<compile_context>
chip_gen: v7x
topology: tpu7x:2x2x1
jax: 0.10.0
libtpu: 0.0.40
codegen_flags: <defaults>
</compile_context>

<pallas_src>
import math

import jax
import jax.numpy as jnp
import numpy as np
from jax import lax
from jax.experimental import pallas as pl
from jax.experimental.pallas import tpu as pltpu

D_MODEL = 600
N_HEAD = 10
D_K = D_MODEL // N_HEAD          # 60
D_K_PAD = 64                     # per-head lane band (64-aligned)
D_PROJ = N_HEAD * D_K_PAD        # 640 = 5 * 128  (lane-dense projected width)
SCALE = 1.0 / math.sqrt(D_K)


# --------------------------- parameter preparation ---------------------------

def _pad_heads_proj(w, b, scale=1.0):
    """Torch Linear weight w:(out,in), bias b:(out,). Returns
    (w_t_pad:(600,640) bf16, b_pad:(1,640) f32) with head h's 60 output
    columns placed in lane band [h*64, h*64+60) and zeros elsewhere."""
    w_t = jnp.asarray(w, jnp.float32).T * scale              # (in, out)
    b = jnp.asarray(b, jnp.float32) * scale                  # (out,)
    w_t = w_t.reshape(D_MODEL, N_HEAD, D_K)
    b = b.reshape(N_HEAD, D_K)
    w_pad = jnp.zeros((D_MODEL, N_HEAD, D_K_PAD), jnp.float32).at[:, :, :D_K].set(w_t)
    b_pad = jnp.zeros((N_HEAD, D_K_PAD), jnp.float32).at[:, :D_K].set(b)
    return (w_pad.reshape(D_MODEL, D_PROJ).astype(jnp.bfloat16),
            b_pad.reshape(1, D_PROJ))


def _split_fc(w, b):
    """fc weight w:(out,in). Returns (N_HEAD, 64, 600) bf16 with head h's 60
    input rows zero-padded to 64, plus bias (1,600) f32."""
    w_t = jnp.asarray(w, jnp.float32).T.reshape(N_HEAD, D_K, D_MODEL)
    w_pad = jnp.zeros((N_HEAD, D_K_PAD, D_MODEL), jnp.float32).at[:, :D_K, :].set(w_t)
    return w_pad.astype(jnp.bfloat16), jnp.asarray(b, jnp.float32).reshape(1, D_MODEL)


def prepare_params(params):
    """One-time prep: pad/reorder heads to 64-wide bands, fold the 1/sqrt(d_k)
    scale into wq & bq, split wfc per head, cast weights to bf16.
    TODO(synk): optional int8 (v5e/v6e) / fp8-e4m3 (v7x) weight quantization
    here would halve the dominant weight HBM->VMEM DMA."""
    wq_t, bq = _pad_heads_proj(params["wq"], params["bq"], scale=SCALE)
    wk_t, bk = _pad_heads_proj(params["wk"], params["bk"])
    wv_t, bv = _pad_heads_proj(params["wv"], params["bv"])
    wfc_h, bfc = _split_fc(params["wfc"], params["bfc"])
    return {"wq_t": wq_t, "bq": bq, "wk_t": wk_t, "bk": bk,
            "wv_t": wv_t, "bv": bv, "wfc_h": wfc_h, "bfc": bfc}


# ------------------------------ fused kernel ---------------------------------

def _make_kernel(bs, l_x):
    M = bs * l_x

    def kernel(x_ref, wq_ref, wk_ref, wv_ref, wfc_ref,
               bq_ref, bk_ref, bv_ref, bfc_ref, o_ref):
        # ---- absorb x.transpose(1,2): (bs, 600, l_x) -> (M, 600) in VMEM ----
        xt = jnp.concatenate([x_ref[b].T for b in range(bs)], axis=0)
        x_bf = xt.astype(jnp.bfloat16)                               # (M, 600)

        # ---- Q/K/V projections into 64-wide head bands (width 640) ----
        # SCALE already folded into wq_ref / bq_ref at prep time.
        q = jnp.dot(x_bf, wq_ref[...], preferred_element_type=jnp.float32) + bq_ref[...]
        k = jnp.dot(x_bf, wk_ref[...], preferred_element_type=jnp.float32) + bk_ref[...]
        v = jnp.dot(x_bf, wv_ref[...], preferred_element_type=jnp.float32) + bv_ref[...]

        # bf16 right after bias add: halves live vregs across the head loop;
        # padded lanes stay exactly zero.
        q3 = q.reshape(bs, l_x, D_PROJ).astype(jnp.bfloat16)
        k3 = k.reshape(bs, l_x, D_PROJ).astype(jnp.bfloat16)
        v3 = v.reshape(bs, l_x, D_PROJ).astype(jnp.bfloat16)

        # ---- per-head attention with per-head fc accumulation ----
        acc = None
        for h in range(N_HEAD):                                      # static unroll
            c = h * D_K_PAD                                          # 64-aligned band
            qh = q3[:, :, c:c + D_K_PAD]                             # (bs, l_x, 64)
            kh = k3[:, :, c:c + D_K_PAD]
            vh = v3[:, :, c:c + D_K_PAD]
            # batched contraction over d_k (padded dims are zero -> exact)
            s = lax.dot_general(qh, kh, (((2,), (2,)), ((0,), (0,))),
                                preferred_element_type=jnp.float32)  # (bs, l_x, l_x)
            s = s - jnp.max(s, axis=-1, keepdims=True)
            p = jnp.exp(s)
            p = p * pl.reciprocal(jnp.sum(p, axis=-1, keepdims=True), approx=True)
            # TODO(synk): nn.Dropout(p=0.1) on attention weights treated as
            # identity (eval/inference mode).
            oh = lax.dot_general(p.astype(jnp.bfloat16), vh,
                                 (((2,), (1,)), ((0,), (0,))),
                                 preferred_element_type=jnp.float32)  # (bs, l_x, 64)
            oh2 = oh.reshape(M, D_K_PAD).astype(jnp.bfloat16)
            d = jnp.dot(oh2, wfc_ref[h],
                        preferred_element_type=jnp.float32)           # (M, 600)
            acc = d if acc is None else acc + d

        out = acc + bfc_ref[...]                                      # (M, 600) f32
        # TODO(synk): final nn.Dropout(p=0.1) treated as identity (eval mode).

        # ---- absorb out.transpose(1,2): write back as (bs, 600, l_x) ----
        out3 = out.reshape(bs, l_x, D_MODEL)
        for b in range(bs):
            o_ref[b] = out3[b].T

    return kernel


# -------------------------------- wrapper ------------------------------------

def mha_forward(x, prep):
    """x: (bs, d_model, l_x) f32 -> (bs, d_model, l_x) f32 (module layout)."""
    bs, dm, l_x = x.shape
    assert dm == D_MODEL
    M = bs * l_x

    def full(shp):
        return pl.BlockSpec(shp, lambda i: (0,) * len(shp))

    # Advisory cost estimate: weight-DMA dominated at small M.
    flops = (3 * 2 * M * D_MODEL * D_PROJ                    # q/k/v projections
             + N_HEAD * 2 * 2 * bs * l_x * l_x * D_K_PAD     # scores + PV
             + N_HEAD * 2 * M * D_K_PAD * D_MODEL)           # per-head fc accumulation
    transcendentals = N_HEAD * bs * l_x * (l_x + 1)          # exp + reciprocal
    bytes_accessed = (3 * D_MODEL * D_PROJ * 2               # wq/wk/wv bf16
                      + N_HEAD * D_K_PAD * D_MODEL * 2       # wfc bf16
                      + (3 * D_PROJ + D_MODEL) * 4           # biases f32
                      + 2 * bs * D_MODEL * l_x * 4)          # x + out f32

    return pl.pallas_call(
        _make_kernel(bs, l_x),
        out_shape=jax.ShapeDtypeStruct((bs, D_MODEL, l_x), jnp.float32),
        grid=(1,),
        in_specs=[
            full((bs, D_MODEL, l_x)),            # x (native layout, no wrapper transpose)
            full((D_MODEL, D_PROJ)),             # wq_t (bf16, head-padded, SCALE folded)
            full((D_MODEL, D_PROJ)),             # wk_t (bf16, head-padded)
            full((D_MODEL, D_PROJ)),             # wv_t (bf16, head-padded)
            full((N_HEAD, D_K_PAD, D_MODEL)),    # wfc per-head split (bf16)
            full((1, D_PROJ)),                   # bq (scaled)
            full((1, D_PROJ)),                   # bk
            full((1, D_PROJ)),                   # bv
            full((1, D_MODEL)),                  # bfc
        ],
        out_specs=full((bs, D_MODEL, l_x)),
        compiler_params=pltpu.CompilerParams(
            dimension_semantics=("arbitrary",)),
        cost_estimate=pl.CostEstimate(flops=int(flops),
                                      transcendentals=int(transcendentals),
                                      bytes_accessed=int(bytes_accessed)),
        # VMEM footprint at M=16 is ~3.3 MB (weights + tiny activations), well
        # under every generation's default scoped limit; when tiling M up for
        # v7x's two cores, re-derive the budget and set vmem_limit_bytes.
        # TODO(synk): when this layer runs repeatedly, prefetch the next call's
        # bf16 weights via a cross-pallas_call DMA future (P10) to hide the
        # dominant weight HBM->VMEM load.
    )(x, prep["wq_t"], prep["wk_t"], prep["wv_t"], prep["wfc_h"],
      prep["bq"], prep["bk"], prep["bv"], prep["bfc"])


# --------------------------- pure-JAX reference -------------------------------

def ref_forward(x, p):
    bs, _, l_x = x.shape
    xt = jnp.transpose(x, (0, 2, 1))
    q = xt @ p["wq"].T + p["bq"]
    k = xt @ p["wk"].T + p["bk"]
    v = xt @ p["wv"].T + p["bv"]

    def to_heads(t):
        return (t.reshape(bs, l_x, N_HEAD, D_K)
                 .transpose(2, 0, 1, 3)
                 .reshape(N_HEAD * bs, l_x, D_K))

    qh, kh, vh = to_heads(q), to_heads(k), to_heads(v)
    attn = jnp.einsum("bqd,bkd->bqk", qh, kh) * SCALE
    attn = jax.nn.softmax(attn, axis=2)
    out = jnp.einsum("bqk,bkd->bqd", attn, vh)
    out = (out.reshape(N_HEAD, bs, l_x, D_K)
              .transpose(1, 2, 0, 3)
              .reshape(bs, l_x, D_MODEL))
    out = out @ p["wfc"].T + p["bfc"]
    return out.transpose(0, 2, 1)


# ---------------------------------- main --------------------------------------

if __name__ == "__main__":
    bs, l_x = 2, 8

    key = jax.random.PRNGKey(0)
    keys = jax.random.split(key, 9)

    def init_w(k, shape, scale=0.02):
        return jax.random.normal(k, shape, jnp.float32) * scale

    params = {
        "wq": init_w(keys[0], (D_MODEL, D_MODEL)), "bq": init_w(keys[1], (D_MODEL,)),
        "wk": init_w(keys[2], (D_MODEL, D_MODEL)), "bk": init_w(keys[3], (D_MODEL,)),
        "wv": init_w(keys[4], (D_MODEL, D_MODEL)), "bv": init_w(keys[5], (D_MODEL,)),
        "wfc": init_w(keys[6], (D_MODEL, D_MODEL)), "bfc": init_w(keys[7], (D_MODEL,)),
    }
    x = jax.random.normal(keys[8], (bs, D_MODEL, l_x), jnp.float32)

    prep = prepare_params(params)      # one-time pad/transpose/scale-fold/bf16 cast
    fwd = jax.jit(mha_forward)

    out = jax.block_until_ready(fwd(x, prep))
    assert out.shape == (bs, D_MODEL, l_x), out.shape

    ref = jax.block_until_ready(ref_forward(x, params))
    # bf16 weights/activations + approx reciprocal in softmax are deliberate
    # deviations from the f32 PyTorch module; 2e-2 tolerance covers them.
    if not np.allclose(np.asarray(out), np.asarray(ref), rtol=2e-2, atol=2e-2):
        raise AssertionError(
            "mismatch vs reference, max abs diff = "
            f"{np.abs(np.asarray(out) - np.asarray(ref)).max()}")

    print("KERNEL_OK")
</pallas_src>

<mosaic_0001>
module attributes {stable_mosaic.version = 11 : i64} {
  func.func @kernel(%arg0: i32, %arg1: memref<2x600x8xf32, #tpu.memory_space<vmem>>, %arg2: memref<600x640xbf16, #tpu.memory_space<vmem>>, %arg3: memref<600x640xbf16, #tpu.memory_space<vmem>>, %arg4: memref<600x640xbf16, #tpu.memory_space<vmem>>, %arg5: memref<10x64x600xbf16, #tpu.memory_space<vmem>>, %arg6: memref<1x640xf32, #tpu.memory_space<vmem>>, %arg7: memref<1x640xf32, #tpu.memory_space<vmem>>, %arg8: memref<1x640xf32, #tpu.memory_space<vmem>>, %arg9: memref<1x600xf32, #tpu.memory_space<vmem>>, %arg10: memref<2x600x8xf32, #tpu.memory_space<vmem>>) attributes {dimension_semantics = [#tpu.dimension_semantics<arbitrary>], iteration_bounds = array<i64: 1>, scalar_prefetch = 0 : i64, scratch_operands = 0 : i64, tpu.core_type = #tpu.core_type<tc>, window_params = [{pipeline_mode = #tpu.pipeline_mode<synchronous>, transform_indices = @transform_0, window_bounds = array<i64: 2, 600, 8>}, {pipeline_mode = #tpu.pipeline_mode<synchronous>, transform_indices = @transform_1, window_bounds = array<i64: 600, 640>}, {pipeline_mode = #tpu.pipeline_mode<synchronous>, transform_indices = @transform_2, window_bounds = array<i64: 600, 640>}, {pipeline_mode = #tpu.pipeline_mode<synchronous>, transform_indices = @transform_3, window_bounds = array<i64: 600, 640>}, {pipeline_mode = #tpu.pipeline_mode<synchronous>, transform_indices = @transform_4, window_bounds = array<i64: 10, 64, 600>}, {pipeline_mode = #tpu.pipeline_mode<synchronous>, transform_indices = @transform_5, window_bounds = array<i64: 1, 640>}, {pipeline_mode = #tpu.pipeline_mode<synchronous>, transform_indices = @transform_6, window_bounds = array<i64: 1, 640>}, {pipeline_mode = #tpu.pipeline_mode<synchronous>, transform_indices = @transform_7, window_bounds = array<i64: 1, 640>}, {pipeline_mode = #tpu.pipeline_mode<synchronous>, transform_indices = @transform_8, window_bounds = array<i64: 1, 600>}, {pipeline_mode = #tpu.pipeline_mode<synchronous>, transform_indices = @transform_9, window_bounds = array<i64: 2, 600, 8>}]} {
    %c0 = arith.constant 0 : index
    %c0_0 = arith.constant 0 : index
    %c0_1 = arith.constant 0 : index
    %0 = vector.load %arg1[%c0, %c0_0, %c0_1] : memref<2x600x8xf32, #tpu.memory_space<vmem>>, vector<1x600x8xf32>
    %1 = vector.shape_cast %0 : vector<1x600x8xf32> to vector<600x8xf32>
    %2 = tpu.transpose %1, [1, 0] : vector<600x8xf32> -> vector<8x600xf32>
    %c1 = arith.constant 1 : index
    %c0_2 = arith.constant 0 : index
    %c0_3 = arith.constant 0 : index
    %3 = vector.load %arg1[%c1, %c0_2, %c0_3] : memref<2x600x8xf32, #tpu.memory_space<vmem>>, vector<1x600x8xf32>
    %4 = vector.shape_cast %3 : vector<1x600x8xf32> to vector<600x8xf32>
    %5 = tpu.transpose %4, [1, 0] : vector<600x8xf32> -> vector<8x600xf32>
    %6 = tpu.concatenate %2, %5 in 0 : vector<8x600xf32>, vector<8x600xf32> -> vector<16x600xf32>
    %7 = arith.truncf %6 : vector<16x600xf32> to vector<16x600xbf16>
    %c0_4 = arith.constant 0 : index
    %c0_5 = arith.constant 0 : index
    %8 = vector.load %arg2[%c0_4, %c0_5] : memref<600x640xbf16, #tpu.memory_space<vmem>>, vector<600x640xbf16>
    %cst = arith.constant dense<0.000000e+00> : vector<16x640xf32>
    %9 = tpu.matmul %7, %8, %cst {dimension_numbers = #tpu.dot_dimension_numbers<[1], [0], [0], [1], [0, 0, 1, 1], [], []>} : vector<16x600xbf16>, vector<600x640xbf16>, vector<16x640xf32> -> vector<16x640xf32>
    %c0_6 = arith.constant 0 : index
    %c0_7 = arith.constant 0 : index
    %10 = vector.load %arg6[%c0_6, %c0_7] : memref<1x640xf32, #tpu.memory_space<vmem>>, vector<1x640xf32>
    %11 = vector.broadcast %10 : vector<1x640xf32> to vector<16x640xf32>
    %12 = arith.addf %9, %11 : vector<16x640xf32>
    %c0_8 = arith.constant 0 : index
    %c0_9 = arith.constant 0 : index
    %13 = vector.load %arg3[%c0_8, %c0_9] : memref<600x640xbf16, #tpu.memory_space<vmem>>, vector<600x640xbf16>
    %cst_10 = arith.constant dense<0.000000e+00> : vector<16x640xf32>
    %14 = tpu.matmul %7, %13, %cst_10 {dimension_numbers = #tpu.dot_dimension_numbers<[1], [0], [0], [1], [0, 0, 1, 1], [], []>} : vector<16x600xbf16>, vector<600x640xbf16>, vector<16x640xf32> -> vector<16x640xf32>
    %c0_11 = arith.constant 0 : index
    %c0_12 = arith.constant 0 : index
    %15 = vector.load %arg7[%c0_11, %c0_12] : memref<1x640xf32, #tpu.memory_space<vmem>>, vector<1x640xf32>
    %16 = vector.broadcast %15 : vector<1x640xf32> to vector<16x640xf32>
    %17 = arith.addf %14, %16 : vector<16x640xf32>
    %c0_13 = arith.constant 0 : index
    %c0_14 = arith.constant 0 : index
    %18 = vector.load %arg4[%c0_13, %c0_14] : memref<600x640xbf16, #tpu.memory_space<vmem>>, vector<600x640xbf16>
    %cst_15 = arith.constant dense<0.000000e+00> : vector<16x640xf32>
    %19 = tpu.matmul %7, %18, %cst_15 {dimension_numbers = #tpu.dot_dimension_numbers<[1], [0], [0], [1], [0, 0, 1, 1], [], []>} : vector<16x600xbf16>, vector<600x640xbf16>, vector<16x640xf32> -> vector<16x640xf32>
    %c0_16 = arith.constant 0 : index
    %c0_17 = arith.constant 0 : index
    %20 = vector.load %arg8[%c0_16, %c0_17] : memref<1x640xf32, #tpu.memory_space<vmem>>, vector<1x640xf32>
    %21 = vector.broadcast %20 : vector<1x640xf32> to vector<16x640xf32>
    %22 = arith.addf %19, %21 : vector<16x640xf32>
    %23 = vector.shape_cast %12 : vector<16x640xf32> to vector<2x8x640xf32>
    %24 = arith.truncf %23 : vector<2x8x640xf32> to vector<2x8x640xbf16>
    %25 = vector.shape_cast %17 : vector<16x640xf32> to vector<2x8x640xf32>
    %26 = arith.truncf %25 : vector<2x8x640xf32> to vector<2x8x640xbf16>
    %27 = vector.shape_cast %22 : vector<16x640xf32> to vector<2x8x640xf32>
    %28 = arith.truncf %27 : vector<2x8x640xf32> to vector<2x8x640xbf16>
    %29 = vector.extract_strided_slice %24 {offsets = [0, 0, 0], sizes = [2, 8, 64], strides = [1, 1, 1]} : vector<2x8x640xbf16> to vector<2x8x64xbf16>
    %30 = vector.extract_strided_slice %26 {offsets = [0, 0, 0], sizes = [2, 8, 64], strides = [1, 1, 1]} : vector<2x8x640xbf16> to vector<2x8x64xbf16>
    %31 = vector.extract_strided_slice %28 {offsets = [0, 0, 0], sizes = [2, 8, 64], strides = [1, 1, 1]} : vector<2x8x640xbf16> to vector<2x8x64xbf16>
    %cst_18 = arith.constant dense<0.000000e+00> : vector<2x8x8xf32>
    %32 = tpu.matmul %29, %30, %cst_18 {dimension_numbers = #tpu.dot_dimension_numbers<[2], [2], [1], [1], [0, 0, 0, 1, 1, 1], [0], [0]>} : vector<2x8x64xbf16>, vector<2x8x64xbf16>, vector<2x8x8xf32> -> vector<2x8x8xf32>
    %cst_19 = arith.constant dense<0xFF800000> : vector<2x8xf32>
    %33 = vector.multi_reduction <maximumf>, %32, %cst_19 [2] : vector<2x8x8xf32> to vector<2x8xf32>
    %34 = vector.shape_cast %33 : vector<2x8xf32> to vector<2x8x1xf32>
    %35 = vector.broadcast %34 : vector<2x8x1xf32> to vector<2x8x8xf32>
    %36 = arith.subf %32, %35 : vector<2x8x8xf32>
    %37 = math.exp %36 : vector<2x8x8xf32>
    %cst_20 = arith.constant dense<0.000000e+00> : vector<2x8xf32>
    %38 = vector.multi_reduction <add>, %37, %cst_20 [2] : vector<2x8x8xf32> to vector<2x8xf32>
    %39 = vector.shape_cast %38 : vector<2x8xf32> to vector<2x8x1xf32>
    %40 = tpu.reciprocal %39 {approx = true} : vector<2x8x1xf32> -> vector<2x8x1xf32>
    %41 = vector.broadcast %40 : vector<2x8x1xf32> to vector<2x8x8xf32>
    %42 = arith.mulf %37, %41 : vector<2x8x8xf32>
    %43 = arith.truncf %42 : vector<2x8x8xf32> to vector<2x8x8xbf16>
    %cst_21 = arith.constant dense<0.000000e+00> : vector<2x8x64xf32>
    %44 = tpu.matmul %43, %31, %cst_21 {dimension_numbers = #tpu.dot_dimension_numbers<[2], [1], [1], [2], [0, 0, 0, 1, 1, 2], [0], [0]>} : vector<2x8x8xbf16>, vector<2x8x64xbf16>, vector<2x8x64xf32> -> vector<2x8x64xf32>
    %45 = vector.shape_cast %44 : vector<2x8x64xf32> to vector<16x64xf32>
    %46 = arith.truncf %45 : vector<16x64xf32> to vector<16x64xbf16>
    %c0_22 = arith.constant 0 : index
    %c0_23 = arith.constant 0 : index
    %c0_24 = arith.constant 0 : index
    %47 = vector.load %arg5[%c0_22, %c0_23, %c0_24] : memref<10x64x600xbf16, #tpu.memory_space<vmem>>, vector<1x64x600xbf16>
    %48 = vector.shape_cast %47 : vector<1x64x600xbf16> to vector<64x600xbf16>
    %cst_25 = arith.constant dense<0.000000e+00> : vector<16x600xf32>
    %49 = tpu.matmul %46, %48, %cst_25 {dimension_numbers = #tpu.dot_dimension_numbers<[1], [0], [0], [1], [0, 0, 1, 1], [], []>} : vector<16x64xbf16>, vector<64x600xbf16>, vector<16x600xf32> -> vector<16x600xf32>
    %50 = vector.extract_strided_slice %24 {offsets = [0, 0, 64], sizes = [2, 8, 64], strides = [1, 1, 1]} : vector<2x8x640xbf16> to vector<2x8x64xbf16>
    %51 = vector.extract_strided_slice %26 {offsets = [0, 0, 64], sizes = [2, 8, 64], strides = [1, 1, 1]} : vector<2x8x640xbf16> to vector<2x8x64xbf16>
    %52 = vector.extract_strided_slice %28 {offsets = [0, 0, 64], sizes = [2, 8, 64], strides = [1, 1, 1]} : vector<2x8x640xbf16> to vector<2x8x64xbf16>
    %cst_26 = arith.constant dense<0.000000e+00> : vector<2x8x8xf32>
    %53 = tpu.matmul %50, %51, %cst_26 {dimension_numbers = #tpu.dot_dimension_numbers<[2], [2], [1], [1], [0, 0, 0, 1, 1, 1], [0], [0]>} : vector<2x8x64xbf16>, vector<2x8x64xbf16>, vector<2x8x8xf32> -> vector<2x8x8xf32>
    %cst_27 = arith.constant dense<0xFF800000> : vector<2x8xf32>
    %54 = vector.multi_reduction <maximumf>, %53, %cst_27 [2] : vector<2x8x8xf32> to vector<2x8xf32>
    %55 = vector.shape_cast %54 : vector<2x8xf32> to vector<2x8x1xf32>
    %56 = vector.broadcast %55 : vector<2x8x1xf32> to vector<2x8x8xf32>
    %57 = arith.subf %53, %56 : vector<2x8x8xf32>
    %58 = math.exp %57 : vector<2x8x8xf32>
    %cst_28 = arith.constant dense<0.000000e+00> : vector<2x8xf32>
    %59 = vector.multi_reduction <add>, %58, %cst_28 [2] : vector<2x8x8xf32> to vector<2x8xf32>
    %60 = vector.shape_cast %59 : vector<2x8xf32> to vector<2x8x1xf32>
    %61 = tpu.reciprocal %60 {approx = true} : vector<2x8x1xf32> -> vector<2x8x1xf32>
    %62 = vector.broadcast %61 : vector<2x8x1xf32> to vector<2x8x8xf32>
    %63 = arith.mulf %58, %62 : vector<2x8x8xf32>
    %64 = arith.truncf %63 : vector<2x8x8xf32> to vector<2x8x8xbf16>
    %cst_29 = arith.constant dense<0.000000e+00> : vector<2x8x64xf32>
    %65 = tpu.matmul %64, %52, %cst_29 {dimension_numbers = #tpu.dot_dimension_numbers<[2], [1], [1], [2], [0, 0, 0, 1, 1, 2], [0], [0]>} : vector<2x8x8xbf16>, vector<2x8x64xbf16>, vector<2x8x64xf32> -> vector<2x8x64xf32>
    %66 = vector.shape_cast %65 : vector<2x8x64xf32> to vector<16x64xf32>
    %67 = arith.truncf %66 : vector<16x64xf32> to vector<16x64xbf16>
    %c1_30 = arith.constant 1 : index
    %c0_31 = arith.constant 0 : index
    %c0_32 = arith.constant 0 : index
    %68 = vector.load %arg5[%c1_30, %c0_31, %c0_32] : memref<10x64x600xbf16, #tpu.memory_space<vmem>>, vector<1x64x600xbf16>
    %69 = vector.shape_cast %68 : vector<1x64x600xbf16> to vector<64x600xbf16>
    %cst_33 = arith.constant dense<0.000000e+00> : vector<16x600xf32>
    %70 = tpu.matmul %67, %69, %cst_33 {dimension_numbers = #tpu.dot_dimension_numbers<[1], [0], [0], [1], [0, 0, 1, 1], [], []>} : vector<16x64xbf16>, vector<64x600xbf16>, vector<16x600xf32> -> vector<16x600xf32>
    %71 = arith.addf %49, %70 : vector<16x600xf32>
    %72 = vector.extract_strided_slice %24 {offsets = [0, 0, 128], sizes = [2, 8, 64], strides = [1, 1, 1]} : vector<2x8x640xbf16> to vector<2x8x64xbf16>
    %73 = vector.extract_strided_slice %26 {offsets = [0, 0, 128], sizes = [2, 8, 64], strides = [1, 1, 1]} : vector<2x8x640xbf16> to vector<2x8x64xbf16>
    %74 = vector.extract_strided_slice %28 {offsets = [0, 0, 128], sizes = [2, 8, 64], strides = [1, 1, 1]} : vector<2x8x640xbf16> to vector<2x8x64xbf16>
    %cst_34 = arith.constant dense<0.000000e+00> : vector<2x8x8xf32>
    %75 = tpu.matmul %72, %73, %cst_34 {dimension_numbers = #tpu.dot_dimension_numbers<[2], [2], [1], [1], [0, 0, 0, 1, 1, 1], [0], [0]>} : vector<2x8x64xbf16>, vector<2x8x64xbf16>, vector<2x8x8xf32> -> vector<2x8x8xf32>
    %cst_35 = arith.constant dense<0xFF800000> : vector<2x8xf32>
    %76 = vector.multi_reduction <maximumf>, %75, %cst_35 [2] : vector<2x8x8xf32> to vector<2x8xf32>
    %77 = vector.shape_cast %76 : vector<2x8xf32> to vector<2x8x1xf32>
    %78 = vector.broadcast %77 : vector<2x8x1xf32> to vector<2x8x8xf32>
    %79 = arith.subf %75, %78 : vector<2x8x8xf32>
    %80 = math.exp %79 : vector<2x8x8xf32>
    %cst_36 = arith.constant dense<0.000000e+00> : vector<2x8xf32>
    %81 = vector.multi_reduction <add>, %80, %cst_36 [2] : vector<2x8x8xf32> to vector<2x8xf32>
    %82 = vector.shape_cast %81 : vector<2x8xf32> to vector<2x8x1xf32>
    %83 = tpu.reciprocal %82 {approx = true} : vector<2x8x1xf32> -> vector<2x8x1xf32>
    %84 = vector.broadcast %83 : vector<2x8x1xf32> to vector<2x8x8xf32>
    %85 = arith.mulf %80, %84 : vector<2x8x8xf32>
    %86 = arith.truncf %85 : vector<2x8x8xf32> to vector<2x8x8xbf16>
    %cst_37 = arith.constant dense<0.000000e+00> : vector<2x8x64xf32>
    %87 = tpu.matmul %86, %74, %cst_37 {dimension_numbers = #tpu.dot_dimension_numbers<[2], [1], [1], [2], [0, 0, 0, 1, 1, 2], [0], [0]>} : vector<2x8x8xbf16>, vector<2x8x64xbf16>, vector<2x8x64xf32> -> vector<2x8x64xf32>
    %88 = vector.shape_cast %87 : vector<2x8x64xf32> to vector<16x64xf32>
    %89 = arith.truncf %88 : vector<16x64xf32> to vector<16x64xbf16>
    %c2 = arith.constant 2 : index
    %c0_38 = arith.constant 0 : index
    %c0_39 = arith.constant 0 : index
    %90 = vector.load %arg5[%c2, %c0_38, %c0_39] : memref<10x64x600xbf16, #tpu.memory_space<vmem>>, vector<1x64x600xbf16>
    %91 = vector.shape_cast %90 : vector<1x64x600xbf16> to vector<64x600xbf16>
    %cst_40 = arith.constant dense<0.000000e+00> : vector<16x600xf32>
    %92 = tpu.matmul %89, %91, %cst_40 {dimension_numbers = #tpu.dot_dimension_numbers<[1], [0], [0], [1], [0, 0, 1, 1], [], []>} : vector<16x64xbf16>, vector<64x600xbf16>, vector<16x600xf32> -> vector<16x600xf32>
    %93 = arith.addf %71, %92 : vector<16x600xf32>
    %94 = vector.extract_strided_slice %24 {offsets = [0, 0, 192], sizes = [2, 8, 64], strides = [1, 1, 1]} : vector<2x8x640xbf16> to vector<2x8x64xbf16>
    %95 = vector.extract_strided_slice %26 {offsets = [0, 0, 192], sizes = [2, 8, 64], strides = [1, 1, 1]} : vector<2x8x640xbf16> to vector<2x8x64xbf16>
    %96 = vector.extract_strided_slice %28 {offsets = [0, 0, 192], sizes = [2, 8, 64], strides = [1, 1, 1]} : vector<2x8x640xbf16> to vector<2x8x64xbf16>
    %cst_41 = arith.constant dense<0.000000e+00> : vector<2x8x8xf32>
    %97 = tpu.matmul %94, %95, %cst_41 {dimension_numbers = #tpu.dot_dimension_numbers<[2], [2], [1], [1], [0, 0, 0, 1, 1, 1], [0], [0]>} : vector<2x8x64xbf16>, vector<2x8x64xbf16>, vector<2x8x8xf32> -> vector<2x8x8xf32>
    %cst_42 = arith.constant dense<0xFF800000> : vector<2x8xf32>
    %98 = vector.multi_reduction <maximumf>, %97, %cst_42 [2] : vector<2x8x8xf32> to vector<2x8xf32>
    %99 = vector.shape_cast %98 : vector<2x8xf32> to vector<2x8x1xf32>
    %100 = vector.broadcast %99 : vector<2x8x1xf32> to vector<2x8x8xf32>
    %101 = arith.subf %97, %100 : vector<2x8x8xf32>
    %102 = math.exp %101 : vector<2x8x8xf32>
    %cst_43 = arith.constant dense<0.000000e+00> : vector<2x8xf32>
    %103 = vector.multi_reduction <add>, %102, %cst_43 [2] : vector<2x8x8xf32> to vector<2x8xf32>
    %104 = vector.shape_cast %103 : vector<2x8xf32> to vector<2x8x1xf32>
    %105 = tpu.reciprocal %104 {approx = true} : vector<2x8x1xf32> -> vector<2x8x1xf32>
    %106 = vector.broadcast %105 : vector<2x8x1xf32> to vector<2x8x8xf32>
    %107 = arith.mulf %102, %106 : vector<2x8x8xf32>
    %108 = arith.truncf %107 : vector<2x8x8xf32> to vector<2x8x8xbf16>
    %cst_44 = arith.constant dense<0.000000e+00> : vector<2x8x64xf32>
    %109 = tpu.matmul %108, %96, %cst_44 {dimension_numbers = #tpu.dot_dimension_numbers<[2], [1], [1], [2], [0, 0, 0, 1, 1, 2], [0], [0]>} : vector<2x8x8xbf16>, vector<2x8x64xbf16>, vector<2x8x64xf32> -> vector<2x8x64xf32>
    %110 = vector.shape_cast %109 : vector<2x8x64xf32> to vector<16x64xf32>
    %111 = arith.truncf %110 : vector<16x64xf32> to vector<16x64xbf16>
    %c3 = arith.constant 3 : index
    %c0_45 = arith.constant 0 : index
    %c0_46 = arith.constant 0 : index
    %112 = vector.load %arg5[%c3, %c0_45, %c0_46] : memref<10x64x600xbf16, #tpu.memory_space<vmem>>, vector<1x64x600xbf16>
    %113 = vector.shape_cast %112 : vector<1x64x600xbf16> to vector<64x600xbf16>
    %cst_47 = arith.constant dense<0.000000e+00> : vector<16x600xf32>
    %114 = tpu.matmul %111, %113, %cst_47 {dimension_numbers = #tpu.dot_dimension_numbers<[1], [0], [0], [1], [0, 0, 1, 1], [], []>} : vector<16x64xbf16>, vector<64x600xbf16>, vector<16x600xf32> -> vector<16x600xf32>
    %115 = arith.addf %93, %114 : vector<16x600xf32>
    %116 = vector.extract_strided_slice %24 {offsets = [0, 0, 256], sizes = [2, 8, 64], strides = [1, 1, 1]} : vector<2x8x640xbf16> to vector<2x8x64xbf16>
    %117 = vector.extract_strided_slice %26 {offsets = [0, 0, 256], sizes = [2, 8, 64], strides = [1, 1, 1]} : vector<2x8x640xbf16> to vector<2x8x64xbf16>
    %118 = vector.extract_strided_slice %28 {offsets = [0, 0, 256], sizes = [2, 8, 64], strides = [1, 1, 1]} : vector<2x8x640xbf16> to vector<2x8x64xbf16>
    %cst_48 = arith.constant dense<0.000000e+00> : vector<2x8x8xf32>
    %119 = tpu.matmul %116, %117, %cst_48 {dimension_numbers = #tpu.dot_dimension_numbers<[2], [2], [1], [1], [0, 0, 0, 1, 1, 1], [0], [0]>} : vector<2x8x64xbf16>, vector<2x8x64xbf16>, vector<2x8x8xf32> -> vector<2x8x8xf32>
    %cst_49 = arith.constant dense<0xFF800000> : vector<2x8xf32>
    %120 = vector.multi_reduction <maximumf>, %119, %cst_49 [2] : vector<2x8x8xf32> to vector<2x8xf32>
    %121 = vector.shape_cast %120 : vector<2x8xf32> to vector<2x8x1xf32>
    %122 = vector.broadcast %121 : vector<2x8x1xf32> to vector<2x8x8xf32>
    %123 = arith.subf %119, %122 : vector<2x8x8xf32>
    %124 = math.exp %123 : vector<2x8x8xf32>
    %cst_50 = arith.constant dense<0.000000e+00> : vector<2x8xf32>
    %125 = vector.multi_reduction <add>, %124, %cst_50 [2] : vector<2x8x8xf32> to vector<2x8xf32>
    %126 = vector.shape_cast %125 : vector<2x8xf32> to vector<2x8x1xf32>
    %127 = tpu.reciprocal %126 {approx = true} : vector<2x8x1xf32> -> vector<2x8x1xf32>
    %128 = vector.broadcast %127 : vector<2x8x1xf32> to vector<2x8x8xf32>
    %129 = arith.mulf %124, %128 : vector<2x8x8xf32>
    %130 = arith.truncf %129 : vector<2x8x8xf32> to vector<2x8x8xbf16>
    %cst_51 = arith.constant dense<0.000000e+00> : vector<2x8x64xf32>
    %131 = tpu.matmul %130, %118, %cst_51 {dimension_numbers = #tpu.dot_dimension_numbers<[2], [1], [1], [2], [0, 0, 0, 1, 1, 2], [0], [0]>} : vector<2x8x8xbf16>, vector<2x8x64xbf16>, vector<2x8x64xf32> -> vector<2x8x64xf32>
    %132 = vector.shape_cast %131 : vector<2x8x64xf32> to vector<16x64xf32>
    %133 = arith.truncf %132 : vector<16x64xf32> to vector<16x64xbf16>
    %c4 = arith.constant 4 : index
    %c0_52 = arith.constant 0 : index
    %c0_53 = arith.constant 0 : index
    %134 = vector.load %arg5[%c4, %c0_52, %c0_53] : memref<10x64x600xbf16, #tpu.memory_space<vmem>>, vector<1x64x600xbf16>
    %135 = vector.shape_cast %134 : vector<1x64x600xbf16> to vector<64x600xbf16>
    %cst_54 = arith.constant dense<0.000000e+00> : vector<16x600xf32>
    %136 = tpu.matmul %133, %135, %cst_54 {dimension_numbers = #tpu.dot_dimension_numbers<[1], [0], [0], [1], [0, 0, 1, 1], [], []>} : vector<16x64xbf16>, vector<64x600xbf16>, vector<16x600xf32> -> vector<16x600xf32>
    %137 = arith.addf %115, %136 : vector<16x600xf32>
    %138 = vector.extract_strided_slice %24 {offsets = [0, 0, 320], sizes = [2, 8, 64], strides = [1, 1, 1]} : vector<2x8x640xbf16> to vector<2x8x64xbf16>
    %139 = vector.extract_strided_slice %26 {offsets = [0, 0, 320], sizes = [2, 8, 64], strides = [1, 1, 1]} : vector<2x8x640xbf16> to vector<2x8x64xbf16>
    %140 = vector.extract_strided_slice %28 {offsets = [0, 0, 320], sizes = [2, 8, 64], strides = [1, 1, 1]} : vector<2x8x640xbf16> to vector<2x8x64xbf16>
    %cst_55 = arith.constant dense<0.000000e+00> : vector<2x8x8xf32>
    %141 = tpu.matmul %138, %139, %cst_55 {dimension_numbers = #tpu.dot_dimension_numbers<[2], [2], [1], [1], [0, 0, 0, 1, 1, 1], [0], [0]>} : vector<2x8x64xbf16>, vector<2x8x64xbf16>, vector<2x8x8xf32> -> vector<2x8x8xf32>
    %cst_56 = arith.constant dense<0xFF800000> : vector<2x8xf32>
    %142 = vector.multi_reduction <maximumf>, %141, %cst_56 [2] : vector<2x8x8xf32> to vector<2x8xf32>
    %143 = vector.shape_cast %142 : vector<2x8xf32> to vector<2x8x1xf32>
    %144 = vector.broadcast %143 : vector<2x8x1xf32> to vector<2x8x8xf32>
    %145 = arith.subf %141, %144 : vector<2x8x8xf32>
    %146 = math.exp %145 : vector<2x8x8xf32>
    %cst_57 = arith.constant dense<0.000000e+00> : vector<2x8xf32>
    %147 = vector.multi_reduction <add>, %146, %cst_57 [2] : vector<2x8x8xf32> to vector<2x8xf32>
    %148 = vector.shape_cast %147 : vector<2x8xf32> to vector<2x8x1xf32>
    %149 = tpu.reciprocal %148 {approx = true} : vector<2x8x1xf32> -> vector<2x8x1xf32>
    %150 = vector.broadcast %149 : vector<2x8x1xf32> to vector<2x8x8xf32>
    %151 = arith.mulf %146, %150 : vector<2x8x8xf32>
    %152 = arith.truncf %151 : vector<2x8x8xf32> to vector<2x8x8xbf16>
    %cst_58 = arith.constant dense<0.000000e+00> : vector<2x8x64xf32>
    %153 = tpu.matmul %152, %140, %cst_58 {dimension_numbers = #tpu.dot_dimension_numbers<[2], [1], [1], [2], [0, 0, 0, 1, 1, 2], [0], [0]>} : vector<2x8x8xbf16>, vector<2x8x64xbf16>, vector<2x8x64xf32> -> vector<2x8x64xf32>
    %154 = vector.shape_cast %153 : vector<2x8x64xf32> to vector<16x64xf32>
    %155 = arith.truncf %154 : vector<16x64xf32> to vector<16x64xbf16>
    %c5 = arith.constant 5 : index
    %c0_59 = arith.constant 0 : index
    %c0_60 = arith.constant 0 : index
    %156 = vector.load %arg5[%c5, %c0_59, %c0_60] : memref<10x64x600xbf16, #tpu.memory_space<vmem>>, vector<1x64x600xbf16>
    %157 = vector.shape_cast %156 : vector<1x64x600xbf16> to vector<64x600xbf16>
    %cst_61 = arith.constant dense<0.000000e+00> : vector<16x600xf32>
    %158 = tpu.matmul %155, %157, %cst_61 {dimension_numbers = #tpu.dot_dimension_numbers<[1], [0], [0], [1], [0, 0, 1, 1], [], []>} : vector<16x64xbf16>, vector<64x600xbf16>, vector<16x600xf32> -> vector<16x600xf32>
    %159 = arith.addf %137, %158 : vector<16x600xf32>
    %160 = vector.extract_strided_slice %24 {offsets = [0, 0, 384], sizes = [2, 8, 64], strides = [1, 1, 1]} : vector<2x8x640xbf16> to vector<2x8x64xbf16>
    %161 = vector.extract_strided_slice %26 {offsets = [0, 0, 384], sizes = [2, 8, 64], strides = [1, 1, 1]} : vector<2x8x640xbf16> to vector<2x8x64xbf16>
    %162 = vector.extract_strided_slice %28 {offsets = [0, 0, 384], sizes = [2, 8, 64], strides = [1, 1, 1]} : vector<2x8x640xbf16> to vector<2x8x64xbf16>
    %cst_62 = arith.constant dense<0.000000e+00> : vector<2x8x8xf32>
    %163 = tpu.matmul %160, %161, %cst_62 {dimension_numbers = #tpu.dot_dimension_numbers<[2], [2], [1], [1], [0, 0, 0, 1, 1, 1], [0], [0]>} : vector<2x8x64xbf16>, vector<2x8x64xbf16>, vector<2x8x8xf32> -> vector<2x8x8xf32>
    %cst_63 = arith.constant dense<0xFF800000> : vector<2x8xf32>
    %164 = vector.multi_reduction <maximumf>, %163, %cst_63 [2] : vector<2x8x8xf32> to vector<2x8xf32>
    %165 = vector.shape_cast %164 : vector<2x8xf32> to vector<2x8x1xf32>
    %166 = vector.broadcast %165 : vector<2x8x1xf32> to vector<2x8x8xf32>
    %167 = arith.subf %163, %166 : vector<2x8x8xf32>
    %168 = math.exp %167 : vector<2x8x8xf32>
    %cst_64 = arith.constant dense<0.000000e+00> : vector<2x8xf32>
    %169 = vector.multi_reduction <add>, %168, %cst_64 [2] : vector<2x8x8xf32> to vector<2x8xf32>
    %170 = vector.shape_cast %169 : vector<2x8xf32> to vector<2x8x1xf32>
    %171 = tpu.reciprocal %170 {approx = true} : vector<2x8x1xf32> -> vector<2x8x1xf32>
    %172 = vector.broadcast %171 : vector<2x8x1xf32> to vector<2x8x8xf32>
    %173 = arith.mulf %168, %172 : vector<2x8x8xf32>
    %174 = arith.truncf %173 : vector<2x8x8xf32> to vector<2x8x8xbf16>
    %cst_65 = arith.constant dense<0.000000e+00> : vector<2x8x64xf32>
    %175 = tpu.matmul %174, %162, %cst_65 {dimension_numbers = #tpu.dot_dimension_numbers<[2], [1], [1], [2], [0, 0, 0, 1, 1, 2], [0], [0]>} : vector<2x8x8xbf16>, vector<2x8x64xbf16>, vector<2x8x64xf32> -> vector<2x8x64xf32>
    %176 = vector.shape_cast %175 : vector<2x8x64xf32> to vector<16x64xf32>
    %177 = arith.truncf %176 : vector<16x64xf32> to vector<16x64xbf16>
    %c6 = arith.constant 6 : index
    %c0_66 = arith.constant 0 : index
    %c0_67 = arith.constant 0 : index
    %178 = vector.load %arg5[%c6, %c0_66, %c0_67] : memref<10x64x600xbf16, #tpu.memory_space<vmem>>, vector<1x64x600xbf16>
    %179 = vector.shape_cast %178 : vector<1x64x600xbf16> to vector<64x600xbf16>
    %cst_68 = arith.constant dense<0.000000e+00> : vector<16x600xf32>
    %180 = tpu.matmul %177, %179, %cst_68 {dimension_numbers = #tpu.dot_dimension_numbers<[1], [0], [0], [1], [0, 0, 1, 1], [], []>} : vector<16x64xbf16>, vector<64x600xbf16>, vector<16x600xf32> -> vector<16x600xf32>
    %181 = arith.addf %159, %180 : vector<16x600xf32>
    %182 = vector.extract_strided_slice %24 {offsets = [0, 0, 448], sizes = [2, 8, 64], strides = [1, 1, 1]} : vector<2x8x640xbf16> to vector<2x8x64xbf16>
    %183 = vector.extract_strided_slice %26 {offsets = [0, 0, 448], sizes = [2, 8, 64], strides = [1, 1, 1]} : vector<2x8x640xbf16> to vector<2x8x64xbf16>
    %184 = vector.extract_strided_slice %28 {offsets = [0, 0, 448], sizes = [2, 8, 64], strides = [1, 1, 1]} : vector<2x8x640xbf16> to vector<2x8x64xbf16>
    %cst_69 = arith.constant dense<0.000000e+00> : vector<2x8x8xf32>
    %185 = tpu.matmul %182, %183, %cst_69 {dimension_numbers = #tpu.dot_dimension_numbers<[2], [2], [1], [1], [0, 0, 0, 1, 1, 1], [0], [0]>} : vector<2x8x64xbf16>, vector<2x8x64xbf16>, vector<2x8x8xf32> -> vector<2x8x8xf32>
    %cst_70 = arith.constant dense<0xFF800000> : vector<2x8xf32>
    %186 = vector.multi_reduction <maximumf>, %185, %cst_70 [2] : vector<2x8x8xf32> to vector<2x8xf32>
    %187 = vector.shape_cast %186 : vector<2x8xf32> to vector<2x8x1xf32>
    %188 = vector.broadcast %187 : vector<2x8x1xf32> to vector<2x8x8xf32>
    %189 = arith.subf %185, %188 : vector<2x8x8xf32>
    %190 = math.exp %189 : vector<2x8x8xf32>
    %cst_71 = arith.constant dense<0.000000e+00> : vector<2x8xf32>
    %191 = vector.multi_reduction <add>, %190, %cst_71 [2] : vector<2x8x8xf32> to vector<2x8xf32>
    %192 = vector.shape_cast %191 : vector<2x8xf32> to vector<2x8x1xf32>
    %193 = tpu.reciprocal %192 {approx = true} : vector<2x8x1xf32> -> vector<2x8x1xf32>
    %194 = vector.broadcast %193 : vector<2x8x1xf32> to vector<2x8x8xf32>
    %195 = arith.mulf %190, %194 : vector<2x8x8xf32>
    %196 = arith.truncf %195 : vector<2x8x8xf32> to vector<2x8x8xbf16>
    %cst_72 = arith.constant dense<0.000000e+00> : vector<2x8x64xf32>
    %197 = tpu.matmul %196, %184, %cst_72 {dimension_numbers = #tpu.dot_dimension_numbers<[2], [1], [1], [2], [0, 0, 0, 1, 1, 2], [0], [0]>} : vector<2x8x8xbf16>, vector<2x8x64xbf16>, vector<2x8x64xf32> -> vector<2x8x64xf32>
    %198 = vector.shape_cast %197 : vector<2x8x64xf32> to vector<16x64xf32>
    %199 = arith.truncf %198 : vector<16x64xf32> to vector<16x64xbf16>
    %c7 = arith.constant 7 : index
    %c0_73 = arith.constant 0 : index
    %c0_74 = arith.constant 0 : index
    %200 = vector.load %arg5[%c7, %c0_73, %c0_74] : memref<10x64x600xbf16, #tpu.memory_space<vmem>>, vector<1x64x600xbf16>
    %201 = vector.shape_cast %200 : vector<1x64x600xbf16> to vector<64x600xbf16>
    %cst_75 = arith.constant dense<0.000000e+00> : vector<16x600xf32>
    %202 = tpu.matmul %199, %201, %cst_75 {dimension_numbers = #tpu.dot_dimension_numbers<[1], [0], [0], [1], [0, 0, 1, 1], [], []>} : vector<16x64xbf16>, vector<64x600xbf16>, vector<16x600xf32> -> vector<16x600xf32>
    %203 = arith.addf %181, %202 : vector<16x600xf32>
    %204 = vector.extract_strided_slice %24 {offsets = [0, 0, 512], sizes = [2, 8, 64], strides = [1, 1, 1]} : vector<2x8x640xbf16> to vector<2x8x64xbf16>
    %205 = vector.extract_strided_slice %26 {offsets = [0, 0, 512], sizes = [2, 8, 64], strides = [1, 1, 1]} : vector<2x8x640xbf16> to vector<2x8x64xbf16>
    %206 = vector.extract_strided_slice %28 {offsets = [0, 0, 512], sizes = [2, 8, 64], strides = [1, 1, 1]} : vector<2x8x640xbf16> to vector<2x8x64xbf16>
    %cst_76 = arith.constant dense<0.000000e+00> : vector<2x8x8xf32>
    %207 = tpu.matmul %204, %205, %cst_76 {dimension_numbers = #tpu.dot_dimension_numbers<[2], [2], [1], [1], [0, 0, 0, 1, 1, 1], [0], [0]>} : vector<2x8x64xbf16>, vector<2x8x64xbf16>, vector<2x8x8xf32> -> vector<2x8x8xf32>
    %cst_77 = arith.constant dense<0xFF800000> : vector<2x8xf32>
    %208 = vector.multi_reduction <maximumf>, %207, %cst_77 [2] : vector<2x8x8xf32> to vector<2x8xf32>
    %209 = vector.shape_cast %208 : vector<2x8xf32> to vector<2x8x1xf32>
    %210 = vector.broadcast %209 : vector<2x8x1xf32> to vector<2x8x8xf32>
    %211 = arith.subf %207, %210 : vector<2x8x8xf32>
    %212 = math.exp %211 : vector<2x8x8xf32>
    %cst_78 = arith.constant dense<0.000000e+00> : vector<2x8xf32>
    %213 = vector.multi_reduction <add>, %212, %cst_78 [2] : vector<2x8x8xf32> to vector<2x8xf32>
    %214 = vector.shape_cast %213 : vector<2x8xf32> to vector<2x8x1xf32>
    %215 = tpu.reciprocal %214 {approx = true} : vector<2x8x1xf32> -> vector<2x8x1xf32>
    %216 = vector.broadcast %215 : vector<2x8x1xf32> to vector<2x8x8xf32>
    %217 = arith.mulf %212, %216 : vector<2x8x8xf32>
    %218 = arith.truncf %217 : vector<2x8x8xf32> to vector<2x8x8xbf16>
    %cst_79 = arith.constant dense<0.000000e+00> : vector<2x8x64xf32>
    %219 = tpu.matmul %218, %206, %cst_79 {dimension_numbers = #tpu.dot_dimension_numbers<[2], [1], [1], [2], [0, 0, 0, 1, 1, 2], [0], [0]>} : vector<2x8x8xbf16>, vector<2x8x64xbf16>, vector<2x8x64xf32> -> vector<2x8x64xf32>
    %220 = vector.shape_cast %219 : vector<2x8x64xf32> to vector<16x64xf32>
    %221 = arith.truncf %220 : vector<16x64xf32> to vector<16x64xbf16>
    %c8 = arith.constant 8 : index
    %c0_80 = arith.constant 0 : index
    %c0_81 = arith.constant 0 : index
    %222 = vector.load %arg5[%c8, %c0_80, %c0_81] : memref<10x64x600xbf16, #tpu.memory_space<vmem>>, vector<1x64x600xbf16>
    %223 = vector.shape_cast %222 : vector<1x64x600xbf16> to vector<64x600xbf16>
    %cst_82 = arith.constant dense<0.000000e+00> : vector<16x600xf32>
    %224 = tpu.matmul %221, %223, %cst_82 {dimension_numbers = #tpu.dot_dimension_numbers<[1], [0], [0], [1], [0, 0, 1, 1], [], []>} : vector<16x64xbf16>, vector<64x600xbf16>, vector<16x600xf32> -> vector<16x600xf32>
    %225 = arith.addf %203, %224 : vector<16x600xf32>
    %226 = vector.extract_strided_slice %24 {offsets = [0, 0, 576], sizes = [2, 8, 64], strides = [1, 1, 1]} : vector<2x8x640xbf16> to vector<2x8x64xbf16>
    %227 = vector.extract_strided_slice %26 {offsets = [0, 0, 576], sizes = [2, 8, 64], strides = [1, 1, 1]} : vector<2x8x640xbf16> to vector<2x8x64xbf16>
    %228 = vector.extract_strided_slice %28 {offsets = [0, 0, 576], sizes = [2, 8, 64], strides = [1, 1, 1]} : vector<2x8x640xbf16> to vector<2x8x64xbf16>
    %cst_83 = arith.constant dense<0.000000e+00> : vector<2x8x8xf32>
    %229 = tpu.matmul %226, %227, %cst_83 {dimension_numbers = #tpu.dot_dimension_numbers<[2], [2], [1], [1], [0, 0, 0, 1, 1, 1], [0], [0]>} : vector<2x8x64xbf16>, vector<2x8x64xbf16>, vector<2x8x8xf32> -> vector<2x8x8xf32>
    %cst_84 = arith.constant dense<0xFF800000> : vector<2x8xf32>
    %230 = vector.multi_reduction <maximumf>, %229, %cst_84 [2] : vector<2x8x8xf32> to vector<2x8xf32>
    %231 = vector.shape_cast %230 : vector<2x8xf32> to vector<2x8x1xf32>
    %232 = vector.broadcast %231 : vector<2x8x1xf32> to vector<2x8x8xf32>
    %233 = arith.subf %229, %232 : vector<2x8x8xf32>
    %234 = math.exp %233 : vector<2x8x8xf32>
    %cst_85 = arith.constant dense<0.000000e+00> : vector<2x8xf32>
    %235 = vector.multi_reduction <add>, %234, %cst_85 [2] : vector<2x8x8xf32> to vector<2x8xf32>
    %236 = vector.shape_cast %235 : vector<2x8xf32> to vector<2x8x1xf32>
    %237 = tpu.reciprocal %236 {approx = true} : vector<2x8x1xf32> -> vector<2x8x1xf32>
    %238 = vector.broadcast %237 : vector<2x8x1xf32> to vector<2x8x8xf32>
    %239 = arith.mulf %234, %238 : vector<2x8x8xf32>
    %240 = arith.truncf %239 : vector<2x8x8xf32> to vector<2x8x8xbf16>
    %cst_86 = arith.constant dense<0.000000e+00> : vector<2x8x64xf32>
    %241 = tpu.matmul %240, %228, %cst_86 {dimension_numbers = #tpu.dot_dimension_numbers<[2], [1], [1], [2], [0, 0, 0, 1, 1, 2], [0], [0]>} : vector<2x8x8xbf16>, vector<2x8x64xbf16>, vector<2x8x64xf32> -> vector<2x8x64xf32>
    %242 = vector.shape_cast %241 : vector<2x8x64xf32> to vector<16x64xf32>
    %243 = arith.truncf %242 : vector<16x64xf32> to vector<16x64xbf16>
    %c9 = arith.constant 9 : index
    %c0_87 = arith.constant 0 : index
    %c0_88 = arith.constant 0 : index
    %244 = vector.load %arg5[%c9, %c0_87, %c0_88] : memref<10x64x600xbf16, #tpu.memory_space<vmem>>, vector<1x64x600xbf16>
    %245 = vector.shape_cast %244 : vector<1x64x600xbf16> to vector<64x600xbf16>
    %cst_89 = arith.constant dense<0.000000e+00> : vector<16x600xf32>
    %246 = tpu.matmul %243, %245, %cst_89 {dimension_numbers = #tpu.dot_dimension_numbers<[1], [0], [0], [1], [0, 0, 1, 1], [], []>} : vector<16x64xbf16>, vector<64x600xbf16>, vector<16x600xf32> -> vector<16x600xf32>
    %247 = arith.addf %225, %246 : vector<16x600xf32>
    %c0_90 = arith.constant 0 : index
    %c0_91 = arith.constant 0 : index
    %248 = vector.load %arg9[%c0_90, %c0_91] : memref<1x600xf32, #tpu.memory_space<vmem>>, vector<1x600xf32>
    %249 = vector.broadcast %248 : vector<1x600xf32> to vector<16x600xf32>
    %250 = arith.addf %247, %249 : vector<16x600xf32>
    %251 = vector.shape_cast %250 : vector<16x600xf32> to vector<2x8x600xf32>
    %252 = vector.extract_strided_slice %251 {offsets = [0, 0, 0], sizes = [1, 8, 600], strides = [1, 1, 1]} : vector<2x8x600xf32> to vector<1x8x600xf32>
    %253 = vector.shape_cast %252 : vector<1x8x600xf32> to vector<8x600xf32>
    %254 = tpu.transpose %253, [1, 0] : vector<8x600xf32> -> vector<600x8xf32>
    %c0_92 = arith.constant 0 : index
    %c0_93 = arith.constant 0 : index
    %c0_94 = arith.constant 0 : index
    %255 = vector.load %arg10[%c0_92, %c0_93, %c0_94] : memref<2x600x8xf32, #tpu.memory_space<vmem>>, vector<1x600x8xf32>
    %256 = vector.shape_cast %255 : vector<1x600x8xf32> to vector<600x8xf32>
    %257 = vector.shape_cast %254 : vector<600x8xf32> to vector<1x600x8xf32>
    tpu.vector_store %arg10[%c0_92, %c0_93, %c0_94], %257 {strides = array<i32>} : memref<2x600x8xf32, #tpu.memory_space<vmem>>, vector<1x600x8xf32>,
    %258 = vector.extract_strided_slice %251 {offsets = [1, 0, 0], sizes = [1, 8, 600], strides = [1, 1, 1]} : vector<2x8x600xf32> to vector<1x8x600xf32>
    %259 = vector.shape_cast %258 : vector<1x8x600xf32> to vector<8x600xf32>
    %260 = tpu.transpose %259, [1, 0] : vector<8x600xf32> -> vector<600x8xf32>
    %c1_95 = arith.constant 1 : index
    %c0_96 = arith.constant 0 : index
    %c0_97 = arith.constant 0 : index
    %261 = vector.load %arg10[%c1_95, %c0_96, %c0_97] : memref<2x600x8xf32, #tpu.memory_space<vmem>>, vector<1x600x8xf32>
    %262 = vector.shape_cast %261 : vector<1x600x8xf32> to vector<600x8xf32>
    %263 = vector.shape_cast %260 : vector<600x8xf32> to vector<1x600x8xf32>
    tpu.vector_store %arg10[%c1_95, %c0_96, %c0_97], %263 {strides = array<i32>} : memref<2x600x8xf32, #tpu.memory_space<vmem>>, vector<1x600x8xf32>,
    return
  }
  func.func @transform_0(%arg0: i32) -> (i32, i32, i32) {
    %c0_i32 = arith.constant 0 : i32
    %c0_i32_0 = arith.constant 0 : i32
    %c0_i32_1 = arith.constant 0 : i32
    %c0_i32_2 = arith.constant 0 : i32
    return %c0_i32, %c0_i32_0, %c0_i32_1 : i32, i32, i32
  }
  func.func @transform_1(%arg0: i32) -> (i32, i32) {
    %c0_i32 = arith.constant 0 : i32
    %c0_i32_0 = arith.constant 0 : i32
    %c0_i32_1 = arith.constant 0 : i32
    return %c0_i32, %c0_i32_0 : i32, i32
  }
  func.func @transform_2(%arg0: i32) -> (i32, i32) {
    %c0_i32 = arith.constant 0 : i32
    %c0_i32_0 = arith.constant 0 : i32
    %c0_i32_1 = arith.constant 0 : i32
    return %c0_i32, %c0_i32_0 : i32, i32
  }
  func.func @transform_3(%arg0: i32) -> (i32, i32) {
    %c0_i32 = arith.constant 0 : i32
    %c0_i32_0 = arith.constant 0 : i32
    %c0_i32_1 = arith.constant 0 : i32
    return %c0_i32, %c0_i32_0 : i32, i32
  }
  func.func @transform_4(%arg0: i32) -> (i32, i32, i32) {
    %c0_i32 = arith.constant 0 : i32
    %c0_i32_0 = arith.constant 0 : i32
    %c0_i32_1 = arith.constant 0 : i32
    %c0_i32_2 = arith.constant 0 : i32
    return %c0_i32, %c0_i32_0, %c0_i32_1 : i32, i32, i32
  }
  func.func @transform_5(%arg0: i32) -> (i32, i32) {
    %c0_i32 = arith.constant 0 : i32
    %c0_i32_0 = arith.constant 0 : i32
    %c0_i32_1 = arith.constant 0 : i32
    return %c0_i32, %c0_i32_0 : i32, i32
  }
  func.func @transform_6(%arg0: i32) -> (i32, i32) {
    %c0_i32 = arith.constant 0 : i32
    %c0_i32_0 = arith.constant 0 : i32
    %c0_i32_1 = arith.constant 0 : i32
    return %c0_i32, %c0_i32_0 : i32, i32
  }
  func.func @transform_7(%arg0: i32) -> (i32, i32) {
    %c0_i32 = arith.constant 0 : i32
    %c0_i32_0 = arith.constant 0 : i32
    %c0_i32_1 = arith.constant 0 : i32
    return %c0_i32, %c0_i32_0 : i32, i32
  }
  func.func @transform_8(%arg0: i32) -> (i32, i32) {
    %c0_i32 = arith.constant 0 : i32
    %c0_i32_0 = arith.constant 0 : i32
    %c0_i32_1 = arith.constant 0 : i32
    return %c0_i32, %c0_i32_0 : i32, i32
  }
  func.func @transform_9(%arg0: i32) -> (i32, i32, i32) {
    %c0_i32 = arith.constant 0 : i32
    %c0_i32_0 = arith.constant 0 : i32
    %c0_i32_1 = arith.constant 0 : i32
    %c0_i32_2 = arith.constant 0 : i32
    return %c0_i32, %c0_i32_0, %c0_i32_1 : i32, i32, i32
  }
}

</mosaic_0001>

<llo_original>
// kernel: mha_forward.1
$region0: #{mha_forward.1}
  #allocation0 [shape = 'u32[]', space=smem, size = 0x4, offset = 0x4, fixed_abs, tag = 'smem constant byte address 0x4 - core index']
  #allocation1 [shape = 'u32[144,128]{1,0:T(1,128)}', space=vmem, size = 0x12000, scoped, tag = 'internal scratch']
  %s0 = inlined_call_operand.vmem [shape: f32[2,600,8], index: 0, kind: input, shape index: {}]
  %s1 = inlined_call_operand.hbm [shape: bf16[600,640], index: 1, kind: input, shape index: {}]
  %s2 = inlined_call_operand.hbm [shape: bf16[600,640], index: 2, kind: input, shape index: {}]
  %s3 = inlined_call_operand.hbm [shape: bf16[600,640], index: 3, kind: input, shape index: {}]
  %s4 = inlined_call_operand.hbm [shape: bf16[10,64,600], index: 4, kind: input, shape index: {}]
  %s5 = inlined_call_operand.vmem [shape: f32[1,640], index: 5, kind: input, shape index: {}]
  %s6 = inlined_call_operand.vmem [shape: f32[1,640], index: 6, kind: input, shape index: {}]
  %s7 = inlined_call_operand.vmem [shape: f32[1,640], index: 7, kind: input, shape index: {}]
  %s8 = inlined_call_operand.vmem [shape: f32[1,600], index: 8, kind: input, shape index: {}]
  %s9 = inlined_call_operand.vmem [shape: f32[2,600,8], index: 9, kind: output, shape index: {}]
  %s10 = sld [smem:[#allocation0]]
  $region62: #{mha_forward.1} parent=0
    _
  %s12 = ssub.s32 1, %s10
  %s13 = scalar_select 0, %s12, %s10
  $region1: #{mha_forward.1} parent=0
    #allocation2 [shape = 'u8[768000]{0}', space=vmem, size = 0xbb800, scoped, tag = 'input window, operand 1, single buffered']
    #allocation3 [shape = 's32[1]{0}', space=sflag, size = 0x4, scoped, tag = 'scoped memory for mha_forward.1']
    #allocation4 [shape = 'u8[768000]{0}', space=vmem, size = 0xbb800, scoped, tag = 'input window, operand 2, single buffered']
    #allocation5 [shape = 's32[1]{0}', space=sflag, size = 0x4, scoped, tag = 'scoped memory for mha_forward.1']
    #allocation6 [shape = 'u8[768000]{0}', space=vmem, size = 0xbb800, scoped, tag = 'input window, operand 3, single buffered']
    #allocation7 [shape = 'u8[819200]{0}', space=vmem, size = 0xc8000, scoped, tag = 'input window, operand 4, single buffered']
    #allocation8 [shape = 's32[1]{0}', space=sflag, size = 0x4, scoped, tag = 'scoped memory for mha_forward.1']
    %14 = vsyncpa [#allocation3], 0
    %15 = vsyncpa [#allocation5], 0
    %16 = vsyncpa [#allocation8], 0
    // Predicated region
    $region2: #{mha_forward.1} parent=1 // pred_check
      _
    $region3: #{mha_forward.1} parent=1 // pred_check_branch
      %18 = sbr.rel (0) target = $region5
    $region4: #{mha_forward.1} parent=1 // pred_region
      _
    $region5: #{mha_forward.1} parent=1 // pred_fallthru
      _
    // Predicated region
    $region6: #{mha_forward.1} parent=1 // pred_check
      _
    $region7: #{mha_forward.1} parent=1 // pred_check_branch
      %20 = sbr.rel (0) target = $region9
    $region8: #{mha_forward.1} parent=1 // pred_region
      %s22 = ssub.s32 24000, 24000
      %23 = vsyncadd [#allocation3], %s22
      %s24 = sshll.u32 [#allocation2], 4
      %s25 = int_to_ptr.vmem [resolvable:$true] %s24
      %30 = dma.hbm_to_vmem [thread:$0]  %s1, 24000, %s25, [#allocation3], 320, 320, 20
    $region9: #{mha_forward.1} parent=1 // pred_fallthru
      _
    // Predicated region
    $region10: #{mha_forward.1} parent=1 // pred_check
      _
    $region11: #{mha_forward.1} parent=1 // pred_check_branch
      %32 = sbr.rel (0) target = $region13
    $region12: #{mha_forward.1} parent=1 // pred_region
      %s34 = ssub.s32 24000, 24000
      %35 = vsyncadd [#allocation5], %s34
      %s36 = sshll.u32 [#allocation4], 4
      %s37 = int_to_ptr.vmem [resolvable:$true] %s36
      %42 = dma.hbm_to_vmem [thread:$0]  %s2, 24000, %s37, [#allocation5], 320, 320, 20
    $region13: #{mha_forward.1} parent=1 // pred_fallthru
      _
    // Predicated region
    $region14: #{mha_forward.1} parent=1 // pred_check
      _
    $region15: #{mha_forward.1} parent=1 // pred_check_branch
      %44 = sbr.rel (0) target = $region17
    $region16: #{mha_forward.1} parent=1 // pred_region
      %s46 = ssub.s32 24000, 24000
      %47 = vsyncadd [#allocation5], %s46
      %s48 = sshll.u32 [#allocation6], 4
      %s49 = int_to_ptr.vmem [resolvable:$true] %s48
      %54 = dma.hbm_to_vmem [thread:$0]  %s3, 24000, %s49, [#allocation5], 320, 320, 20
    $region17: #{mha_forward.1} parent=1 // pred_fallthru
      _
    // Predicated region
    $region18: #{mha_forward.1} parent=1 // pred_check
      _
    $region19: #{mha_forward.1} parent=1 // pred_check_branch
      %56 = sbr.rel (0) target = $region21
    $region20: #{mha_forward.1} parent=1 // pred_region
      %s58 = ssub.s32 25600, 25600
      %59 = vsyncadd [#allocation8], %s58
      %s60 = sshll.u32 [#allocation7], 4
      %s61 = int_to_ptr.vmem [resolvable:$true] %s60
      %66 = dma.hbm_to_vmem [thread:$0]  %s4, 25600, %s61, [#allocation8], 320, 320, 20
    $region21: #{mha_forward.1} parent=1 // pred_fallthru
      _
    // Predicated region
    $region22: #{mha_forward.1} parent=1 // pred_check
      _
    $region23: #{mha_forward.1} parent=1 // pred_check_branch
      %68 = sbr.rel (0) target = $region25
    $region24: #{mha_forward.1} parent=1 // pred_region
      _
    $region25: #{mha_forward.1} parent=1 // pred_fallthru
      _
    // Predicated region
    $region26: #{mha_forward.1} parent=1 // pred_check
      _
    $region27: #{mha_forward.1} parent=1 // pred_check_branch
      %70 = sbr.rel (0) target = $region29
    $region28: #{mha_forward.1} parent=1 // pred_region
      _
    $region29: #{mha_forward.1} parent=1 // pred_fallthru
      _
    // Predicated region
    $region30: #{mha_forward.1} parent=1 // pred_check
      _
    $region31: #{mha_forward.1} parent=1 // pred_check_branch
      %72 = sbr.rel (0) target = $region33
    $region32: #{mha_forward.1} parent=1 // pred_region
      _
    $region33: #{mha_forward.1} parent=1 // pred_fallthru
      _
    // Predicated region
    $region34: #{mha_forward.1} parent=1 // pred_check
      _
    $region35: #{mha_forward.1} parent=1 // pred_check_branch
      %74 = sbr.rel (0) target = $region37
    $region36: #{mha_forward.1} parent=1 // pred_region
      _
    $region37: #{mha_forward.1} parent=1 // pred_fallthru
      _
    // Predicated region
    $region38: #{mha_forward.1} parent=1 // pred_check
      _
    $region39: #{mha_forward.1} parent=1 // pred_check_branch
      %76 = sbr.rel (0) target = $region41
    $region40: #{mha_forward.1} parent=1 // pred_region
      %77 = dma.done [#allocation3], 24000
    $region41: #{mha_forward.1} parent=1 // pred_fallthru
      _
    // Predicated region
    $region42: #{mha_forward.1} parent=1 // pred_check
      _
    $region43: #{mha_forward.1} parent=1 // pred_check_branch
      %79 = sbr.rel (0) target = $region45
    $region44: #{mha_forward.1} parent=1 // pred_region
      %80 = dma.done [#allocation5], 24000
    $region45: #{mha_forward.1} parent=1 // pred_fallthru
      _
    // Predicated region
    $region46: #{mha_forward.1} parent=1 // pred_check
      _
    $region47: #{mha_forward.1} parent=1 // pred_check_branch
      %82 = sbr.rel (0) target = $region49
    $region48: #{mha_forward.1} parent=1 // pred_region
      %83 = dma.done [#allocation5], 24000
    $region49: #{mha_forward.1} parent=1 // pred_fallthru
      _
    // Predicated region
    $region50: #{mha_forward.1} parent=1 // pred_check
      _
    $region51: #{mha_forward.1} parent=1 // pred_check_branch
      %85 = sbr.rel (0) target = $region53
    $region52: #{mha_forward.1} parent=1 // pred_region
      %86 = dma.done [#allocation8], 25600
    $region53: #{mha_forward.1} parent=1 // pred_fallthru
      _
    %v88 = vld [vmem:[%s0] sm:$0xff]
    %v89 = vld [vmem:[%s0 + $0x8] sm:$0xff]
    %v90 = vld [vmem:[%s0 + $0x10] sm:$0xff]
    %v91 = vld [vmem:[%s0 + $0x18] sm:$0xff]
    %v92 = vld [vmem:[%s0 + $0x20] sm:$0xff]
    %v93 = vld [vmem:[%s0 + $0x28] sm:$0xff]
    %v94 = vld [vmem:[%s0 + $0x30] sm:$0xff]
    %v95 = vld [vmem:[%s0 + $0x38] sm:$0xff]
    %v96 = vld [vmem:[%s0 + $0x40] sm:$0xff]
    %v97 = vld [vmem:[%s0 + $0x48] sm:$0xff]
    %v98 = vld [vmem:[%s0 + $0x50] sm:$0xff]
    %v99 = vld [vmem:[%s0 + $0x58] sm:$0xff]
    %v100 = vld [vmem:[%s0 + $0x60] sm:$0xff]
    %v101 = vld [vmem:[%s0 + $0x68] sm:$0xff]
    %v102 = vld [vmem:[%s0 + $0x70] sm:$0xff]
    %v103 = vld [vmem:[%s0 + $0x78] sm:$0xff]
    %v104 = vld [vmem:[%s0 + $0x80] sm:$0xff]
    %v105 = vld [vmem:[%s0 + $0x88] sm:$0xff]
    %v106 = vld [vmem:[%s0 + $0x90] sm:$0xff]
    %v107 = vld [vmem:[%s0 + $0x98] sm:$0xff]
    %v108 = vld [vmem:[%s0 + $0xa0] sm:$0xff]
    %v109 = vld [vmem:[%s0 + $0xa8] sm:$0xff]
    %v110 = vld [vmem:[%s0 + $0xb0] sm:$0xff]
    %v111 = vld [vmem:[%s0 + $0xb8] sm:$0xff]
    %v112 = vld [vmem:[%s0 + $0xc0] sm:$0xff]
    %v113 = vld [vmem:[%s0 + $0xc8] sm:$0xff]
    %v114 = vld [vmem:[%s0 + $0xd0] sm:$0xff]
    %v115 = vld [vmem:[%s0 + $0xd8] sm:$0xff]
    %v116 = vld [vmem:[%s0 + $0xe0] sm:$0xff]
    %v117 = vld [vmem:[%s0 + $0xe8] sm:$0xff]
    %v118 = vld [vmem:[%s0 + $0xf0] sm:$0xff]
    %v119 = vld [vmem:[%s0 + $0xf8] sm:$0xff]
    %v120 = vld [vmem:[%s0 + $0x100] sm:$0xff]
    %v121 = vld [vmem:[%s0 + $0x108] sm:$0xff]
    %v122 = vld [vmem:[%s0 + $0x110] sm:$0xff]
    %v123 = vld [vmem:[%s0 + $0x118] sm:$0xff]
    %v124 = vld [vmem:[%s0 + $0x120] sm:$0xff]
    %v125 = vld [vmem:[%s0 + $0x128] sm:$0xff]
    %v126 = vld [vmem:[%s0 + $0x130] sm:$0xff]
    %v127 = vld [vmem:[%s0 + $0x138] sm:$0xff]
    %v128 = vld [vmem:[%s0 + $0x140] sm:$0xff]
    %v129 = vld [vmem:[%s0 + $0x148] sm:$0xff]
    %v130 = vld [vmem:[%s0 + $0x150] sm:$0xff]
    %v131 = vld [vmem:[%s0 + $0x158] sm:$0xff]
    %v132 = vld [vmem:[%s0 + $0x160] sm:$0xff]
    %v133 = vld [vmem:[%s0 + $0x168] sm:$0xff]
    %v134 = vld [vmem:[%s0 + $0x170] sm:$0xff]
    %v135 = vld [vmem:[%s0 + $0x178] sm:$0xff]
    %v136 = vld [vmem:[%s0 + $0x180] sm:$0xff]
    %v137 = vld [vmem:[%s0 + $0x188] sm:$0xff]
    %v138 = vld [vmem:[%s0 + $0x190] sm:$0xff]
    %v139 = vld [vmem:[%s0 + $0x198] sm:$0xff]
    %v140 = vld [vmem:[%s0 + $0x1a0] sm:$0xff]
    %v141 = vld [vmem:[%s0 + $0x1a8] sm:$0xff]
    %v142 = vld [vmem:[%s0 + $0x1b0] sm:$0xff]
    %v143 = vld [vmem:[%s0 + $0x1b8] sm:$0xff]
    %v144 = vld [vmem:[%s0 + $0x1c0] sm:$0xff]
    %v145 = vld [vmem:[%s0 + $0x1c8] sm:$0xff]
    %v146 = vld [vmem:[%s0 + $0x1d0] sm:$0xff]
    %v147 = vld [vmem:[%s0 + $0x1d8] sm:$0xff]
    %v148 = vld [vmem:[%s0 + $0x1e0] sm:$0xff]
    %v149 = vld [vmem:[%s0 + $0x1e8] sm:$0xff]
    %v150 = vld [vmem:[%s0 + $0x1f0] sm:$0xff]
    %v151 = vld [vmem:[%s0 + $0x1f8] sm:$0xff]
    %v152 = vld [vmem:[%s0 + $0x200] sm:$0xff]
    %v153 = vld [vmem:[%s0 + $0x208] sm:$0xff]
    %v154 = vld [vmem:[%s0 + $0x210] sm:$0xff]
    %v155 = vld [vmem:[%s0 + $0x218] sm:$0xff]
    %v156 = vld [vmem:[%s0 + $0x220] sm:$0xff]
    %v157 = vld [vmem:[%s0 + $0x228] sm:$0xff]
    %v158 = vld [vmem:[%s0 + $0x230] sm:$0xff]
    %v159 = vld [vmem:[%s0 + $0x238] sm:$0xff]
    %v160 = vld [vmem:[%s0 + $0x240] sm:$0xff]
    %v161 = vld [vmem:[%s0 + $0x248] sm:$0xff]
    %v162 = vld [vmem:[%s0 + $0x250] sm:$0xff]
    %163 = vxpose.xlu0.b32.start [1/16] %v88, 128
    %164 = vxpose.xlu0.b32.cont [2/16] %v89, 128
    %165 = vxpose.xlu0.b32.cont [3/16] %v90, 128
    %166 = vxpose.xlu0.b32.cont [4/16] %v91, 128
    %167 = vxpose.xlu0.b32.cont [5/16] %v92, 128
    %168 = vxpose.xlu0.b32.cont [6/16] %v93, 128
    %169 = vxpose.xlu0.b32.cont [7/16] %v94, 128
    %170 = vxpose.xlu0.b32.cont [8/16] %v95, 128
    %171 = vxpose.xlu0.b32.cont [9/16] %v96, 128
    %172 = vxpose.xlu0.b32.cont [10/16] %v97, 128
    %173 = vxpose.xlu0.b32.cont [11/16] %v98, 128
    %174 = vxpose.xlu0.b32.cont [12/16] %v99, 128
    %175 = vxpose.xlu0.b32.cont [13/16] %v100, 128
    %176 = vxpose.xlu0.b32.cont [14/16] %v101, 128
    %177 = vxpose.xlu0.b32.cont [15/16] %v102, 128
    %178 = vxpose.xlu0.b32.end [16/16] %v103, 128
    %v179 = vpop.trf.xlu0
    %v180 = vpop.trf.xlu0
    %v181 = vpop.trf.xlu0
    %v182 = vpop.trf.xlu0
    %v183 = vpop.trf.xlu0
    %v184 = vpop.trf.xlu0
    %v185 = vpop.trf.xlu0
    %v186 = vpop.trf.xlu0
    %v187 = vpop.trf.xlu0
    %v188 = vpop.trf.xlu0
    %v189 = vpop.trf.xlu0
    %v190 = vpop.trf.xlu0
    %v191 = vpop.trf.xlu0
    %v192 = vpop.trf.xlu0
    %v193 = vpop.trf.xlu0
    %v194 = vpop.trf.xlu0
    %195 = vxpose.xlu0.b32.start [1/16] %v104, 128
    %196 = vxpose.xlu0.b32.cont [2/16] %v105, 128
    %197 = vxpose.xlu0.b32.cont [3/16] %v106, 128
    %198 = vxpose.xlu0.b32.cont [4/16] %v107, 128
    %199 = vxpose.xlu0.b32.cont [5/16] %v108, 128
    %200 = vxpose.xlu0.b32.cont [6/16] %v109, 128
    %201 = vxpose.xlu0.b32.cont [7/16] %v110, 128
    %202 = vxpose.xlu0.b32.cont [8/16] %v111, 128
    %203 = vxpose.xlu0.b32.cont [9/16] %v112, 128
    %204 = vxpose.xlu0.b32.cont [10/16] %v113, 128
    %205 = vxpose.xlu0.b32.cont [11/16] %v114, 128
    %206 = vxpose.xlu0.b32.cont [12/16] %v115, 128
    %207 = vxpose.xlu0.b32.cont [13/16] %v116, 128
    %208 = vxpose.xlu0.b32.cont [14/16] %v117, 128
    %209 = vxpose.xlu0.b32.cont [15/16] %v118, 128
    %210 = vxpose.xlu0.b32.end [16/16] %v119, 128
    %v211 = vpop.trf.xlu0
    %v212 = vpop.trf.xlu0
    %v213 = vpop.trf.xlu0
    %v214 = vpop.trf.xlu0
    %v215 = vpop.trf.xlu0
    %v216 = vpop.trf.xlu0
    %v217 = vpop.trf.xlu0
    %v218 = vpop.trf.xlu0
    %v219 = vpop.trf.xlu0
    %v220 = vpop.trf.xlu0
    %v221 = vpop.trf.xlu0
    %v222 = vpop.trf.xlu0
    %v223 = vpop.trf.xlu0
    %v224 = vpop.trf.xlu0
    %v225 = vpop.trf.xlu0
    %v226 = vpop.trf.xlu0
    %227 = vxpose.xlu0.b32.start [1/16] %v120, 128
    %228 = vxpose.xlu0.b32.cont [2/16] %v121, 128
    %229 = vxpose.xlu0.b32.cont [3/16] %v122, 128
    %230 = vxpose.xlu0.b32.cont [4/16] %v123, 128
    %231 = vxpose.xlu0.b32.cont [5/16] %v124, 128
    %232 = vxpose.xlu0.b32.cont [6/16] %v125, 128
    %233 = vxpose.xlu0.b32.cont [7/16] %v126, 128
    %234 = vxpose.xlu0.b32.cont [8/16] %v127, 128
    %235 = vxpose.xlu0.b32.cont [9/16] %v128, 128
    %236 = vxpose.xlu0.b32.cont [10/16] %v129, 128
    %237 = vxpose.xlu0.b32.cont [11/16] %v130, 128
    %238 = vxpose.xlu0.b32.cont [12/16] %v131, 128
    %239 = vxpose.xlu0.b32.cont [13/16] %v132, 128
    %240 = vxpose.xlu0.b32.cont [14/16] %v133, 128
    %241 = vxpose.xlu0.b32.cont [15/16] %v134, 128
    %242 = vxpose.xlu0.b32.end [16/16] %v135, 128
    %v243 = vpop.trf.xlu0
    %v244 = vpop.trf.xlu0
    %v245 = vpop.trf.xlu0
    %v246 = vpop.trf.xlu0
    %v247 = vpop.trf.xlu0
    %v248 = vpop.trf.xlu0
    %v249 = vpop.trf.xlu0
    %v250 = vpop.trf.xlu0
    %v251 = vpop.trf.xlu0
    %v252 = vpop.trf.xlu0
    %v253 = vpop.trf.xlu0
    %v254 = vpop.trf.xlu0
    %v255 = vpop.trf.xlu0
    %v256 = vpop.trf.xlu0
    %v257 = vpop.trf.xlu0
    %v258 = vpop.trf.xlu0
    %259 = vxpose.xlu0.b32.start [1/16] %v136, 128
    %260 = vxpose.xlu0.b32.cont [2/16] %v137, 128
    %261 = vxpose.xlu0.b32.cont [3/16] %v138, 128
    %262 = vxpose.xlu0.b32.cont [4/16] %v139, 128
    %263 = vxpose.xlu0.b32.cont [5/16] %v140, 128
    %264 = vxpose.xlu0.b32.cont [6/16] %v141, 128
    %265 = vxpose.xlu0.b32.cont [7/16] %v142, 128
    %266 = vxpose.xlu0.b32.cont [8/16] %v143, 128
    %267 = vxpose.xlu0.b32.cont [9/16] %v144, 128
    %268 = vxpose.xlu0.b32.cont [10/16] %v145, 128
    %269 = vxpose.xlu0.b32.cont [11/16] %v146, 128
    %270 = vxpose.xlu0.b32.cont [12/16] %v147, 128
    %271 = vxpose.xlu0.b32.cont [13/16] %v148, 128
    %272 = vxpose.xlu0.b32.cont [14/16] %v149, 128
    %273 = vxpose.xlu0.b32.cont [15/16] %v150, 128
    %274 = vxpose.xlu0.b32.end [16/16] %v151, 128
    %v275 = vpop.trf.xlu0
    %v276 = vpop.trf.xlu0
    %v277 = vpop.trf.xlu0
    %v278 = vpop.trf.xlu0
    %v279 = vpop.trf.xlu0
    %v280 = vpop.trf.xlu0
    %v281 = vpop.trf.xlu0
    %v282 = vpop.trf.xlu0
    %v283 = vpop.trf.xlu0
    %v284 = vpop.trf.xlu0
    %v285 = vpop.trf.xlu0
    %v286 = vpop.trf.xlu0
    %v287 = vpop.trf.xlu0
    %v288 = vpop.trf.xlu0
    %v289 = vpop.trf.xlu0
    %v290 = vpop.trf.xlu0
    %291 = vxpose.xlu0.b32.start [1/16] %v152, 128
    %292 = vxpose.xlu0.b32.cont [2/16] %v153, 128
    %293 = vxpose.xlu0.b32.cont [3/16] %v154, 128
    %294 = vxpose.xlu0.b32.cont [4/16] %v155, 128
    %295 = vxpose.xlu0.b32.cont [5/16] %v156, 128
    %296 = vxpose.xlu0.b32.cont [6/16] %v157, 128
    %297 = vxpose.xlu0.b32.cont [7/16] %v158, 128
    %298 = vxpose.xlu0.b32.cont [8/16] %v159, 128
    %299 = vxpose.xlu0.b32.cont [9/16] %v160, 128
    %300 = vxpose.xlu0.b32.cont [10/16] %v161, 128
    %301 = vxpose.xlu0.b32.cont [11/16] %v162, 128
    %302 = vxpose.xlu0.b32.cont [12/16] 0.0, 128
    %303 = vxpose.xlu0.b32.cont [13/16] 0.0, 128
    %304 = vxpose.xlu0.b32.cont [14/16] 0.0, 128
    %305 = vxpose.xlu0.b32.cont [15/16] 0.0, 128
    %306 = vxpose.xlu0.b32.end [16/16] 0.0, 128
    %v307 = vpop.trf.xlu0
    %v308 = vpop.trf.xlu0
    %v309 = vpop.trf.xlu0
    %v310 = vpop.trf.xlu0
    %v311 = vpop.trf.xlu0
    %v312 = vpop.trf.xlu0
    %v313 = vpop.trf.xlu0
    %v314 = vpop.trf.xlu0
    %v315 = vpop.trf.xlu0
    %v316 = vpop.trf.xlu0
    %v317 = vpop.trf.xlu0
    %v318 = vpop.trf.xlu0
    %v319 = vpop.trf.xlu0
    %v320 = vpop.trf.xlu0
    %v321 = vpop.trf.xlu0
    %v322 = vpop.trf.xlu0
    %s323 = scalar_lea.vmem %s0, 600
    %v324 = vld [vmem:[%s323] sm:$0xff]
    %v325 = vld [vmem:[%s323 + $0x8] sm:$0xff]
    %v326 = vld [vmem:[%s323 + $0x10] sm:$0xff]
    %v327 = vld [vmem:[%s323 + $0x18] sm:$0xff]
    %v328 = vld [vmem:[%s323 + $0x20] sm:$0xff]
    %v329 = vld [vmem:[%s323 + $0x28] sm:$0xff]
    %v330 = vld [vmem:[%s323 + $0x30] sm:$0xff]
    %v331 = vld [vmem:[%s323 + $0x38] sm:$0xff]
    %v332 = vld [vmem:[%s323 + $0x40] sm:$0xff]
    %v333 = vld [vmem:[%s323 + $0x48] sm:$0xff]
    %v334 = vld [vmem:[%s323 + $0x50] sm:$0xff]
    %v335 = vld [vmem:[%s323 + $0x58] sm:$0xff]
    %v336 = vld [vmem:[%s323 + $0x60] sm:$0xff]
    %v337 = vld [vmem:[%s323 + $0x68] sm:$0xff]
    %v338 = vld [vmem:[%s323 + $0x70] sm:$0xff]
    %v339 = vld [vmem:[%s323 + $0x78] sm:$0xff]
    %v340 = vld [vmem:[%s323 + $0x80] sm:$0xff]
    %v341 = vld [vmem:[%s323 + $0x88] sm:$0xff]
    %v342 = vld [vmem:[%s323 + $0x90] sm:$0xff]
    %v343 = vld [vmem:[%s323 + $0x98] sm:$0xff]
    %v344 = vld [vmem:[%s323 + $0xa0] sm:$0xff]
    %v345 = vld [vmem:[%s323 + $0xa8] sm:$0xff]
    %v346 = vld [vmem:[%s323 + $0xb0] sm:$0xff]
    %v347 = vld [vmem:[%s323 + $0xb8] sm:$0xff]
    %v348 = vld [vmem:[%s323 + $0xc0] sm:$0xff]
    %v349 = vld [vmem:[%s323 + $0xc8] sm:$0xff]
    %v350 = vld [vmem:[%s323 + $0xd0] sm:$0xff]
    %v351 = vld [vmem:[%s323 + $0xd8] sm:$0xff]
    %v352 = vld [vmem:[%s323 + $0xe0] sm:$0xff]
    %v353 = vld [vmem:[%s323 + $0xe8] sm:$0xff]
    %v354 = vld [vmem:[%s323 + $0xf0] sm:$0xff]
    %v355 = vld [vmem:[%s323 + $0xf8] sm:$0xff]
    %v356 = vld [vmem:[%s323 + $0x100] sm:$0xff]
    %v357 = vld [vmem:[%s323 + $0x108] sm:$0xff]
    %v358 = vld [vmem:[%s323 + $0x110] sm:$0xff]
    %v359 = vld [vmem:[%s323 + $0x118] sm:$0xff]
    %v360 = vld [vmem:[%s323 + $0x120] sm:$0xff]
    %v361 = vld [vmem:[%s323 + $0x128] sm:$0xff]
    %v362 = vld [vmem:[%s323 + $0x130] sm:$0xff]
    %v363 = vld [vmem:[%s323 + $0x138] sm:$0xff]
    %v364 = vld [vmem:[%s323 + $0x140] sm:$0xff]
    %v365 = vld [vmem:[%s323 + $0x148] sm:$0xff]
    %v366 = vld [vmem:[%s323 + $0x150] sm:$0xff]
    %v367 = vld [vmem:[%s323 + $0x158] sm:$0xff]
    %v368 = vld [vmem:[%s323 + $0x160] sm:$0xff]
    %v369 = vld [vmem:[%s323 + $0x168] sm:$0xff]
    %v370 = vld [vmem:[%s323 + $0x170] sm:$0xff]
    %v371 = vld [vmem:[%s323 + $0x178] sm:$0xff]
    %v372 = vld [vmem:[%s323 + $0x180] sm:$0xff]
    %v373 = vld [vmem:[%s323 + $0x188] sm:$0xff]
    %v374 = vld [vmem:[%s323 + $0x190] sm:$0xff]
    %v375 = vld [vmem:[%s323 + $0x198] sm:$0xff]
    %v376 = vld [vmem:[%s323 + $0x1a0] sm:$0xff]
    %v377 = vld [vmem:[%s323 + $0x1a8] sm:$0xff]
    %v378 = vld [vmem:[%s323 + $0x1b0] sm:$0xff]
    %v379 = vld [vmem:[%s323 + $0x1b8] sm:$0xff]
    %v380 = vld [vmem:[%s323 + $0x1c0] sm:$0xff]
    %v381 = vld [vmem:[%s323 + $0x1c8] sm:$0xff]
    %v382 = vld [vmem:[%s323 + $0x1d0] sm:$0xff]
    %v383 = vld [vmem:[%s323 + $0x1d8] sm:$0xff]
    %v384 = vld [vmem:[%s323 + $0x1e0] sm:$0xff]
    %v385 = vld [vmem:[%s323 + $0x1e8] sm:$0xff]
    %v386 = vld [vmem:[%s323 + $0x1f0] sm:$0xff]
    %v387 = vld [vmem:[%s323 + $0x1f8] sm:$0xff]
    %v388 = vld [vmem:[%s323 + $0x200] sm:$0xff]
    %v389 = vld [vmem:[%s323 + $0x208] sm:$0xff]
    %v390 = vld [vmem:[%s323 + $0x210] sm:$0xff]
    %v391 = vld [vmem:[%s323 + $0x218] sm:$0xff]
    %v392 = vld [vmem:[%s323 + $0x220] sm:$0xff]
    %v393 = vld [vmem:[%s323 + $0x228] sm:$0xff]
    %v394 = vld [vmem:[%s323 + $0x230] sm:$0xff]
    %v395 = vld [vmem:[%s323 + $0x238] sm:$0xff]
    %v396 = vld [vmem:[%s323 + $0x240] sm:$0xff]
    %v397 = vld [vmem:[%s323 + $0x248] sm:$0xff]
    %v398 = vld [vmem:[%s323 + $0x250] sm:$0xff]
    %399 = vxpose.xlu0.b32.start [1/16] %v324, 128
    %400 = vxpose.xlu0.b32.cont [2/16] %v325, 128
    %401 = vxpose.xlu0.b32.cont [3/16] %v326, 128
    %402 = vxpose.xlu0.b32.cont [4/16] %v327, 128
    %403 = vxpose.xlu0.b32.cont [5/16] %v328, 128
    %404 = vxpose.xlu0.b32.cont [6/16] %v329, 128
    %405 = vxpose.xlu0.b32.cont [7/16] %v330, 128
    %406 = vxpose.xlu0.b32.cont [8/16] %v331, 128
    %407 = vxpose.xlu0.b32.cont [9/16] %v332, 128
    %408 = vxpose.xlu0.b32.cont [10/16] %v333, 128
    %409 = vxpose.xlu0.b32.cont [11/16] %v334, 128
    %410 = vxpose.xlu0.b32.cont [12/16] %v335, 128
    %411 = vxpose.xlu0.b32.cont [13/16] %v336, 128
    %412 = vxpose.xlu0.b32.cont [14/16] %v337, 128
    %413 = vxpose.xlu0.b32.cont [15/16] %v338, 128
    %414 = vxpose.xlu0.b32.end [16/16] %v339, 128
    %v415 = vpop.trf.xlu0
    %v416 = vpop.trf.xlu0
    %v417 = vpop.trf.xlu0
    %v418 = vpop.trf.xlu0
    %v419 = vpop.trf.xlu0
    %v420 = vpop.trf.xlu0
    %v421 = vpop.trf.xlu0
    %v422 = vpop.trf.xlu0
    %v423 = vpop.trf.xlu0
    %v424 = vpop.trf.xlu0
    %v425 = vpop.trf.xlu0
    %v426 = vpop.trf.xlu0
    %v427 = vpop.trf.xlu0
    %v428 = vpop.trf.xlu0
    %v429 = vpop.trf.xlu0
    %v430 = vpop.trf.xlu0
    %431 = vxpose.xlu0.b32.start [1/16] %v340, 128
    %432 = vxpose.xlu0.b32.cont [2/16] %v341, 128
    %433 = vxpose.xlu0.b32.cont [3/16] %v342, 128
    %434 = vxpose.xlu0.b32.cont [4/16] %v343, 128
    %435 = vxpose.xlu0.b32.cont [5/16] %v344, 128
    %436 = vxpose.xlu0.b32.cont [6/16] %v345, 128
    %437 = vxpose.xlu0.b32.cont [7/16] %v346, 128
    %438 = vxpose.xlu0.b32.cont [8/16] %v347, 128
    %439 = vxpose.xlu0.b32.cont [9/16] %v348, 128
    %440 = vxpose.xlu0.b32.cont [10/16] %v349, 128
    %441 = vxpose.xlu0.b32.cont [11/16] %v350, 128
    %442 = vxpose.xlu0.b32.cont [12/16] %v351, 128
    %443 = vxpose.xlu0.b32.cont [13/16] %v352, 128
    %444 = vxpose.xlu0.b32.cont [14/16] %v353, 128
    %445 = vxpose.xlu0.b32.cont [15/16] %v354, 128
    %446 = vxpose.xlu0.b32.end [16/16] %v355, 128
    %v447 = vpop.trf.xlu0
    %v448 = vpop.trf.xlu0
    %v449 = vpop.trf.xlu0
    %v450 = vpop.trf.xlu0
    %v451 = vpop.trf.xlu0
    %v452 = vpop.trf.xlu0
    %v453 = vpop.trf.xlu0
    %v454 = vpop.trf.xlu0
    %v455 = vpop.trf.xlu0
    %v456 = vpop.trf.xlu0
    %v457 = vpop.trf.xlu0
    %v458 = vpop.trf.xlu0
    %v459 = vpop.trf.xlu0
    %v460 = vpop.trf.xlu0
    %v461 = vpop.trf.xlu0
    %v462 = vpop.trf.xlu0
    %463 = vxpose.xlu0.b32.start [1/16] %v356, 128
    %464 = vxpose.xlu0.b32.cont [2/16] %v357, 128
    %465 = vxpose.xlu0.b32.cont [3/16] %v358, 128
    %466 = vxpose.xlu0.b32.cont [4/16] %v359, 128
    %467 = vxpose.xlu0.b32.cont [5/16] %v360, 128
    %468 = vxpose.xlu0.b32.cont [6/16] %v361, 128
    %469 = vxpose.xlu0.b32.cont [7/16] %v362, 128
    %470 = vxpose.xlu0.b32.cont [8/16] %v363, 128
    %471 = vxpose.xlu0.b32.cont [9/16] %v364, 128
    %472 = vxpose.xlu0.b32.cont [10/16] %v365, 128
    %473 = vxpose.xlu0.b32.cont [11/16] %v366, 128
    %474 = vxpose.xlu0.b32.cont [12/16] %v367, 128
    %475 = vxpose.xlu0.b32.cont [13/16] %v368, 128
    %476 = vxpose.xlu0.b32.cont [14/16] %v369, 128
    %477 = vxpose.xlu0.b32.cont [15/16] %v370, 128
    %478 = vxpose.xlu0.b32.end [16/16] %v371, 128
    %v479 = vpop.trf.xlu0
    %v480 = vpop.trf.xlu0
    %v481 = vpop.trf.xlu0
    %v482 = vpop.trf.xlu0
    %v483 = vpop.trf.xlu0
    %v484 = vpop.trf.xlu0
    %v485 = vpop.trf.xlu0
    %v486 = vpop.trf.xlu0
    %v487 = vpop.trf.xlu0
    %v488 = vpop.trf.xlu0
    %v489 = vpop.trf.xlu0
    %v490 = vpop.trf.xlu0
    %v491 = vpop.trf.xlu0
    %v492 = vpop.trf.xlu0
    %v493 = vpop.trf.xlu0
    %v494 = vpop.trf.xlu0
    %495 = vxpose.xlu0.b32.start [1/16] %v372, 128
    %496 = vxpose.xlu0.b32.cont [2/16] %v373, 128
    %497 = vxpose.xlu0.b32.cont [3/16] %v374, 128
    %498 = vxpose.xlu0.b32.cont [4/16] %v375, 128
    %499 = vxpose.xlu0.b32.cont [5/16] %v376, 128
    %500 = vxpose.xlu0.b32.cont [6/16] %v377, 128
    %501 = vxpose.xlu0.b32.cont [7/16] %v378, 128
    %502 = vxpose.xlu0.b32.cont [8/16] %v379, 128
    %503 = vxpose.xlu0.b32.cont [9/16] %v380, 128
    %504 = vxpose.xlu0.b32.cont [10/16] %v381, 128
    %505 = vxpose.xlu0.b32.cont [11/16] %v382, 128
    %506 = vxpose.xlu0.b32.cont [12/16] %v383, 128
    %507 = vxpose.xlu0.b32.cont [13/16] %v384, 128
    %508 = vxpose.xlu0.b32.cont [14/16] %v385, 128
    %509 = vxpose.xlu0.b32.cont [15/16] %v386, 128
    %510 = vxpose.xlu0.b32.end [16/16] %v387, 128
    %v511 = vpop.trf.xlu0
    %v512 = vpop.trf.xlu0
    %v513 = vpop.trf.xlu0
    %v514 = vpop.trf.xlu0
    %v515 = vpop.trf.xlu0
    %v516 = vpop.trf.xlu0
    %v517 = vpop.trf.xlu0
    %v518 = vpop.trf.xlu0
    %v519 = vpop.trf.xlu0
    %v520 = vpop.trf.xlu0
    %v521 = vpop.trf.xlu0
    %v522 = vpop.trf.xlu0
    %v523 = vpop.trf.xlu0
    %v524 = vpop.trf.xlu0
    %v525 = vpop.trf.xlu0
    %v526 = vpop.trf.xlu0
    %527 = vxpose.xlu0.b32.start [1/16] %v388, 128
    %528 = vxpose.xlu0.b32.cont [2/16] %v389, 128
    %529 = vxpose.xlu0.b32.cont [3/16] %v390, 128
    %530 = vxpose.xlu0.b32.cont [4/16] %v391, 128
    %531 = vxpose.xlu0.b32.cont [5/16] %v392, 128
    %532 = vxpose.xlu0.b32.cont [6/16] %v393, 128
    %533 = vxpose.xlu0.b32.cont [7/16] %v394, 128
    %534 = vxpose.xlu0.b32.cont [8/16] %v395, 128
    %535 = vxpose.xlu0.b32.cont [9/16] %v396, 128
    %536 = vxpose.xlu0.b32.cont [10/16] %v397, 128
    %537 = vxpose.xlu0.b32.cont [11/16] %v398, 128
    %538 = vxpose.xlu0.b32.cont [12/16] 0.0, 128
    %539 = vxpose.xlu0.b32.cont [13/16] 0.0, 128
    %540 = vxpose.xlu0.b32.cont [14/16] 0.0, 128
    %541 = vxpose.xlu0.b32.cont [15/16] 0.0, 128
    %542 = vxpose.xlu0.b32.end [16/16] 0.0, 128
    %v543 = vpop.trf.xlu0
    %v544 = vpop.trf.xlu0
    %v545 = vpop.trf.xlu0
    %v546 = vpop.trf.xlu0
    %v547 = vpop.trf.xlu0
    %v548 = vpop.trf.xlu0
    %v549 = vpop.trf.xlu0
    %v550 = vpop.trf.xlu0
    %v551 = vpop.trf.xlu0
    %v552 = vpop.trf.xlu0
    %v553 = vpop.trf.xlu0
    %v554 = vpop.trf.xlu0
    %v555 = vpop.trf.xlu0
    %v556 = vpop.trf.xlu0
    %v557 = vpop.trf.xlu0
    %v558 = vpop.trf.xlu0
    %v559 = vpack.c.bf16 %v415, %v179
    %v560 = vpack.c.bf16 %v447, %v211
    %v561 = vpack.c.bf16 %v479, %v243
    %v562 = vpack.c.bf16 %v511, %v275
    %v563 = vpack.c.bf16 %v543, %v307
    %v564 = vld [vmem:[#allocation2] sm:$0xff]
    %v565 = vld [vmem:[#allocation2 + $0x8] sm:$0xff]
    %v566 = vld [vmem:[#allocation2 + $0x10] sm:$0xf]
    %v567 = vld [vmem:[#allocation2 + $0x14] sm:$0xff]
    %v568 = vld [vmem:[#allocation2 + $0x1c] sm:$0xff]
    %v569 = vld [vmem:[#allocation2 + $0x24] sm:$0xf]
    %v570 = vld [vmem:[#allocation2 + $0x28] sm:$0xff]
    %v571 = vld [vmem:[#allocation2 + $0x30] sm:$0xff]
    %v572 = vld [vmem:[#allocation2 + $0x38] sm:$0xf]
    %v573 = vld [vmem:[#allocation2 + $0x3c] sm:$0xff]
    %v574 = vld [vmem:[#allocation2 + $0x44] sm:$0xff]
    %v575 = vld [vmem:[#allocation2 + $0x4c] sm:$0xf]
    %v576 = vld [vmem:[#allocation2 + $0x50] sm:$0xff]
    %v577 = vld [vmem:[#allocation2 + $0x58] sm:$0xff]
    %v578 = vld [vmem:[#allocation2 + $0x60] sm:$0xf]
    %v579 = vld [vmem:[#allocation2 + $0x64] sm:$0xff]
    %v580 = vld [vmem:[#allocation2 + $0x6c] sm:$0xff]
    %v581 = vld [vmem:[#allocation2 + $0x74] sm:$0xf]
    %v582 = vld [vmem:[#allocation2 + $0x78] sm:$0xff]
    %v583 = vld [vmem:[#allocation2 + $0x80] sm:$0xff]
    %v584 = vld [vmem:[#allocation2 + $0x88] sm:$0xf]
    %v585 = vld [vmem:[#allocation2 + $0x8c] sm:$0xff]
    %v586 = vld [vmem:[#allocation2 + $0x94] sm:$0xff]
    %v587 = vld [vmem:[#allocation2 + $0x9c] sm:$0xf]
    %v588 = vld [vmem:[#allocation2 + $0xa0] sm:$0xff]
    %v589 = vld [vmem:[#allocation2 + $0xa8] sm:$0xff]
    %v590 = vld [vmem:[#allocation2 + $0xb0] sm:$0xf]
    %v591 = vld [vmem:[#allocation2 + $0xb4] sm:$0xff]
    %v592 = vld [vmem:[#allocation2 + $0xbc] sm:$0xff]
    %v593 = vld [vmem:[#allocation2 + $0xc4] sm:$0xf]
    %v594 = vld [vmem:[#allocation2 + $0xc8] sm:$0xff]
    %v595 = vld [vmem:[#allocation2 + $0xd0] sm:$0xff]
    %v596 = vld [vmem:[#allocation2 + $0xd8] sm:$0xf]
    %v597 = vld [vmem:[#allocation2 + $0xdc] sm:$0xff]
    %v598 = vld [vmem:[#allocation2 + $0xe4] sm:$0xff]
    %v599 = vld [vmem:[#allocation2 + $0xec] sm:$0xf]
    %v600 = vld [vmem:[#allocation2 + $0xf0] sm:$0xff]
    %v601 = vld [vmem:[#allocation2 + $0xf8] sm:$0xff]
    %v602 = vld [vmem:[#allocation2 + $0x100] sm:$0xf]
    %v603 = vld [vmem:[#allocation2 + $0x104] sm:$0xff]
    %v604 = vld [vmem:[#allocation2 + $0x10c] sm:$0xff]
    %v605 = vld [vmem:[#allocation2 + $0x114] sm:$0xf]
    %v606 = vld [vmem:[#allocation2 + $0x118] sm:$0xff]
    %v607 = vld [vmem:[#allocation2 + $0x120] sm:$0xff]
    %v608 = vld [vmem:[#allocation2 + $0x128] sm:$0xf]
    %v609 = vld [vmem:[#allocation2 + $0x12c] sm:$0xff]
    %v610 = vld [vmem:[#allocation2 + $0x134] sm:$0xff]
    %v611 = vld [vmem:[#allocation2 + $0x13c] sm:$0xf]
    %v612 = vld [vmem:[#allocation2 + $0x140] sm:$0xff]
    %v613 = vld [vmem:[#allocation2 + $0x148] sm:$0xff]
    %v614 = vld [vmem:[#allocation2 + $0x150] sm:$0xf]
    %v615 = vld [vmem:[#allocation2 + $0x154] sm:$0xff]
    %v616 = vld [vmem:[#allocation2 + $0x15c] sm:$0xff]
    %v617 = vld [vmem:[#allocation2 + $0x164] sm:$0xf]
    %v618 = vld [vmem:[#allocation2 + $0x168] sm:$0xff]
    %v619 = vld [vmem:[#allocation2 + $0x170] sm:$0xff]
    %v620 = vld [vmem:[#allocation2 + $0x178] sm:$0xf]
    %v621 = vld [vmem:[#allocation2 + $0x17c] sm:$0xff]
    %v622 = vld [vmem:[#allocation2 + $0x184] sm:$0xff]
    %v623 = vld [vmem:[#allocation2 + $0x18c] sm:$0xf]
    %v624 = vld [vmem:[#allocation2 + $0x190] sm:$0xff]
    %v625 = vld [vmem:[#allocation2 + $0x198] sm:$0xff]
    %v626 = vld [vmem:[#allocation2 + $0x1a0] sm:$0xf]
    %v627 = vld [vmem:[#allocation2 + $0x1a4] sm:$0xff]
    %v628 = vld [vmem:[#allocation2 + $0x1ac] sm:$0xff]
    %v629 = vld [vmem:[#allocation2 + $0x1b4] sm:$0xf]
    %v630 = vld [vmem:[#allocation2 + $0x1b8] sm:$0xff]
    %v631 = vld [vmem:[#allocation2 + $0x1c0] sm:$0xff]
    %v632 = vld [vmem:[#allocation2 + $0x1c8] sm:$0xf]
    %v633 = vld [vmem:[#allocation2 + $0x1cc] sm:$0xff]
    %v634 = vld [vmem:[#allocation2 + $0x1d4] sm:$0xff]
    %v635 = vld [vmem:[#allocation2 + $0x1dc] sm:$0xf]
    %v636 = vld [vmem:[#allocation2 + $0x1e0] sm:$0xff]
    %v637 = vld [vmem:[#allocation2 + $0x1e8] sm:$0xff]
    %v638 = vld [vmem:[#allocation2 + $0x1f0] sm:$0xf]
    %v639 = vld [vmem:[#allocation2 + $0x1f4] sm:$0xff]
    %v640 = vld [vmem:[#allocation2 + $0x1fc] sm:$0xff]
    %v641 = vld [vmem:[#allocation2 + $0x204] sm:$0xf]
    %v642 = vld [vmem:[#allocation2 + $0x208] sm:$0xff]
    %v643 = vld [vmem:[#allocation2 + $0x210] sm:$0xff]
    %v644 = vld [vmem:[#allocation2 + $0x218] sm:$0xf]
    %v645 = vld [vmem:[#allocation2 + $0x21c] sm:$0xff]
    %v646 = vld [vmem:[#allocation2 + $0x224] sm:$0xff]
    %v647 = vld [vmem:[#allocation2 + $0x22c] sm:$0xf]
    %v648 = vld [vmem:[#allocation2 + $0x230] sm:$0xff]
    %v649 = vld [vmem:[#allocation2 + $0x238] sm:$0xff]
    %v650 = vld [vmem:[#allocation2 + $0x240] sm:$0xf]
    %v651 = vld [vmem:[#allocation2 + $0x244] sm:$0xff]
    %v652 = vld [vmem:[#allocation2 + $0x24c] sm:$0xff]
    %v653 = vld [vmem:[#allocation2 + $0x254] sm:$0xf]
    %v654 = vld [vmem:[#allocation2 + $0x258] sm:$0xff]
    %v655 = vld [vmem:[#allocation2 + $0x260] sm:$0xff]
    %v656 = vld [vmem:[#allocation2 + $0x268] sm:$0xf]
    %v657 = vld [vmem:[#allocation2 + $0x26c] sm:$0xff]
    %v658 = vld [vmem:[#allocation2 + $0x274] sm:$0xff]
    %v659 = vld [vmem:[#allocation2 + $0x27c] sm:$0xf]
    %v660 = vld [vmem:[#allocation2 + $0x280] sm:$0xff]
    %v661 = vld [vmem:[#allocation2 + $0x288] sm:$0xff]
    %v662 = vld [vmem:[#allocation2 + $0x290] sm:$0xf]
    %v663 = vld [vmem:[#allocation2 + $0x294] sm:$0xff]
    %v664 = vld [vmem:[#allocation2 + $0x29c] sm:$0xff]
    %v665 = vld [vmem:[#allocation2 + $0x2a4] sm:$0xf]
    %v666 = vld [vmem:[#allocation2 + $0x2a8] sm:$0xff]
    %v667 = vld [vmem:[#allocation2 + $0x2b0] sm:$0xff]
    %v668 = vld [vmem:[#allocation2 + $0x2b8] sm:$0xf]
    %v669 = vld [vmem:[#allocation2 + $0x2bc] sm:$0xff]
    %v670 = vld [vmem:[#allocation2 + $0x2c4] sm:$0xff]
    %v671 = vld [vmem:[#allocation2 + $0x2cc] sm:$0xf]
    %v672 = vld [vmem:[#allocation2 + $0x2d0] sm:$0xff]
    %v673 = vld [vmem:[#allocation2 + $0x2d8] sm:$0xff]
    %v674 = vld [vmem:[#allocation2 + $0x2e0] sm:$0xf]
    %v675 = vld [vmem:[#allocation2 + $0x2e4] sm:$0xff]
    %v676 = vld [vmem:[#allocation2 + $0x2ec] sm:$0xff]
    %v677 = vld [vmem:[#allocation2 + $0x2f4] sm:$0xf]
    %v678 = vld [vmem:[#allocation2 + $0x2f8] sm:$0xff]
    %v679 = vld [vmem:[#allocation2 + $0x300] sm:$0xff]
    %v680 = vld [vmem:[#allocation2 + $0x308] sm:$0xf]
    %v681 = vld [vmem:[#allocation2 + $0x30c] sm:$0xff]
    %v682 = vld [vmem:[#allocation2 + $0x314] sm:$0xff]
    %v683 = vld [vmem:[#allocation2 + $0x31c] sm:$0xf]
    %v684 = vld [vmem:[#allocation2 + $0x320] sm:$0xff]
    %v685 = vld [vmem:[#allocation2 + $0x328] sm:$0xff]
    %v686 = vld [vmem:[#allocation2 + $0x330] sm:$0xf]
    %v687 = vld [vmem:[#allocation2 + $0x334] sm:$0xff]
    %v688 = vld [vmem:[#allocation2 + $0x33c] sm:$0xff]
    %v689 = vld [vmem:[#allocation2 + $0x344] sm:$0xf]
    %v690 = vld [vmem:[#allocation2 + $0x348] sm:$0xff]
    %v691 = vld [vmem:[#allocation2 + $0x350] sm:$0xff]
    %v692 = vld [vmem:[#allocation2 + $0x358] sm:$0xf]
    %v693 = vld [vmem:[#allocation2 + $0x35c] sm:$0xff]
    %v694 = vld [vmem:[#allocation2 + $0x364] sm:$0xff]
    %v695 = vld [vmem:[#allocation2 + $0x36c] sm:$0xf]
    %v696 = vld [vmem:[#allocation2 + $0x370] sm:$0xff]
    %v697 = vld [vmem:[#allocation2 + $0x378] sm:$0xff]
    %v698 = vld [vmem:[#allocation2 + $0x380] sm:$0xf]
    %v699 = vld [vmem:[#allocation2 + $0x384] sm:$0xff]
    %v700 = vld [vmem:[#allocation2 + $0x38c] sm:$0xff]
    %v701 = vld [vmem:[#allocation2 + $0x394] sm:$0xf]
    %v702 = vld [vmem:[#allocation2 + $0x398] sm:$0xff]
    %v703 = vld [vmem:[#allocation2 + $0x3a0] sm:$0xff]
    %v704 = vld [vmem:[#allocation2 + $0x3a8] sm:$0xf]
    %v705 = vld [vmem:[#allocation2 + $0x3ac] sm:$0xff]
    %v706 = vld [vmem:[#allocation2 + $0x3b4] sm:$0xff]
    %v707 = vld [vmem:[#allocation2 + $0x3bc] sm:$0xf]
    %v708 = vld [vmem:[#allocation2 + $0x3c0] sm:$0xff]
    %v709 = vld [vmem:[#allocation2 + $0x3c8] sm:$0xff]
    %v710 = vld [vmem:[#allocation2 + $0x3d0] sm:$0xf]
    %v711 = vld [vmem:[#allocation2 + $0x3d4] sm:$0xff]
    %v712 = vld [vmem:[#allocation2 + $0x3dc] sm:$0xff]
    %v713 = vld [vmem:[#allocation2 + $0x3e4] sm:$0xf]
    %v714 = vld [vmem:[#allocation2 + $0x3e8] sm:$0xff]
    %v715 = vld [vmem:[#allocation2 + $0x3f0] sm:$0xff]
    %v716 = vld [vmem:[#allocation2 + $0x3f8] sm:$0xf]
    %v717 = vld [vmem:[#allocation2 + $0x3fc] sm:$0xff]
    %v718 = vld [vmem:[#allocation2 + $0x404] sm:$0xff]
    %v719 = vld [vmem:[#allocation2 + $0x40c] sm:$0xf]
    %v720 = vld [vmem:[#allocation2 + $0x410] sm:$0xff]
    %v721 = vld [vmem:[#allocation2 + $0x418] sm:$0xff]
    %v722 = vld [vmem:[#allocation2 + $0x420] sm:$0xf]
    %v723 = vld [vmem:[#allocation2 + $0x424] sm:$0xff]
    %v724 = vld [vmem:[#allocation2 + $0x42c] sm:$0xff]
    %v725 = vld [vmem:[#allocation2 + $0x434] sm:$0xf]
    %v726 = vld [vmem:[#allocation2 + $0x438] sm:$0xff]
    %v727 = vld [vmem:[#allocation2 + $0x440] sm:$0xff]
    %v728 = vld [vmem:[#allocation2 + $0x448] sm:$0xf]
    %v729 = vld [vmem:[#allocation2 + $0x44c] sm:$0xff]
    %v730 = vld [vmem:[#allocation2 + $0x454] sm:$0xff]
    %v731 = vld [vmem:[#allocation2 + $0x45c] sm:$0xf]
    %v732 = vld [vmem:[#allocation2 + $0x460] sm:$0xff]
    %v733 = vld [vmem:[#allocation2 + $0x468] sm:$0xff]
    %v734 = vld [vmem:[#allocation2 + $0x470] sm:$0xf]
    %v735 = vld [vmem:[#allocation2 + $0x474] sm:$0xff]
    %v736 = vld [vmem:[#allocation2 + $0x47c] sm:$0xff]
    %v737 = vld [vmem:[#allocation2 + $0x484] sm:$0xf]
    %v738 = vld [vmem:[#allocation2 + $0x488] sm:$0xff]
    %v739 = vld [vmem:[#allocation2 + $0x490] sm:$0xff]
    %v740 = vld [vmem:[#allocation2 + $0x498] sm:$0xf]
    %v741 = vld [vmem:[#allocation2 + $0x49c] sm:$0xff]
    %v742 = vld [vmem:[#allocation2 + $0x4a4] sm:$0xff]
    %v743 = vld [vmem:[#allocation2 + $0x4ac] sm:$0xf]
    %v744 = vld [vmem:[#allocation2 + $0x4b0] sm:$0xff]
    %v745 = vld [vmem:[#allocation2 + $0x4b8] sm:$0xff]
    %v746 = vld [vmem:[#allocation2 + $0x4c0] sm:$0xf]
    %v747 = vld [vmem:[#allocation2 + $0x4c4] sm:$0xff]
    %v748 = vld [vmem:[#allocation2 + $0x4cc] sm:$0xff]
    %v749 = vld [vmem:[#allocation2 + $0x4d4] sm:$0xf]
    %v750 = vld [vmem:[#allocation2 + $0x4d8] sm:$0xff]
    %v751 = vld [vmem:[#allocation2 + $0x4e0] sm:$0xff]
    %v752 = vld [vmem:[#allocation2 + $0x4e8] sm:$0xf]
    %v753 = vld [vmem:[#allocation2 + $0x4ec] sm:$0xff]
    %v754 = vld [vmem:[#allocation2 + $0x4f4] sm:$0xff]
    %v755 = vld [vmem:[#allocation2 + $0x4fc] sm:$0xf]
    %v756 = vld [vmem:[#allocation2 + $0x500] sm:$0xff]
    %v757 = vld [vmem:[#allocation2 + $0x508] sm:$0xff]
    %v758 = vld [vmem:[#allocation2 + $0x510] sm:$0xf]
    %v759 = vld [vmem:[#allocation2 + $0x514] sm:$0xff]
    %v760 = vld [vmem:[#allocation2 + $0x51c] sm:$0xff]
    %v761 = vld [vmem:[#allocation2 + $0x524] sm:$0xf]
    %v762 = vld [vmem:[#allocation2 + $0x528] sm:$0xff]
    %v763 = vld [vmem:[#allocation2 + $0x530] sm:$0xff]
    %v764 = vld [vmem:[#allocation2 + $0x538] sm:$0xf]
    %v765 = vld [vmem:[#allocation2 + $0x53c] sm:$0xff]
    %v766 = vld [vmem:[#allocation2 + $0x544] sm:$0xff]
    %v767 = vld [vmem:[#allocation2 + $0x54c] sm:$0xf]
    %v768 = vld [vmem:[#allocation2 + $0x550] sm:$0xff]
    %v769 = vld [vmem:[#allocation2 + $0x558] sm:$0xff]
    %v770 = vld [vmem:[#allocation2 + $0x560] sm:$0xf]
    %v771 = vld [vmem:[#allocation2 + $0x564] sm:$0xff]
    %v772 = vld [vmem:[#allocation2 + $0x56c] sm:$0xff]
    %v773 = vld [vmem:[#allocation2 + $0x574] sm:$0xf]
    %v774 = vld [vmem:[#allocation2 + $0x578] sm:$0xff]
    %v775 = vld [vmem:[#allocation2 + $0x580] sm:$0xff]
    %v776 = vld [vmem:[#allocation2 + $0x588] sm:$0xf]
    %v777 = vld [vmem:[#allocation2 + $0x58c] sm:$0xff]
    %v778 = vld [vmem:[#allocation2 + $0x594] sm:$0xff]
    %v779 = vld [vmem:[#allocation2 + $0x59c] sm:$0xf]
    %v780 = vld [vmem:[#allocation2 + $0x5a0] sm:$0xff]
    %v781 = vld [vmem:[#allocation2 + $0x5a8] sm:$0xff]
    %v782 = vld [vmem:[#allocation2 + $0x5b0] sm:$0xf]
    %v783 = vld [vmem:[#allocation2 + $0x5b4] sm:$0xff]
    %v784 = vld [vmem:[#allocation2 + $0x5bc] sm:$0xff]
    %v785 = vld [vmem:[#allocation2 + $0x5c4] sm:$0xf]
    %v786 = vld [vmem:[#allocation2 + $0x5c8] sm:$0xff]
    %v787 = vld [vmem:[#allocation2 + $0x5d0] sm:$0xff]
    %v788 = vld [vmem:[#allocation2 + $0x5d8] sm:$0xf]
    %v789 = vld [vmem:[%s5] sm:$0x1f]
    %v791 = vlaneseq
    %v792 = vshrl.u32 %v791, 7
    %v793 = vsub.s32 0, %v792
    %v794 = vrot.slane %v789, %v793
    %v795 = vlaneseq
    %v796 = vshrl.u32 %v795, 7
    %v797 = vsub.s32 1, %v796
    %v798 = vrot.slane %v789, %v797
    %v799 = vlaneseq
    %v800 = vshrl.u32 %v799, 7
    %v801 = vsub.s32 2, %v800
    %v802 = vrot.slane %v789, %v801
    %v803 = vlaneseq
    %v804 = vshrl.u32 %v803, 7
    %v805 = vsub.s32 3, %v804
    %v806 = vrot.slane %v789, %v805
    %v807 = vlaneseq
    %v808 = vshrl.u32 %v807, 7
    %v809 = vsub.s32 4, %v808
    %v810 = vrot.slane %v789, %v809
    %v1041 = vunpack.c.l.b16 %v564
    %v1042 = vunpack.c.h.b16 %v564
    %v1043 = vunpack.c.l.b16 %v565
    %v1044 = vunpack.c.h.b16 %v565
    %v1045 = vunpack.c.l.b16 %v566
    %v1046 = vunpack.c.l.b16 %v567
    %v1047 = vunpack.c.h.b16 %v567
    %v1048 = vunpack.c.l.b16 %v568
    %v1049 = vunpack.c.h.b16 %v568
    %v1050 = vunpack.c.l.b16 %v569
    %v1051 = vunpack.c.l.b16 %v570
    %v1052 = vunpack.c.h.b16 %v570
    %v1053 = vunpack.c.l.b16 %v571
    %v1054 = vunpack.c.h.b16 %v571
    %v1055 = vunpack.c.l.b16 %v572
    %v1056 = vunpack.c.l.b16 %v573
    %v1057 = vunpack.c.h.b16 %v573
    %v1058 = vunpack.c.l.b16 %v574
    %v1059 = vunpack.c.h.b16 %v574
    %v1060 = vunpack.c.l.b16 %v575
    %v1061 = vunpack.c.l.b16 %v576
    %v1062 = vunpack.c.h.b16 %v576
    %v1063 = vunpack.c.l.b16 %v577
    %v1064 = vunpack.c.h.b16 %v577
    %v1065 = vunpack.c.l.b16 %v578
    %v1066 = vunpack.c.l.b16 %v579
    %v1067 = vunpack.c.h.b16 %v579
    %v1068 = vunpack.c.l.b16 %v580
    %v1069 = vunpack.c.h.b16 %v580
    %v1070 = vunpack.c.l.b16 %v581
    %v1071 = vunpack.c.l.b16 %v582
    %v1072 = vunpack.c.h.b16 %v582
    %v1073 = vunpack.c.l.b16 %v583
    %v1074 = vunpack.c.h.b16 %v583
    %v1075 = vunpack.c.l.b16 %v584
    %v1076 = vunpack.c.l.b16 %v585
    %v1077 = vunpack.c.h.b16 %v585
    %v1078 = vunpack.c.l.b16 %v586
    %v1079 = vunpack.c.h.b16 %v586
    %v1080 = vunpack.c.l.b16 %v587
    %v1081 = vunpack.c.l.b16 %v588
    %v1082 = vunpack.c.h.b16 %v588
    %v1083 = vunpack.c.l.b16 %v589
    %v1084 = vunpack.c.h.b16 %v589
    %v1085 = vunpack.c.l.b16 %v590
    %v1086 = vunpack.c.l.b16 %v591
    %v1087 = vunpack.c.h.b16 %v591
    %v1088 = vunpack.c.l.b16 %v592
    %v1089 = vunpack.c.h.b16 %v592
    %v1090 = vunpack.c.l.b16 %v593
    %v1091 = vunpack.c.l.b16 %v594
    %v1092 = vunpack.c.h.b16 %v594
    %v1093 = vunpack.c.l.b16 %v595
    %v1094 = vunpack.c.h.b16 %v595
    %v1095 = vunpack.c.l.b16 %v596
    %v1096 = vunpack.c.l.b16 %v597
    %v1097 = vunpack.c.h.b16 %v597
    %v1098 = vunpack.c.l.b16 %v598
    %v1099 = vunpack.c.h.b16 %v598
    %v1100 = vunpack.c.l.b16 %v599
    %v1101 = vunpack.c.l.b16 %v600
    %v1102 = vunpack.c.h.b16 %v600
    %v1103 = vunpack.c.l.b16 %v601
    %v1104 = vunpack.c.h.b16 %v601
    %v1105 = vunpack.c.l.b16 %v602
    %v1106 = vunpack.c.l.b16 %v603
    %v1107 = vunpack.c.h.b16 %v603
    %v1108 = vunpack.c.l.b16 %v604
    %v1109 = vunpack.c.h.b16 %v604
    %v1110 = vunpack.c.l.b16 %v605
    %v1111 = vunpack.c.l.b16 %v606
    %v1112 = vunpack.c.h.b16 %v606
    %v1113 = vunpack.c.l.b16 %v607
    %v1114 = vunpack.c.h.b16 %v607
    %v1115 = vunpack.c.l.b16 %v608
    %v1116 = vunpack.c.l.b16 %v609
    %v1117 = vunpack.c.h.b16 %v609
    %v1118 = vunpack.c.l.b16 %v610
    %v1119 = vunpack.c.h.b16 %v610
    %v1120 = vunpack.c.l.b16 %v611
    %v1121 = vunpack.c.l.b16 %v612
    %v1122 = vunpack.c.h.b16 %v612
    %v1123 = vunpack.c.l.b16 %v613
    %v1124 = vunpack.c.h.b16 %v613
    %v1125 = vunpack.c.l.b16 %v614
    %v1126 = vunpack.c.l.b16 %v615
    %v1127 = vunpack.c.h.b16 %v615
    %v1128 = vunpack.c.l.b16 %v616
    %v1129 = vunpack.c.h.b16 %v616
    %v1130 = vunpack.c.l.b16 %v617
    %v1131 = vunpack.c.l.b16 %v618
    %v1132 = vunpack.c.h.b16 %v618
    %v1133 = vunpack.c.l.b16 %v619
    %v1134 = vunpack.c.h.b16 %v619
    %v1135 = vunpack.c.l.b16 %v620
    %v1136 = vunpack.c.l.b16 %v621
    %v1137 = vunpack.c.h.b16 %v621
    %v1138 = vunpack.c.l.b16 %v622
    %v1139 = vunpack.c.h.b16 %v622
    %v1140 = vunpack.c.l.b16 %v623
    %v1141 = vunpack.c.l.b16 %v624
    %v1142 = vunpack.c.h.b16 %v624
    %v1143 = vunpack.c.l.b16 %v625
    %v1144 = vunpack.c.h.b16 %v625
    %v1145 = vunpack.c.l.b16 %v626
    %v1146 = vunpack.c.l.b16 %v627
    %v1147 = vunpack.c.h.b16 %v627
    %v1148 = vunpack.c.l.b16 %v628
    %v1149 = vunpack.c.h.b16 %v628
    %v1150 = vunpack.c.l.b16 %v629
    %v1151 = vunpack.c.l.b16 %v630
    %v1152 = vunpack.c.h.b16 %v630
    %v1153 = vunpack.c.l.b16 %v631
    %v1154 = vunpack.c.h.b16 %v631
    %v1155 = vunpack.c.l.b16 %v632
    %v1156 = vunpack.c.l.b16 %v633
    %v1157 = vunpack.c.h.b16 %v633
    %v1158 = vunpack.c.l.b16 %v634
    %v1159 = vunpack.c.h.b16 %v634
    %v1160 = vunpack.c.l.b16 %v635
    %v1161 = vunpack.c.l.b16 %v636
    %v1162 = vunpack.c.h.b16 %v636
    %v1163 = vunpack.c.l.b16 %v637
    %v1164 = vunpack.c.h.b16 %v637
    %v1165 = vunpack.c.l.b16 %v638
    %v1166 = vunpack.c.l.b16 %v639
    %v1167 = vunpack.c.h.b16 %v639
    %v1168 = vunpack.c.l.b16 %v640
    %v1169 = vunpack.c.h.b16 %v640
    %v1170 = vunpack.c.l.b16 %v641
    %v1171 = vunpack.c.l.b16 %v642
    %v1172 = vunpack.c.h.b16 %v642
    %v1173 = vunpack.c.l.b16 %v643
    %v1174 = vunpack.c.h.b16 %v643
    %v1175 = vunpack.c.l.b16 %v644
    %v1176 = vunpack.c.l.b16 %v645
    %v1177 = vunpack.c.h.b16 %v645
    %v1178 = vunpack.c.l.b16 %v646
    %v1179 = vunpack.c.h.b16 %v646
    %v1180 = vunpack.c.l.b16 %v647
    %v1181 = vunpack.c.l.b16 %v648
    %v1182 = vunpack.c.h.b16 %v648
    %v1183 = vunpack.c.l.b16 %v649
    %v1184 = vunpack.c.h.b16 %v649
    %v1185 = vunpack.c.l.b16 %v650
    %v1186 = vunpack.c.l.b16 %v651
    %v1187 = vunpack.c.h.b16 %v651
    %v1188 = vunpack.c.l.b16 %v652
    %v1189 = vunpack.c.h.b16 %v652
    %v1190 = vunpack.c.l.b16 %v653
    %v1191 = vunpack.c.l.b16 %v654
    %v1192 = vunpack.c.h.b16 %v654
    %v1193 = vunpack.c.l.b16 %v655
    %v1194 = vunpack.c.h.b16 %v655
    %v1195 = vunpack.c.l.b16 %v656
    %v1196 = vunpack.c.l.b16 %v657
    %v1197 = vunpack.c.h.b16 %v657
    %v1198 = vunpack.c.l.b16 %v658
    %v1199 = vunpack.c.h.b16 %v658
    %v1200 = vunpack.c.l.b16 %v659
    %v1201 = vunpack.c.l.b16 %v660
    %v1202 = vunpack.c.h.b16 %v660
    %v1203 = vunpack.c.l.b16 %v661
    %v1204 = vunpack.c.h.b16 %v661
    %v1205 = vunpack.c.l.b16 %v662
    %v1206 = vunpack.c.l.b16 %v663
    %v1207 = vunpack.c.h.b16 %v663
    %v1208 = vunpack.c.l.b16 %v664
    %v1209 = vunpack.c.h.b16 %v664
    %v1210 = vunpack.c.l.b16 %v665
    %v1211 = vunpack.c.l.b16 %v666
    %v1212 = vunpack.c.h.b16 %v666
    %v1213 = vunpack.c.l.b16 %v667
    %v1214 = vunpack.c.h.b16 %v667
    %v1215 = vunpack.c.l.b16 %v668
    %v1216 = vunpack.c.l.b16 %v669
    %v1217 = vunpack.c.h.b16 %v669
    %v1218 = vunpack.c.l.b16 %v670
    %v1219 = vunpack.c.h.b16 %v670
    %v1220 = vunpack.c.l.b16 %v671
    %v1221 = vunpack.c.l.b16 %v672
    %v1222 = vunpack.c.h.b16 %v672
    %v1223 = vunpack.c.l.b16 %v673
    %v1224 = vunpack.c.h.b16 %v673
    %v1225 = vunpack.c.l.b16 %v674
    %v1226 = vunpack.c.l.b16 %v675
    %v1227 = vunpack.c.h.b16 %v675
    %v1228 = vunpack.c.l.b16 %v676
    %v1229 = vunpack.c.h.b16 %v676
    %v1230 = vunpack.c.l.b16 %v677
    %v1231 = vunpack.c.l.b16 %v678
    %v1232 = vunpack.c.h.b16 %v678
    %v1233 = vunpack.c.l.b16 %v679
    %v1234 = vunpack.c.h.b16 %v679
    %v1235 = vunpack.c.l.b16 %v680
    %v1236 = vunpack.c.l.b16 %v681
    %v1237 = vunpack.c.h.b16 %v681
    %v1238 = vunpack.c.l.b16 %v682
    %v1239 = vunpack.c.h.b16 %v682
    %v1240 = vunpack.c.l.b16 %v683
    %v1241 = vunpack.c.l.b16 %v684
    %v1242 = vunpack.c.h.b16 %v684
    %v1243 = vunpack.c.l.b16 %v685
    %v1244 = vunpack.c.h.b16 %v685
    %v1245 = vunpack.c.l.b16 %v686
    %v1246 = vunpack.c.l.b16 %v687
    %v1247 = vunpack.c.h.b16 %v687
    %v1248 = vunpack.c.l.b16 %v688
    %v1249 = vunpack.c.h.b16 %v688
    %v1250 = vunpack.c.l.b16 %v689
    %v1251 = vunpack.c.l.b16 %v690
    %v1252 = vunpack.c.h.b16 %v690
    %v1253 = vunpack.c.l.b16 %v691
    %v1254 = vunpack.c.h.b16 %v691
    %v1255 = vunpack.c.l.b16 %v692
    %v1256 = vunpack.c.l.b16 %v693
    %v1257 = vunpack.c.h.b16 %v693
    %v1258 = vunpack.c.l.b16 %v694
    %v1259 = vunpack.c.h.b16 %v694
    %v1260 = vunpack.c.l.b16 %v695
    %v1261 = vunpack.c.l.b16 %v696
    %v1262 = vunpack.c.h.b16 %v696
    %v1263 = vunpack.c.l.b16 %v697
    %v1264 = vunpack.c.h.b16 %v697
    %v1265 = vunpack.c.l.b16 %v698
    %v1266 = vunpack.c.l.b16 %v699
    %v1267 = vunpack.c.h.b16 %v699
    %v1268 = vunpack.c.l.b16 %v700
    %v1269 = vunpack.c.h.b16 %v700
    %v1270 = vunpack.c.l.b16 %v701
    %v1271 = vunpack.c.l.b16 %v702
    %v1272 = vunpack.c.h.b16 %v702
    %v1273 = vunpack.c.l.b16 %v703
    %v1274 = vunpack.c.h.b16 %v703
    %v1275 = vunpack.c.l.b16 %v704
    %v1276 = vunpack.c.l.b16 %v705
    %v1277 = vunpack.c.h.b16 %v705
    %v1278 = vunpack.c.l.b16 %v706
    %v1279 = vunpack.c.h.b16 %v706
    %v1280 = vunpack.c.l.b16 %v707
    %v1281 = vunpack.c.l.b16 %v708
    %v1282 = vunpack.c.h.b16 %v708
    %v1283 = vunpack.c.l.b16 %v709
    %v1284 = vunpack.c.h.b16 %v709
    %v1285 = vunpack.c.l.b16 %v710
    %v1286 = vunpack.c.l.b16 %v711
    %v1287 = vunpack.c.h.b16 %v711
    %v1288 = vunpack.c.l.b16 %v712
    %v1289 = vunpack.c.h.b16 %v712
    %v1290 = vunpack.c.l.b16 %v713
    %v1291 = vunpack.c.l.b16 %v714
    %v1292 = vunpack.c.h.b16 %v714
    %v1293 = vunpack.c.l.b16 %v715
    %v1294 = vunpack.c.h.b16 %v715
    %v1295 = vunpack.c.l.b16 %v716
    %v1296 = vunpack.c.l.b16 %v717
    %v1297 = vunpack.c.h.b16 %v717
    %v1298 = vunpack.c.l.b16 %v718
    %v1299 = vunpack.c.h.b16 %v718
    %v1300 = vunpack.c.l.b16 %v719
    %v1301 = vunpack.c.l.b16 %v720
    %v1302 = vunpack.c.h.b16 %v720
    %v1303 = vunpack.c.l.b16 %v721
    %v1304 = vunpack.c.h.b16 %v721
    %v1305 = vunpack.c.l.b16 %v722
    %v1306 = vunpack.c.l.b16 %v723
    %v1307 = vunpack.c.h.b16 %v723
    %v1308 = vunpack.c.l.b16 %v724
    %v1309 = vunpack.c.h.b16 %v724
    %v1310 = vunpack.c.l.b16 %v725
    %v1311 = vunpack.c.l.b16 %v726
    %v1312 = vunpack.c.h.b16 %v726
    %v1313 = vunpack.c.l.b16 %v727
    %v1314 = vunpack.c.h.b16 %v727
    %v1315 = vunpack.c.l.b16 %v728
    %v1316 = vunpack.c.l.b16 %v729
    %v1317 = vunpack.c.h.b16 %v729
    %v1318 = vunpack.c.l.b16 %v730
    %v1319 = vunpack.c.h.b16 %v730
    %v1320 = vunpack.c.l.b16 %v731
    %v1321 = vunpack.c.l.b16 %v732
    %v1322 = vunpack.c.h.b16 %v732
    %v1323 = vunpack.c.l.b16 %v733
    %v1324 = vunpack.c.h.b16 %v733
    %v1325 = vunpack.c.l.b16 %v734
    %v1326 = vunpack.c.l.b16 %v735
    %v1327 = vunpack.c.h.b16 %v735
    %v1328 = vunpack.c.l.b16 %v736
    %v1329 = vunpack.c.h.b16 %v736
    %v1330 = vunpack.c.l.b16 %v737
    %v1331 = vunpack.c.l.b16 %v738
    %v1332 = vunpack.c.h.b16 %v738
    %v1333 = vunpack.c.l.b16 %v739
    %v1334 = vunpack.c.h.b16 %v739
    %v1335 = vunpack.c.l.b16 %v740
    %v1336 = vunpack.c.l.b16 %v741
    %v1337 = vunpack.c.h.b16 %v741
    %v1338 = vunpack.c.l.b16 %v742
    %v1339 = vunpack.c.h.b16 %v742
    %v1340 = vunpack.c.l.b16 %v743
    %v1341 = vunpack.c.l.b16 %v744
    %v1342 = vunpack.c.h.b16 %v744
    %v1343 = vunpack.c.l.b16 %v745
    %v1344 = vunpack.c.h.b16 %v745
    %v1345 = vunpack.c.l.b16 %v746
    %v1346 = vunpack.c.l.b16 %v747
    %v1347 = vunpack.c.h.b16 %v747
    %v1348 = vunpack.c.l.b16 %v748
    %v1349 = vunpack.c.h.b16 %v748
    %v1350 = vunpack.c.l.b16 %v749
    %v1351 = vunpack.c.l.b16 %v750
    %v1352 = vunpack.c.h.b16 %v750
    %v1353 = vunpack.c.l.b16 %v751
    %v1354 = vunpack.c.h.b16 %v751
    %v1355 = vunpack.c.l.b16 %v752
    %v1356 = vunpack.c.l.b16 %v753
    %v1357 = vunpack.c.h.b16 %v753
    %v1358 = vunpack.c.l.b16 %v754
    %v1359 = vunpack.c.h.b16 %v754
    %v1360 = vunpack.c.l.b16 %v755
    %v1361 = vunpack.c.l.b16 %v756
    %v1362 = vunpack.c.h.b16 %v756
    %v1363 = vunpack.c.l.b16 %v757
    %v1364 = vunpack.c.h.b16 %v757
    %v1365 = vunpack.c.l.b16 %v758
    %v1366 = vunpack.c.l.b16 %v759
    %v1367 = vunpack.c.h.b16 %v759
    %v1368 = vunpack.c.l.b16 %v760
    %v1369 = vunpack.c.h.b16 %v760
    %v1370 = vunpack.c.l.b16 %v761
    %v1371 = vunpack.c.l.b16 %v762
    %v1372 = vunpack.c.h.b16 %v762
    %v1373 = vunpack.c.l.b16 %v763
    %v1374 = vunpack.c.h.b16 %v763
    %v1375 = vunpack.c.l.b16 %v764
    %v1376 = vunpack.c.l.b16 %v765
    %v1377 = vunpack.c.h.b16 %v765
    %v1378 = vunpack.c.l.b16 %v766
    %v1379 = vunpack.c.h.b16 %v766
    %v1380 = vunpack.c.l.b16 %v767
    %v1381 = vunpack.c.l.b16 %v768
    %v1382 = vunpack.c.h.b16 %v768
    %v1383 = vunpack.c.l.b16 %v769
    %v1384 = vunpack.c.h.b16 %v769
    %v1385 = vunpack.c.l.b16 %v770
    %v1386 = vunpack.c.l.b16 %v771
    %v1387 = vunpack.c.h.b16 %v771
    %v1388 = vunpack.c.l.b16 %v772
    %v1389 = vunpack.c.h.b16 %v772
    %v1390 = vunpack.c.l.b16 %v773
    %v1391 = vunpack.c.l.b16 %v774
    %v1392 = vunpack.c.h.b16 %v774
    %v1393 = vunpack.c.l.b16 %v775
    %v1394 = vunpack.c.h.b16 %v775
    %v1395 = vunpack.c.l.b16 %v776
    %v1396 = vunpack.c.l.b16 %v777
    %v1397 = vunpack.c.h.b16 %v777
    %v1398 = vunpack.c.l.b16 %v778
    %v1399 = vunpack.c.h.b16 %v778
    %v1400 = vunpack.c.l.b16 %v779
    %v1401 = vunpack.c.l.b16 %v780
    %v1402 = vunpack.c.h.b16 %v780
    %v1403 = vunpack.c.l.b16 %v781
    %v1404 = vunpack.c.h.b16 %v781
    %v1405 = vunpack.c.l.b16 %v782
    %v1406 = vunpack.c.l.b16 %v783
    %v1407 = vunpack.c.h.b16 %v783
    %v1408 = vunpack.c.l.b16 %v784
    %v1409 = vunpack.c.h.b16 %v784
    %v1410 = vunpack.c.l.b16 %v785
    %v1411 = vunpack.c.l.b16 %v786
    %v1412 = vunpack.c.h.b16 %v786
    %v1413 = vunpack.c.l.b16 %v787
    %v1414 = vunpack.c.h.b16 %v787
    %v1415 = vunpack.c.l.b16 %v788
    %v1416 = vpack.c.b16 %v1046, %v1041
    %v1417 = vpack.c.b16 %v1047, %v1042
    %v1418 = vpack.c.b16 %v1048, %v1043
    %v1419 = vpack.c.b16 %v1049, %v1044
    %v1420 = vpack.c.b16 %v1050, %v1045
    %v1421 = vpack.c.b16 %v1056, %v1051
    %v1422 = vpack.c.b16 %v1057, %v1052
    %v1423 = vpack.c.b16 %v1058, %v1053
    %v1424 = vpack.c.b16 %v1059, %v1054
    %v1425 = vpack.c.b16 %v1060, %v1055
    %v1426 = vpack.c.b16 %v1066, %v1061
    %v1427 = vpack.c.b16 %v1067, %v1062
    %v1428 = vpack.c.b16 %v1068, %v1063
    %v1429 = vpack.c.b16 %v1069, %v1064
    %v1430 = vpack.c.b16 %v1070, %v1065
    %v1431 = vpack.c.b16 %v1076, %v1071
    %v1432 = vpack.c.b16 %v1077, %v1072
    %v1433 = vpack.c.b16 %v1078, %v1073
    %v1434 = vpack.c.b16 %v1079, %v1074
    %v1435 = vpack.c.b16 %v1080, %v1075
    %v1436 = vpack.c.b16 %v1086, %v1081
    %v1437 = vpack.c.b16 %v1087, %v1082
    %v1438 = vpack.c.b16 %v1088, %v1083
    %v1439 = vpack.c.b16 %v1089, %v1084
    %v1440 = vpack.c.b16 %v1090, %v1085
    %v1441 = vpack.c.b16 %v1096, %v1091
    %v1442 = vpack.c.b16 %v1097, %v1092
    %v1443 = vpack.c.b16 %v1098, %v1093
    %v1444 = vpack.c.b16 %v1099, %v1094
    %v1445 = vpack.c.b16 %v1100, %v1095
    %v1446 = vpack.c.b16 %v1106, %v1101
    %v1447 = vpack.c.b16 %v1107, %v1102
    %v1448 = vpack.c.b16 %v1108, %v1103
    %v1449 = vpack.c.b16 %v1109, %v1104
    %v1450 = vpack.c.b16 %v1110, %v1105
    %v1451 = vpack.c.b16 %v1116, %v1111
    %v1452 = vpack.c.b16 %v1117, %v1112
    %v1453 = vpack.c.b16 %v1118, %v1113
    %v1454 = vpack.c.b16 %v1119, %v1114
    %v1455 = vpack.c.b16 %v1120, %v1115
    %v1456 = vpack.c.b16 %v1126, %v1121
    %v1457 = vpack.c.b16 %v1127, %v1122
    %v1458 = vpack.c.b16 %v1128, %v1123
    %v1459 = vpack.c.b16 %v1129, %v1124
    %v1460 = vpack.c.b16 %v1130, %v1125
    %v1461 = vpack.c.b16 %v1136, %v1131
    %v1462 = vpack.c.b16 %v1137, %v1132
    %v1463 = vpack.c.b16 %v1138, %v1133
    %v1464 = vpack.c.b16 %v1139, %v1134
    %v1465 = vpack.c.b16 %v1140, %v1135
    %v1466 = vpack.c.b16 %v1146, %v1141
    %v1467 = vpack.c.b16 %v1147, %v1142
    %v1468 = vpack.c.b16 %v1148, %v1143
    %v1469 = vpack.c.b16 %v1149, %v1144
    %v1470 = vpack.c.b16 %v1150, %v1145
    %v1471 = vpack.c.b16 %v1156, %v1151
    %v1472 = vpack.c.b16 %v1157, %v1152
    %v1473 = vpack.c.b16 %v1158, %v1153
    %v1474 = vpack.c.b16 %v1159, %v1154
    %v1475 = vpack.c.b16 %v1160, %v1155
    %v1476 = vpack.c.b16 %v1166, %v1161
    %v1477 = vpack.c.b16 %v1167, %v1162
    %v1478 = vpack.c.b16 %v1168, %v1163
    %v1479 = vpack.c.b16 %v1169, %v1164
    %v1480 = vpack.c.b16 %v1170, %v1165
    %v1481 = vpack.c.b16 %v1176, %v1171
    %v1482 = vpack.c.b16 %v1177, %v1172
    %v1483 = vpack.c.b16 %v1178, %v1173
    %v1484 = vpack.c.b16 %v1179, %v1174
    %v1485 = vpack.c.b16 %v1180, %v1175
    %v1486 = vpack.c.b16 %v1186, %v1181
    %v1487 = vpack.c.b16 %v1187, %v1182
    %v1488 = vpack.c.b16 %v1188, %v1183
    %v1489 = vpack.c.b16 %v1189, %v1184
    %v1490 = vpack.c.b16 %v1190, %v1185
    %v1491 = vpack.c.b16 %v1196, %v1191
    %v1492 = vpack.c.b16 %v1197, %v1192
    %v1493 = vpack.c.b16 %v1198, %v1193
    %v1494 = vpack.c.b16 %v1199, %v1194
    %v1495 = vpack.c.b16 %v1200, %v1195
    %v1496 = vpack.c.b16 %v1206, %v1201
    %v1497 = vpack.c.b16 %v1207, %v1202
    %v1498 = vpack.c.b16 %v1208, %v1203
    %v1499 = vpack.c.b16 %v1209, %v1204
    %v1500 = vpack.c.b16 %v1210, %v1205
    %v1501 = vpack.c.b16 %v1216, %v1211
    %v1502 = vpack.c.b16 %v1217, %v1212
    %v1503 = vpack.c.b16 %v1218, %v1213
    %v1504 = vpack.c.b16 %v1219, %v1214
    %v1505 = vpack.c.b16 %v1220, %v1215
    %v1506 = vpack.c.b16 %v1226, %v1221
    %v1507 = vpack.c.b16 %v1227, %v1222
    %v1508 = vpack.c.b16 %v1228, %v1223
    %v1509 = vpack.c.b16 %v1229, %v1224
    %v1510 = vpack.c.b16 %v1230, %v1225
    %v1511 = vpack.c.b16 %v1236, %v1231
    %v1512 = vpack.c.b16 %v1237, %v1232
    %v1513 = vpack.c.b16 %v1238, %v1233
    %v1514 = vpack.c.b16 %v1239, %v1234
    %v1515 = vpack.c.b16 %v1240, %v1235
    %v1516 = vpack.c.b16 %v1246, %v1241
    %v1517 = vpack.c.b16 %v1247, %v1242
    %v1518 = vpack.c.b16 %v1248, %v1243
    %v1519 = vpack.c.b16 %v1249, %v1244
    %v1520 = vpack.c.b16 %v1250, %v1245
    %v1521 = vpack.c.b16 %v1256, %v1251
    %v1522 = vpack.c.b16 %v1257, %v1252
    %v1523 = vpack.c.b16 %v1258, %v1253
    %v1524 = vpack.c.b16 %v1259, %v1254
    %v1525 = vpack.c.b16 %v1260, %v1255
    %v1526 = vpack.c.b16 %v1266, %v1261
    %v1527 = vpack.c.b16 %v1267, %v1262
    %v1528 = vpack.c.b16 %v1268, %v1263
    %v1529 = vpack.c.b16 %v1269, %v1264
    %v1530 = vpack.c.b16 %v1270, %v1265
    %v1531 = vpack.c.b16 %v1276, %v1271
    %v1532 = vpack.c.b16 %v1277, %v1272
    %v1533 = vpack.c.b16 %v1278, %v1273
    %v1534 = vpack.c.b16 %v1279, %v1274
    %v1535 = vpack.c.b16 %v1280, %v1275
    %v1536 = vpack.c.b16 %v1286, %v1281
    %v1537 = vpack.c.b16 %v1287, %v1282
    %v1538 = vpack.c.b16 %v1288, %v1283
    %v1539 = vpack.c.b16 %v1289, %v1284
    %v1540 = vpack.c.b16 %v1290, %v1285
    %v1541 = vpack.c.b16 %v1296, %v1291
    %v1542 = vpack.c.b16 %v1297, %v1292
    %v1543 = vpack.c.b16 %v1298, %v1293
    %v1544 = vpack.c.b16 %v1299, %v1294
    %v1545 = vpack.c.b16 %v1300, %v1295
    %v1546 = vpack.c.b16 %v1306, %v1301
    %v1547 = vpack.c.b16 %v1307, %v1302
    %v1548 = vpack.c.b16 %v1308, %v1303
    %v1549 = vpack.c.b16 %v1309, %v1304
    %v1550 = vpack.c.b16 %v1310, %v1305
    %v1551 = vpack.c.b16 %v1316, %v1311
    %v1552 = vpack.c.b16 %v1317, %v1312
    %v1553 = vpack.c.b16 %v1318, %v1313
    %v1554 = vpack.c.b16 %v1319, %v1314
    %v1555 = vpack.c.b16 %v1320, %v1315
    %v1556 = vpack.c.b16 %v1326, %v1321
    %v1557 = vpack.c.b16 %v1327, %v1322
    %v1558 = vpack.c.b16 %v1328, %v1323
    %v1559 = vpack.c.b16 %v1329, %v1324
    %v1560 = vpack.c.b16 %v1330, %v1325
    %v1561 = vpack.c.b16 %v1336, %v1331
    %v1562 = vpack.c.b16 %v1337, %v1332
    %v1563 = vpack.c.b16 %v1338, %v1333
    %v1564 = vpack.c.b16 %v1339, %v1334
    %v1565 = vpack.c.b16 %v1340, %v1335
    %v1566 = vpack.c.b16 %v1346, %v1341
    %v1567 = vpack.c.b16 %v1347, %v1342
    %v1568 = vpack.c.b16 %v1348, %v1343
    %v1569 = vpack.c.b16 %v1349, %v1344
    %v1570 = vpack.c.b16 %v1350, %v1345
    %v1571 = vpack.c.b16 %v1356, %v1351
    %v1572 = vpack.c.b16 %v1357, %v1352
    %v1573 = vpack.c.b16 %v1358, %v1353
    %v1574 = vpack.c.b16 %v1359, %v1354
    %v1575 = vpack.c.b16 %v1360, %v1355
    %v1576 = vpack.c.b16 %v1366, %v1361
    %v1577 = vpack.c.b16 %v1367, %v1362
    %v1578 = vpack.c.b16 %v1368, %v1363
    %v1579 = vpack.c.b16 %v1369, %v1364
    %v1580 = vpack.c.b16 %v1370, %v1365
    %v1581 = vpack.c.b16 %v1376, %v1371
    %v1582 = vpack.c.b16 %v1377, %v1372
    %v1583 = vpack.c.b16 %v1378, %v1373
    %v1584 = vpack.c.b16 %v1379, %v1374
    %v1585 = vpack.c.b16 %v1380, %v1375
    %v1586 = vpack.c.b16 %v1386, %v1381
    %v1587 = vpack.c.b16 %v1387, %v1382
    %v1588 = vpack.c.b16 %v1388, %v1383
    %v1589 = vpack.c.b16 %v1389, %v1384
    %v1590 = vpack.c.b16 %v1390, %v1385
    %v1591 = vpack.c.b16 %v1396, %v1391
    %v1592 = vpack.c.b16 %v1397, %v1392
    %v1593 = vpack.c.b16 %v1398, %v1393
    %v1594 = vpack.c.b16 %v1399, %v1394
    %v1595 = vpack.c.b16 %v1400, %v1395
    %v1596 = vpack.c.b16 %v1406, %v1401
    %v1597 = vpack.c.b16 %v1407, %v1402
    %v1598 = vpack.c.b16 %v1408, %v1403
    %v1599 = vpack.c.b16 %v1409, %v1404
    %v1600 = vpack.c.b16 %v1410, %v1405
    %v1601 = vpack.c.b16 %v1411, %v1411
    %v1602 = vpack.c.b16 %v1412, %v1412
    %v1603 = vpack.c.b16 %v1413, %v1413
    %v1604 = vpack.c.b16 %v1414, %v1414
    %v1605 = vpack.c.b16 %v1415, %v1415
    %vm1791 = vcmask 719872
    %v1793 = vsel %vm1791, %v563, 0
    %vm1795 = vcmask 1043456
    %v1797 = vsel %vm1795, %v1601, 0
    %v1800 = vsel %vm1795, %v1602, 0
    %v1803 = vsel %vm1795, %v1603, 0
    %v1806 = vsel %vm1795, %v1604, 0
    %v1809 = vsel %vm1795, %v1605, 0
    %1811 = vmatprep.subr.bf16.mxu0 %v1417
    %1812 = vmatpush1.bf16.msra.mxu0 %v1416
    %1813 = vmatprep.subr.bf16.mxu0 %v1422
    %1814 = vmatpush1.bf16.msra.mxu0 %v1421
    %1815 = vmatprep.subr.bf16.mxu0 %v1427
    %1816 = vmatpush1.bf16.msra.mxu0 %v1426
    %1817 = vmatprep.subr.bf16.mxu0 %v1432
    %1818 = vmatpush1.bf16.msra.mxu0 %v1431
    %1819 = vmatprep.subr.bf16.mxu0 %v1437
    %1820 = vmatpush1.bf16.msra.mxu0 %v1436
    %1821 = vmatprep.subr.bf16.mxu0 %v1442
    %1822 = vmatpush1.bf16.msra.mxu0 %v1441
    %1823 = vmatprep.subr.bf16.mxu0 %v1447
    %1824 = vmatpush1.bf16.msra.mxu0 %v1446
    %1825 = vmatprep.subr.bf16.mxu0 %v1452
    %1826 = vmatpush1.bf16.msra.mxu0 %v1451
    %1827 = vmatprep.subr.bf16.mxu0 %v1457
    %1828 = vmatpush1.bf16.msra.mxu0 %v1456
    %1829 = vmatprep.subr.bf16.mxu0 %v1462
    %1830 = vmatpush1.bf16.msra.mxu0 %v1461
    %1831 = vmatprep.subr.bf16.mxu0 %v1467
    %1832 = vmatpush1.bf16.msra.mxu0 %v1466
    %1833 = vmatprep.subr.bf16.mxu0 %v1472
    %1834 = vmatpush1.bf16.msra.mxu0 %v1471
    %1835 = vmatprep.subr.bf16.mxu0 %v1477
    %1836 = vmatpush1.bf16.msra.mxu0 %v1476
    %1837 = vmatprep.subr.bf16.mxu0 %v1482
    %1838 = vmatpush1.bf16.msra.mxu0 %v1481
    %1839 = vmatprep.subr.bf16.mxu0 %v1487
    %1840 = vmatpush1.bf16.msra.mxu0 %v1486
    %1841 = vmatprep.subr.bf16.mxu0 %v1492
    %1842 = vmatpush1.bf16.msra.mxu0 %v1491
    %1843 = vmatprep.mubr.bf16.mxu0 %v560
    %1844 = vmatmul.mubr.bf16.gmra.mrb[0].mxu0 %v559
    %v1845 = vpop.f32.mrb[0].mxu0
    %v1846 = vadd.f32 %v794, %v1845
    %v1847 = vpop.f32.mrb[0].mxu0
    %v1848 = vadd.f32 %v798, %v1847
    %v1849 = vpop.f32.mrb[0].mxu0
    %v1850 = vadd.f32 %v794, %v1849
    %v1851 = vpop.f32.mrb[0].mxu0
    %v1852 = vadd.f32 %v798, %v1851
    %1853 = vdwg.mxu0
    %1854 = vmatprep.subr.bf16.mxu0 %v1497
    %1855 = vmatpush1.bf16.msra.mxu0 %v1496
    %1856 = vmatprep.subr.bf16.mxu0 %v1502
    %1857 = vmatpush1.bf16.msra.mxu0 %v1501
    %1858 = vmatprep.subr.bf16.mxu0 %v1507
    %1859 = vmatpush1.bf16.msra.mxu0 %v1506
    %1860 = vmatprep.subr.bf16.mxu0 %v1512
    %1861 = vmatpush1.bf16.msra.mxu0 %v1511
    %1862 = vmatprep.subr.bf16.mxu0 %v1517
    %1863 = vmatpush1.bf16.msra.mxu0 %v1516
    %1864 = vmatprep.subr.bf16.mxu0 %v1522
    %1865 = vmatpush1.bf16.msra.mxu0 %v1521
    %1866 = vmatprep.subr.bf16.mxu0 %v1527
    %1867 = vmatpush1.bf16.msra.mxu0 %v1526
    %1868 = vmatprep.subr.bf16.mxu0 %v1532
    %1869 = vmatpush1.bf16.msra.mxu0 %v1531
    %1870 = vmatprep.subr.bf16.mxu0 %v1537
    %1871 = vmatpush1.bf16.msra.mxu0 %v1536
    %1872 = vmatprep.subr.bf16.mxu0 %v1542
    %1873 = vmatpush1.bf16.msra.mxu0 %v1541
    %1874 = vmatprep.subr.bf16.mxu0 %v1547
    %1875 = vmatpush1.bf16.msra.mxu0 %v1546
    %1876 = vmatprep.subr.bf16.mxu0 %v1552
    %1877 = vmatpush1.bf16.msra.mxu0 %v1551
    %1878 = vmatprep.subr.bf16.mxu0 %v1557
    %1879 = vmatpush1.bf16.msra.mxu0 %v1556
    %1880 = vmatprep.subr.bf16.mxu0 %v1562
    %1881 = vmatpush1.bf16.msra.mxu0 %v1561
    %1882 = vmatprep.subr.bf16.mxu0 %v1567
    %1883 = vmatpush1.bf16.msra.mxu0 %v1566
    %1884 = vmatprep.subr.bf16.mxu0 %v1572
    %1885 = vmatpush1.bf16.msra.mxu0 %v1571
    %1886 = vmatprep.mubr.bf16.mxu0 %v562
    %1887 = vmatmul.mubr.bf16.gmra.mrb[0].mxu0 %v561
    %v1888 = vpop.f32.mrb[0].mxu0
    %v1889 = vadd.f32 %v1846, %v1888
    %v1890 = vpop.f32.mrb[0].mxu0
    %v1891 = vadd.f32 %v1848, %v1890
    %v1892 = vpop.f32.mrb[0].mxu0
    %v1893 = vadd.f32 %v1850, %v1892
    %v1894 = vpop.f32.mrb[0].mxu0
    %v1895 = vadd.f32 %v1852, %v1894
    %1896 = vdwg.mxu0
    %1897 = vmatprep.subr.bf16.mxu0 %v1577
    %1898 = vmatpush1.bf16.msra.mxu0 %v1576
    %1899 = vmatprep.subr.bf16.mxu0 %v1582
    %1900 = vmatpush1.bf16.msra.mxu0 %v1581
    %1901 = vmatprep.subr.bf16.mxu0 %v1587
    %1902 = vmatpush1.bf16.msra.mxu0 %v1586
    %1903 = vmatprep.subr.bf16.mxu0 %v1592
    %1904 = vmatpush1.bf16.msra.mxu0 %v1591
    %1905 = vmatprep.subr.bf16.mxu0 %v1597
    %1906 = vmatpush1.bf16.msra.mxu0 %v1596
    %1907 = vmatprep.subr.bf16.mxu0 %v1800
    %1908 = vmatpush1.bf16.msra.mxu0 %v1797
    %1909 = vmatprep.subr.bf16.mxu0 0
    %1910 = vmatpush1.bf16.msra.mxu0 0
    %1911 = vmatprep.subr.bf16.mxu0 0
    %1912 = vmatpush1.bf16.msra.mxu0 0
    %1913 = vmatprep.subr.bf16.mxu0 0
    %1914 = vmatpush1.bf16.msra.mxu0 0
    %1915 = vmatprep.subr.bf16.mxu0 0
    %1916 = vmatpush1.bf16.msra.mxu0 0
    %1917 = vmatprep.subr.bf16.mxu0 0
    %1918 = vmatpush1.bf16.msra.mxu0 0
    %1919 = vmatprep.subr.bf16.mxu0 0
    %1920 = vmatpush1.bf16.msra.mxu0 0
    %1921 = vmatprep.subr.bf16.mxu0 0
    %1922 = vmatpush1.bf16.msra.mxu0 0
    %1923 = vmatprep.subr.bf16.mxu0 0
    %1924 = vmatpush1.bf16.msra.mxu0 0
    %1925 = vmatprep.subr.bf16.mxu0 0
    %1926 = vmatpush1.bf16.msra.mxu0 0
    %1927 = vmatprep.subr.bf16.mxu0 0
    %1928 = vmatpush1.bf16.msra.mxu0 0
    %1929 = vmatprep.mubr.bf16.mxu0 0
    %1930 = vmatmul.mubr.bf16.gmra.mrb[0].mxu0 %v1793
    %v1931 = vpop.f32.mrb[0].mxu0
    %v1932 = vadd.f32 %v1889, %v1931
    %v1933 = vpop.f32.mrb[0].mxu0
    %v1934 = vadd.f32 %v1891, %v1933
    %v1935 = vpop.f32.mrb[0].mxu0
    %v1936 = vadd.f32 %v1893, %v1935
    %v1937 = vpop.f32.mrb[0].mxu0
    %v1938 = vadd.f32 %v1895, %v1937
    %1939 = vdwg.mxu0
    %1940 = vmatprep.subr.bf16.mxu0 %v1419
    %1941 = vmatpush1.bf16.msra.mxu0 %v1418
    %1942 = vmatprep.subr.bf16.mxu0 %v1424
    %1943 = vmatpush1.bf16.msra.mxu0 %v1423
    %1944 = vmatprep.subr.bf16.mxu0 %v1429
    %1945 = vmatpush1.bf16.msra.mxu0 %v1428
    %1946 = vmatprep.subr.bf16.mxu0 %v1434
    %1947 = vmatpush1.bf16.msra.mxu0 %v1433
    %1948 = vmatprep.subr.bf16.mxu0 %v1439
    %1949 = vmatpush1.bf16.msra.mxu0 %v1438
    %1950 = vmatprep.subr.bf16.mxu0 %v1444
    %1951 = vmatpush1.bf16.msra.mxu0 %v1443
    %1952 = vmatprep.subr.bf16.mxu0 %v1449
    %1953 = vmatpush1.bf16.msra.mxu0 %v1448
    %1954 = vmatprep.subr.bf16.mxu0 %v1454
    %1955 = vmatpush1.bf16.msra.mxu0 %v1453
    %1956 = vmatprep.subr.bf16.mxu0 %v1459
    %1957 = vmatpush1.bf16.msra.mxu0 %v1458
    %1958 = vmatprep.subr.bf16.mxu0 %v1464
    %1959 = vmatpush1.bf16.msra.mxu0 %v1463
    %1960 = vmatprep.subr.bf16.mxu0 %v1469
    %1961 = vmatpush1.bf16.msra.mxu0 %v1468
    %1962 = vmatprep.subr.bf16.mxu0 %v1474
    %1963 = vmatpush1.bf16.msra.mxu0 %v1473
    %1964 = vmatprep.subr.bf16.mxu0 %v1479
    %1965 = vmatpush1.bf16.msra.mxu0 %v1478
    %1966 = vmatprep.subr.bf16.mxu0 %v1484
    %1967 = vmatpush1.bf16.msra.mxu0 %v1483
    %1968 = vmatprep.subr.bf16.mxu0 %v1489
    %1969 = vmatpush1.bf16.msra.mxu0 %v1488
    %1970 = vmatprep.subr.bf16.mxu0 %v1494
    %1971 = vmatpush1.bf16.msra.mxu0 %v1493
    %1972 = vmatprep.mubr.bf16.mxu0 %v560
    %1973 = vmatmul.mubr.bf16.gmra.mrb[0].mxu0 %v559
    %v1974 = vpop.f32.mrb[0].mxu0
    %v1975 = vadd.f32 %v802, %v1974
    %v1976 = vpop.f32.mrb[0].mxu0
    %v1977 = vadd.f32 %v806, %v1976
    %v1978 = vpop.f32.mrb[0].mxu0
    %v1979 = vadd.f32 %v802, %v1978
    %v1980 = vpop.f32.mrb[0].mxu0
    %v1981 = vadd.f32 %v806, %v1980
    %1982 = vdwg.mxu0
    %1983 = vmatprep.subr.bf16.mxu0 %v1499
    %1984 = vmatpush1.bf16.msra.mxu0 %v1498
    %1985 = vmatprep.subr.bf16.mxu0 %v1504
    %1986 = vmatpush1.bf16.msra.mxu0 %v1503
    %1987 = vmatprep.subr.bf16.mxu0 %v1509
    %1988 = vmatpush1.bf16.msra.mxu0 %v1508
    %1989 = vmatprep.subr.bf16.mxu0 %v1514
    %1990 = vmatpush1.bf16.msra.mxu0 %v1513
    %1991 = vmatprep.subr.bf16.mxu0 %v1519
    %1992 = vmatpush1.bf16.msra.mxu0 %v1518
    %1993 = vmatprep.subr.bf16.mxu0 %v1524
    %1994 = vmatpush1.bf16.msra.mxu0 %v1523
    %1995 = vmatprep.subr.bf16.mxu0 %v1529
    %1996 = vmatpush1.bf16.msra.mxu0 %v1528
    %1997 = vmatprep.subr.bf16.mxu0 %v1534
    %1998 = vmatpush1.bf16.msra.mxu0 %v1533
    %1999 = vmatprep.subr.bf16.mxu0 %v1539
    %2000 = vmatpush1.bf16.msra.mxu0 %v1538
    %2001 = vmatprep.subr.bf16.mxu0 %v1544
    %2002 = vmatpush1.bf16.msra.mxu0 %v1543
    %2003 = vmatprep.subr.bf16.mxu0 %v1549
    %2004 = vmatpush1.bf16.msra.mxu0 %v1548
    %2005 = vmatprep.subr.bf16.mxu0 %v1554
    %2006 = vmatpush1.bf16.msra.mxu0 %v1553
    %2007 = vmatprep.subr.bf16.mxu0 %v1559
    %2008 = vmatpush1.bf16.msra.mxu0 %v1558
    %2009 = vmatprep.subr.bf16.mxu0 %v1564
    %2010 = vmatpush1.bf16.msra.mxu0 %v1563
    %2011 = vmatprep.subr.bf16.mxu0 %v1569
    %2012 = vmatpush1.bf16.msra.mxu0 %v1568
    %2013 = vmatprep.subr.bf16.mxu0 %v1574
    %2014 = vmatpush1.bf16.msra.mxu0 %v1573
    %2015 = vmatprep.mubr.bf16.mxu0 %v562
    %2016 = vmatmul.mubr.bf16.gmra.mrb[0].mxu0 %v561
    %v2017 = vpop.f32.mrb[0].mxu0
    %v2018 = vadd.f32 %v1975, %v2017
    %v2019 = vpop.f32.mrb[0].mxu0
    %v2020 = vadd.f32 %v1977, %v2019
    %v2021 = vpop.f32.mrb[0].mxu0
    %v2022 = vadd.f32 %v1979, %v2021
    %v2023 = vpop.f32.mrb[0].mxu0
    %v2024 = vadd.f32 %v1981, %v2023
    %2025 = vdwg.mxu0
    %2026 = vmatprep.subr.bf16.mxu0 %v1579
    %2027 = vmatpush1.bf16.msra.mxu0 %v1578
    %2028 = vmatprep.subr.bf16.mxu0 %v1584
    %2029 = vmatpush1.bf16.msra.mxu0 %v1583
    %2030 = vmatprep.subr.bf16.mxu0 %v1589
    %2031 = vmatpush1.bf16.msra.mxu0 %v1588
    %2032 = vmatprep.subr.bf16.mxu0 %v1594
    %2033 = vmatpush1.bf16.msra.mxu0 %v1593
    %2034 = vmatprep.subr.bf16.mxu0 %v1599
    %2035 = vmatpush1.bf16.msra.mxu0 %v1598
    %2036 = vmatprep.subr.bf16.mxu0 %v1806
    %2037 = vmatpush1.bf16.msra.mxu0 %v1803
    %2038 = vmatprep.subr.bf16.mxu0 0
    %2039 = vmatpush1.bf16.msra.mxu0 0
    %2040 = vmatprep.subr.bf16.mxu0 0
    %2041 = vmatpush1.bf16.msra.mxu0 0
    %2042 = vmatprep.subr.bf16.mxu0 0
    %2043 = vmatpush1.bf16.msra.mxu0 0
    %2044 = vmatprep.subr.bf16.mxu0 0
    %2045 = vmatpush1.bf16.msra.mxu0 0
    %2046 = vmatprep.subr.bf16.mxu0 0
    %2047 = vmatpush1.bf16.msra.mxu0 0
    %2048 = vmatprep.subr.bf16.mxu0 0
    %2049 = vmatpush1.bf16.msra.mxu0 0
    %2050 = vmatprep.subr.bf16.mxu0 0
    %2051 = vmatpush1.bf16.msra.mxu0 0
    %2052 = vmatprep.subr.bf16.mxu0 0
    %2053 = vmatpush1.bf16.msra.mxu0 0
    %2054 = vmatprep.subr.bf16.mxu0 0
    %2055 = vmatpush1.bf16.msra.mxu0 0
    %2056 = vmatprep.subr.bf16.mxu0 0
    %2057 = vmatpush1.bf16.msra.mxu0 0
    %2058 = vmatprep.mubr.bf16.mxu0 0
    %2059 = vmatmul.mubr.bf16.gmra.mrb[0].mxu0 %v1793
    %v2060 = vpop.f32.mrb[0].mxu0
    %v2061 = vadd.f32 %v2018, %v2060
    %v2062 = vpop.f32.mrb[0].mxu0
    %v2063 = vadd.f32 %v2020, %v2062
    %v2064 = vpop.f32.mrb[0].mxu0
    %v2065 = vadd.f32 %v2022, %v2064
    %v2066 = vpop.f32.mrb[0].mxu0
    %v2067 = vadd.f32 %v2024, %v2066
    %2068 = vdwg.mxu0
    %2069 = vmatprep.subr.bf16.mxu0 0
    %2070 = vmatpush1.bf16.msra.mxu0 %v1420
    %2071 = vmatprep.subr.bf16.mxu0 0
    %2072 = vmatpush1.bf16.msra.mxu0 %v1425
    %2073 = vmatprep.subr.bf16.mxu0 0
    %2074 = vmatpush1.bf16.msra.mxu0 %v1430
    %2075 = vmatprep.subr.bf16.mxu0 0
    %2076 = vmatpush1.bf16.msra.mxu0 %v1435
    %2077 = vmatprep.subr.bf16.mxu0 0
    %2078 = vmatpush1.bf16.msra.mxu0 %v1440
    %2079 = vmatprep.subr.bf16.mxu0 0
    %2080 = vmatpush1.bf16.msra.mxu0 %v1445
    %2081 = vmatprep.subr.bf16.mxu0 0
    %2082 = vmatpush1.bf16.msra.mxu0 %v1450
    %2083 = vmatprep.subr.bf16.mxu0 0
    %2084 = vmatpush1.bf16.msra.mxu0 %v1455
    %2085 = vmatprep.subr.bf16.mxu0 0
    %2086 = vmatpush1.bf16.msra.mxu0 %v1460
    %2087 = vmatprep.subr.bf16.mxu0 0
    %2088 = vmatpush1.bf16.msra.mxu0 %v1465
    %2089 = vmatprep.subr.bf16.mxu0 0
    %2090 = vmatpush1.bf16.msra.mxu0 %v1470
    %2091 = vmatprep.subr.bf16.mxu0 0
    %2092 = vmatpush1.bf16.msra.mxu0 %v1475
    %2093 = vmatprep.subr.bf16.mxu0 0
    %2094 = vmatpush1.bf16.msra.mxu0 %v1480
    %2095 = vmatprep.subr.bf16.mxu0 0
    %2096 = vmatpush1.bf16.msra.mxu0 %v1485
    %2097 = vmatprep.subr.bf16.mxu0 0
    %2098 = vmatpush1.bf16.msra.mxu0 %v1490
    %2099 = vmatprep.subr.bf16.mxu0 0
    %2100 = vmatpush1.bf16.msra.mxu0 %v1495
    %2101 = vmatprep.mubr.bf16.mxu0 %v560
    %2102 = vmatmul.mubr.bf16.gmra.mrb[0].mxu0 %v559
    %v2103 = vpop.f32.mrb[0].mxu0
    %v2104 = vadd.f32 %v810, %v2103
    %v2105 = vpop.f32.mrb[0].mxu0
    %v2106 = vpop.f32.mrb[0].mxu0
    %v2107 = vadd.f32 %v810, %v2106
    %v2108 = vpop.f32.mrb[0].mxu0
    %2109 = vdwg.mxu0
    %2110 = vmatprep.subr.bf16.mxu0 0
    %2111 = vmatpush1.bf16.msra.mxu0 %v1500
    %2112 = vmatprep.subr.bf16.mxu0 0
    %2113 = vmatpush1.bf16.msra.mxu0 %v1505
    %2114 = vmatprep.subr.bf16.mxu0 0
    %2115 = vmatpush1.bf16.msra.mxu0 %v1510
    %2116 = vmatprep.subr.bf16.mxu0 0
    %2117 = vmatpush1.bf16.msra.mxu0 %v1515
    %2118 = vmatprep.subr.bf16.mxu0 0
    %2119 = vmatpush1.bf16.msra.mxu0 %v1520
    %2120 = vmatprep.subr.bf16.mxu0 0
    %2121 = vmatpush1.bf16.msra.mxu0 %v1525
    %2122 = vmatprep.subr.bf16.mxu0 0
    %2123 = vmatpush1.bf16.msra.mxu0 %v1530
    %2124 = vmatprep.subr.bf16.mxu0 0
    %2125 = vmatpush1.bf16.msra.mxu0 %v1535
    %2126 = vmatprep.subr.bf16.mxu0 0
    %2127 = vmatpush1.bf16.msra.mxu0 %v1540
    %2128 = vmatprep.subr.bf16.mxu0 0
    %2129 = vmatpush1.bf16.msra.mxu0 %v1545
    %2130 = vmatprep.subr.bf16.mxu0 0
    %2131 = vmatpush1.bf16.msra.mxu0 %v1550
    %2132 = vmatprep.subr.bf16.mxu0 0
    %2133 = vmatpush1.bf16.msra.mxu0 %v1555
    %2134 = vmatprep.subr.bf16.mxu0 0
    %2135 = vmatpush1.bf16.msra.mxu0 %v1560
    %2136 = vmatprep.subr.bf16.mxu0 0
    %2137 = vmatpush1.bf16.msra.mxu0 %v1565
    %2138 = vmatprep.subr.bf16.mxu0 0
    %2139 = vmatpush1.bf16.msra.mxu0 %v1570
    %2140 = vmatprep.subr.bf16.mxu0 0
    %2141 = vmatpush1.bf16.msra.mxu0 %v1575
    %2142 = vmatprep.mubr.bf16.mxu0 %v562
    %2143 = vmatmul.mubr.bf16.gmra.mrb[0].mxu0 %v561
    %v2144 = vpop.f32.mrb[0].mxu0
    %v2145 = vadd.f32 %v2104, %v2144
    %v2146 = vpop.f32.mrb[0].mxu0
    %v2147 = vpop.f32.mrb[0].mxu0
    %v2148 = vadd.f32 %v2107, %v2147
    %v2149 = vpop.f32.mrb[0].mxu0
    %2150 = vdwg.mxu0
    %2151 = vmatprep.subr.bf16.mxu0 0
    %2152 = vmatpush1.bf16.msra.mxu0 %v1580
    %2153 = vmatprep.subr.bf16.mxu0 0
    %2154 = vmatpush1.bf16.msra.mxu0 %v1585
    %2155 = vmatprep.subr.bf16.mxu0 0
    %2156 = vmatpush1.bf16.msra.mxu0 %v1590
    %2157 = vmatprep.subr.bf16.mxu0 0
    %2158 = vmatpush1.bf16.msra.mxu0 %v1595
    %2159 = vmatprep.subr.bf16.mxu0 0
    %2160 = vmatpush1.bf16.msra.mxu0 %v1600
    %2161 = vmatprep.subr.bf16.mxu0 0
    %2162 = vmatpush1.bf16.msra.mxu0 %v1809
    %2163 = vmatprep.subr.bf16.mxu0 0
    %2164 = vmatpush1.bf16.msra.mxu0 0
    %2165 = vmatprep.subr.bf16.mxu0 0
    %2166 = vmatpush1.bf16.msra.mxu0 0
    %2167 = vmatprep.subr.bf16.mxu0 0
    %2168 = vmatpush1.bf16.msra.mxu0 0
    %2169 = vmatprep.subr.bf16.mxu0 0
    %2170 = vmatpush1.bf16.msra.mxu0 0
    %2171 = vmatprep.subr.bf16.mxu0 0
    %2172 = vmatpush1.bf16.msra.mxu0 0
    %2173 = vmatprep.subr.bf16.mxu0 0
    %2174 = vmatpush1.bf16.msra.mxu0 0
    %2175 = vmatprep.subr.bf16.mxu0 0
    %2176 = vmatpush1.bf16.msra.mxu0 0
    %2177 = vmatprep.subr.bf16.mxu0 0
    %2178 = vmatpush1.bf16.msra.mxu0 0
    %2179 = vmatprep.subr.bf16.mxu0 0
    %2180 = vmatpush1.bf16.msra.mxu0 0
    %2181 = vmatprep.subr.bf16.mxu0 0
    %2182 = vmatpush1.bf16.msra.mxu0 0
    %2183 = vmatprep.mubr.bf16.mxu0 0
    %2184 = vmatmul.mubr.bf16.gmra.mrb[0].mxu0 %v1793
    %v2185 = vpop.f32.mrb[0].mxu0
    %v2186 = vadd.f32 %v2145, %v2185
    %v2187 = vpop.f32.mrb[0].mxu0
    %v2188 = vpop.f32.mrb[0].mxu0
    %v2189 = vadd.f32 %v2148, %v2188
    %v2190 = vpop.f32.mrb[0].mxu0
    %2191 = vdwg.mxu0
    %v2192 = vld [vmem:[#allocation4] sm:$0xff]
    %v2193 = vld [vmem:[#allocation4 + $0x8] sm:$0xff]
    %v2194 = vld [vmem:[#allocation4 + $0x10] sm:$0xf]
    %v2195 = vld [vmem:[#allocation4 + $0x14] sm:$0xff]
    %v2196 = vld [vmem:[#allocation4 + $0x1c] sm:$0xff]
    %v2197 = vld [vmem:[#allocation4 + $0x24] sm:$0xf]
    %v2198 = vld [vmem:[#allocation4 + $0x28] sm:$0xff]
    %v2199 = vld [vmem:[#allocation4 + $0x30] sm:$0xff]
    %v2200 = vld [vmem:[#allocation4 + $0x38] sm:$0xf]
    %v2201 = vld [vmem:[#allocation4 + $0x3c] sm:$0xff]
    %v2202 = vld [vmem:[#allocation4 + $0x44] sm:$0xff]
    %v2203 = vld [vmem:[#allocation4 + $0x4c] sm:$0xf]
    %v2204 = vld [vmem:[#allocation4 + $0x50] sm:$0xff]
    %v2205 = vld [vmem:[#allocation4 + $0x58] sm:$0xff]
    %v2206 = vld [vmem:[#allocation4 + $0x60] sm:$0xf]
    %v2207 = vld [vmem:[#allocation4 + $0x64] sm:$0xff]
    %v2208 = vld [vmem:[#allocation4 + $0x6c] sm:$0xff]
    %v2209 = vld [vmem:[#allocation4 + $0x74] sm:$0xf]
    %v2210 = vld [vmem:[#allocation4 + $0x78] sm:$0xff]
    %v2211 = vld [vmem:[#allocation4 + $0x80] sm:$0xff]
    %v2212 = vld [vmem:[#allocation4 + $0x88] sm:$0xf]
    %v2213 = vld [vmem:[#allocation4 + $0x8c] sm:$0xff]
    %v2214 = vld [vmem:[#allocation4 + $0x94] sm:$0xff]
    %v2215 = vld [vmem:[#allocation4 + $0x9c] sm:$0xf]
    %v2216 = vld [vmem:[#allocation4 + $0xa0] sm:$0xff]
    %v2217 = vld [vmem:[#allocation4 + $0xa8] sm:$0xff]
    %v2218 = vld [vmem:[#allocation4 + $0xb0] sm:$0xf]
    %v2219 = vld [vmem:[#allocation4 + $0xb4] sm:$0xff]
    %v2220 = vld [vmem:[#allocation4 + $0xbc] sm:$0xff]
    %v2221 = vld [vmem:[#allocation4 + $0xc4] sm:$0xf]
    %v2222 = vld [vmem:[#allocation4 + $0xc8] sm:$0xff]
    %v2223 = vld [vmem:[#allocation4 + $0xd0] sm:$0xff]
    %v2224 = vld [vmem:[#allocation4 + $0xd8] sm:$0xf]
    %v2225 = vld [vmem:[#allocation4 + $0xdc] sm:$0xff]
    %v2226 = vld [vmem:[#allocation4 + $0xe4] sm:$0xff]
    %v2227 = vld [vmem:[#allocation4 + $0xec] sm:$0xf]
    %v2228 = vld [vmem:[#allocation4 + $0xf0] sm:$0xff]
    %v2229 = vld [vmem:[#allocation4 + $0xf8] sm:$0xff]
    %v2230 = vld [vmem:[#allocation4 + $0x100] sm:$0xf]
    %v2231 = vld [vmem:[#allocation4 + $0x104] sm:$0xff]
    %v2232 = vld [vmem:[#allocation4 + $0x10c] sm:$0xff]
    %v2233 = vld [vmem:[#allocation4 + $0x114] sm:$0xf]
    %v2234 = vld [vmem:[#allocation4 + $0x118] sm:$0xff]
    %v2235 = vld [vmem:[#allocation4 + $0x120] sm:$0xff]
    %v2236 = vld [vmem:[#allocation4 + $0x128] sm:$0xf]
    %v2237 = vld [vmem:[#allocation4 + $0x12c] sm:$0xff]
    %v2238 = vld [vmem:[#allocation4 + $0x134] sm:$0xff]
    %v2239 = vld [vmem:[#allocation4 + $0x13c] sm:$0xf]
    %v2240 = vld [vmem:[#allocation4 + $0x140] sm:$0xff]
    %v2241 = vld [vmem:[#allocation4 + $0x148] sm:$0xff]
    %v2242 = vld [vmem:[#allocation4 + $0x150] sm:$0xf]
    %v2243 = vld [vmem:[#allocation4 + $0x154] sm:$0xff]
    %v2244 = vld [vmem:[#allocation4 + $0x15c] sm:$0xff]
    %v2245 = vld [vmem:[#allocation4 + $0x164] sm:$0xf]
    %v2246 = vld [vmem:[#allocation4 + $0x168] sm:$0xff]
    %v2247 = vld [vmem:[#allocation4 + $0x170] sm:$0xff]
    %v2248 = vld [vmem:[#allocation4 + $0x178] sm:$0xf]
    %v2249 = vld [vmem:[#allocation4 + $0x17c] sm:$0xff]
    %v2250 = vld [vmem:[#allocation4 + $0x184] sm:$0xff]
    %v2251 = vld [vmem:[#allocation4 + $0x18c] sm:$0xf]
    %v2252 = vld [vmem:[#allocation4 + $0x190] sm:$0xff]
    %v2253 = vld [vmem:[#allocation4 + $0x198] sm:$0xff]
    %v2254 = vld [vmem:[#allocation4 + $0x1a0] sm:$0xf]
    %v2255 = vld [vmem:[#allocation4 + $0x1a4] sm:$0xff]
    %v2256 = vld [vmem:[#allocation4 + $0x1ac] sm:$0xff]
    %v2257 = vld [vmem:[#allocation4 + $0x1b4] sm:$0xf]
    %v2258 = vld [vmem:[#allocation4 + $0x1b8] sm:$0xff]
    %v2259 = vld [vmem:[#allocation4 + $0x1c0] sm:$0xff]
    %v2260 = vld [vmem:[#allocation4 + $0x1c8] sm:$0xf]
    %v2261 = vld [vmem:[#allocation4 + $0x1cc] sm:$0xff]
    %v2262 = vld [vmem:[#allocation4 + $0x1d4] sm:$0xff]
    %v2263 = vld [vmem:[#allocation4 + $0x1dc] sm:$0xf]
    %v2264 = vld [vmem:[#allocation4 + $0x1e0] sm:$0xff]
    %v2265 = vld [vmem:[#allocation4 + $0x1e8] sm:$0xff]
    %v2266 = vld [vmem:[#allocation4 + $0x1f0] sm:$0xf]
    %v2267 = vld [vmem:[#allocation4 + $0x1f4] sm:$0xff]
    %v2268 = vld [vmem:[#allocation4 + $0x1fc] sm:$0xff]
    %v2269 = vld [vmem:[#allocation4 + $0x204] sm:$0xf]
    %v2270 = vld [vmem:[#allocation4 + $0x208] sm:$0xff]
    %v2271 = vld [vmem:[#allocation4 + $0x210] sm:$0xff]
    %v2272 = vld [vmem:[#allocation4 + $0x218] sm:$0xf]
    %v2273 = vld [vmem:[#allocation4 + $0x21c] sm:$0xff]
    %v2274 = vld [vmem:[#allocation4 + $0x224] sm:$0xff]
    %v2275 = vld [vmem:[#allocation4 + $0x22c] sm:$0xf]
    %v2276 = vld [vmem:[#allocation4 + $0x230] sm:$0xff]
    %v2277 = vld [vmem:[#allocation4 + $0x238] sm:$0xff]
    %v2278 = vld [vmem:[#allocation4 + $0x240] sm:$0xf]
    %v2279 = vld [vmem:[#allocation4 + $0x244] sm:$0xff]
    %v2280 = vld [vmem:[#allocation4 + $0x24c] sm:$0xff]
    %v2281 = vld [vmem:[#allocation4 + $0x254] sm:$0xf]
    %v2282 = vld [vmem:[#allocation4 + $0x258] sm:$0xff]
    %v2283 = vld [vmem:[#allocation4 + $0x260] sm:$0xff]
    %v2284 = vld [vmem:[#allocation4 + $0x268] sm:$0xf]
    %v2285 = vld [vmem:[#allocation4 + $0x26c] sm:$0xff]
    %v2286 = vld [vmem:[#allocation4 + $0x274] sm:$0xff]
    %v2287 = vld [vmem:[#allocation4 + $0x27c] sm:$0xf]
    %v2288 = vld [vmem:[#allocation4 + $0x280] sm:$0xff]
    %v2289 = vld [vmem:[#allocation4 + $0x288] sm:$0xff]
    %v2290 = vld [vmem:[#allocation4 + $0x290] sm:$0xf]
    %v2291 = vld [vmem:[#allocation4 + $0x294] sm:$0xff]
    %v2292 = vld [vmem:[#allocation4 + $0x29c] sm:$0xff]
    %v2293 = vld [vmem:[#allocation4 + $0x2a4] sm:$0xf]
    %v2294 = vld [vmem:[#allocation4 + $0x2a8] sm:$0xff]
    %v2295 = vld [vmem:[#allocation4 + $0x2b0] sm:$0xff]
    %v2296 = vld [vmem:[#allocation4 + $0x2b8] sm:$0xf]
    %v2297 = vld [vmem:[#allocation4 + $0x2bc] sm:$0xff]
    %v2298 = vld [vmem:[#allocation4 + $0x2c4] sm:$0xff]
    %v2299 = vld [vmem:[#allocation4 + $0x2cc] sm:$0xf]
    %v2300 = vld [vmem:[#allocation4 + $0x2d0] sm:$0xff]
    %v2301 = vld [vmem:[#allocation4 + $0x2d8] sm:$0xff]
    %v2302 = vld [vmem:[#allocation4 + $0x2e0] sm:$0xf]
    %v2303 = vld [vmem:[#allocation4 + $0x2e4] sm:$0xff]
    %v2304 = vld [vmem:[#allocation4 + $0x2ec] sm:$0xff]
    %v2305 = vld [vmem:[#allocation4 + $0x2f4] sm:$0xf]
    %v2306 = vld [vmem:[#allocation4 + $0x2f8] sm:$0xff]
    %v2307 = vld [vmem:[#allocation4 + $0x300] sm:$0xff]
    %v2308 = vld [vmem:[#allocation4 + $0x308] sm:$0xf]
    %v2309 = vld [vmem:[#allocation4 + $0x30c] sm:$0xff]
    %v2310 = vld [vmem:[#allocation4 + $0x314] sm:$0xff]
    %v2311 = vld [vmem:[#allocation4 + $0x31c] sm:$0xf]
    %v2312 = vld [vmem:[#allocation4 + $0x320] sm:$0xff]
    %v2313 = vld [vmem:[#allocation4 + $0x328] sm:$0xff]
    %v2314 = vld [vmem:[#allocation4 + $0x330] sm:$0xf]
    %v2315 = vld [vmem:[#allocation4 + $0x334] sm:$0xff]
    %v2316 = vld [vmem:[#allocation4 + $0x33c] sm:$0xff]
    %v2317 = vld [vmem:[#allocation4 + $0x344] sm:$0xf]
    %v2318 = vld [vmem:[#allocation4 + $0x348] sm:$0xff]
    %v2319 = vld [vmem:[#allocation4 + $0x350] sm:$0xff]
    %v2320 = vld [vmem:[#allocation4 + $0x358] sm:$0xf]
    %v2321 = vld [vmem:[#allocation4 + $0x35c] sm:$0xff]
    %v2322 = vld [vmem:[#allocation4 + $0x364] sm:$0xff]
    %v2323 = vld [vmem:[#allocation4 + $0x36c] sm:$0xf]
    %v2324 = vld [vmem:[#allocation4 + $0x370] sm:$0xff]
    %v2325 = vld [vmem:[#allocation4 + $0x378] sm:$0xff]
    %v2326 = vld [vmem:[#allocation4 + $0x380] sm:$0xf]
    %v2327 = vld [vmem:[#allocation4 + $0x384] sm:$0xff]
    %v2328 = vld [vmem:[#allocation4 + $0x38c] sm:$0xff]
    %v2329 = vld [vmem:[#allocation4 + $0x394] sm:$0xf]
    %v2330 = vld [vmem:[#allocation4 + $0x398] sm:$0xff]
    %v2331 = vld [vmem:[#allocation4 + $0x3a0] sm:$0xff]
    %v2332 = vld [vmem:[#allocation4 + $0x3a8] sm:$0xf]
    %v2333 = vld [vmem:[#allocation4 + $0x3ac] sm:$0xff]
    %v2334 = vld [vmem:[#allocation4 + $0x3b4] sm:$0xff]
    %v2335 = vld [vmem:[#allocation4 + $0x3bc] sm:$0xf]
    %v2336 = vld [vmem:[#allocation4 + $0x3c0] sm:$0xff]
    %v2337 = vld [vmem:[#allocation4 + $0x3c8] sm:$0xff]
    %v2338 = vld [vmem:[#allocation4 + $0x3d0] sm:$0xf]
    %v2339 = vld [vmem:[#allocation4 + $0x3d4] sm:$0xff]
    %v2340 = vld [vmem:[#allocation4 + $0x3dc] sm:$0xff]
    %v2341 = vld [vmem:[#allocation4 + $0x3e4] sm:$0xf]
    %v2342 = vld [vmem:[#allocation4 + $0x3e8] sm:$0xff]
    %v2343 = vld [vmem:[#allocation4 + $0x3f0] sm:$0xff]
    %v2344 = vld [vmem:[#allocation4 + $0x3f8] sm:$0xf]
    %v2345 = vld [vmem:[#allocation4 + $0x3fc] sm:$0xff]
    %v2346 = vld [vmem:[#allocation4 + $0x404] sm:$0xff]
    %v2347 = vld [vmem:[#allocation4 + $0x40c] sm:$0xf]
    %v2348 = vld [vmem:[#allocation4 + $0x410] sm:$0xff]
    %v2349 = vld [vmem:[#allocation4 + $0x418] sm:$0xff]
    %v2350 = vld [vmem:[#allocation4 + $0x420] sm:$0xf]
    %v2351 = vld [vmem:[#allocation4 + $0x424] sm:$0xff]
    %v2352 = vld [vmem:[#allocation4 + $0x42c] sm:$0xff]
    %v2353 = vld [vmem:[#allocation4 + $0x434] sm:$0xf]
    %v2354 = vld [vmem:[#allocation4 + $0x438] sm:$0xff]
    %v2355 = vld [vmem:[#allocation4 + $0x440] sm:$0xff]
    %v2356 = vld [vmem:[#allocation4 + $0x448] sm:$0xf]
    %v2357 = vld [vmem:[#allocation4 + $0x44c] sm:$0xff]
    %v2358 = vld [vmem:[#allocation4 + $0x454] sm:$0xff]
    %v2359 = vld [vmem:[#allocation4 + $0x45c] sm:$0xf]
    %v2360 = vld [vmem:[#allocation4 + $0x460] sm:$0xff]
    %v2361 = vld [vmem:[#allocation4 + $0x468] sm:$0xff]
    %v2362 = vld [vmem:[#allocation4 + $0x470] sm:$0xf]
    %v2363 = vld [vmem:[#allocation4 + $0x474] sm:$0xff]
    %v2364 = vld [vmem:[#allocation4 + $0x47c] sm:$0xff]
    %v2365 = vld [vmem:[#allocation4 + $0x484] sm:$0xf]
    %v2366 = vld [vmem:[#allocation4 + $0x488] sm:$0xff]
    %v2367 = vld [vmem:[#allocation4 + $0x490] sm:$0xff]
    %v2368 = vld [vmem:[#allocation4 + $0x498] sm:$0xf]
    %v2369 = vld [vmem:[#allocation4 + $0x49c] sm:$0xff]
    %v2370 = vld [vmem:[#allocation4 + $0x4a4] sm:$0xff]
    %v2371 = vld [vmem:[#allocation4 + $0x4ac] sm:$0xf]
    %v2372 = vld [vmem:[#allocation4 + $0x4b0] sm:$0xff]
    %v2373 = vld [vmem:[#allocation4 + $0x4b8] sm:$0xff]
    %v2374 = vld [vmem:[#allocation4 + $0x4c0] sm:$0xf]
    %v2375 = vld [vmem:[#allocation4 + $0x4c4] sm:$0xff]
    %v2376 = vld [vmem:[#allocation4 + $0x4cc] sm:$0xff]
    %v2377 = vld [vmem:[#allocation4 + $0x4d4] sm:$0xf]
    %v2378 = vld [vmem:[#allocation4 + $0x4d8] sm:$0xff]
    %v2379 = vld [vmem:[#allocation4 + $0x4e0] sm:$0xff]
    %v2380 = vld [vmem:[#allocation4 + $0x4e8] sm:$0xf]
    %v2381 = vld [vmem:[#allocation4 + $0x4ec] sm:$0xff]
    %v2382 = vld [vmem:[#allocation4 + $0x4f4] sm:$0xff]
    %v2383 = vld [vmem:[#allocation4 + $0x4fc] sm:$0xf]
    %v2384 = vld [vmem:[#allocation4 + $0x500] sm:$0xff]
    %v2385 = vld [vmem:[#allocation4 + $0x508] sm:$0xff]
    %v2386 = vld [vmem:[#allocation4 + $0x510] sm:$0xf]
    %v2387 = vld [vmem:[#allocation4 + $0x514] sm:$0xff]
    %v2388 = vld [vmem:[#allocation4 + $0x51c] sm:$0xff]
    %v2389 = vld [vmem:[#allocation4 + $0x524] sm:$0xf]
    %v2390 = vld [vmem:[#allocation4 + $0x528] sm:$0xff]
    %v2391 = vld [vmem:[#allocation4 + $0x530] sm:$0xff]
    %v2392 = vld [vmem:[#allocation4 + $0x538] sm:$0xf]
    %v2393 = vld [vmem:[#allocation4 + $0x53c] sm:$0xff]
    %v2394 = vld [vmem:[#allocation4 + $0x544] sm:$0xff]
    %v2395 = vld [vmem:[#allocation4 + $0x54c] sm:$0xf]
    %v2396 = vld [vmem:[#allocation4 + $0x550] sm:$0xff]
    %v2397 = vld [vmem:[#allocation4 + $0x558] sm:$0xff]
    %v2398 = vld [vmem:[#allocation4 + $0x560] sm:$0xf]
    %v2399 = vld [vmem:[#allocation4 + $0x564] sm:$0xff]
    %v2400 = vld [vmem:[#allocation4 + $0x56c] sm:$0xff]
    %v2401 = vld [vmem:[#allocation4 + $0x574] sm:$0xf]
    %v2402 = vld [vmem:[#allocation4 + $0x578] sm:$0xff]
    %v2403 = vld [vmem:[#allocation4 + $0x580] sm:$0xff]
    %v2404 = vld [vmem:[#allocation4 + $0x588] sm:$0xf]
    %v2405 = vld [vmem:[#allocation4 + $0x58c] sm:$0xff]
    %v2406 = vld [vmem:[#allocation4 + $0x594] sm:$0xff]
    %v2407 = vld [vmem:[#allocation4 + $0x59c] sm:$0xf]
    %v2408 = vld [vmem:[#allocation4 + $0x5a0] sm:$0xff]
    %v2409 = vld [vmem:[#allocation4 + $0x5a8] sm:$0xff]
    %v2410 = vld [vmem:[#allocation4 + $0x5b0] sm:$0xf]
    %v2411 = vld [vmem:[#allocation4 + $0x5b4] sm:$0xff]
    %v2412 = vld [vmem:[#allocation4 + $0x5bc] sm:$0xff]
    %v2413 = vld [vmem:[#allocation4 + $0x5c4] sm:$0xf]
    %v2414 = vld [vmem:[#allocation4 + $0x5c8] sm:$0xff]
    %v2415 = vld [vmem:[#allocation4 + $0x5d0] sm:$0xff]
    %v2416 = vld [vmem:[#allocation4 + $0x5d8] sm:$0xf]
    %v2417 = vld [vmem:[%s6] sm:$0x1f]
    %v2419 = vlaneseq
    %v2420 = vshrl.u32 %v2419, 7
    %v2421 = vsub.s32 0, %v2420
    %v2422 = vrot.slane %v2417, %v2421
    %v2423 = vlaneseq
    %v2424 = vshrl.u32 %v2423, 7
    %v2425 = vsub.s32 1, %v2424
    %v2426 = vrot.slane %v2417, %v2425
    %v2427 = vlaneseq
    %v2428 = vshrl.u32 %v2427, 7
    %v2429 = vsub.s32 2, %v2428
    %v2430 = vrot.slane %v2417, %v2429
    %v2431 = vlaneseq
    %v2432 = vshrl.u32 %v2431, 7
    %v2433 = vsub.s32 3, %v2432
    %v2434 = vrot.slane %v2417, %v2433
    %v2435 = vlaneseq
    %v2436 = vshrl.u32 %v2435, 7
    %v2437 = vsub.s32 4, %v2436
    %v2438 = vrot.slane %v2417, %v2437
    %v2669 = vunpack.c.l.b16 %v2192
    %v2670 = vunpack.c.h.b16 %v2192
    %v2671 = vunpack.c.l.b16 %v2193
    %v2672 = vunpack.c.h.b16 %v2193
    %v2673 = vunpack.c.l.b16 %v2194
    %v2674 = vunpack.c.l.b16 %v2195
    %v2675 = vunpack.c.h.b16 %v2195
    %v2676 = vunpack.c.l.b16 %v2196
    %v2677 = vunpack.c.h.b16 %v2196
    %v2678 = vunpack.c.l.b16 %v2197
    %v2679 = vunpack.c.l.b16 %v2198
    %v2680 = vunpack.c.h.b16 %v2198
    %v2681 = vunpack.c.l.b16 %v2199
    %v2682 = vunpack.c.h.b16 %v2199
    %v2683 = vunpack.c.l.b16 %v2200
    %v2684 = vunpack.c.l.b16 %v2201
    %v2685 = vunpack.c.h.b16 %v2201
    %v2686 = vunpack.c.l.b16 %v2202
    %v2687 = vunpack.c.h.b16 %v2202
    %v2688 = vunpack.c.l.b16 %v2203
    %v2689 = vunpack.c.l.b16 %v2204
    %v2690 = vunpack.c.h.b16 %v2204
    %v2691 = vunpack.c.l.b16 %v2205
    %v2692 = vunpack.c.h.b16 %v2205
    %v2693 = vunpack.c.l.b16 %v2206
    %v2694 = vunpack.c.l.b16 %v2207
    %v2695 = vunpack.c.h.b16 %v2207
    %v2696 = vunpack.c.l.b16 %v2208
    %v2697 = vunpack.c.h.b16 %v2208
    %v2698 = vunpack.c.l.b16 %v2209
    %v2699 = vunpack.c.l.b16 %v2210
    %v2700 = vunpack.c.h.b16 %v2210
    %v2701 = vunpack.c.l.b16 %v2211
    %v2702 = vunpack.c.h.b16 %v2211
    %v2703 = vunpack.c.l.b16 %v2212
    %v2704 = vunpack.c.l.b16 %v2213
    %v2705 = vunpack.c.h.b16 %v2213
    %v2706 = vunpack.c.l.b16 %v2214
    %v2707 = vunpack.c.h.b16 %v2214
    %v2708 = vunpack.c.l.b16 %v2215
    %v2709 = vunpack.c.l.b16 %v2216
    %v2710 = vunpack.c.h.b16 %v2216
    %v2711 = vunpack.c.l.b16 %v2217
    %v2712 = vunpack.c.h.b16 %v2217
    %v2713 = vunpack.c.l.b16 %v2218
    %v2714 = vunpack.c.l.b16 %v2219
    %v2715 = vunpack.c.h.b16 %v2219
    %v2716 = vunpack.c.l.b16 %v2220
    %v2717 = vunpack.c.h.b16 %v2220
    %v2718 = vunpack.c.l.b16 %v2221
    %v2719 = vunpack.c.l.b16 %v2222
    %v2720 = vunpack.c.h.b16 %v2222
    %v2721 = vunpack.c.l.b16 %v2223
    %v2722 = vunpack.c.h.b16 %v2223
    %v2723 = vunpack.c.l.b16 %v2224
    %v2724 = vunpack.c.l.b16 %v2225
    %v2725 = vunpack.c.h.b16 %v2225
    %v2726 = vunpack.c.l.b16 %v2226
    %v2727 = vunpack.c.h.b16 %v2226
    %v2728 = vunpack.c.l.b16 %v2227
    %v2729 = vunpack.c.l.b16 %v2228
    %v2730 = vunpack.c.h.b16 %v2228
    %v2731 = vunpack.c.l.b16 %v2229
    %v2732 = vunpack.c.h.b16 %v2229
    %v2733 = vunpack.c.l.b16 %v2230
    %v2734 = vunpack.c.l.b16 %v2231
    %v2735 = vunpack.c.h.b16 %v2231
    %v2736 = vunpack.c.l.b16 %v2232
    %v2737 = vunpack.c.h.b16 %v2232
    %v2738 = vunpack.c.l.b16 %v2233
    %v2739 = vunpack.c.l.b16 %v2234
    %v2740 = vunpack.c.h.b16 %v2234
    %v2741 = vunpack.c.l.b16 %v2235
    %v2742 = vunpack.c.h.b16 %v2235
    %v2743 = vunpack.c.l.b16 %v2236
    %v2744 = vunpack.c.l.b16 %v2237
    %v2745 = vunpack.c.h.b16 %v2237
    %v2746 = vunpack.c.l.b16 %v2238
    %v2747 = vunpack.c.h.b16 %v2238
    %v2748 = vunpack.c.l.b16 %v2239
    %v2749 = vunpack.c.l.b16 %v2240
    %v2750 = vunpack.c.h.b16 %v2240
    %v2751 = vunpack.c.l.b16 %v2241
    %v2752 = vunpack.c.h.b16 %v2241
    %v2753 = vunpack.c.l.b16 %v2242
    %v2754 = vunpack.c.l.b16 %v2243
    %v2755 = vunpack.c.h.b16 %v2243
    %v2756 = vunpack.c.l.b16 %v2244
    %v2757 = vunpack.c.h.b16 %v2244
    %v2758 = vunpack.c.l.b16 %v2245
    %v2759 = vunpack.c.l.b16 %v2246
    %v2760 = vunpack.c.h.b16 %v2246
    %v2761 = vunpack.c.l.b16 %v2247
    %v2762 = vunpack.c.h.b16 %v2247
    %v2763 = vunpack.c.l.b16 %v2248
    %v2764 = vunpack.c.l.b16 %v2249
    %v2765 = vunpack.c.h.b16 %v2249
    %v2766 = vunpack.c.l.b16 %v2250
    %v2767 = vunpack.c.h.b16 %v2250
    %v2768 = vunpack.c.l.b16 %v2251
    %v2769 = vunpack.c.l.b16 %v2252
    %v2770 = vunpack.c.h.b16 %v2252
    %v2771 = vunpack.c.l.b16 %v2253
    %v2772 = vunpack.c.h.b16 %v2253
    %v2773 = vunpack.c.l.b16 %v2254
    %v2774 = vunpack.c.l.b16 %v2255
    %v2775 = vunpack.c.h.b16 %v2255
    %v2776 = vunpack.c.l.b16 %v2256
    %v2777 = vunpack.c.h.b16 %v2256
    %v2778 = vunpack.c.l.b16 %v2257
    %v2779 = vunpack.c.l.b16 %v2258
    %v2780 = vunpack.c.h.b16 %v2258
    %v2781 = vunpack.c.l.b16 %v2259
    %v2782 = vunpack.c.h.b16 %v2259
    %v2783 = vunpack.c.l.b16 %v2260
    %v2784 = vunpack.c.l.b16 %v2261
    %v2785 = vunpack.c.h.b16 %v2261
    %v2786 = vunpack.c.l.b16 %v2262
    %v2787 = vunpack.c.h.b16 %v2262
    %v2788 = vunpack.c.l.b16 %v2263
    %v2789 = vunpack.c.l.b16 %v2264
    %v2790 = vunpack.c.h.b16 %v2264
    %v2791 = vunpack.c.l.b16 %v2265
    %v2792 = vunpack.c.h.b16 %v2265
    %v2793 = vunpack.c.l.b16 %v2266
    %v2794 = vunpack.c.l.b16 %v2267
    %v2795 = vunpack.c.h.b16 %v2267
    %v2796 = vunpack.c.l.b16 %v2268
    %v2797 = vunpack.c.h.b16 %v2268
    %v2798 = vunpack.c.l.b16 %v2269
    %v2799 = vunpack.c.l.b16 %v2270
    %v2800 = vunpack.c.h.b16 %v2270
    %v2801 = vunpack.c.l.b16 %v2271
    %v2802 = vunpack.c.h.b16 %v2271
    %v2803 = vunpack.c.l.b16 %v2272
    %v2804 = vunpack.c.l.b16 %v2273
    %v2805 = vunpack.c.h.b16 %v2273
    %v2806 = vunpack.c.l.b16 %v2274
    %v2807 = vunpack.c.h.b16 %v2274
    %v2808 = vunpack.c.l.b16 %v2275
    %v2809 = vunpack.c.l.b16 %v2276
    %v2810 = vunpack.c.h.b16 %v2276
    %v2811 = vunpack.c.l.b16 %v2277
    %v2812 = vunpack.c.h.b16 %v2277
    %v2813 = vunpack.c.l.b16 %v2278
    %v2814 = vunpack.c.l.b16 %v2279
    %v2815 = vunpack.c.h.b16 %v2279
    %v2816 = vunpack.c.l.b16 %v2280
    %v2817 = vunpack.c.h.b16 %v2280
    %v2818 = vunpack.c.l.b16 %v2281
    %v2819 = vunpack.c.l.b16 %v2282
    %v2820 = vunpack.c.h.b16 %v2282
    %v2821 = vunpack.c.l.b16 %v2283
    %v2822 = vunpack.c.h.b16 %v2283
    %v2823 = vunpack.c.l.b16 %v2284
    %v2824 = vunpack.c.l.b16 %v2285
    %v2825 = vunpack.c.h.b16 %v2285
    %v2826 = vunpack.c.l.b16 %v2286
    %v2827 = vunpack.c.h.b16 %v2286
    %v2828 = vunpack.c.l.b16 %v2287
    %v2829 = vunpack.c.l.b16 %v2288
    %v2830 = vunpack.c.h.b16 %v2288
    %v2831 = vunpack.c.l.b16 %v2289
    %v2832 = vunpack.c.h.b16 %v2289
    %v2833 = vunpack.c.l.b16 %v2290
    %v2834 = vunpack.c.l.b16 %v2291
    %v2835 = vunpack.c.h.b16 %v2291
    %v2836 = vunpack.c.l.b16 %v2292
    %v2837 = vunpack.c.h.b16 %v2292
    %v2838 = vunpack.c.l.b16 %v2293
    %v2839 = vunpack.c.l.b16 %v2294
    %v2840 = vunpack.c.h.b16 %v2294
    %v2841 = vunpack.c.l.b16 %v2295
    %v2842 = vunpack.c.h.b16 %v2295
    %v2843 = vunpack.c.l.b16 %v2296
    %v2844 = vunpack.c.l.b16 %v2297
    %v2845 = vunpack.c.h.b16 %v2297
    %v2846 = vunpack.c.l.b16 %v2298
    %v2847 = vunpack.c.h.b16 %v2298
    %v2848 = vunpack.c.l.b16 %v2299
    %v2849 = vunpack.c.l.b16 %v2300
    %v2850 = vunpack.c.h.b16 %v2300
    %v2851 = vunpack.c.l.b16 %v2301
    %v2852 = vunpack.c.h.b16 %v2301
    %v2853 = vunpack.c.l.b16 %v2302
    %v2854 = vunpack.c.l.b16 %v2303
    %v2855 = vunpack.c.h.b16 %v2303
    %v2856 = vunpack.c.l.b16 %v2304
    %v2857 = vunpack.c.h.b16 %v2304
    %v2858 = vunpack.c.l.b16 %v2305
    %v2859 = vunpack.c.l.b16 %v2306
    %v2860 = vunpack.c.h.b16 %v2306
    %v2861 = vunpack.c.l.b16 %v2307
    %v2862 = vunpack.c.h.b16 %v2307
    %v2863 = vunpack.c.l.b16 %v2308
    %v2864 = vunpack.c.l.b16 %v2309
    %v2865 = vunpack.c.h.b16 %v2309
    %v2866 = vunpack.c.l.b16 %v2310
    %v2867 = vunpack.c.h.b16 %v2310
    %v2868 = vunpack.c.l.b16 %v2311
    %v2869 = vunpack.c.l.b16 %v2312
    %v2870 = vunpack.c.h.b16 %v2312
    %v2871 = vunpack.c.l.b16 %v2313
    %v2872 = vunpack.c.h.b16 %v2313
    %v2873 = vunpack.c.l.b16 %v2314
    %v2874 = vunpack.c.l.b16 %v2315
    %v2875 = vunpack.c.h.b16 %v2315
    %v2876 = vunpack.c.l.b16 %v2316
    %v2877 = vunpack.c.h.b16 %v2316
    %v2878 = vunpack.c.l.b16 %v2317
    %v2879 = vunpack.c.l.b16 %v2318
    %v2880 = vunpack.c.h.b16 %v2318
    %v2881 = vunpack.c.l.b16 %v2319
    %v2882 = vunpack.c.h.b16 %v2319
    %v2883 = vunpack.c.l.b16 %v2320
    %v2884 = vunpack.c.l.b16 %v2321
    %v2885 = vunpack.c.h.b16 %v2321
    %v2886 = vunpack.c.l.b16 %v2322
    %v2887 = vunpack.c.h.b16 %v2322
    %v2888 = vunpack.c.l.b16 %v2323
    %v2889 = vunpack.c.l.b16 %v2324
    %v2890 = vunpack.c.h.b16 %v2324
    %v2891 = vunpack.c.l.b16 %v2325
    %v2892 = vunpack.c.h.b16 %v2325
    %v2893 = vunpack.c.l.b16 %v2326
    %v2894 = vunpack.c.l.b16 %v2327
    %v2895 = vunpack.c.h.b16 %v2327
    %v2896 = vunpack.c.l.b16 %v2328
    %v2897 = vunpack.c.h.b16 %v2328
    %v2898 = vunpack.c.l.b16 %v2329
    %v2899 = vunpack.c.l.b16 %v2330
    %v2900 = vunpack.c.h.b16 %v2330
    %v2901 = vunpack.c.l.b16 %v2331
    %v2902 = vunpack.c.h.b16 %v2331
    %v2903 = vunpack.c.l.b16 %v2332
    %v2904 = vunpack.c.l.b16 %v2333
    %v2905 = vunpack.c.h.b16 %v2333
    %v2906 = vunpack.c.l.b16 %v2334
    %v2907 = vunpack.c.h.b16 %v2334
    %v2908 = vunpack.c.l.b16 %v2335
    %v2909 = vunpack.c.l.b16 %v2336
    %v2910 = vunpack.c.h.b16 %v2336
    %v2911 = vunpack.c.l.b16 %v2337
    %v2912 = vunpack.c.h.b16 %v2337
    %v2913 = vunpack.c.l.b16 %v2338
    %v2914 = vunpack.c.l.b16 %v2339
    %v2915 = vunpack.c.h.b16 %v2339
    %v2916 = vunpack.c.l.b16 %v2340
    %v2917 = vunpack.c.h.b16 %v2340
    %v2918 = vunpack.c.l.b16 %v2341
    %v2919 = vunpack.c.l.b16 %v2342
    %v2920 = vunpack.c.h.b16 %v2342
    %v2921 = vunpack.c.l.b16 %v2343
    %v2922 = vunpack.c.h.b16 %v2343
    %v2923 = vunpack.c.l.b16 %v2344
    %v2924 = vunpack.c.l.b16 %v2345
    %v2925 = vunpack.c.h.b16 %v2345
    %v2926 = vunpack.c.l.b16 %v2346
    %v2927 = vunpack.c.h.b16 %v2346
    %v2928 = vunpack.c.l.b16 %v2347
    %v2929 = vunpack.c.l.b16 %v2348
    %v2930 = vunpack.c.h.b16 %v2348
    %v2931 = vunpack.c.l.b16 %v2349
    %v2932 = vunpack.c.h.b16 %v2349
    %v2933 = vunpack.c.l.b16 %v2350
    %v2934 = vunpack.c.l.b16 %v2351
    %v2935 = vunpack.c.h.b16 %v2351
    %v2936 = vunpack.c.l.b16 %v2352
    %v2937 = vunpack.c.h.b16 %v2352
    %v2938 = vunpack.c.l.b16 %v2353
    %v2939 = vunpack.c.l.b16 %v2354
    %v2940 = vunpack.c.h.b16 %v2354
    %v2941 = vunpack.c.l.b16 %v2355
    %v2942 = vunpack.c.h.b16 %v2355
    %v2943 = vunpack.c.l.b16 %v2356
    %v2944 = vunpack.c.l.b16 %v2357
    %v2945 = vunpack.c.h.b16 %v2357
    %v2946 = vunpack.c.l.b16 %v2358
    %v2947 = vunpack.c.h.b16 %v2358
    %v2948 = vunpack.c.l.b16 %v2359
    %v2949 = vunpack.c.l.b16 %v2360
    %v2950 = vunpack.c.h.b16 %v2360
    %v2951 = vunpack.c.l.b16 %v2361
    %v2952 = vunpack.c.h.b16 %v2361
    %v2953 = vunpack.c.l.b16 %v2362
    %v2954 = vunpack.c.l.b16 %v2363
    %v2955 = vunpack.c.h.b16 %v2363
    %v2956 = vunpack.c.l.b16 %v2364
    %v2957 = vunpack.c.h.b16 %v2364
    %v2958 = vunpack.c.l.b16 %v2365
    %v2959 = vunpack.c.l.b16 %v2366
    %v2960 = vunpack.c.h.b16 %v2366
    %v2961 = vunpack.c.l.b16 %v2367
    %v2962 = vunpack.c.h.b16 %v2367
    %v2963 = vunpack.c.l.b16 %v2368
    %v2964 = vunpack.c.l.b16 %v2369
    %v2965 = vunpack.c.h.b16 %v2369
    %v2966 = vunpack.c.l.b16 %v2370
    %v2967 = vunpack.c.h.b16 %v2370
    %v2968 = vunpack.c.l.b16 %v2371
    %v2969 = vunpack.c.l.b16 %v2372
    %v2970 = vunpack.c.h.b16 %v2372
    %v2971 = vunpack.c.l.b16 %v2373
    %v2972 = vunpack.c.h.b16 %v2373
    %v2973 = vunpack.c.l.b16 %v2374
    %v2974 = vunpack.c.l.b16 %v2375
    %v2975 = vunpack.c.h.b16 %v2375
    %v2976 = vunpack.c.l.b16 %v2376
    %v2977 = vunpack.c.h.b16 %v2376
    %v2978 = vunpack.c.l.b16 %v2377
    %v2979 = vunpack.c.l.b16 %v2378
    %v2980 = vunpack.c.h.b16 %v2378
    %v2981 = vunpack.c.l.b16 %v2379
    %v2982 = vunpack.c.h.b16 %v2379
    %v2983 = vunpack.c.l.b16 %v2380
    %v2984 = vunpack.c.l.b16 %v2381
    %v2985 = vunpack.c.h.b16 %v2381
    %v2986 = vunpack.c.l.b16 %v2382
    %v2987 = vunpack.c.h.b16 %v2382
    %v2988 = vunpack.c.l.b16 %v2383
    %v2989 = vunpack.c.l.b16 %v2384
    %v2990 = vunpack.c.h.b16 %v2384
    %v2991 = vunpack.c.l.b16 %v2385
    %v2992 = vunpack.c.h.b16 %v2385
    %v2993 = vunpack.c.l.b16 %v2386
    %v2994 = vunpack.c.l.b16 %v2387
    %v2995 = vunpack.c.h.b16 %v2387
    %v2996 = vunpack.c.l.b16 %v2388
    %v2997 = vunpack.c.h.b16 %v2388
    %v2998 = vunpack.c.l.b16 %v2389
    %v2999 = vunpack.c.l.b16 %v2390
    %v3000 = vunpack.c.h.b16 %v2390
    %v3001 = vunpack.c.l.b16 %v2391
    %v3002 = vunpack.c.h.b16 %v2391
    %v3003 = vunpack.c.l.b16 %v2392
    %v3004 = vunpack.c.l.b16 %v2393
    %v3005 = vunpack.c.h.b16 %v2393
    %v3006 = vunpack.c.l.b16 %v2394
    %v3007 = vunpack.c.h.b16 %v2394
    %v3008 = vunpack.c.l.b16 %v2395
    %v3009 = vunpack.c.l.b16 %v2396
    %v3010 = vunpack.c.h.b16 %v2396
    %v3011 = vunpack.c.l.b16 %v2397
    %v3012 = vunpack.c.h.b16 %v2397
    %v3013 = vunpack.c.l.b16 %v2398
    %v3014 = vunpack.c.l.b16 %v2399
    %v3015 = vunpack.c.h.b16 %v2399
    %v3016 = vunpack.c.l.b16 %v2400
    %v3017 = vunpack.c.h.b16 %v2400
    %v3018 = vunpack.c.l.b16 %v2401
    %v3019 = vunpack.c.l.b16 %v2402
    %v3020 = vunpack.c.h.b16 %v2402
    %v3021 = vunpack.c.l.b16 %v2403
    %v3022 = vunpack.c.h.b16 %v2403
    %v3023 = vunpack.c.l.b16 %v2404
    %v3024 = vunpack.c.l.b16 %v2405
    %v3025 = vunpack.c.h.b16 %v2405
    %v3026 = vunpack.c.l.b16 %v2406
    %v3027 = vunpack.c.h.b16 %v2406
    %v3028 = vunpack.c.l.b16 %v2407
    %v3029 = vunpack.c.l.b16 %v2408
    %v3030 = vunpack.c.h.b16 %v2408
    %v3031 = vunpack.c.l.b16 %v2409
    %v3032 = vunpack.c.h.b16 %v2409
    %v3033 = vunpack.c.l.b16 %v2410
    %v3034 = vunpack.c.l.b16 %v2411
    %v3035 = vunpack.c.h.b16 %v2411
    %v3036 = vunpack.c.l.b16 %v2412
    %v3037 = vunpack.c.h.b16 %v2412
    %v3038 = vunpack.c.l.b16 %v2413
    %v3039 = vunpack.c.l.b16 %v2414
    %v3040 = vunpack.c.h.b16 %v2414
    %v3041 = vunpack.c.l.b16 %v2415
    %v3042 = vunpack.c.h.b16 %v2415
    %v3043 = vunpack.c.l.b16 %v2416
    %v3044 = vpack.c.b16 %v2674, %v2669
    %v3045 = vpack.c.b16 %v2675, %v2670
    %v3046 = vpack.c.b16 %v2676, %v2671
    %v3047 = vpack.c.b16 %v2677, %v2672
    %v3048 = vpack.c.b16 %v2678, %v2673
    %v3049 = vpack.c.b16 %v2684, %v2679
    %v3050 = vpack.c.b16 %v2685, %v2680
    %v3051 = vpack.c.b16 %v2686, %v2681
    %v3052 = vpack.c.b16 %v2687, %v2682
    %v3053 = vpack.c.b16 %v2688, %v2683
    %v3054 = vpack.c.b16 %v2694, %v2689
    %v3055 = vpack.c.b16 %v2695, %v2690
    %v3056 = vpack.c.b16 %v2696, %v2691
    %v3057 = vpack.c.b16 %v2697, %v2692
    %v3058 = vpack.c.b16 %v2698, %v2693
    %v3059 = vpack.c.b16 %v2704, %v2699
    %v3060 = vpack.c.b16 %v2705, %v2700
    %v3061 = vpack.c.b16 %v2706, %v2701
    %v3062 = vpack.c.b16 %v2707, %v2702
    %v3063 = vpack.c.b16 %v2708, %v2703
    %v3064 = vpack.c.b16 %v2714, %v2709
    %v3065 = vpack.c.b16 %v2715, %v2710
    %v3066 = vpack.c.b16 %v2716, %v2711
    %v3067 = vpack.c.b16 %v2717, %v2712
    %v3068 = vpack.c.b16 %v2718, %v2713
    %v3069 = vpack.c.b16 %v2724, %v2719
    %v3070 = vpack.c.b16 %v2725, %v2720
    %v3071 = vpack.c.b16 %v2726, %v2721
    %v3072 = vpack.c.b16 %v2727, %v2722
    %v3073 = vpack.c.b16 %v2728, %v2723
    %v3074 = vpack.c.b16 %v2734, %v2729
    %v3075 = vpack.c.b16 %v2735, %v2730
    %v3076 = vpack.c.b16 %v2736, %v2731
    %v3077 = vpack.c.b16 %v2737, %v2732
    %v3078 = vpack.c.b16 %v2738, %v2733
    %v3079 = vpack.c.b16 %v2744, %v2739
    %v3080 = vpack.c.b16 %v2745, %v2740
    %v3081 = vpack.c.b16 %v2746, %v2741
    %v3082 = vpack.c.b16 %v2747, %v2742
    %v3083 = vpack.c.b16 %v2748, %v2743
    %v3084 = vpack.c.b16 %v2754, %v2749
    %v3085 = vpack.c.b16 %v2755, %v2750
    %v3086 = vpack.c.b16 %v2756, %v2751
    %v3087 = vpack.c.b16 %v2757, %v2752
    %v3088 = vpack.c.b16 %v2758, %v2753
    %v3089 = vpack.c.b16 %v2764, %v2759
    %v3090 = vpack.c.b16 %v2765, %v2760
    %v3091 = vpack.c.b16 %v2766, %v2761
    %v3092 = vpack.c.b16 %v2767, %v2762
    %v3093 = vpack.c.b16 %v2768, %v2763
    %v3094 = vpack.c.b16 %v2774, %v2769
    %v3095 = vpack.c.b16 %v2775, %v2770
    %v3096 = vpack.c.b16 %v2776, %v2771
    %v3097 = vpack.c.b16 %v2777, %v2772
    %v3098 = vpack.c.b16 %v2778, %v2773
    %v3099 = vpack.c.b16 %v2784, %v2779
    %v3100 = vpack.c.b16 %v2785, %v2780
    %v3101 = vpack.c.b16 %v2786, %v2781
    %v3102 = vpack.c.b16 %v2787, %v2782
    %v3103 = vpack.c.b16 %v2788, %v2783
    %v3104 = vpack.c.b16 %v2794, %v2789
    %v3105 = vpack.c.b16 %v2795, %v2790
    %v3106 = vpack.c.b16 %v2796, %v2791
    %v3107 = vpack.c.b16 %v2797, %v2792
    %v3108 = vpack.c.b16 %v2798, %v2793
    %v3109 = vpack.c.b16 %v2804, %v2799
    %v3110 = vpack.c.b16 %v2805, %v2800
    %v3111 = vpack.c.b16 %v2806, %v2801
    %v3112 = vpack.c.b16 %v2807, %v2802
    %v3113 = vpack.c.b16 %v2808, %v2803
    %v3114 = vpack.c.b16 %v2814, %v2809
    %v3115 = vpack.c.b16 %v2815, %v2810
    %v3116 = vpack.c.b16 %v2816, %v2811
    %v3117 = vpack.c.b16 %v2817, %v2812
    %v3118 = vpack.c.b16 %v2818, %v2813
    %v3119 = vpack.c.b16 %v2824, %v2819
    %v3120 = vpack.c.b16 %v2825, %v2820
    %v3121 = vpack.c.b16 %v2826, %v2821
    %v3122 = vpack.c.b16 %v2827, %v2822
    %v3123 = vpack.c.b16 %v2828, %v2823
    %v3124 = vpack.c.b16 %v2834, %v2829
    %v3125 = vpack.c.b16 %v2835, %v2830
    %v3126 = vpack.c.b16 %v2836, %v2831
    %v3127 = vpack.c.b16 %v2837, %v2832
    %v3128 = vpack.c.b16 %v2838, %v2833
    %v3129 = vpack.c.b16 %v2844, %v2839
    %v3130 = vpack.c.b16 %v2845, %v2840
    %v3131 = vpack.c.b16 %v2846, %v2841
    %v3132 = vpack.c.b16 %v2847, %v2842
    %v3133 = vpack.c.b16 %v2848, %v2843
    %v3134 = vpack.c.b16 %v2854, %v2849
    %v3135 = vpack.c.b16 %v2855, %v2850
    %v3136 = vpack.c.b16 %v2856, %v2851
    %v3137 = vpack.c.b16 %v2857, %v2852
    %v3138 = vpack.c.b16 %v2858, %v2853
    %v3139 = vpack.c.b16 %v2864, %v2859
    %v3140 = vpack.c.b16 %v2865, %v2860
    %v3141 = vpack.c.b16 %v2866, %v2861
    %v3142 = vpack.c.b16 %v2867, %v2862
    %v3143 = vpack.c.b16 %v2868, %v2863
    %v3144 = vpack.c.b16 %v2874, %v2869
    %v3145 = vpack.c.b16 %v2875, %v2870
    %v3146 = vpack.c.b16 %v2876, %v2871
    %v3147 = vpack.c.b16 %v2877, %v2872
    %v3148 = vpack.c.b16 %v2878, %v2873
    %v3149 = vpack.c.b16 %v2884, %v2879
    %v3150 = vpack.c.b16 %v2885, %v2880
    %v3151 = vpack.c.b16 %v2886, %v2881
    %v3152 = vpack.c.b16 %v2887, %v2882
    %v3153 = vpack.c.b16 %v2888, %v2883
    %v3154 = vpack.c.b16 %v2894, %v2889
    %v3155 = vpack.c.b16 %v2895, %v2890
    %v3156 = vpack.c.b16 %v2896, %v2891
    %v3157 = vpack.c.b16 %v2897, %v2892
    %v3158 = vpack.c.b16 %v2898, %v2893
    %v3159 = vpack.c.b16 %v2904, %v2899
    %v3160 = vpack.c.b16 %v2905, %v2900
    %v3161 = vpack.c.b16 %v2906, %v2901
    %v3162 = vpack.c.b16 %v2907, %v2902
    %v3163 = vpack.c.b16 %v2908, %v2903
    %v3164 = vpack.c.b16 %v2914, %v2909
    %v3165 = vpack.c.b16 %v2915, %v2910
    %v3166 = vpack.c.b16 %v2916, %v2911
    %v3167 = vpack.c.b16 %v2917, %v2912
    %v3168 = vpack.c.b16 %v2918, %v2913
    %v3169 = vpack.c.b16 %v2924, %v2919
    %v3170 = vpack.c.b16 %v2925, %v2920
    %v3171 = vpack.c.b16 %v2926, %v2921
    %v3172 = vpack.c.b16 %v2927, %v2922
    %v3173 = vpack.c.b16 %v2928, %v2923
    %v3174 = vpack.c.b16 %v2934, %v2929
    %v3175 = vpack.c.b16 %v2935, %v2930
    %v3176 = vpack.c.b16 %v2936, %v2931
    %v3177 = vpack.c.b16 %v2937, %v2932
    %v3178 = vpack.c.b16 %v2938, %v2933
    %v3179 = vpack.c.b16 %v2944, %v2939
    %v3180 = vpack.c.b16 %v2945, %v2940
    %v3181 = vpack.c.b16 %v2946, %v2941
    %v3182 = vpack.c.b16 %v2947, %v2942
    %v3183 = vpack.c.b16 %v2948, %v2943
    %v3184 = vpack.c.b16 %v2954, %v2949
    %v3185 = vpack.c.b16 %v2955, %v2950
    %v3186 = vpack.c.b16 %v2956, %v2951
    %v3187 = vpack.c.b16 %v2957, %v2952
    %v3188 = vpack.c.b16 %v2958, %v2953
    %v3189 = vpack.c.b16 %v2964, %v2959
    %v3190 = vpack.c.b16 %v2965, %v2960
    %v3191 = vpack.c.b16 %v2966, %v2961
    %v3192 = vpack.c.b16 %v2967, %v2962
    %v3193 = vpack.c.b16 %v2968, %v2963
    %v3194 = vpack.c.b16 %v2974, %v2969
    %v3195 = vpack.c.b16 %v2975, %v2970
    %v3196 = vpack.c.b16 %v2976, %v2971
    %v3197 = vpack.c.b16 %v2977, %v2972
    %v3198 = vpack.c.b16 %v2978, %v2973
    %v3199 = vpack.c.b16 %v2984, %v2979
    %v3200 = vpack.c.b16 %v2985, %v2980
    %v3201 = vpack.c.b16 %v2986, %v2981
    %v3202 = vpack.c.b16 %v2987, %v2982
    %v3203 = vpack.c.b16 %v2988, %v2983
    %v3204 = vpack.c.b16 %v2994, %v2989
    %v3205 = vpack.c.b16 %v2995, %v2990
    %v3206 = vpack.c.b16 %v2996, %v2991
    %v3207 = vpack.c.b16 %v2997, %v2992
    %v3208 = vpack.c.b16 %v2998, %v2993
    %v3209 = vpack.c.b16 %v3004, %v2999
    %v3210 = vpack.c.b16 %v3005, %v3000
    %v3211 = vpack.c.b16 %v3006, %v3001
    %v3212 = vpack.c.b16 %v3007, %v3002
    %v3213 = vpack.c.b16 %v3008, %v3003
    %v3214 = vpack.c.b16 %v3014, %v3009
    %v3215 = vpack.c.b16 %v3015, %v3010
    %v3216 = vpack.c.b16 %v3016, %v3011
    %v3217 = vpack.c.b16 %v3017, %v3012
    %v3218 = vpack.c.b16 %v3018, %v3013
    %v3219 = vpack.c.b16 %v3024, %v3019
    %v3220 = vpack.c.b16 %v3025, %v3020
    %v3221 = vpack.c.b16 %v3026, %v3021
    %v3222 = vpack.c.b16 %v3027, %v3022
    %v3223 = vpack.c.b16 %v3028, %v3023
    %v3224 = vpack.c.b16 %v3034, %v3029
    %v3225 = vpack.c.b16 %v3035, %v3030
    %v3226 = vpack.c.b16 %v3036, %v3031
    %v3227 = vpack.c.b16 %v3037, %v3032
    %v3228 = vpack.c.b16 %v3038, %v3033
    %v3229 = vpack.c.b16 %v3039, %v3039
    %v3230 = vpack.c.b16 %v3040, %v3040
    %v3231 = vpack.c.b16 %v3041, %v3041
    %v3232 = vpack.c.b16 %v3042, %v3042
    %v3233 = vpack.c.b16 %v3043, %v3043
    %v3420 = vsel %vm1795, %v3229, 0
    %v3423 = vsel %vm1795, %v3230, 0
    %v3426 = vsel %vm1795, %v3231, 0
    %v3429 = vsel %vm1795, %v3232, 0
    %v3432 = vsel %vm1795, %v3233, 0
    %3434 = vmatprep.subr.bf16.mxu0 %v3045
    %3435 = vmatpush1.bf16.msra.mxu0 %v3044
    %3436 = vmatprep.subr.bf16.mxu0 %v3050
    %3437 = vmatpush1.bf16.msra.mxu0 %v3049
    %3438 = vmatprep.subr.bf16.mxu0 %v3055
    %3439 = vmatpush1.bf16.msra.mxu0 %v3054
    %3440 = vmatprep.subr.bf16.mxu0 %v3060
    %3441 = vmatpush1.bf16.msra.mxu0 %v3059
    %3442 = vmatprep.subr.bf16.mxu0 %v3065
    %3443 = vmatpush1.bf16.msra.mxu0 %v3064
    %3444 = vmatprep.subr.bf16.mxu0 %v3070
    %3445 = vmatpush1.bf16.msra.mxu0 %v3069
    %3446 = vmatprep.subr.bf16.mxu0 %v3075
    %3447 = vmatpush1.bf16.msra.mxu0 %v3074
    %3448 = vmatprep.subr.bf16.mxu0 %v3080
    %3449 = vmatpush1.bf16.msra.mxu0 %v3079
    %3450 = vmatprep.subr.bf16.mxu0 %v3085
    %3451 = vmatpush1.bf16.msra.mxu0 %v3084
    %3452 = vmatprep.subr.bf16.mxu0 %v3090
    %3453 = vmatpush1.bf16.msra.mxu0 %v3089
    %3454 = vmatprep.subr.bf16.mxu0 %v3095
    %3455 = vmatpush1.bf16.msra.mxu0 %v3094
    %3456 = vmatprep.subr.bf16.mxu0 %v3100
    %3457 = vmatpush1.bf16.msra.mxu0 %v3099
    %3458 = vmatprep.subr.bf16.mxu0 %v3105
    %3459 = vmatpush1.bf16.msra.mxu0 %v3104
    %3460 = vmatprep.subr.bf16.mxu0 %v3110
    %3461 = vmatpush1.bf16.msra.mxu0 %v3109
    %3462 = vmatprep.subr.bf16.mxu0 %v3115
    %3463 = vmatpush1.bf16.msra.mxu0 %v3114
    %3464 = vmatprep.subr.bf16.mxu0 %v3120
    %3465 = vmatpush1.bf16.msra.mxu0 %v3119
    %3466 = vmatprep.mubr.bf16.mxu0 %v560
    %3467 = vmatmul.mubr.bf16.gmra.mrb[0].mxu0 %v559
    %v3468 = vpop.f32.mrb[0].mxu0
    %v3469 = vadd.f32 %v2422, %v3468
    %v3470 = vpop.f32.mrb[0].mxu0
    %v3471 = vadd.f32 %v2426, %v3470
    %v3472 = vpop.f32.mrb[0].mxu0
    %v3473 = vadd.f32 %v2422, %v3472
    %v3474 = vpop.f32.mrb[0].mxu0
    %v3475 = vadd.f32 %v2426, %v3474
    %3476 = vdwg.mxu0
    %3477 = vmatprep.subr.bf16.mxu0 %v3125
    %3478 = vmatpush1.bf16.msra.mxu0 %v3124
    %3479 = vmatprep.subr.bf16.mxu0 %v3130
    %3480 = vmatpush1.bf16.msra.mxu0 %v3129
    %3481 = vmatprep.subr.bf16.mxu0 %v3135
    %3482 = vmatpush1.bf16.msra.mxu0 %v3134
    %3483 = vmatprep.subr.bf16.mxu0 %v3140
    %3484 = vmatpush1.bf16.msra.mxu0 %v3139
    %3485 = vmatprep.subr.bf16.mxu0 %v3145
    %3486 = vmatpush1.bf16.msra.mxu0 %v3144
    %3487 = vmatprep.subr.bf16.mxu0 %v3150
    %3488 = vmatpush1.bf16.msra.mxu0 %v3149
    %3489 = vmatprep.subr.bf16.mxu0 %v3155
    %3490 = vmatpush1.bf16.msra.mxu0 %v3154
    %3491 = vmatprep.subr.bf16.mxu0 %v3160
    %3492 = vmatpush1.bf16.msra.mxu0 %v3159
    %3493 = vmatprep.subr.bf16.mxu0 %v3165
    %3494 = vmatpush1.bf16.msra.mxu0 %v3164
    %3495 = vmatprep.subr.bf16.mxu0 %v3170
    %3496 = vmatpush1.bf16.msra.mxu0 %v3169
    %3497 = vmatprep.subr.bf16.mxu0 %v3175
    %3498 = vmatpush1.bf16.msra.mxu0 %v3174
    %3499 = vmatprep.subr.bf16.mxu0 %v3180
    %3500 = vmatpush1.bf16.msra.mxu0 %v3179
    %3501 = vmatprep.subr.bf16.mxu0 %v3185
    %3502 = vmatpush1.bf16.msra.mxu0 %v3184
    %3503 = vmatprep.subr.bf16.mxu0 %v3190
    %3504 = vmatpush1.bf16.msra.mxu0 %v3189
    %3505 = vmatprep.subr.bf16.mxu0 %v3195
    %3506 = vmatpush1.bf16.msra.mxu0 %v3194
    %3507 = vmatprep.subr.bf16.mxu0 %v3200
    %3508 = vmatpush1.bf16.msra.mxu0 %v3199
    %3509 = vmatprep.mubr.bf16.mxu0 %v562
    %3510 = vmatmul.mubr.bf16.gmra.mrb[0].mxu0 %v561
    %v3511 = vpop.f32.mrb[0].mxu0
    %v3512 = vadd.f32 %v3469, %v3511
    %v3513 = vpop.f32.mrb[0].mxu0
    %v3514 = vadd.f32 %v3471, %v3513
    %v3515 = vpop.f32.mrb[0].mxu0
    %v3516 = vadd.f32 %v3473, %v3515
    %v3517 = vpop.f32.mrb[0].mxu0
    %v3518 = vadd.f32 %v3475, %v3517
    %3519 = vdwg.mxu0
    %3520 = vmatprep.subr.bf16.mxu0 %v3205
    %3521 = vmatpush1.bf16.msra.mxu0 %v3204
    %3522 = vmatprep.subr.bf16.mxu0 %v3210
    %3523 = vmatpush1.bf16.msra.mxu0 %v3209
    %3524 = vmatprep.subr.bf16.mxu0 %v3215
    %3525 = vmatpush1.bf16.msra.mxu0 %v3214
    %3526 = vmatprep.subr.bf16.mxu0 %v3220
    %3527 = vmatpush1.bf16.msra.mxu0 %v3219
    %3528 = vmatprep.subr.bf16.mxu0 %v3225
    %3529 = vmatpush1.bf16.msra.mxu0 %v3224
    %3530 = vmatprep.subr.bf16.mxu0 %v3423
    %3531 = vmatpush1.bf16.msra.mxu0 %v3420
    %3532 = vmatprep.subr.bf16.mxu0 0
    %3533 = vmatpush1.bf16.msra.mxu0 0
    %3534 = vmatprep.subr.bf16.mxu0 0
    %3535 = vmatpush1.bf16.msra.mxu0 0
    %3536 = vmatprep.subr.bf16.mxu0 0
    %3537 = vmatpush1.bf16.msra.mxu0 0
    %3538 = vmatprep.subr.bf16.mxu0 0
    %3539 = vmatpush1.bf16.msra.mxu0 0
    %3540 = vmatprep.subr.bf16.mxu0 0
    %3541 = vmatpush1.bf16.msra.mxu0 0
    %3542 = vmatprep.subr.bf16.mxu0 0
    %3543 = vmatpush1.bf16.msra.mxu0 0
    %3544 = vmatprep.subr.bf16.mxu0 0
    %3545 = vmatpush1.bf16.msra.mxu0 0
    %3546 = vmatprep.subr.bf16.mxu0 0
    %3547 = vmatpush1.bf16.msra.mxu0 0
    %3548 = vmatprep.subr.bf16.mxu0 0
    %3549 = vmatpush1.bf16.msra.mxu0 0
    %3550 = vmatprep.subr.bf16.mxu0 0
    %3551 = vmatpush1.bf16.msra.mxu0 0
    %3552 = vmatprep.mubr.bf16.mxu0 0
    %3553 = vmatmul.mubr.bf16.gmra.mrb[0].mxu0 %v1793
    %v3554 = vpop.f32.mrb[0].mxu0
    %v3555 = vadd.f32 %v3512, %v3554
    %v3556 = vpop.f32.mrb[0].mxu0
    %v3557 = vadd.f32 %v3514, %v3556
    %v3558 = vpop.f32.mrb[0].mxu0
    %v3559 = vadd.f32 %v3516, %v3558
    %v3560 = vpop.f32.mrb[0].mxu0
    %v3561 = vadd.f32 %v3518, %v3560
    %3562 = vdwg.mxu0
    %3563 = vmatprep.subr.bf16.mxu0 %v3047
    %3564 = vmatpush1.bf16.msra.mxu0 %v3046
    %3565 = vmatprep.subr.bf16.mxu0 %v3052
    %3566 = vmatpush1.bf16.msra.mxu0 %v3051
    %3567 = vmatprep.subr.bf16.mxu0 %v3057
    %3568 = vmatpush1.bf16.msra.mxu0 %v3056
    %3569 = vmatprep.subr.bf16.mxu0 %v3062
    %3570 = vmatpush1.bf16.msra.mxu0 %v3061
    %3571 = vmatprep.subr.bf16.mxu0 %v3067
    %3572 = vmatpush1.bf16.msra.mxu0 %v3066
    %3573 = vmatprep.subr.bf16.mxu0 %v3072
    %3574 = vmatpush1.bf16.msra.mxu0 %v3071
    %3575 = vmatprep.subr.bf16.mxu0 %v3077
    %3576 = vmatpush1.bf16.msra.mxu0 %v3076
    %3577 = vmatprep.subr.bf16.mxu0 %v3082
    %3578 = vmatpush1.bf16.msra.mxu0 %v3081
    %3579 = vmatprep.subr.bf16.mxu0 %v3087
    %3580 = vmatpush1.bf16.msra.mxu0 %v3086
    %3581 = vmatprep.subr.bf16.mxu0 %v3092
    %3582 = vmatpush1.bf16.msra.mxu0 %v3091
    %3583 = vmatprep.subr.bf16.mxu0 %v3097
    %3584 = vmatpush1.bf16.msra.mxu0 %v3096
    %3585 = vmatprep.subr.bf16.mxu0 %v3102
    %3586 = vmatpush1.bf16.msra.mxu0 %v3101
    %3587 = vmatprep.subr.bf16.mxu0 %v3107
    %3588 = vmatpush1.bf16.msra.mxu0 %v3106
    %3589 = vmatprep.subr.bf16.mxu0 %v3112
    %3590 = vmatpush1.bf16.msra.mxu0 %v3111
    %3591 = vmatprep.subr.bf16.mxu0 %v3117
    %3592 = vmatpush1.bf16.msra.mxu0 %v3116
    %3593 = vmatprep.subr.bf16.mxu0 %v3122
    %3594 = vmatpush1.bf16.msra.mxu0 %v3121
    %3595 = vmatprep.mubr.bf16.mxu0 %v560
    %3596 = vmatmul.mubr.bf16.gmra.mrb[0].mxu0 %v559
    %v3597 = vpop.f32.mrb[0].mxu0
    %v3598 = vadd.f32 %v2430, %v3597
    %v3599 = vpop.f32.mrb[0].mxu0
    %v3600 = vadd.f32 %v2434, %v3599
    %v3601 = vpop.f32.mrb[0].mxu0
    %v3602 = vadd.f32 %v2430, %v3601
    %v3603 = vpop.f32.mrb[0].mxu0
    %v3604 = vadd.f32 %v2434, %v3603
    %3605 = vdwg.mxu0
    %3606 = vmatprep.subr.bf16.mxu0 %v3127
    %3607 = vmatpush1.bf16.msra.mxu0 %v3126
    %3608 = vmatprep.subr.bf16.mxu0 %v3132
    %3609 = vmatpush1.bf16.msra.mxu0 %v3131
    %3610 = vmatprep.subr.bf16.mxu0 %v3137
    %3611 = vmatpush1.bf16.msra.mxu0 %v3136
    %3612 = vmatprep.subr.bf16.mxu0 %v3142
    %3613 = vmatpush1.bf16.msra.mxu0 %v3141
    %3614 = vmatprep.subr.bf16.mxu0 %v3147
    %3615 = vmatpush1.bf16.msra.mxu0 %v3146
    %3616 = vmatprep.subr.bf16.mxu0 %v3152
    %3617 = vmatpush1.bf16.msra.mxu0 %v3151
    %3618 = vmatprep.subr.bf16.mxu0 %v3157
    %3619 = vmatpush1.bf16.msra.mxu0 %v3156
    %3620 = vmatprep.subr.bf16.mxu0 %v3162
    %3621 = vmatpush1.bf16.msra.mxu0 %v3161
    %3622 = vmatprep.subr.bf16.mxu0 %v3167
    %3623 = vmatpush1.bf16.msra.mxu0 %v3166
    %3624 = vmatprep.subr.bf16.mxu0 %v3172
    %3625 = vmatpush1.bf16.msra.mxu0 %v3171
    %3626 = vmatprep.subr.bf16.mxu0 %v3177
    %3627 = vmatpush1.bf16.msra.mxu0 %v3176
    %3628 = vmatprep.subr.bf16.mxu0 %v3182
    %3629 = vmatpush1.bf16.msra.mxu0 %v3181
    %3630 = vmatprep.subr.bf16.mxu0 %v3187
    %3631 = vmatpush1.bf16.msra.mxu0 %v3186
    %3632 = vmatprep.subr.bf16.mxu0 %v3192
    %3633 = vmatpush1.bf16.msra.mxu0 %v3191
    %3634 = vmatprep.subr.bf16.mxu0 %v3197
    %3635 = vmatpush1.bf16.msra.mxu0 %v3196
    %3636 = vmatprep.subr.bf16.mxu0 %v3202
    %3637 = vmatpush1.bf16.msra.mxu0 %v3201
    %3638 = vmatprep.mubr.bf16.mxu0 %v562
    %3639 = vmatmul.mubr.bf16.gmra.mrb[0].mxu0 %v561
    %v3640 = vpop.f32.mrb[0].mxu0
    %v3641 = vadd.f32 %v3598, %v3640
    %v3642 = vpop.f32.mrb[0].mxu0
    %v3643 = vadd.f32 %v3600, %v3642
    %v3644 = vpop.f32.mrb[0].mxu0
    %v3645 = vadd.f32 %v3602, %v3644
    %v3646 = vpop.f32.mrb[0].mxu0
    %v3647 = vadd.f32 %v3604, %v3646
    %3648 = vdwg.mxu0
    %3649 = vmatprep.subr.bf16.mxu0 %v3207
    %3650 = vmatpush1.bf16.msra.mxu0 %v3206
    %3651 = vmatprep.subr.bf16.mxu0 %v3212
    %3652 = vmatpush1.bf16.msra.mxu0 %v3211
    %3653 = vmatprep.subr.bf16.mxu0 %v3217
    %3654 = vmatpush1.bf16.msra.mxu0 %v3216
    %3655 = vmatprep.subr.bf16.mxu0 %v3222
    %3656 = vmatpush1.bf16.msra.mxu0 %v3221
    %3657 = vmatprep.subr.bf16.mxu0 %v3227
    %3658 = vmatpush1.bf16.msra.mxu0 %v3226
    %3659 = vmatprep.subr.bf16.mxu0 %v3429
    %3660 = vmatpush1.bf16.msra.mxu0 %v3426
    %3661 = vmatprep.subr.bf16.mxu0 0
    %3662 = vmatpush1.bf16.msra.mxu0 0
    %3663 = vmatprep.subr.bf16.mxu0 0
    %3664 = vmatpush1.bf16.msra.mxu0 0
    %3665 = vmatprep.subr.bf16.mxu0 0
    %3666 = vmatpush1.bf16.msra.mxu0 0
    %3667 = vmatprep.subr.bf16.mxu0 0
    %3668 = vmatpush1.bf16.msra.mxu0 0
    %3669 = vmatprep.subr.bf16.mxu0 0
    %3670 = vmatpush1.bf16.msra.mxu0 0
    %3671 = vmatprep.subr.bf16.mxu0 0
    %3672 = vmatpush1.bf16.msra.mxu0 0
    %3673 = vmatprep.subr.bf16.mxu0 0
    %3674 = vmatpush1.bf16.msra.mxu0 0
    %3675 = vmatprep.subr.bf16.mxu0 0
    %3676 = vmatpush1.bf16.msra.mxu0 0
    %3677 = vmatprep.subr.bf16.mxu0 0
    %3678 = vmatpush1.bf16.msra.mxu0 0
    %3679 = vmatprep.subr.bf16.mxu0 0
    %3680 = vmatpush1.bf16.msra.mxu0 0
    %3681 = vmatprep.mubr.bf16.mxu0 0
    %3682 = vmatmul.mubr.bf16.gmra.mrb[0].mxu0 %v1793
    %v3683 = vpop.f32.mrb[0].mxu0
    %v3684 = vadd.f32 %v3641, %v3683
    %v3685 = vpop.f32.mrb[0].mxu0
    %v3686 = vadd.f32 %v3643, %v3685
    %v3687 = vpop.f32.mrb[0].mxu0
    %v3688 = vadd.f32 %v3645, %v3687
    %v3689 = vpop.f32.mrb[0].mxu0
    %v3690 = vadd.f32 %v3647, %v3689
    %3691 = vdwg.mxu0
    %3692 = vmatprep.subr.bf16.mxu0 0
    %3693 = vmatpush1.bf16.msra.mxu0 %v3048
    %3694 = vmatprep.subr.bf16.mxu0 0
    %3695 = vmatpush1.bf16.msra.mxu0 %v3053
    %3696 = vmatprep.subr.bf16.mxu0 0
    %3697 = vmatpush1.bf16.msra.mxu0 %v3058
    %3698 = vmatprep.subr.bf16.mxu0 0
    %3699 = vmatpush1.bf16.msra.mxu0 %v3063
    %3700 = vmatprep.subr.bf16.mxu0 0
    %3701 = vmatpush1.bf16.msra.mxu0 %v3068
    %3702 = vmatprep.subr.bf16.mxu0 0
    %3703 = vmatpush1.bf16.msra.mxu0 %v3073
    %3704 = vmatprep.subr.bf16.mxu0 0
    %3705 = vmatpush1.bf16.msra.mxu0 %v3078
    %3706 = vmatprep.subr.bf16.mxu0 0
    %3707 = vmatpush1.bf16.msra.mxu0 %v3083
    %3708 = vmatprep.subr.bf16.mxu0 0
    %3709 = vmatpush1.bf16.msra.mxu0 %v3088
    %3710 = vmatprep.subr.bf16.mxu0 0
    %3711 = vmatpush1.bf16.msra.mxu0 %v3093
    %3712 = vmatprep.subr.bf16.mxu0 0
    %3713 = vmatpush1.bf16.msra.mxu0 %v3098
    %3714 = vmatprep.subr.bf16.mxu0 0
    %3715 = vmatpush1.bf16.msra.mxu0 %v3103
    %3716 = vmatprep.subr.bf16.mxu0 0
    %3717 = vmatpush1.bf16.msra.mxu0 %v3108
    %3718 = vmatprep.subr.bf16.mxu0 0
    %3719 = vmatpush1.bf16.msra.mxu0 %v3113
    %3720 = vmatprep.subr.bf16.mxu0 0
    %3721 = vmatpush1.bf16.msra.mxu0 %v3118
    %3722 = vmatprep.subr.bf16.mxu0 0
    %3723 = vmatpush1.bf16.msra.mxu0 %v3123
    %3724 = vmatprep.mubr.bf16.mxu0 %v560
    %3725 = vmatmul.mubr.bf16.gmra.mrb[0].mxu0 %v559
    %v3726 = vpop.f32.mrb[0].mxu0
    %v3727 = vadd.f32 %v2438, %v3726
    %v3728 = vpop.f32.mrb[0].mxu0
    %v3729 = vpop.f32.mrb[0].mxu0
    %v3730 = vadd.f32 %v2438, %v3729
    %v3731 = vpop.f32.mrb[0].mxu0
    %3732 = vdwg.mxu0
    %3733 = vmatprep.subr.bf16.mxu0 0
    %3734 = vmatpush1.bf16.msra.mxu0 %v3128
    %3735 = vmatprep.subr.bf16.mxu0 0
    %3736 = vmatpush1.bf16.msra.mxu0 %v3133
    %3737 = vmatprep.subr.bf16.mxu0 0
    %3738 = vmatpush1.bf16.msra.mxu0 %v3138
    %3739 = vmatprep.subr.bf16.mxu0 0
    %3740 = vmatpush1.bf16.msra.mxu0 %v3143
    %3741 = vmatprep.subr.bf16.mxu0 0
    %3742 = vmatpush1.bf16.msra.mxu0 %v3148
    %3743 = vmatprep.subr.bf16.mxu0 0
    %3744 = vmatpush1.bf16.msra.mxu0 %v3153
    %3745 = vmatprep.subr.bf16.mxu0 0
    %3746 = vmatpush1.bf16.msra.mxu0 %v3158
    %3747 = vmatprep.subr.bf16.mxu0 0
    %3748 = vmatpush1.bf16.msra.mxu0 %v3163
    %3749 = vmatprep.subr.bf16.mxu0 0
    %3750 = vmatpush1.bf16.msra.mxu0 %v3168
    %3751 = vmatprep.subr.bf16.mxu0 0
    %3752 = vmatpush1.bf16.msra.mxu0 %v3173
    %3753 = vmatprep.subr.bf16.mxu0 0
    %3754 = vmatpush1.bf16.msra.mxu0 %v3178
    %3755 = vmatprep.subr.bf16.mxu0 0
    %3756 = vmatpush1.bf16.msra.mxu0 %v3183
    %3757 = vmatprep.subr.bf16.mxu0 0
    %3758 = vmatpush1.bf16.msra.mxu0 %v3188
    %3759 = vmatprep.subr.bf16.mxu0 0
    %3760 = vmatpush1.bf16.msra.mxu0 %v3193
    %3761 = vmatprep.subr.bf16.mxu0 0
    %3762 = vmatpush1.bf16.msra.mxu0 %v3198
    %3763 = vmatprep.subr.bf16.mxu0 0
    %3764 = vmatpush1.bf16.msra.mxu0 %v3203
    %3765 = vmatprep.mubr.bf16.mxu0 %v562
    %3766 = vmatmul.mubr.bf16.gmra.mrb[0].mxu0 %v561
    %v3767 = vpop.f32.mrb[0].mxu0
    %v3768 = vadd.f32 %v3727, %v3767
    %v3769 = vpop.f32.mrb[0].mxu0
    %v3770 = vpop.f32.mrb[0].mxu0
    %v3771 = vadd.f32 %v3730, %v3770
    %v3772 = vpop.f32.mrb[0].mxu0
    %3773 = vdwg.mxu0
    %3774 = vmatprep.subr.bf16.mxu0 0
    %3775 = vmatpush1.bf16.msra.mxu0 %v3208
    %3776 = vmatprep.subr.bf16.mxu0 0
    %3777 = vmatpush1.bf16.msra.mxu0 %v3213
    %3778 = vmatprep.subr.bf16.mxu0 0
    %3779 = vmatpush1.bf16.msra.mxu0 %v3218
    %3780 = vmatprep.subr.bf16.mxu0 0
    %3781 = vmatpush1.bf16.msra.mxu0 %v3223
    %3782 = vmatprep.subr.bf16.mxu0 0
    %3783 = vmatpush1.bf16.msra.mxu0 %v3228
    %3784 = vmatprep.subr.bf16.mxu0 0
    %3785 = vmatpush1.bf16.msra.mxu0 %v3432
    %3786 = vmatprep.subr.bf16.mxu0 0
    %3787 = vmatpush1.bf16.msra.mxu0 0
    %3788 = vmatprep.subr.bf16.mxu0 0
    %3789 = vmatpush1.bf16.msra.mxu0 0
    %3790 = vmatprep.subr.bf16.mxu0 0
    %3791 = vmatpush1.bf16.msra.mxu0 0
    %3792 = vmatprep.subr.bf16.mxu0 0
    %3793 = vmatpush1.bf16.msra.mxu0 0
    %3794 = vmatprep.subr.bf16.mxu0 0
    %3795 = vmatpush1.bf16.msra.mxu0 0
    %3796 = vmatprep.subr.bf16.mxu0 0
    %3797 = vmatpush1.bf16.msra.mxu0 0
    %3798 = vmatprep.subr.bf16.mxu0 0
    %3799 = vmatpush1.bf16.msra.mxu0 0
    %3800 = vmatprep.subr.bf16.mxu0 0
    %3801 = vmatpush1.bf16.msra.mxu0 0
    %3802 = vmatprep.subr.bf16.mxu0 0
    %3803 = vmatpush1.bf16.msra.mxu0 0
    %3804 = vmatprep.subr.bf16.mxu0 0
    %3805 = vmatpush1.bf16.msra.mxu0 0
    %3806 = vmatprep.mubr.bf16.mxu0 0
    %3807 = vmatmul.mubr.bf16.gmra.mrb[0].mxu0 %v1793
    %v3808 = vpop.f32.mrb[0].mxu0
    %v3809 = vadd.f32 %v3768, %v3808
    %v3810 = vpop.f32.mrb[0].mxu0
    %v3811 = vpop.f32.mrb[0].mxu0
    %v3812 = vadd.f32 %v3771, %v3811
    %v3813 = vpop.f32.mrb[0].mxu0
    %3814 = vdwg.mxu0
    %v3815 = vld [vmem:[#allocation6] sm:$0xff]
    %v3816 = vld [vmem:[#allocation6 + $0x8] sm:$0xff]
    %v3817 = vld [vmem:[#allocation6 + $0x10] sm:$0xf]
    %v3818 = vld [vmem:[#allocation6 + $0x14] sm:$0xff]
    %v3819 = vld [vmem:[#allocation6 + $0x1c] sm:$0xff]
    %v3820 = vld [vmem:[#allocation6 + $0x24] sm:$0xf]
    %v3821 = vld [vmem:[#allocation6 + $0x28] sm:$0xff]
    %v3822 = vld [vmem:[#allocation6 + $0x30] sm:$0xff]
    %v3823 = vld [vmem:[#allocation6 + $0x38] sm:$0xf]
    %v3824 = vld [vmem:[#allocation6 + $0x3c] sm:$0xff]
    %v3825 = vld [vmem:[#allocation6 + $0x44] sm:$0xff]
    %v3826 = vld [vmem:[#allocation6 + $0x4c] sm:$0xf]
    %v3827 = vld [vmem:[#allocation6 + $0x50] sm:$0xff]
    %v3828 = vld [vmem:[#allocation6 + $0x58] sm:$0xff]
    %v3829 = vld [vmem:[#allocation6 + $0x60] sm:$0xf]
    %v3830 = vld [vmem:[#allocation6 + $0x64] sm:$0xff]
    %v3831 = vld [vmem:[#allocation6 + $0x6c] sm:$0xff]
    %v3832 = vld [vmem:[#allocation6 + $0x74] sm:$0xf]
    %v3833 = vld [vmem:[#allocation6 + $0x78] sm:$0xff]
    %v3834 = vld [vmem:[#allocation6 + $0x80] sm:$0xff]
    %v3835 = vld [vmem:[#allocation6 + $0x88] sm:$0xf]
    %v3836 = vld [vmem:[#allocation6 + $0x8c] sm:$0xff]
    %v3837 = vld [vmem:[#allocation6 + $0x94] sm:$0xff]
    %v3838 = vld [vmem:[#allocation6 + $0x9c] sm:$0xf]
    %v3839 = vld [vmem:[#allocation6 + $0xa0] sm:$0xff]
    %v3840 = vld [vmem:[#allocation6 + $0xa8] sm:$0xff]
    %v3841 = vld [vmem:[#allocation6 + $0xb0] sm:$0xf]
    %v3842 = vld [vmem:[#allocation6 + $0xb4] sm:$0xff]
    %v3843 = vld [vmem:[#allocation6 + $0xbc] sm:$0xff]
    %v3844 = vld [vmem:[#allocation6 + $0xc4] sm:$0xf]
    %v3845 = vld [vmem:[#allocation6 + $0xc8] sm:$0xff]
    %v3846 = vld [vmem:[#allocation6 + $0xd0] sm:$0xff]
    %v3847 = vld [vmem:[#allocation6 + $0xd8] sm:$0xf]
    %v3848 = vld [vmem:[#allocation6 + $0xdc] sm:$0xff]
    %v3849 = vld [vmem:[#allocation6 + $0xe4] sm:$0xff]
    %v3850 = vld [vmem:[#allocation6 + $0xec] sm:$0xf]
    %v3851 = vld [vmem:[#allocation6 + $0xf0] sm:$0xff]
    %v3852 = vld [vmem:[#allocation6 + $0xf8] sm:$0xff]
    %v3853 = vld [vmem:[#allocation6 + $0x100] sm:$0xf]
    %v3854 = vld [vmem:[#allocation6 + $0x104] sm:$0xff]
    %v3855 = vld [vmem:[#allocation6 + $0x10c] sm:$0xff]
    %v3856 = vld [vmem:[#allocation6 + $0x114] sm:$0xf]
    %v3857 = vld [vmem:[#allocation6 + $0x118] sm:$0xff]
    %v3858 = vld [vmem:[#allocation6 + $0x120] sm:$0xff]
    %v3859 = vld [vmem:[#allocation6 + $0x128] sm:$0xf]
    %v3860 = vld [vmem:[#allocation6 + $0x12c] sm:$0xff]
    %v3861 = vld [vmem:[#allocation6 + $0x134] sm:$0xff]
    %v3862 = vld [vmem:[#allocation6 + $0x13c] sm:$0xf]
    %v3863 = vld [vmem:[#allocation6 + $0x140] sm:$0xff]
    %v3864 = vld [vmem:[#allocation6 + $0x148] sm:$0xff]
    %v3865 = vld [vmem:[#allocation6 + $0x150] sm:$0xf]
    %v3866 = vld [vmem:[#allocation6 + $0x154] sm:$0xff]
    %v3867 = vld [vmem:[#allocation6 + $0x15c] sm:$0xff]
    %v3868 = vld [vmem:[#allocation6 + $0x164] sm:$0xf]
    %v3869 = vld [vmem:[#allocation6 + $0x168] sm:$0xff]
    %v3870 = vld [vmem:[#allocation6 + $0x170] sm:$0xff]
    %v3871 = vld [vmem:[#allocation6 + $0x178] sm:$0xf]
    %v3872 = vld [vmem:[#allocation6 + $0x17c] sm:$0xff]
    %v3873 = vld [vmem:[#allocation6 + $0x184] sm:$0xff]
    %v3874 = vld [vmem:[#allocation6 + $0x18c] sm:$0xf]
    %v3875 = vld [vmem:[#allocation6 + $0x190] sm:$0xff]
    %v3876 = vld [vmem:[#allocation6 + $0x198] sm:$0xff]
    %v3877 = vld [vmem:[#allocation6 + $0x1a0] sm:$0xf]
    %v3878 = vld [vmem:[#allocation6 + $0x1a4] sm:$0xff]
    %v3879 = vld [vmem:[#allocation6 + $0x1ac] sm:$0xff]
    %v3880 = vld [vmem:[#allocation6 + $0x1b4] sm:$0xf]
    %v3881 = vld [vmem:[#allocation6 + $0x1b8] sm:$0xff]
    %v3882 = vld [vmem:[#allocation6 + $0x1c0] sm:$0xff]
    %v3883 = vld [vmem:[#allocation6 + $0x1c8] sm:$0xf]
    %v3884 = vld [vmem:[#allocation6 + $0x1cc] sm:$0xff]
    %v3885 = vld [vmem:[#allocation6 + $0x1d4] sm:$0xff]
    %v3886 = vld [vmem:[#allocation6 + $0x1dc] sm:$0xf]
    %v3887 = vld [vmem:[#allocation6 + $0x1e0] sm:$0xff]
    %v3888 = vld [vmem:[#allocation6 + $0x1e8] sm:$0xff]
    %v3889 = vld [vmem:[#allocation6 + $0x1f0] sm:$0xf]
    %v3890 = vld [vmem:[#allocation6 + $0x1f4] sm:$0xff]
    %v3891 = vld [vmem:[#allocation6 + $0x1fc] sm:$0xff]
    %v3892 = vld [vmem:[#allocation6 + $0x204] sm:$0xf]
    %v3893 = vld [vmem:[#allocation6 + $0x208] sm:$0xff]
    %v3894 = vld [vmem:[#allocation6 + $0x210] sm:$0xff]
    %v3895 = vld [vmem:[#allocation6 + $0x218] sm:$0xf]
    %v3896 = vld [vmem:[#allocation6 + $0x21c] sm:$0xff]
    %v3897 = vld [vmem:[#allocation6 + $0x224] sm:$0xff]
    %v3898 = vld [vmem:[#allocation6 + $0x22c] sm:$0xf]
    %v3899 = vld [vmem:[#allocation6 + $0x230] sm:$0xff]
    %v3900 = vld [vmem:[#allocation6 + $0x238] sm:$0xff]
    %v3901 = vld [vmem:[#allocation6 + $0x240] sm:$0xf]
    %v3902 = vld [vmem:[#allocation6 + $0x244] sm:$0xff]
    %v3903 = vld [vmem:[#allocation6 + $0x24c] sm:$0xff]
    %v3904 = vld [vmem:[#allocation6 + $0x254] sm:$0xf]
    %v3905 = vld [vmem:[#allocation6 + $0x258] sm:$0xff]
    %v3906 = vld [vmem:[#allocation6 + $0x260] sm:$0xff]
    %v3907 = vld [vmem:[#allocation6 + $0x268] sm:$0xf]
    %v3908 = vld [vmem:[#allocation6 + $0x26c] sm:$0xff]
    %v3909 = vld [vmem:[#allocation6 + $0x274] sm:$0xff]
    %v3910 = vld [vmem:[#allocation6 + $0x27c] sm:$0xf]
    %v3911 = vld [vmem:[#allocation6 + $0x280] sm:$0xff]
    %v3912 = vld [vmem:[#allocation6 + $0x288] sm:$0xff]
    %v3913 = vld [vmem:[#allocation6 + $0x290] sm:$0xf]
    %v3914 = vld [vmem:[#allocation6 + $0x294] sm:$0xff]
    %v3915 = vld [vmem:[#allocation6 + $0x29c] sm:$0xff]
    %v3916 = vld [vmem:[#allocation6 + $0x2a4] sm:$0xf]
    %v3917 = vld [vmem:[#allocation6 + $0x2a8] sm:$0xff]
    %v3918 = vld [vmem:[#allocation6 + $0x2b0] sm:$0xff]
    %v3919 = vld [vmem:[#allocation6 + $0x2b8] sm:$0xf]
    %v3920 = vld [vmem:[#allocation6 + $0x2bc] sm:$0xff]
    %v3921 = vld [vmem:[#allocation6 + $0x2c4] sm:$0xff]
    %v3922 = vld [vmem:[#allocation6 + $0x2cc] sm:$0xf]
    %v3923 = vld [vmem:[#allocation6 + $0x2d0] sm:$0xff]
    %v3924 = vld [vmem:[#allocation6 + $0x2d8] sm:$0xff]
    %v3925 = vld [vmem:[#allocation6 + $0x2e0] sm:$0xf]
    %v3926 = vld [vmem:[#allocation6 + $0x2e4] sm:$0xff]
    %v3927 = vld [vmem:[#allocation6 + $0x2ec] sm:$0xff]
    %v3928 = vld [vmem:[#allocation6 + $0x2f4] sm:$0xf]
    %v3929 = vld [vmem:[#allocation6 + $0x2f8] sm:$0xff]
    %v3930 = vld [vmem:[#allocation6 + $0x300] sm:$0xff]
    %v3931 = vld [vmem:[#allocation6 + $0x308] sm:$0xf]
    %v3932 = vld [vmem:[#allocation6 + $0x30c] sm:$0xff]
    %v3933 = vld [vmem:[#allocation6 + $0x314] sm:$0xff]
    %v3934 = vld [vmem:[#allocation6 + $0x31c] sm:$0xf]
    %v3935 = vld [vmem:[#allocation6 + $0x320] sm:$0xff]
    %v3936 = vld [vmem:[#allocation6 + $0x328] sm:$0xff]
    %v3937 = vld [vmem:[#allocation6 + $0x330] sm:$0xf]
    %v3938 = vld [vmem:[#allocation6 + $0x334] sm:$0xff]
    %v3939 = vld [vmem:[#allocation6 + $0x33c] sm:$0xff]
    %v3940 = vld [vmem:[#allocation6 + $0x344] sm:$0xf]
    %v3941 = vld [vmem:[#allocation6 + $0x348] sm:$0xff]
    %v3942 = vld [vmem:[#allocation6 + $0x350] sm:$0xff]
    %v3943 = vld [vmem:[#allocation6 + $0x358] sm:$0xf]
    %v3944 = vld [vmem:[#allocation6 + $0x35c] sm:$0xff]
    %v3945 = vld [vmem:[#allocation6 + $0x364] sm:$0xff]
    %v3946 = vld [vmem:[#allocation6 + $0x36c] sm:$0xf]
    %v3947 = vld [vmem:[#allocation6 + $0x370] sm:$0xff]
    %v3948 = vld [vmem:[#allocation6 + $0x378] sm:$0xff]
    %v3949 = vld [vmem:[#allocation6 + $0x380] sm:$0xf]
    %v3950 = vld [vmem:[#allocation6 + $0x384] sm:$0xff]
    %v3951 = vld [vmem:[#allocation6 + $0x38c] sm:$0xff]
    %v3952 = vld [vmem:[#allocation6 + $0x394] sm:$0xf]
    %v3953 = vld [vmem:[#allocation6 + $0x398] sm:$0xff]
    %v3954 = vld [vmem:[#allocation6 + $0x3a0] sm:$0xff]
    %v3955 = vld [vmem:[#allocation6 + $0x3a8] sm:$0xf]
    %v3956 = vld [vmem:[#allocation6 + $0x3ac] sm:$0xff]
    %v3957 = vld [vmem:[#allocation6 + $0x3b4] sm:$0xff]
    %v3958 = vld [vmem:[#allocation6 + $0x3bc] sm:$0xf]
    %v3959 = vld [vmem:[#allocation6 + $0x3c0] sm:$0xff]
    %v3960 = vld [vmem:[#allocation6 + $0x3c8] sm:$0xff]
    %v3961 = vld [vmem:[#allocation6 + $0x3d0] sm:$0xf]
    %v3962 = vld [vmem:[#allocation6 + $0x3d4] sm:$0xff]
    %v3963 = vld [vmem:[#allocation6 + $0x3dc] sm:$0xff]
    %v3964 = vld [vmem:[#allocation6 + $0x3e4] sm:$0xf]
    %v3965 = vld [vmem:[#allocation6 + $0x3e8] sm:$0xff]
    %v3966 = vld [vmem:[#allocation6 + $0x3f0] sm:$0xff]
    %v3967 = vld [vmem:[#allocation6 + $0x3f8] sm:$0xf]
    %v3968 = vld [vmem:[#allocation6 + $0x3fc] sm:$0xff]
    %v3969 = vld [vmem:[#allocation6 + $0x404] sm:$0xff]
    %v3970 = vld [vmem:[#allocation6 + $0x40c] sm:$0xf]
    %v3971 = vld [vmem:[#allocation6 + $0x410] sm:$0xff]
    %v3972 = vld [vmem:[#allocation6 + $0x418] sm:$0xff]
    %v3973 = vld [vmem:[#allocation6 + $0x420] sm:$0xf]
    %v3974 = vld [vmem:[#allocation6 + $0x424] sm:$0xff]
    %v3975 = vld [vmem:[#allocation6 + $0x42c] sm:$0xff]
    %v3976 = vld [vmem:[#allocation6 + $0x434] sm:$0xf]
    %v3977 = vld [vmem:[#allocation6 + $0x438] sm:$0xff]
    %v3978 = vld [vmem:[#allocation6 + $0x440] sm:$0xff]
    %v3979 = vld [vmem:[#allocation6 + $0x448] sm:$0xf]
    %v3980 = vld [vmem:[#allocation6 + $0x44c] sm:$0xff]
    %v3981 = vld [vmem:[#allocation6 + $0x454] sm:$0xff]
    %v3982 = vld [vmem:[#allocation6 + $0x45c] sm:$0xf]
    %v3983 = vld [vmem:[#allocation6 + $0x460] sm:$0xff]
    %v3984 = vld [vmem:[#allocation6 + $0x468] sm:$0xff]
    %v3985 = vld [vmem:[#allocation6 + $0x470] sm:$0xf]
    %v3986 = vld [vmem:[#allocation6 + $0x474] sm:$0xff]
    %v3987 = vld [vmem:[#allocation6 + $0x47c] sm:$0xff]
    %v3988 = vld [vmem:[#allocation6 + $0x484] sm:$0xf]
    %v3989 = vld [vmem:[#allocation6 + $0x488] sm:$0xff]
    %v3990 = vld [vmem:[#allocation6 + $0x490] sm:$0xff]
    %v3991 = vld [vmem:[#allocation6 + $0x498] sm:$0xf]
    %v3992 = vld [vmem:[#allocation6 + $0x49c] sm:$0xff]
    %v3993 = vld [vmem:[#allocation6 + $0x4a4] sm:$0xff]
    %v3994 = vld [vmem:[#allocation6 + $0x4ac] sm:$0xf]
    %v3995 = vld [vmem:[#allocation6 + $0x4b0] sm:$0xff]
    %v3996 = vld [vmem:[#allocation6 + $0x4b8] sm:$0xff]
    %v3997 = vld [vmem:[#allocation6 + $0x4c0] sm:$0xf]
    %v3998 = vld [vmem:[#allocation6 + $0x4c4] sm:$0xff]
    %v3999 = vld [vmem:[#allocation6 + $0x4cc] sm:$0xff]
    %v4000 = vld [vmem:[#allocation6 + $0x4d4] sm:$0xf]
    %v4001 = vld [vmem:[#allocation6 + $0x4d8] sm:$0xff]
    %v4002 = vld [vmem:[#allocation6 + $0x4e0] sm:$0xff]
    %v4003 = vld [vmem:[#allocation6 + $0x4e8] sm:$0xf]
    %v4004 = vld [vmem:[#allocation6 + $0x4ec] sm:$0xff]
    %v4005 = vld [vmem:[#allocation6 + $0x4f4] sm:$0xff]
    %v4006 = vld [vmem:[#allocation6 + $0x4fc] sm:$0xf]
    %v4007 = vld [vmem:[#allocation6 + $0x500] sm:$0xff]
    %v4008 = vld [vmem:[#allocation6 + $0x508] sm:$0xff]
    %v4009 = vld [vmem:[#allocation6 + $0x510] sm:$0xf]
    %v4010 = vld [vmem:[#allocation6 + $0x514] sm:$0xff]
    %v4011 = vld [vmem:[#allocation6 + $0x51c] sm:$0xff]
    %v4012 = vld [vmem:[#allocation6 + $0x524] sm:$0xf]
    %v4013 = vld [vmem:[#allocation6 + $0x528] sm:$0xff]
    %v4014 = vld [vmem:[#allocation6 + $0x530] sm:$0xff]
    %v4015 = vld [vmem:[#allocation6 + $0x538] sm:$0xf]
    %v4016 = vld [vmem:[#allocation6 + $0x53c] sm:$0xff]
    %v4017 = vld [vmem:[#allocation6 + $0x544] sm:$0xff]
    %v4018 = vld [vmem:[#allocation6 + $0x54c] sm:$0xf]
    %v4019 = vld [vmem:[#allocation6 + $0x550] sm:$0xff]
    %v4020 = vld [vmem:[#allocation6 + $0x558] sm:$0xff]
    %v4021 = vld [vmem:[#allocation6 + $0x560] sm:$0xf]
    %v4022 = vld [vmem:[#allocation6 + $0x564] sm:$0xff]
    %v4023 = vld [vmem:[#allocation6 + $0x56c] sm:$0xff]
    %v4024 = vld [vmem:[#allocation6 + $0x574] sm:$0xf]
    %v4025 = vld [vmem:[#allocation6 + $0x578] sm:$0xff]
    %v4026 = vld [vmem:[#allocation6 + $0x580] sm:$0xff]
    %v4027 = vld [vmem:[#allocation6 + $0x588] sm:$0xf]
    %v4028 = vld [vmem:[#allocation6 + $0x58c] sm:$0xff]
    %v4029 = vld [vmem:[#allocation6 + $0x594] sm:$0xff]
    %v4030 = vld [vmem:[#allocation6 + $0x59c] sm:$0xf]
    %v4031 = vld [vmem:[#allocation6 + $0x5a0] sm:$0xff]
    %v4032 = vld [vmem:[#allocation6 + $0x5a8] sm:$0xff]
    %v4033 = vld [vmem:[#allocation6 + $0x5b0] sm:$0xf]
    %v4034 = vld [vmem:[#allocation6 + $0x5b4] sm:$0xff]
    %v4035 = vld [vmem:[#allocation6 + $0x5bc] sm:$0xff]
    %v4036 = vld [vmem:[#allocation6 + $0x5c4] sm:$0xf]
    %v4037 = vld [vmem:[#allocation6 + $0x5c8] sm:$0xff]
    %v4038 = vld [vmem:[#allocation6 + $0x5d0] sm:$0xff]
    %v4039 = vld [vmem:[#allocation6 + $0x5d8] sm:$0xf]
    %v4040 = vld [vmem:[%s7] sm:$0x1f]
    %v4042 = vlaneseq
    %v4043 = vshrl.u32 %v4042, 7
    %v4044 = vsub.s32 0, %v4043
    %v4045 = vrot.slane %v4040, %v4044
    %v4046 = vlaneseq
    %v4047 = vshrl.u32 %v4046, 7
    %v4048 = vsub.s32 1, %v4047
    %v4049 = vrot.slane %v4040, %v4048
    %v4050 = vlaneseq
    %v4051 = vshrl.u32 %v4050, 7
    %v4052 = vsub.s32 2, %v4051
    %v4053 = vrot.slane %v4040, %v4052
    %v4054 = vlaneseq
    %v4055 = vshrl.u32 %v4054, 7
    %v4056 = vsub.s32 3, %v4055
    %v4057 = vrot.slane %v4040, %v4056
    %v4058 = vlaneseq
    %v4059 = vshrl.u32 %v4058, 7
    %v4060 = vsub.s32 4, %v4059
    %v4061 = vrot.slane %v4040, %v4060
    %v4292 = vunpack.c.l.b16 %v3815
    %v4293 = vunpack.c.h.b16 %v3815
    %v4294 = vunpack.c.l.b16 %v3816
    %v4295 = vunpack.c.h.b16 %v3816
    %v4296 = vunpack.c.l.b16 %v3817
    %v4297 = vunpack.c.l.b16 %v3818
    %v4298 = vunpack.c.h.b16 %v3818
    %v4299 = vunpack.c.l.b16 %v3819
    %v4300 = vunpack.c.h.b16 %v3819
    %v4301 = vunpack.c.l.b16 %v3820
    %v4302 = vunpack.c.l.b16 %v3821
    %v4303 = vunpack.c.h.b16 %v3821
    %v4304 = vunpack.c.l.b16 %v3822
    %v4305 = vunpack.c.h.b16 %v3822
    %v4306 = vunpack.c.l.b16 %v3823
    %v4307 = vunpack.c.l.b16 %v3824
    %v4308 = vunpack.c.h.b16 %v3824
    %v4309 = vunpack.c.l.b16 %v3825
    %v4310 = vunpack.c.h.b16 %v3825
    %v4311 = vunpack.c.l.b16 %v3826
    %v4312 = vunpack.c.l.b16 %v3827
    %v4313 = vunpack.c.h.b16 %v3827
    %v4314 = vunpack.c.l.b16 %v3828
    %v4315 = vunpack.c.h.b16 %v3828
    %v4316 = vunpack.c.l.b16 %v3829
    %v4317 = vunpack.c.l.b16 %v3830
    %v4318 = vunpack.c.h.b16 %v3830
    %v4319 = vunpack.c.l.b16 %v3831
    %v4320 = vunpack.c.h.b16 %v3831
    %v4321 = vunpack.c.l.b16 %v3832
    %v4322 = vunpack.c.l.b16 %v3833
    %v4323 = vunpack.c.h.b16 %v3833
    %v4324 = vunpack.c.l.b16 %v3834
    %v4325 = vunpack.c.h.b16 %v3834
    %v4326 = vunpack.c.l.b16 %v3835
    %v4327 = vunpack.c.l.b16 %v3836
    %v4328 = vunpack.c.h.b16 %v3836
    %v4329 = vunpack.c.l.b16 %v3837
    %v4330 = vunpack.c.h.b16 %v3837
    %v4331 = vunpack.c.l.b16 %v3838
    %v4332 = vunpack.c.l.b16 %v3839
    %v4333 = vunpack.c.h.b16 %v3839
    %v4334 = vunpack.c.l.b16 %v3840
    %v4335 = vunpack.c.h.b16 %v3840
    %v4336 = vunpack.c.l.b16 %v3841
    %v4337 = vunpack.c.l.b16 %v3842
    %v4338 = vunpack.c.h.b16 %v3842
    %v4339 = vunpack.c.l.b16 %v3843
    %v4340 = vunpack.c.h.b16 %v3843
    %v4341 = vunpack.c.l.b16 %v3844
    %v4342 = vunpack.c.l.b16 %v3845
    %v4343 = vunpack.c.h.b16 %v3845
    %v4344 = vunpack.c.l.b16 %v3846
    %v4345 = vunpack.c.h.b16 %v3846
    %v4346 = vunpack.c.l.b16 %v3847
    %v4347 = vunpack.c.l.b16 %v3848
    %v4348 = vunpack.c.h.b16 %v3848
    %v4349 = vunpack.c.l.b16 %v3849
    %v4350 = vunpack.c.h.b16 %v3849
    %v4351 = vunpack.c.l.b16 %v3850
    %v4352 = vunpack.c.l.b16 %v3851
    %v4353 = vunpack.c.h.b16 %v3851
    %v4354 = vunpack.c.l.b16 %v3852
    %v4355 = vunpack.c.h.b16 %v3852
    %v4356 = vunpack.c.l.b16 %v3853
    %v4357 = vunpack.c.l.b16 %v3854
    %v4358 = vunpack.c.h.b16 %v3854
    %v4359 = vunpack.c.l.b16 %v3855
    %v4360 = vunpack.c.h.b16 %v3855
    %v4361 = vunpack.c.l.b16 %v3856
    %v4362 = vunpack.c.l.b16 %v3857
    %v4363 = vunpack.c.h.b16 %v3857
    %v4364 = vunpack.c.l.b16 %v3858
    %v4365 = vunpack.c.h.b16 %v3858
    %v4366 = vunpack.c.l.b16 %v3859
    %v4367 = vunpack.c.l.b16 %v3860
    %v4368 = vunpack.c.h.b16 %v3860
    %v4369 = vunpack.c.l.b16 %v3861
    %v4370 = vunpack.c.h.b16 %v3861
    %v4371 = vunpack.c.l.b16 %v3862
    %v4372 = vunpack.c.l.b16 %v3863
    %v4373 = vunpack.c.h.b16 %v3863
    %v4374 = vunpack.c.l.b16 %v3864
    %v4375 = vunpack.c.h.b16 %v3864
    %v4376 = vunpack.c.l.b16 %v3865
    %v4377 = vunpack.c.l.b16 %v3866
    %v4378 = vunpack.c.h.b16 %v3866
    %v4379 = vunpack.c.l.b16 %v3867
    %v4380 = vunpack.c.h.b16 %v3867
    %v4381 = vunpack.c.l.b16 %v3868
    %v4382 = vunpack.c.l.b16 %v3869
    %v4383 = vunpack.c.h.b16 %v3869
    %v4384 = vunpack.c.l.b16 %v3870
    %v4385 = vunpack.c.h.b16 %v3870
    %v4386 = vunpack.c.l.b16 %v3871
    %v4387 = vunpack.c.l.b16 %v3872
    %v4388 = vunpack.c.h.b16 %v3872
    %v4389 = vunpack.c.l.b16 %v3873
    %v4390 = vunpack.c.h.b16 %v3873
    %v4391 = vunpack.c.l.b16 %v3874
    %v4392 = vunpack.c.l.b16 %v3875
    %v4393 = vunpack.c.h.b16 %v3875
    %v4394 = vunpack.c.l.b16 %v3876
    %v4395 = vunpack.c.h.b16 %v3876
    %v4396 = vunpack.c.l.b16 %v3877
    %v4397 = vunpack.c.l.b16 %v3878
    %v4398 = vunpack.c.h.b16 %v3878
    %v4399 = vunpack.c.l.b16 %v3879
    %v4400 = vunpack.c.h.b16 %v3879
    %v4401 = vunpack.c.l.b16 %v3880
    %v4402 = vunpack.c.l.b16 %v3881
    %v4403 = vunpack.c.h.b16 %v3881
    %v4404 = vunpack.c.l.b16 %v3882
    %v4405 = vunpack.c.h.b16 %v3882
    %v4406 = vunpack.c.l.b16 %v3883
    %v4407 = vunpack.c.l.b16 %v3884
    %v4408 = vunpack.c.h.b16 %v3884
    %v4409 = vunpack.c.l.b16 %v3885
    %v4410 = vunpack.c.h.b16 %v3885
    %v4411 = vunpack.c.l.b16 %v3886
    %v4412 = vunpack.c.l.b16 %v3887
    %v4413 = vunpack.c.h.b16 %v3887
    %v4414 = vunpack.c.l.b16 %v3888
    %v4415 = vunpack.c.h.b16 %v3888
    %v4416 = vunpack.c.l.b16 %v3889
    %v4417 = vunpack.c.l.b16 %v3890
    %v4418 = vunpack.c.h.b16 %v3890
    %v4419 = vunpack.c.l.b16 %v3891
    %v4420 = vunpack.c.h.b16 %v3891
    %v4421 = vunpack.c.l.b16 %v3892
    %v4422 = vunpack.c.l.b16 %v3893
    %v4423 = vunpack.c.h.b16 %v3893
    %v4424 = vunpack.c.l.b16 %v3894
    %v4425 = vunpack.c.h.b16 %v3894
    %v4426 = vunpack.c.l.b16 %v3895
    %v4427 = vunpack.c.l.b16 %v3896
    %v4428 = vunpack.c.h.b16 %v3896
    %v4429 = vunpack.c.l.b16 %v3897
    %v4430 = vunpack.c.h.b16 %v3897
    %v4431 = vunpack.c.l.b16 %v3898
    %v4432 = vunpack.c.l.b16 %v3899
    %v4433 = vunpack.c.h.b16 %v3899
    %v4434 = vunpack.c.l.b16 %v3900
    %v4435 = vunpack.c.h.b16 %v3900
    %v4436 = vunpack.c.l.b16 %v3901
    %v4437 = vunpack.c.l.b16 %v3902
    %v4438 = vunpack.c.h.b16 %v3902
    %v4439 = vunpack.c.l.b16 %v3903
    %v4440 = vunpack.c.h.b16 %v3903
    %v4441 = vunpack.c.l.b16 %v3904
    %v4442 = vunpack.c.l.b16 %v3905
    %v4443 = vunpack.c.h.b16 %v3905
    %v4444 = vunpack.c.l.b16 %v3906
    %v4445 = vunpack.c.h.b16 %v3906
    %v4446 = vunpack.c.l.b16 %v3907
    %v4447 = vunpack.c.l.b16 %v3908
    %v4448 = vunpack.c.h.b16 %v3908
    %v4449 = vunpack.c.l.b16 %v3909
    %v4450 = vunpack.c.h.b16 %v3909
    %v4451 = vunpack.c.l.b16 %v3910
    %v4452 = vunpack.c.l.b16 %v3911
    %v4453 = vunpack.c.h.b16 %v3911
    %v4454 = vunpack.c.l.b16 %v3912
    %v4455 = vunpack.c.h.b16 %v3912
    %v4456 = vunpack.c.l.b16 %v3913
    %v4457 = vunpack.c.l.b16 %v3914
    %v4458 = vunpack.c.h.b16 %v3914
    %v4459 = vunpack.c.l.b16 %v3915
    %v4460 = vunpack.c.h.b16 %v3915
    %v4461 = vunpack.c.l.b16 %v3916
    %v4462 = vunpack.c.l.b16 %v3917
    %v4463 = vunpack.c.h.b16 %v3917
    %v4464 = vunpack.c.l.b16 %v3918
    %v4465 = vunpack.c.h.b16 %v3918
    %v4466 = vunpack.c.l.b16 %v3919
    %v4467 = vunpack.c.l.b16 %v3920
    %v4468 = vunpack.c.h.b16 %v3920
    %v4469 = vunpack.c.l.b16 %v3921
    %v4470 = vunpack.c.h.b16 %v3921
    %v4471 = vunpack.c.l.b16 %v3922
    %v4472 = vunpack.c.l.b16 %v3923
    %v4473 = vunpack.c.h.b16 %v3923
    %v4474 = vunpack.c.l.b16 %v3924
    %v4475 = vunpack.c.h.b16 %v3924
    %v4476 = vunpack.c.l.b16 %v3925
    %v4477 = vunpack.c.l.b16 %v3926
    %v4478 = vunpack.c.h.b16 %v3926
    %v4479 = vunpack.c.l.b16 %v3927
    %v4480 = vunpack.c.h.b16 %v3927
    %v4481 = vunpack.c.l.b16 %v3928
    %v4482 = vunpack.c.l.b16 %v3929
    %v4483 = vunpack.c.h.b16 %v3929
    %v4484 = vunpack.c.l.b16 %v3930
    %v4485 = vunpack.c.h.b16 %v3930
    %v4486 = vunpack.c.l.b16 %v3931
    %v4487 = vunpack.c.l.b16 %v3932
    %v4488 = vunpack.c.h.b16 %v3932
    %v4489 = vunpack.c.l.b16 %v3933
    %v4490 = vunpack.c.h.b16 %v3933
    %v4491 = vunpack.c.l.b16 %v3934
    %v4492 = vunpack.c.l.b16 %v3935
    %v4493 = vunpack.c.h.b16 %v3935
    %v4494 = vunpack.c.l.b16 %v3936
    %v4495 = vunpack.c.h.b16 %v3936
    %v4496 = vunpack.c.l.b16 %v3937
    %v4497 = vunpack.c.l.b16 %v3938
    %v4498 = vunpack.c.h.b16 %v3938
    %v4499 = vunpack.c.l.b16 %v3939
    %v4500 = vunpack.c.h.b16 %v3939
    %v4501 = vunpack.c.l.b16 %v3940
    %v4502 = vunpack.c.l.b16 %v3941
    %v4503 = vunpack.c.h.b16 %v3941
    %v4504 = vunpack.c.l.b16 %v3942
    %v4505 = vunpack.c.h.b16 %v3942
    %v4506 = vunpack.c.l.b16 %v3943
    %v4507 = vunpack.c.l.b16 %v3944
    %v4508 = vunpack.c.h.b16 %v3944
    %v4509 = vunpack.c.l.b16 %v3945
    %v4510 = vunpack.c.h.b16 %v3945
    %v4511 = vunpack.c.l.b16 %v3946
    %v4512 = vunpack.c.l.b16 %v3947
    %v4513 = vunpack.c.h.b16 %v3947
    %v4514 = vunpack.c.l.b16 %v3948
    %v4515 = vunpack.c.h.b16 %v3948
    %v4516 = vunpack.c.l.b16 %v3949
    %v4517 = vunpack.c.l.b16 %v3950
    %v4518 = vunpack.c.h.b16 %v3950
    %v4519 = vunpack.c.l.b16 %v3951
    %v4520 = vunpack.c.h.b16 %v3951
    %v4521 = vunpack.c.l.b16 %v3952
    %v4522 = vunpack.c.l.b16 %v3953
    %v4523 = vunpack.c.h.b16 %v3953
    %v4524 = vunpack.c.l.b16 %v3954
    %v4525 = vunpack.c.h.b16 %v3954
    %v4526 = vunpack.c.l.b16 %v3955
    %v4527 = vunpack.c.l.b16 %v3956
    %v4528 = vunpack.c.h.b16 %v3956
    %v4529 = vunpack.c.l.b16 %v3957
    %v4530 = vunpack.c.h.b16 %v3957
    %v4531 = vunpack.c.l.b16 %v3958
    %v4532 = vunpack.c.l.b16 %v3959
    %v4533 = vunpack.c.h.b16 %v3959
    %v4534 = vunpack.c.l.b16 %v3960
    %v4535 = vunpack.c.h.b16 %v3960
    %v4536 = vunpack.c.l.b16 %v3961
    %v4537 = vunpack.c.l.b16 %v3962
    %v4538 = vunpack.c.h.b16 %v3962
    %v4539 = vunpack.c.l.b16 %v3963
    %v4540 = vunpack.c.h.b16 %v3963
    %v4541 = vunpack.c.l.b16 %v3964
    %v4542 = vunpack.c.l.b16 %v3965
    %v4543 = vunpack.c.h.b16 %v3965
    %v4544 = vunpack.c.l.b16 %v3966
    %v4545 = vunpack.c.h.b16 %v3966
    %v4546 = vunpack.c.l.b16 %v3967
    %v4547 = vunpack.c.l.b16 %v3968
    %v4548 = vunpack.c.h.b16 %v3968
    %v4549 = vunpack.c.l.b16 %v3969
    %v4550 = vunpack.c.h.b16 %v3969
    %v4551 = vunpack.c.l.b16 %v3970
    %v4552 = vunpack.c.l.b16 %v3971
    %v4553 = vunpack.c.h.b16 %v3971
    %v4554 = vunpack.c.l.b16 %v3972
    %v4555 = vunpack.c.h.b16 %v3972
    %v4556 = vunpack.c.l.b16 %v3973
    %v4557 = vunpack.c.l.b16 %v3974
    %v4558 = vunpack.c.h.b16 %v3974
    %v4559 = vunpack.c.l.b16 %v3975
    %v4560 = vunpack.c.h.b16 %v3975
    %v4561 = vunpack.c.l.b16 %v3976
    %v4562 = vunpack.c.l.b16 %v3977
    %v4563 = vunpack.c.h.b16 %v3977
    %v4564 = vunpack.c.l.b16 %v3978
    %v4565 = vunpack.c.h.b16 %v3978
    %v4566 = vunpack.c.l.b16 %v3979
    %v4567 = vunpack.c.l.b16 %v3980
    %v4568 = vunpack.c.h.b16 %v3980
    %v4569 = vunpack.c.l.b16 %v3981
    %v4570 = vunpack.c.h.b16 %v3981
    %v4571 = vunpack.c.l.b16 %v3982
    %v4572 = vunpack.c.l.b16 %v3983
    %v4573 = vunpack.c.h.b16 %v3983
    %v4574 = vunpack.c.l.b16 %v3984
    %v4575 = vunpack.c.h.b16 %v3984
    %v4576 = vunpack.c.l.b16 %v3985
    %v4577 = vunpack.c.l.b16 %v3986
    %v4578 = vunpack.c.h.b16 %v3986
    %v4579 = vunpack.c.l.b16 %v3987
    %v4580 = vunpack.c.h.b16 %v3987
    %v4581 = vunpack.c.l.b16 %v3988
    %v4582 = vunpack.c.l.b16 %v3989
    %v4583 = vunpack.c.h.b16 %v3989
    %v4584 = vunpack.c.l.b16 %v3990
    %v4585 = vunpack.c.h.b16 %v3990
    %v4586 = vunpack.c.l.b16 %v3991
    %v4587 = vunpack.c.l.b16 %v3992
    %v4588 = vunpack.c.h.b16 %v3992
    %v4589 = vunpack.c.l.b16 %v3993
    %v4590 = vunpack.c.h.b16 %v3993
    %v4591 = vunpack.c.l.b16 %v3994
    %v4592 = vunpack.c.l.b16 %v3995
    %v4593 = vunpack.c.h.b16 %v3995
    %v4594 = vunpack.c.l.b16 %v3996
    %v4595 = vunpack.c.h.b16 %v3996
    %v4596 = vunpack.c.l.b16 %v3997
    %v4597 = vunpack.c.l.b16 %v3998
    %v4598 = vunpack.c.h.b16 %v3998
    %v4599 = vunpack.c.l.b16 %v3999
    %v4600 = vunpack.c.h.b16 %v3999
    %v4601 = vunpack.c.l.b16 %v4000
    %v4602 = vunpack.c.l.b16 %v4001
    %v4603 = vunpack.c.h.b16 %v4001
    %v4604 = vunpack.c.l.b16 %v4002
    %v4605 = vunpack.c.h.b16 %v4002
    %v4606 = vunpack.c.l.b16 %v4003
    %v4607 = vunpack.c.l.b16 %v4004
    %v4608 = vunpack.c.h.b16 %v4004
    %v4609 = vunpack.c.l.b16 %v4005
    %v4610 = vunpack.c.h.b16 %v4005
    %v4611 = vunpack.c.l.b16 %v4006
    %v4612 = vunpack.c.l.b16 %v4007
    %v4613 = vunpack.c.h.b16 %v4007
    %v4614 = vunpack.c.l.b16 %v4008
    %v4615 = vunpack.c.h.b16 %v4008
    %v4616 = vunpack.c.l.b16 %v4009
    %v4617 = vunpack.c.l.b16 %v4010
    %v4618 = vunpack.c.h.b16 %v4010
    %v4619 = vunpack.c.l.b16 %v4011
    %v4620 = vunpack.c.h.b16 %v4011
    %v4621 = vunpack.c.l.b16 %v4012
    %v4622 = vunpack.c.l.b16 %v4013
    %v4623 = vunpack.c.h.b16 %v4013
    %v4624 = vunpack.c.l.b16 %v4014
    %v4625 = vunpack.c.h.b16 %v4014
    %v4626 = vunpack.c.l.b16 %v4015
    %v4627 = vunpack.c.l.b16 %v4016
    %v4628 = vunpack.c.h.b16 %v4016
    %v4629 = vunpack.c.l.b16 %v4017
    %v4630 = vunpack.c.h.b16 %v4017
    %v4631 = vunpack.c.l.b16 %v4018
    %v4632 = vunpack.c.l.b16 %v4019
    %v4633 = vunpack.c.h.b16 %v4019
    %v4634 = vunpack.c.l.b16 %v4020
    %v4635 = vunpack.c.h.b16 %v4020
    %v4636 = vunpack.c.l.b16 %v4021
    %v4637 = vunpack.c.l.b16 %v4022
    %v4638 = vunpack.c.h.b16 %v4022
    %v4639 = vunpack.c.l.b16 %v4023
    %v4640 = vunpack.c.h.b16 %v4023
    %v4641 = vunpack.c.l.b16 %v4024
    %v4642 = vunpack.c.l.b16 %v4025
    %v4643 = vunpack.c.h.b16 %v4025
    %v4644 = vunpack.c.l.b16 %v4026
    %v4645 = vunpack.c.h.b16 %v4026
    %v4646 = vunpack.c.l.b16 %v4027
    %v4647 = vunpack.c.l.b16 %v4028
    %v4648 = vunpack.c.h.b16 %v4028
    %v4649 = vunpack.c.l.b16 %v4029
    %v4650 = vunpack.c.h.b16 %v4029
    %v4651 = vunpack.c.l.b16 %v4030
    %v4652 = vunpack.c.l.b16 %v4031
    %v4653 = vunpack.c.h.b16 %v4031
    %v4654 = vunpack.c.l.b16 %v4032
    %v4655 = vunpack.c.h.b16 %v4032
    %v4656 = vunpack.c.l.b16 %v4033
    %v4657 = vunpack.c.l.b16 %v4034
    %v4658 = vunpack.c.h.b16 %v4034
    %v4659 = vunpack.c.l.b16 %v4035
    %v4660 = vunpack.c.h.b16 %v4035
    %v4661 = vunpack.c.l.b16 %v4036
    %v4662 = vunpack.c.l.b16 %v4037
    %v4663 = vunpack.c.h.b16 %v4037
    %v4664 = vunpack.c.l.b16 %v4038
    %v4665 = vunpack.c.h.b16 %v4038
    %v4666 = vunpack.c.l.b16 %v4039
    %v4667 = vpack.c.b16 %v4297, %v4292
    %v4668 = vpack.c.b16 %v4298, %v4293
    %v4669 = vpack.c.b16 %v4299, %v4294
    %v4670 = vpack.c.b16 %v4300, %v4295
    %v4671 = vpack.c.b16 %v4301, %v4296
    %v4672 = vpack.c.b16 %v4307, %v4302
    %v4673 = vpack.c.b16 %v4308, %v4303
    %v4674 = vpack.c.b16 %v4309, %v4304
    %v4675 = vpack.c.b16 %v4310, %v4305
    %v4676 = vpack.c.b16 %v4311, %v4306
    %v4677 = vpack.c.b16 %v4317, %v4312
    %v4678 = vpack.c.b16 %v4318, %v4313
    %v4679 = vpack.c.b16 %v4319, %v4314
    %v4680 = vpack.c.b16 %v4320, %v4315
    %v4681 = vpack.c.b16 %v4321, %v4316
    %v4682 = vpack.c.b16 %v4327, %v4322
    %v4683 = vpack.c.b16 %v4328, %v4323
    %v4684 = vpack.c.b16 %v4329, %v4324
    %v4685 = vpack.c.b16 %v4330, %v4325
    %v4686 = vpack.c.b16 %v4331, %v4326
    %v4687 = vpack.c.b16 %v4337, %v4332
    %v4688 = vpack.c.b16 %v4338, %v4333
    %v4689 = vpack.c.b16 %v4339, %v4334
    %v4690 = vpack.c.b16 %v4340, %v4335
    %v4691 = vpack.c.b16 %v4341, %v4336
    %v4692 = vpack.c.b16 %v4347, %v4342
    %v4693 = vpack.c.b16 %v4348, %v4343
    %v4694 = vpack.c.b16 %v4349, %v4344
    %v4695 = vpack.c.b16 %v4350, %v4345
    %v4696 = vpack.c.b16 %v4351, %v4346
    %v4697 = vpack.c.b16 %v4357, %v4352
    %v4698 = vpack.c.b16 %v4358, %v4353
    %v4699 = vpack.c.b16 %v4359, %v4354
    %v4700 = vpack.c.b16 %v4360, %v4355
    %v4701 = vpack.c.b16 %v4361, %v4356
    %v4702 = vpack.c.b16 %v4367, %v4362
    %v4703 = vpack.c.b16 %v4368, %v4363
    %v4704 = vpack.c.b16 %v4369, %v4364
    %v4705 = vpack.c.b16 %v4370, %v4365
    %v4706 = vpack.c.b16 %v4371, %v4366
    %v4707 = vpack.c.b16 %v4377, %v4372
    %v4708 = vpack.c.b16 %v4378, %v4373
    %v4709 = vpack.c.b16 %v4379, %v4374
    %v4710 = vpack.c.b16 %v4380, %v4375
    %v4711 = vpack.c.b16 %v4381, %v4376
    %v4712 = vpack.c.b16 %v4387, %v4382
    %v4713 = vpack.c.b16 %v4388, %v4383
    %v4714 = vpack.c.b16 %v4389, %v4384
    %v4715 = vpack.c.b16 %v4390, %v4385
    %v4716 = vpack.c.b16 %v4391, %v4386
    %v4717 = vpack.c.b16 %v4397, %v4392
    %v4718 = vpack.c.b16 %v4398, %v4393
    %v4719 = vpack.c.b16 %v4399, %v4394
    %v4720 = vpack.c.b16 %v4400, %v4395
    %v4721 = vpack.c.b16 %v4401, %v4396
    %v4722 = vpack.c.b16 %v4407, %v4402
    %v4723 = vpack.c.b16 %v4408, %v4403
    %v4724 = vpack.c.b16 %v4409, %v4404
    %v4725 = vpack.c.b16 %v4410, %v4405
    %v4726 = vpack.c.b16 %v4411, %v4406
    %v4727 = vpack.c.b16 %v4417, %v4412
    %v4728 = vpack.c.b16 %v4418, %v4413
    %v4729 = vpack.c.b16 %v4419, %v4414
    %v4730 = vpack.c.b16 %v4420, %v4415
    %v4731 = vpack.c.b16 %v4421, %v4416
    %v4732 = vpack.c.b16 %v4427, %v4422
    %v4733 = vpack.c.b16 %v4428, %v4423
    %v4734 = vpack.c.b16 %v4429, %v4424
    %v4735 = vpack.c.b16 %v4430, %v4425
    %v4736 = vpack.c.b16 %v4431, %v4426
    %v4737 = vpack.c.b16 %v4437, %v4432
    %v4738 = vpack.c.b16 %v4438, %v4433
    %v4739 = vpack.c.b16 %v4439, %v4434
    %v4740 = vpack.c.b16 %v4440, %v4435
    %v4741 = vpack.c.b16 %v4441, %v4436
    %v4742 = vpack.c.b16 %v4447, %v4442
    %v4743 = vpack.c.b16 %v4448, %v4443
    %v4744 = vpack.c.b16 %v4449, %v4444
    %v4745 = vpack.c.b16 %v4450, %v4445
    %v4746 = vpack.c.b16 %v4451, %v4446
    %v4747 = vpack.c.b16 %v4457, %v4452
    %v4748 = vpack.c.b16 %v4458, %v4453
    %v4749 = vpack.c.b16 %v4459, %v4454
    %v4750 = vpack.c.b16 %v4460, %v4455
    %v4751 = vpack.c.b16 %v4461, %v4456
    %v4752 = vpack.c.b16 %v4467, %v4462
    %v4753 = vpack.c.b16 %v4468, %v4463
    %v4754 = vpack.c.b16 %v4469, %v4464
    %v4755 = vpack.c.b16 %v4470, %v4465
    %v4756 = vpack.c.b16 %v4471, %v4466
    %v4757 = vpack.c.b16 %v4477, %v4472
    %v4758 = vpack.c.b16 %v4478, %v4473
    %v4759 = vpack.c.b16 %v4479, %v4474
    %v4760 = vpack.c.b16 %v4480, %v4475
    %v4761 = vpack.c.b16 %v4481, %v4476
    %v4762 = vpack.c.b16 %v4487, %v4482
    %v4763 = vpack.c.b16 %v4488, %v4483
    %v4764 = vpack.c.b16 %v4489, %v4484
    %v4765 = vpack.c.b16 %v4490, %v4485
    %v4766 = vpack.c.b16 %v4491, %v4486
    %v4767 = vpack.c.b16 %v4497, %v4492
    %v4768 = vpack.c.b16 %v4498, %v4493
    %v4769 = vpack.c.b16 %v4499, %v4494
    %v4770 = vpack.c.b16 %v4500, %v4495
    %v4771 = vpack.c.b16 %v4501, %v4496
    %v4772 = vpack.c.b16 %v4507, %v4502
    %v4773 = vpack.c.b16 %v4508, %v4503
    %v4774 = vpack.c.b16 %v4509, %v4504
    %v4775 = vpack.c.b16 %v4510, %v4505
    %v4776 = vpack.c.b16 %v4511, %v4506
    %v4777 = vpack.c.b16 %v4517, %v4512
    %v4778 = vpack.c.b16 %v4518, %v4513
    %v4779 = vpack.c.b16 %v4519, %v4514
    %v4780 = vpack.c.b16 %v4520, %v4515
    %v4781 = vpack.c.b16 %v4521, %v4516
    %v4782 = vpack.c.b16 %v4527, %v4522
    %v4783 = vpack.c.b16 %v4528, %v4523
    %v4784 = vpack.c.b16 %v4529, %v4524
    %v4785 = vpack.c.b16 %v4530, %v4525
    %v4786 = vpack.c.b16 %v4531, %v4526
    %v4787 = vpack.c.b16 %v4537, %v4532
    %v4788 = vpack.c.b16 %v4538, %v4533
    %v4789 = vpack.c.b16 %v4539, %v4534
    %v4790 = vpack.c.b16 %v4540, %v4535
    %v4791 = vpack.c.b16 %v4541, %v4536
    %v4792 = vpack.c.b16 %v4547, %v4542
    %v4793 = vpack.c.b16 %v4548, %v4543
    %v4794 = vpack.c.b16 %v4549, %v4544
    %v4795 = vpack.c.b16 %v4550, %v4545
    %v4796 = vpack.c.b16 %v4551, %v4546
    %v4797 = vpack.c.b16 %v4557, %v4552
    %v4798 = vpack.c.b16 %v4558, %v4553
    %v4799 = vpack.c.b16 %v4559, %v4554
    %v4800 = vpack.c.b16 %v4560, %v4555
    %v4801 = vpack.c.b16 %v4561, %v4556
    %v4802 = vpack.c.b16 %v4567, %v4562
    %v4803 = vpack.c.b16 %v4568, %v4563
    %v4804 = vpack.c.b16 %v4569, %v4564
    %v4805 = vpack.c.b16 %v4570, %v4565
    %v4806 = vpack.c.b16 %v4571, %v4566
    %v4807 = vpack.c.b16 %v4577, %v4572
    %v4808 = vpack.c.b16 %v4578, %v4573
    %v4809 = vpack.c.b16 %v4579, %v4574
    %v4810 = vpack.c.b16 %v4580, %v4575
    %v4811 = vpack.c.b16 %v4581, %v4576
    %v4812 = vpack.c.b16 %v4587, %v4582
    %v4813 = vpack.c.b16 %v4588, %v4583
    %v4814 = vpack.c.b16 %v4589, %v4584
    %v4815 = vpack.c.b16 %v4590, %v4585
    %v4816 = vpack.c.b16 %v4591, %v4586
    %v4817 = vpack.c.b16 %v4597, %v4592
    %v4818 = vpack.c.b16 %v4598, %v4593
    %v4819 = vpack.c.b16 %v4599, %v4594
    %v4820 = vpack.c.b16 %v4600, %v4595
    %v4821 = vpack.c.b16 %v4601, %v4596
    %v4822 = vpack.c.b16 %v4607, %v4602
    %v4823 = vpack.c.b16 %v4608, %v4603
    %v4824 = vpack.c.b16 %v4609, %v4604
    %v4825 = vpack.c.b16 %v4610, %v4605
    %v4826 = vpack.c.b16 %v4611, %v4606
    %v4827 = vpack.c.b16 %v4617, %v4612
    %v4828 = vpack.c.b16 %v4618, %v4613
    %v4829 = vpack.c.b16 %v4619, %v4614
    %v4830 = vpack.c.b16 %v4620, %v4615
    %v4831 = vpack.c.b16 %v4621, %v4616
    %v4832 = vpack.c.b16 %v4627, %v4622
    %v4833 = vpack.c.b16 %v4628, %v4623
    %v4834 = vpack.c.b16 %v4629, %v4624
    %v4835 = vpack.c.b16 %v4630, %v4625
    %v4836 = vpack.c.b16 %v4631, %v4626
    %v4837 = vpack.c.b16 %v4637, %v4632
    %v4838 = vpack.c.b16 %v4638, %v4633
    %v4839 = vpack.c.b16 %v4639, %v4634
    %v4840 = vpack.c.b16 %v4640, %v4635
    %v4841 = vpack.c.b16 %v4641, %v4636
    %v4842 = vpack.c.b16 %v4647, %v4642
    %v4843 = vpack.c.b16 %v4648, %v4643
    %v4844 = vpack.c.b16 %v4649, %v4644
    %v4845 = vpack.c.b16 %v4650, %v4645
    %v4846 = vpack.c.b16 %v4651, %v4646
    %v4847 = vpack.c.b16 %v4657, %v4652
    %v4848 = vpack.c.b16 %v4658, %v4653
    %v4849 = vpack.c.b16 %v4659, %v4654
    %v4850 = vpack.c.b16 %v4660, %v4655
    %v4851 = vpack.c.b16 %v4661, %v4656
    %v4852 = vpack.c.b16 %v4662, %v4662
    %v4853 = vpack.c.b16 %v4663, %v4663
    %v4854 = vpack.c.b16 %v4664, %v4664
    %v4855 = vpack.c.b16 %v4665, %v4665
    %v4856 = vpack.c.b16 %v4666, %v4666
    %v5043 = vsel %vm1795, %v4852, 0
    %v5046 = vsel %vm1795, %v4853, 0
    %v5049 = vsel %vm1795, %v4854, 0
    %v5052 = vsel %vm1795, %v4855, 0
    %v5055 = vsel %vm1795, %v4856, 0
    %5057 = vmatprep.subr.bf16.mxu0 %v4668
    %5058 = vmatpush1.bf16.msra.mxu0 %v4667
    %5059 = vmatprep.subr.bf16.mxu0 %v4673
    %5060 = vmatpush1.bf16.msra.mxu0 %v4672
    %5061 = vmatprep.subr.bf16.mxu0 %v4678
    %5062 = vmatpush1.bf16.msra.mxu0 %v4677
    %5063 = vmatprep.subr.bf16.mxu0 %v4683
    %5064 = vmatpush1.bf16.msra.mxu0 %v4682
    %5065 = vmatprep.subr.bf16.mxu0 %v4688
    %5066 = vmatpush1.bf16.msra.mxu0 %v4687
    %5067 = vmatprep.subr.bf16.mxu0 %v4693
    %5068 = vmatpush1.bf16.msra.mxu0 %v4692
    %5069 = vmatprep.subr.bf16.mxu0 %v4698
    %5070 = vmatpush1.bf16.msra.mxu0 %v4697
    %5071 = vmatprep.subr.bf16.mxu0 %v4703
    %5072 = vmatpush1.bf16.msra.mxu0 %v4702
    %5073 = vmatprep.subr.bf16.mxu0 %v4708
    %5074 = vmatpush1.bf16.msra.mxu0 %v4707
    %5075 = vmatprep.subr.bf16.mxu0 %v4713
    %5076 = vmatpush1.bf16.msra.mxu0 %v4712
    %5077 = vmatprep.subr.bf16.mxu0 %v4718
    %5078 = vmatpush1.bf16.msra.mxu0 %v4717
    %5079 = vmatprep.subr.bf16.mxu0 %v4723
    %5080 = vmatpush1.bf16.msra.mxu0 %v4722
    %5081 = vmatprep.subr.bf16.mxu0 %v4728
    %5082 = vmatpush1.bf16.msra.mxu0 %v4727
    %5083 = vmatprep.subr.bf16.mxu0 %v4733
    %5084 = vmatpush1.bf16.msra.mxu0 %v4732
    %5085 = vmatprep.subr.bf16.mxu0 %v4738
    %5086 = vmatpush1.bf16.msra.mxu0 %v4737
    %5087 = vmatprep.subr.bf16.mxu0 %v4743
    %5088 = vmatpush1.bf16.msra.mxu0 %v4742
    %5089 = vmatprep.mubr.bf16.mxu0 %v560
    %5090 = vmatmul.mubr.bf16.gmra.mrb[0].mxu0 %v559
    %v5091 = vpop.f32.mrb[0].mxu0
    %v5092 = vadd.f32 %v4045, %v5091
    %v5093 = vpop.f32.mrb[0].mxu0
    %v5094 = vadd.f32 %v4049, %v5093
    %v5095 = vpop.f32.mrb[0].mxu0
    %v5096 = vadd.f32 %v4045, %v5095
    %v5097 = vpop.f32.mrb[0].mxu0
    %v5098 = vadd.f32 %v4049, %v5097
    %5099 = vdwg.mxu0
    %5100 = vmatprep.subr.bf16.mxu0 %v4748
    %5101 = vmatpush1.bf16.msra.mxu0 %v4747
    %5102 = vmatprep.subr.bf16.mxu0 %v4753
    %5103 = vmatpush1.bf16.msra.mxu0 %v4752
    %5104 = vmatprep.subr.bf16.mxu0 %v4758
    %5105 = vmatpush1.bf16.msra.mxu0 %v4757
    %5106 = vmatprep.subr.bf16.mxu0 %v4763
    %5107 = vmatpush1.bf16.msra.mxu0 %v4762
    %5108 = vmatprep.subr.bf16.mxu0 %v4768
    %5109 = vmatpush1.bf16.msra.mxu0 %v4767
    %5110 = vmatprep.subr.bf16.mxu0 %v4773
    %5111 = vmatpush1.bf16.msra.mxu0 %v4772
    %5112 = vmatprep.subr.bf16.mxu0 %v4778
    %5113 = vmatpush1.bf16.msra.mxu0 %v4777
    %5114 = vmatprep.subr.bf16.mxu0 %v4783
    %5115 = vmatpush1.bf16.msra.mxu0 %v4782
    %5116 = vmatprep.subr.bf16.mxu0 %v4788
    %5117 = vmatpush1.bf16.msra.mxu0 %v4787
    %5118 = vmatprep.subr.bf16.mxu0 %v4793
    %5119 = vmatpush1.bf16.msra.mxu0 %v4792
    %5120 = vmatprep.subr.bf16.mxu0 %v4798
    %5121 = vmatpush1.bf16.msra.mxu0 %v4797
    %5122 = vmatprep.subr.bf16.mxu0 %v4803
    %5123 = vmatpush1.bf16.msra.mxu0 %v4802
    %5124 = vmatprep.subr.bf16.mxu0 %v4808
    %5125 = vmatpush1.bf16.msra.mxu0 %v4807
    %5126 = vmatprep.subr.bf16.mxu0 %v4813
    %5127 = vmatpush1.bf16.msra.mxu0 %v4812
    %5128 = vmatprep.subr.bf16.mxu0 %v4818
    %5129 = vmatpush1.bf16.msra.mxu0 %v4817
    %5130 = vmatprep.subr.bf16.mxu0 %v4823
    %5131 = vmatpush1.bf16.msra.mxu0 %v4822
    %5132 = vmatprep.mubr.bf16.mxu0 %v562
    %5133 = vmatmul.mubr.bf16.gmra.mrb[0].mxu0 %v561
    %v5134 = vpop.f32.mrb[0].mxu0
    %v5135 = vadd.f32 %v5092, %v5134
    %v5136 = vpop.f32.mrb[0].mxu0
    %v5137 = vadd.f32 %v5094, %v5136
    %v5138 = vpop.f32.mrb[0].mxu0
    %v5139 = vadd.f32 %v5096, %v5138
    %v5140 = vpop.f32.mrb[0].mxu0
    %v5141 = vadd.f32 %v5098, %v5140
    %5142 = vdwg.mxu0
    %5143 = vmatprep.subr.bf16.mxu0 %v4828
    %5144 = vmatpush1.bf16.msra.mxu0 %v4827
    %5145 = vmatprep.subr.bf16.mxu0 %v4833
    %5146 = vmatpush1.bf16.msra.mxu0 %v4832
    %5147 = vmatprep.subr.bf16.mxu0 %v4838
    %5148 = vmatpush1.bf16.msra.mxu0 %v4837
    %5149 = vmatprep.subr.bf16.mxu0 %v4843
    %5150 = vmatpush1.bf16.msra.mxu0 %v4842
    %5151 = vmatprep.subr.bf16.mxu0 %v4848
    %5152 = vmatpush1.bf16.msra.mxu0 %v4847
    %5153 = vmatprep.subr.bf16.mxu0 %v5046
    %5154 = vmatpush1.bf16.msra.mxu0 %v5043
    %5155 = vmatprep.subr.bf16.mxu0 0
    %5156 = vmatpush1.bf16.msra.mxu0 0
    %5157 = vmatprep.subr.bf16.mxu0 0
    %5158 = vmatpush1.bf16.msra.mxu0 0
    %5159 = vmatprep.subr.bf16.mxu0 0
    %5160 = vmatpush1.bf16.msra.mxu0 0
    %5161 = vmatprep.subr.bf16.mxu0 0
    %5162 = vmatpush1.bf16.msra.mxu0 0
    %5163 = vmatprep.subr.bf16.mxu0 0
    %5164 = vmatpush1.bf16.msra.mxu0 0
    %5165 = vmatprep.subr.bf16.mxu0 0
    %5166 = vmatpush1.bf16.msra.mxu0 0
    %5167 = vmatprep.subr.bf16.mxu0 0
    %5168 = vmatpush1.bf16.msra.mxu0 0
    %5169 = vmatprep.subr.bf16.mxu0 0
    %5170 = vmatpush1.bf16.msra.mxu0 0
    %5171 = vmatprep.subr.bf16.mxu0 0
    %5172 = vmatpush1.bf16.msra.mxu0 0
    %5173 = vmatprep.subr.bf16.mxu0 0
    %5174 = vmatpush1.bf16.msra.mxu0 0
    %5175 = vmatprep.mubr.bf16.mxu0 0
    %5176 = vmatmul.mubr.bf16.gmra.mrb[0].mxu0 %v1793
    %v5177 = vpop.f32.mrb[0].mxu0
    %v5178 = vadd.f32 %v5135, %v5177
    %v5179 = vpop.f32.mrb[0].mxu0
    %v5180 = vadd.f32 %v5137, %v5179
    %v5181 = vpop.f32.mrb[0].mxu0
    %v5182 = vadd.f32 %v5139, %v5181
    %v5183 = vpop.f32.mrb[0].mxu0
    %v5184 = vadd.f32 %v5141, %v5183
    %5185 = vdwg.mxu0
    %5186 = vmatprep.subr.bf16.mxu0 %v4670
    %5187 = vmatpush1.bf16.msra.mxu0 %v4669
    %5188 = vmatprep.subr.bf16.mxu0 %v4675
    %5189 = vmatpush1.bf16.msra.mxu0 %v4674
    %5190 = vmatprep.subr.bf16.mxu0 %v4680
    %5191 = vmatpush1.bf16.msra.mxu0 %v4679
    %5192 = vmatprep.subr.bf16.mxu0 %v4685
    %5193 = vmatpush1.bf16.msra.mxu0 %v4684
    %5194 = vmatprep.subr.bf16.mxu0 %v4690
    %5195 = vmatpush1.bf16.msra.mxu0 %v4689
    %5196 = vmatprep.subr.bf16.mxu0 %v4695
    %5197 = vmatpush1.bf16.msra.mxu0 %v4694
    %5198 = vmatprep.subr.bf16.mxu0 %v4700
    %5199 = vmatpush1.bf16.msra.mxu0 %v4699
    %5200 = vmatprep.subr.bf16.mxu0 %v4705
    %5201 = vmatpush1.bf16.msra.mxu0 %v4704
    %5202 = vmatprep.subr.bf16.mxu0 %v4710
    %5203 = vmatpush1.bf16.msra.mxu0 %v4709
    %5204 = vmatprep.subr.bf16.mxu0 %v4715
    %5205 = vmatpush1.bf16.msra.mxu0 %v4714
    %5206 = vmatprep.subr.bf16.mxu0 %v4720
    %5207 = vmatpush1.bf16.msra.mxu0 %v4719
    %5208 = vmatprep.subr.bf16.mxu0 %v4725
    %5209 = vmatpush1.bf16.msra.mxu0 %v4724
    %5210 = vmatprep.subr.bf16.mxu0 %v4730
    %5211 = vmatpush1.bf16.msra.mxu0 %v4729
    %5212 = vmatprep.subr.bf16.mxu0 %v4735
    %5213 = vmatpush1.bf16.msra.mxu0 %v4734
    %5214 = vmatprep.subr.bf16.mxu0 %v4740
    %5215 = vmatpush1.bf16.msra.mxu0 %v4739
    %5216 = vmatprep.subr.bf16.mxu0 %v4745
    %5217 = vmatpush1.bf16.msra.mxu0 %v4744
    %5218 = vmatprep.mubr.bf16.mxu0 %v560
    %5219 = vmatmul.mubr.bf16.gmra.mrb[0].mxu0 %v559
    %v5220 = vpop.f32.mrb[0].mxu0
    %v5221 = vadd.f32 %v4053, %v5220
    %v5222 = vpop.f32.mrb[0].mxu0
    %v5223 = vadd.f32 %v4057, %v5222
    %v5224 = vpop.f32.mrb[0].mxu0
    %v5225 = vadd.f32 %v4053, %v5224
    %v5226 = vpop.f32.mrb[0].mxu0
    %v5227 = vadd.f32 %v4057, %v5226
    %5228 = vdwg.mxu0
    %5229 = vmatprep.subr.bf16.mxu0 %v4750
    %5230 = vmatpush1.bf16.msra.mxu0 %v4749
    %5231 = vmatprep.subr.bf16.mxu0 %v4755
    %5232 = vmatpush1.bf16.msra.mxu0 %v4754
    %5233 = vmatprep.subr.bf16.mxu0 %v4760
    %5234 = vmatpush1.bf16.msra.mxu0 %v4759
    %5235 = vmatprep.subr.bf16.mxu0 %v4765
    %5236 = vmatpush1.bf16.msra.mxu0 %v4764
    %5237 = vmatprep.subr.bf16.mxu0 %v4770
    %5238 = vmatpush1.bf16.msra.mxu0 %v4769
    %5239 = vmatprep.subr.bf16.mxu0 %v4775
    %5240 = vmatpush1.bf16.msra.mxu0 %v4774
    %5241 = vmatprep.subr.bf16.mxu0 %v4780
    %5242 = vmatpush1.bf16.msra.mxu0 %v4779
    %5243 = vmatprep.subr.bf16.mxu0 %v4785
    %5244 = vmatpush1.bf16.msra.mxu0 %v4784
    %5245 = vmatprep.subr.bf16.mxu0 %v4790
    %5246 = vmatpush1.bf16.msra.mxu0 %v4789
    %5247 = vmatprep.subr.bf16.mxu0 %v4795
    %5248 = vmatpush1.bf16.msra.mxu0 %v4794
    %5249 = vmatprep.subr.bf16.mxu0 %v4800
    %5250 = vmatpush1.bf16.msra.mxu0 %v4799
    %5251 = vmatprep.subr.bf16.mxu0 %v4805
    %5252 = vmatpush1.bf16.msra.mxu0 %v4804
    %5253 = vmatprep.subr.bf16.mxu0 %v4810
    %5254 = vmatpush1.bf16.msra.mxu0 %v4809
    %5255 = vmatprep.subr.bf16.mxu0 %v4815
    %5256 = vmatpush1.bf16.msra.mxu0 %v4814
    %5257 = vmatprep.subr.bf16.mxu0 %v4820
    %5258 = vmatpush1.bf16.msra.mxu0 %v4819
    %5259 = vmatprep.subr.bf16.mxu0 %v4825
    %5260 = vmatpush1.bf16.msra.mxu0 %v4824
    %5261 = vmatprep.mubr.bf16.mxu0 %v562
    %5262 = vmatmul.mubr.bf16.gmra.mrb[0].mxu0 %v561
    %v5263 = vpop.f32.mrb[0].mxu0
    %v5264 = vadd.f32 %v5221, %v5263
    %v5265 = vpop.f32.mrb[0].mxu0
    %v5266 = vadd.f32 %v5223, %v5265
    %v5267 = vpop.f32.mrb[0].mxu0
    %v5268 = vadd.f32 %v5225, %v5267
    %v5269 = vpop.f32.mrb[0].mxu0
    %v5270 = vadd.f32 %v5227, %v5269
    %5271 = vdwg.mxu0
    %5272 = vmatprep.subr.bf16.mxu0 %v4830
    %5273 = vmatpush1.bf16.msra.mxu0 %v4829
    %5274 = vmatprep.subr.bf16.mxu0 %v4835
    %5275 = vmatpush1.bf16.msra.mxu0 %v4834
    %5276 = vmatprep.subr.bf16.mxu0 %v4840
    %5277 = vmatpush1.bf16.msra.mxu0 %v4839
    %5278 = vmatprep.subr.bf16.mxu0 %v4845
    %5279 = vmatpush1.bf16.msra.mxu0 %v4844
    %5280 = vmatprep.subr.bf16.mxu0 %v4850
    %5281 = vmatpush1.bf16.msra.mxu0 %v4849
    %5282 = vmatprep.subr.bf16.mxu0 %v5052
    %5283 = vmatpush1.bf16.msra.mxu0 %v5049
    %5284 = vmatprep.subr.bf16.mxu0 0
    %5285 = vmatpush1.bf16.msra.mxu0 0
    %5286 = vmatprep.subr.bf16.mxu0 0
    %5287 = vmatpush1.bf16.msra.mxu0 0
    %5288 = vmatprep.subr.bf16.mxu0 0
    %5289 = vmatpush1.bf16.msra.mxu0 0
    %5290 = vmatprep.subr.bf16.mxu0 0
    %5291 = vmatpush1.bf16.msra.mxu0 0
    %5292 = vmatprep.subr.bf16.mxu0 0
    %5293 = vmatpush1.bf16.msra.mxu0 0
    %5294 = vmatprep.subr.bf16.mxu0 0
    %5295 = vmatpush1.bf16.msra.mxu0 0
    %5296 = vmatprep.subr.bf16.mxu0 0
    %5297 = vmatpush1.bf16.msra.mxu0 0
    %5298 = vmatprep.subr.bf16.mxu0 0
    %5299 = vmatpush1.bf16.msra.mxu0 0
    %5300 = vmatprep.subr.bf16.mxu0 0
    %5301 = vmatpush1.bf16.msra.mxu0 0
    %5302 = vmatprep.subr.bf16.mxu0 0
    %5303 = vmatpush1.bf16.msra.mxu0 0
    %5304 = vmatprep.mubr.bf16.mxu0 0
    %5305 = vmatmul.mubr.bf16.gmra.mrb[0].mxu0 %v1793
    %v5306 = vpop.f32.mrb[0].mxu0
    %v5307 = vadd.f32 %v5264, %v5306
    %v5308 = vpop.f32.mrb[0].mxu0
    %v5309 = vadd.f32 %v5266, %v5308
    %v5310 = vpop.f32.mrb[0].mxu0
    %v5311 = vadd.f32 %v5268, %v5310
    %v5312 = vpop.f32.mrb[0].mxu0
    %v5313 = vadd.f32 %v5270, %v5312
    %5314 = vdwg.mxu0
    %5315 = vmatprep.subr.bf16.mxu0 0
    %5316 = vmatpush1.bf16.msra.mxu0 %v4671
    %5317 = vmatprep.subr.bf16.mxu0 0
    %5318 = vmatpush1.bf16.msra.mxu0 %v4676
    %5319 = vmatprep.subr.bf16.mxu0 0
    %5320 = vmatpush1.bf16.msra.mxu0 %v4681
    %5321 = vmatprep.subr.bf16.mxu0 0
    %5322 = vmatpush1.bf16.msra.mxu0 %v4686
    %5323 = vmatprep.subr.bf16.mxu0 0
    %5324 = vmatpush1.bf16.msra.mxu0 %v4691
    %5325 = vmatprep.subr.bf16.mxu0 0
    %5326 = vmatpush1.bf16.msra.mxu0 %v4696
    %5327 = vmatprep.subr.bf16.mxu0 0
    %5328 = vmatpush1.bf16.msra.mxu0 %v4701
    %5329 = vmatprep.subr.bf16.mxu0 0
    %5330 = vmatpush1.bf16.msra.mxu0 %v4706
    %5331 = vmatprep.subr.bf16.mxu0 0
    %5332 = vmatpush1.bf16.msra.mxu0 %v4711
    %5333 = vmatprep.subr.bf16.mxu0 0
    %5334 = vmatpush1.bf16.msra.mxu0 %v4716
    %5335 = vmatprep.subr.bf16.mxu0 0
    %5336 = vmatpush1.bf16.msra.mxu0 %v4721
    %5337 = vmatprep.subr.bf16.mxu0 0
    %5338 = vmatpush1.bf16.msra.mxu0 %v4726
    %5339 = vmatprep.subr.bf16.mxu0 0
    %5340 = vmatpush1.bf16.msra.mxu0 %v4731
    %5341 = vmatprep.subr.bf16.mxu0 0
    %5342 = vmatpush1.bf16.msra.mxu0 %v4736
    %5343 = vmatprep.subr.bf16.mxu0 0
    %5344 = vmatpush1.bf16.msra.mxu0 %v4741
    %5345 = vmatprep.subr.bf16.mxu0 0
    %5346 = vmatpush1.bf16.msra.mxu0 %v4746
    %5347 = vmatprep.mubr.bf16.mxu0 %v560
    %5348 = vmatmul.mubr.bf16.gmra.mrb[0].mxu0 %v559
    %v5349 = vpop.f32.mrb[0].mxu0
    %v5350 = vadd.f32 %v4061, %v5349
    %v5351 = vpop.f32.mrb[0].mxu0
    %v5352 = vpop.f32.mrb[0].mxu0
    %v5353 = vadd.f32 %v4061, %v5352
    %v5354 = vpop.f32.mrb[0].mxu0
    %5355 = vdwg.mxu0
    %5356 = vmatprep.subr.bf16.mxu0 0
    %5357 = vmatpush1.bf16.msra.mxu0 %v4751
    %5358 = vmatprep.subr.bf16.mxu0 0
    %5359 = vmatpush1.bf16.msra.mxu0 %v4756
    %5360 = vmatprep.subr.bf16.mxu0 0
    %5361 = vmatpush1.bf16.msra.mxu0 %v4761
    %5362 = vmatprep.subr.bf16.mxu0 0
    %5363 = vmatpush1.bf16.msra.mxu0 %v4766
    %5364 = vmatprep.subr.bf16.mxu0 0
    %5365 = vmatpush1.bf16.msra.mxu0 %v4771
    %5366 = vmatprep.subr.bf16.mxu0 0
    %5367 = vmatpush1.bf16.msra.mxu0 %v4776
    %5368 = vmatprep.subr.bf16.mxu0 0
    %5369 = vmatpush1.bf16.msra.mxu0 %v4781
    %5370 = vmatprep.subr.bf16.mxu0 0
    %5371 = vmatpush1.bf16.msra.mxu0 %v4786
    %5372 = vmatprep.subr.bf16.mxu0 0
    %5373 = vmatpush1.bf16.msra.mxu0 %v4791
    %5374 = vmatprep.subr.bf16.mxu0 0
    %5375 = vmatpush1.bf16.msra.mxu0 %v4796
    %5376 = vmatprep.subr.bf16.mxu0 0
    %5377 = vmatpush1.bf16.msra.mxu0 %v4801
    %5378 = vmatprep.subr.bf16.mxu0 0
    %5379 = vmatpush1.bf16.msra.mxu0 %v4806
    %5380 = vmatprep.subr.bf16.mxu0 0
    %5381 = vmatpush1.bf16.msra.mxu0 %v4811
    %5382 = vmatprep.subr.bf16.mxu0 0
    %5383 = vmatpush1.bf16.msra.mxu0 %v4816
    %5384 = vmatprep.subr.bf16.mxu0 0
    %5385 = vmatpush1.bf16.msra.mxu0 %v4821
    %5386 = vmatprep.subr.bf16.mxu0 0
    %5387 = vmatpush1.bf16.msra.mxu0 %v4826
    %5388 = vmatprep.mubr.bf16.mxu0 %v562
    %5389 = vmatmul.mubr.bf16.gmra.mrb[0].mxu0 %v561
    %v5390 = vpop.f32.mrb[0].mxu0
    %v5391 = vadd.f32 %v5350, %v5390
    %v5392 = vpop.f32.mrb[0].mxu0
    %v5393 = vpop.f32.mrb[0].mxu0
    %v5394 = vadd.f32 %v5353, %v5393
    %v5395 = vpop.f32.mrb[0].mxu0
    %5396 = vdwg.mxu0
    %5397 = vmatprep.subr.bf16.mxu0 0
    %5398 = vmatpush1.bf16.msra.mxu0 %v4831
    %5399 = vmatprep.subr.bf16.mxu0 0
    %5400 = vmatpush1.bf16.msra.mxu0 %v4836
    %5401 = vmatprep.subr.bf16.mxu0 0
    %5402 = vmatpush1.bf16.msra.mxu0 %v4841
    %5403 = vmatprep.subr.bf16.mxu0 0
    %5404 = vmatpush1.bf16.msra.mxu0 %v4846
    %5405 = vmatprep.subr.bf16.mxu0 0
    %5406 = vmatpush1.bf16.msra.mxu0 %v4851
    %5407 = vmatprep.subr.bf16.mxu0 0
    %5408 = vmatpush1.bf16.msra.mxu0 %v5055
    %5409 = vmatprep.subr.bf16.mxu0 0
    %5410 = vmatpush1.bf16.msra.mxu0 0
    %5411 = vmatprep.subr.bf16.mxu0 0
    %5412 = vmatpush1.bf16.msra.mxu0 0
    %5413 = vmatprep.subr.bf16.mxu0 0
    %5414 = vmatpush1.bf16.msra.mxu0 0
    %5415 = vmatprep.subr.bf16.mxu0 0
    %5416 = vmatpush1.bf16.msra.mxu0 0
    %5417 = vmatprep.subr.bf16.mxu0 0
    %5418 = vmatpush1.bf16.msra.mxu0 0
    %5419 = vmatprep.subr.bf16.mxu0 0
    %5420 = vmatpush1.bf16.msra.mxu0 0
    %5421 = vmatprep.subr.bf16.mxu0 0
    %5422 = vmatpush1.bf16.msra.mxu0 0
    %5423 = vmatprep.subr.bf16.mxu0 0
    %5424 = vmatpush1.bf16.msra.mxu0 0
    %5425 = vmatprep.subr.bf16.mxu0 0
    %5426 = vmatpush1.bf16.msra.mxu0 0
    %5427 = vmatprep.subr.bf16.mxu0 0
    %5428 = vmatpush1.bf16.msra.mxu0 0
    %5429 = vmatprep.mubr.bf16.mxu0 0
    %5430 = vmatmul.mubr.bf16.gmra.mrb[0].mxu0 %v1793
    %v5431 = vpop.f32.mrb[0].mxu0
    %v5432 = vadd.f32 %v5391, %v5431
    %v5433 = vpop.f32.mrb[0].mxu0
    %v5434 = vpop.f32.mrb[0].mxu0
    %v5435 = vadd.f32 %v5394, %v5434
    %v5436 = vpop.f32.mrb[0].mxu0
    %5437 = vdwg.mxu0
    %v5438 = vpack.c.bf16 %v1932, %v1932
    %v5439 = vpack.c.bf16 %v1934, %v1934
    %v5440 = vpack.c.bf16 %v2061, %v2061
    %v5441 = vpack.c.bf16 %v2063, %v2063
    %v5442 = vpack.c.bf16 %v2186, %v2186
    %v5443 = vpack.c.bf16 %v1936, %v1936
    %v5444 = vpack.c.bf16 %v1938, %v1938
    %v5445 = vpack.c.bf16 %v2065, %v2065
    %v5446 = vpack.c.bf16 %v2067, %v2067
    %v5447 = vpack.c.bf16 %v2189, %v2189
    %v5448 = vpack.c.bf16 %v3555, %v3555
    %v5449 = vpack.c.bf16 %v3557, %v3557
    %v5450 = vpack.c.bf16 %v3684, %v3684
    %v5451 = vpack.c.bf16 %v3686, %v3686
    %v5452 = vpack.c.bf16 %v3809, %v3809
    %v5453 = vpack.c.bf16 %v3559, %v3559
    %v5454 = vpack.c.bf16 %v3561, %v3561
    %v5455 = vpack.c.bf16 %v3688, %v3688
    %v5456 = vpack.c.bf16 %v3690, %v3690
    %v5457 = vpack.c.bf16 %v3812, %v3812
    %v5458 = vpack.c.bf16 %v5178, %v5178
    %v5459 = vpack.c.bf16 %v5180, %v5180
    %v5460 = vpack.c.bf16 %v5307, %v5307
    %v5461 = vpack.c.bf16 %v5309, %v5309
    %v5462 = vpack.c.bf16 %v5432, %v5432
    %v5463 = vpack.c.bf16 %v5182, %v5182
    %v5464 = vpack.c.bf16 %v5184, %v5184
    %v5465 = vpack.c.bf16 %v5311, %v5311
    %v5466 = vpack.c.bf16 %v5313, %v5313
    %v5467 = vpack.c.bf16 %v5435, %v5435
    %vm5468 = vcmask 523264
    %v5470 = vsel %vm5468, %v5438, 0
    %v5473 = vsel %vm5468, %v5448, 0
    %5475 = vmatprep.subr.bf16.mxu0 0
    %5476 = vmatpush1.bf16.xpose.msra.mxu0 %v5473
    %5477 = vmatprep.subr.bf16.mxu0 0
    %5478 = vmatpush1.bf16.xpose.msra.mxu0 0
    %5479 = vmatprep.subr.bf16.mxu0 0
    %5480 = vmatpush1.bf16.xpose.msra.mxu0 0
    %5481 = vmatprep.subr.bf16.mxu0 0
    %5482 = vmatpush1.bf16.xpose.msra.mxu0 0
    %5483 = vmatprep.subr.bf16.mxu0 0
    %5484 = vmatpush1.bf16.xpose.msra.mxu0 0
    %5485 = vmatprep.subr.bf16.mxu0 0
    %5486 = vmatpush1.bf16.xpose.msra.mxu0 0
    %5487 = vmatprep.subr.bf16.mxu0 0
    %5488 = vmatpush1.bf16.xpose.msra.mxu0 0
    %5489 = vmatprep.subr.bf16.mxu0 0
    %5490 = vmatpush1.bf16.xpose.msra.mxu0 0
    %5491 = vmatprep.subr.bf16.mxu0 0
    %5492 = vmatpush1.bf16.xpose.msra.mxu0 0
    %5493 = vmatprep.subr.bf16.mxu0 0
    %5494 = vmatpush1.bf16.xpose.msra.mxu0 0
    %5495 = vmatprep.subr.bf16.mxu0 0
    %5496 = vmatpush1.bf16.xpose.msra.mxu0 0
    %5497 = vmatprep.subr.bf16.mxu0 0
    %5498 = vmatpush1.bf16.xpose.msra.mxu0 0
    %5499 = vmatprep.subr.bf16.mxu0 0
    %5500 = vmatpush1.bf16.xpose.msra.mxu0 0
    %5501 = vmatprep.subr.bf16.mxu0 0
    %5502 = vmatpush1.bf16.xpose.msra.mxu0 0
    %5503 = vmatprep.subr.bf16.mxu0 0
    %5504 = vmatpush1.bf16.xpose.msra.mxu0 0
    %5505 = vmatprep.subr.bf16.mxu0 0
    %5506 = vmatpush1.bf16.xpose.msra.mxu0 0
    %5507 = vmatprep.mubr.bf16.mxu0 0
    %5508 = vmatmul.mubr.bf16.gmra.mrb[0].mxu0 %v5470
    %v5509 = vpop.f32.mrb[0].mxu0
    %v5510 = vadd.f32 0.0, %v5509
    %v5511 = vpop.f32.mrb[0].mxu0
    %v5512 = vpop.f32.mrb[0].mxu0
    %v5513 = vpop.f32.mrb[0].mxu0
    %5514 = vdwg.mxu0
    %v5516 = vsel %vm5468, %v5443, 0
    %v5519 = vsel %vm5468, %v5453, 0
    %5521 = vmatprep.subr.bf16.mxu0 0
    %5522 = vmatpush1.bf16.xpose.msra.mxu0 %v5519
    %5523 = vmatprep.subr.bf16.mxu0 0
    %5524 = vmatpush1.bf16.xpose.msra.mxu0 0
    %5525 = vmatprep.subr.bf16.mxu0 0
    %5526 = vmatpush1.bf16.xpose.msra.mxu0 0
    %5527 = vmatprep.subr.bf16.mxu0 0
    %5528 = vmatpush1.bf16.xpose.msra.mxu0 0
    %5529 = vmatprep.subr.bf16.mxu0 0
    %5530 = vmatpush1.bf16.xpose.msra.mxu0 0
    %5531 = vmatprep.subr.bf16.mxu0 0
    %5532 = vmatpush1.bf16.xpose.msra.mxu0 0
    %5533 = vmatprep.subr.bf16.mxu0 0
    %5534 = vmatpush1.bf16.xpose.msra.mxu0 0
    %5535 = vmatprep.subr.bf16.mxu0 0
    %5536 = vmatpush1.bf16.xpose.msra.mxu0 0
    %5537 = vmatprep.subr.bf16.mxu0 0
    %5538 = vmatpush1.bf16.xpose.msra.mxu0 0
    %5539 = vmatprep.subr.bf16.mxu0 0
    %5540 = vmatpush1.bf16.xpose.msra.mxu0 0
    %5541 = vmatprep.subr.bf16.mxu0 0
    %5542 = vmatpush1.bf16.xpose.msra.mxu0 0
    %5543 = vmatprep.subr.bf16.mxu0 0
    %5544 = vmatpush1.bf16.xpose.msra.mxu0 0
    %5545 = vmatprep.subr.bf16.mxu0 0
    %5546 = vmatpush1.bf16.xpose.msra.mxu0 0
    %5547 = vmatprep.subr.bf16.mxu0 0
    %5548 = vmatpush1.bf16.xpose.msra.mxu0 0
    %5549 = vmatprep.subr.bf16.mxu0 0
    %5550 = vmatpush1.bf16.xpose.msra.mxu0 0
    %5551 = vmatprep.subr.bf16.mxu0 0
    %5552 = vmatpush1.bf16.xpose.msra.mxu0 0
    %5553 = vmatprep.mubr.bf16.mxu0 0
    %5554 = vmatmul.mubr.bf16.gmra.mrb[0].mxu0 %v5516
    %v5555 = vpop.f32.mrb[0].mxu0
    %v5556 = vadd.f32 0.0, %v5555
    %v5557 = vpop.f32.mrb[0].mxu0
    %v5558 = vpop.f32.mrb[0].mxu0
    %v5559 = vpop.f32.mrb[0].mxu0
    %5560 = vdwg.mxu0
    %vm5561 = vcmask 64512
    %v5562 = vsel %vm5561, %v5510, -inf
    %5563 = vmax.xlane.f32.xlu0 %v5562
    %v5564 = vpop.xlane.xlu0 %5563
    %v5565 = vsel %vm5561, %v5556, -inf
    %5566 = vmax.xlane.f32.xlu0 %v5565
    %v5567 = vpop.xlane.xlu0 %5566
    %v5568 = vsub.f32 %v5510, %v5564
    %v5569 = vsub.f32 %v5556, %v5567
    %v5570 = vmul.f32 %v5568, 1.442695
    %v5571 = vpow.pop %v5570
    %v5572 = vmul.f32 %v5569, 1.442695
    %v5573 = vpow.pop %v5572
    %v5574 = vsel %vm5561, %v5571, 0.0
    %5575 = vadd.xlane.f32.xlu0 %v5574
    %v5576 = vpop.xlane.xlu0 %5575
    %v5577 = vsel %vm5561, %v5573, 0.0
    %5578 = vadd.xlane.f32.xlu0 %v5577
    %v5579 = vpop.xlane.xlu0 %5578
    %v5580 = vrcp.pop %v5576
    %v5581 = vrcp.pop %v5579
    %v5582 = vmul.f32 %v5571, %v5580
    %v5583 = vmul.f32 %v5573, %v5581
    %v5584 = vpack.c.bf16 %v5582, %v5582
    %v5585 = vpack.c.bf16 %v5583, %v5583
    %v5587 = vsel %vm5561, %v5584, 0
    %v5590 = vsel %vm1795, %v5458, 0
    %5592 = vmatprep.subr.bf16.mxu0 0
    %5593 = vmatpush1.bf16.msra.mxu0 %v5590
    %5594 = vmatprep.subr.bf16.mxu0 0
    %5595 = vmatpush1.bf16.msra.mxu0 0
    %5596 = vmatprep.subr.bf16.mxu0 0
    %5597 = vmatpush1.bf16.msra.mxu0 0
    %5598 = vmatprep.subr.bf16.mxu0 0
    %5599 = vmatpush1.bf16.msra.mxu0 0
    %5600 = vmatprep.subr.bf16.mxu0 0
    %5601 = vmatpush1.bf16.msra.mxu0 0
    %5602 = vmatprep.subr.bf16.mxu0 0
    %5603 = vmatpush1.bf16.msra.mxu0 0
    %5604 = vmatprep.subr.bf16.mxu0 0
    %5605 = vmatpush1.bf16.msra.mxu0 0
    %5606 = vmatprep.subr.bf16.mxu0 0
    %5607 = vmatpush1.bf16.msra.mxu0 0
    %5608 = vmatprep.subr.bf16.mxu0 0
    %5609 = vmatpush1.bf16.msra.mxu0 0
    %5610 = vmatprep.subr.bf16.mxu0 0
    %5611 = vmatpush1.bf16.msra.mxu0 0
    %5612 = vmatprep.subr.bf16.mxu0 0
    %5613 = vmatpush1.bf16.msra.mxu0 0
    %5614 = vmatprep.subr.bf16.mxu0 0
    %5615 = vmatpush1.bf16.msra.mxu0 0
    %5616 = vmatprep.subr.bf16.mxu0 0
    %5617 = vmatpush1.bf16.msra.mxu0 0
    %5618 = vmatprep.subr.bf16.mxu0 0
    %5619 = vmatpush1.bf16.msra.mxu0 0
    %5620 = vmatprep.subr.bf16.mxu0 0
    %5621 = vmatpush1.bf16.msra.mxu0 0
    %5622 = vmatprep.subr.bf16.mxu0 0
    %5623 = vmatpush1.bf16.msra.mxu0 0
    %5624 = vmatprep.mubr.bf16.mxu0 0
    %5625 = vmatmul.mubr.bf16.gmra.mrb[0].mxu0 %v5587
    %v5626 = vpop.f32.mrb[0].mxu0
    %v5627 = vadd.f32 0.0, %v5626
    %v5628 = vpop.f32.mrb[0].mxu0
    %v5629 = vpop.f32.mrb[0].mxu0
    %v5630 = vpop.f32.mrb[0].mxu0
    %5631 = vdwg.mxu0
    %v5633 = vsel %vm5561, %v5585, 0
    %v5636 = vsel %vm1795, %v5463, 0
    %5638 = vmatprep.subr.bf16.mxu0 0
    %5639 = vmatpush1.bf16.msra.mxu0 %v5636
    %5640 = vmatprep.subr.bf16.mxu0 0
    %5641 = vmatpush1.bf16.msra.mxu0 0
    %5642 = vmatprep.subr.bf16.mxu0 0
    %5643 = vmatpush1.bf16.msra.mxu0 0
    %5644 = vmatprep.subr.bf16.mxu0 0
    %5645 = vmatpush1.bf16.msra.mxu0 0
    %5646 = vmatprep.subr.bf16.mxu0 0
    %5647 = vmatpush1.bf16.msra.mxu0 0
    %5648 = vmatprep.subr.bf16.mxu0 0
    %5649 = vmatpush1.bf16.msra.mxu0 0
    %5650 = vmatprep.subr.bf16.mxu0 0
    %5651 = vmatpush1.bf16.msra.mxu0 0
    %5652 = vmatprep.subr.bf16.mxu0 0
    %5653 = vmatpush1.bf16.msra.mxu0 0
    %5654 = vmatprep.subr.bf16.mxu0 0
    %5655 = vmatpush1.bf16.msra.mxu0 0
    %5656 = vmatprep.subr.bf16.mxu0 0
    %5657 = vmatpush1.bf16.msra.mxu0 0
    %5658 = vmatprep.subr.bf16.mxu0 0
    %5659 = vmatpush1.bf16.msra.mxu0 0
    %5660 = vmatprep.subr.bf16.mxu0 0
    %5661 = vmatpush1.bf16.msra.mxu0 0
    %5662 = vmatprep.subr.bf16.mxu0 0
    %5663 = vmatpush1.bf16.msra.mxu0 0
    %5664 = vmatprep.subr.bf16.mxu0 0
    %5665 = vmatpush1.bf16.msra.mxu0 0
    %5666 = vmatprep.subr.bf16.mxu0 0
    %5667 = vmatpush1.bf16.msra.mxu0 0
    %5668 = vmatprep.subr.bf16.mxu0 0
    %5669 = vmatpush1.bf16.msra.mxu0 0
    %5670 = vmatprep.mubr.bf16.mxu0 0
    %5671 = vmatmul.mubr.bf16.gmra.mrb[0].mxu0 %v5633
    %v5672 = vpop.f32.mrb[0].mxu0
    %v5673 = vadd.f32 0.0, %v5672
    %v5674 = vpop.f32.mrb[0].mxu0
    %v5675 = vpop.f32.mrb[0].mxu0
    %v5676 = vpop.f32.mrb[0].mxu0
    %5677 = vdwg.mxu0
    %v5678 = vpack.c.bf16 %v5673, %v5627
    %v5679 = vld [vmem:[#allocation7] sm:$0xff]
    %v5680 = vld [vmem:[#allocation7 + $0x8] sm:$0xff]
    %v5681 = vld [vmem:[#allocation7 + $0x10] sm:$0xf]
    %v5682 = vld [vmem:[#allocation7 + $0x14] sm:$0xff]
    %v5683 = vld [vmem:[#allocation7 + $0x1c] sm:$0xff]
    %v5684 = vld [vmem:[#allocation7 + $0x24] sm:$0xf]
    %v5685 = vld [vmem:[#allocation7 + $0x28] sm:$0xff]
    %v5686 = vld [vmem:[#allocation7 + $0x30] sm:$0xff]
    %v5687 = vld [vmem:[#allocation7 + $0x38] sm:$0xf]
    %v5688 = vld [vmem:[#allocation7 + $0x3c] sm:$0xff]
    %v5689 = vld [vmem:[#allocation7 + $0x44] sm:$0xff]
    %v5690 = vld [vmem:[#allocation7 + $0x4c] sm:$0xf]
    %v5691 = vld [vmem:[#allocation7 + $0x50] sm:$0xff]
    %v5692 = vld [vmem:[#allocation7 + $0x58] sm:$0xff]
    %v5693 = vld [vmem:[#allocation7 + $0x60] sm:$0xf]
    %v5694 = vld [vmem:[#allocation7 + $0x64] sm:$0xff]
    %v5695 = vld [vmem:[#allocation7 + $0x6c] sm:$0xff]
    %v5696 = vld [vmem:[#allocation7 + $0x74] sm:$0xf]
    %v5697 = vld [vmem:[#allocation7 + $0x78] sm:$0xff]
    %v5698 = vld [vmem:[#allocation7 + $0x80] sm:$0xff]
    %v5699 = vld [vmem:[#allocation7 + $0x88] sm:$0xf]
    %v5700 = vld [vmem:[#allocation7 + $0x8c] sm:$0xff]
    %v5701 = vld [vmem:[#allocation7 + $0x94] sm:$0xff]
    %v5702 = vld [vmem:[#allocation7 + $0x9c] sm:$0xf]
    %5704 = vrot.lane.b32.xlu0 %v5438, 64
    %v5705 = vpop.permute.xlu0 %5704
    %5707 = vrot.lane.b32.xlu0 %v5448, 64
    %v5708 = vpop.permute.xlu0 %5707
    %v5710 = vsel %vm5468, %v5705, 0
    %v5713 = vsel %vm5468, %v5708, 0
    %5715 = vmatprep.subr.bf16.mxu0 0
    %5716 = vmatpush1.bf16.xpose.msra.mxu0 %v5713
    %5717 = vmatprep.subr.bf16.mxu0 0
    %5718 = vmatpush1.bf16.xpose.msra.mxu0 0
    %5719 = vmatprep.subr.bf16.mxu0 0
    %5720 = vmatpush1.bf16.xpose.msra.mxu0 0
    %5721 = vmatprep.subr.bf16.mxu0 0
    %5722 = vmatpush1.bf16.xpose.msra.mxu0 0
    %5723 = vmatprep.subr.bf16.mxu0 0
    %5724 = vmatpush1.bf16.xpose.msra.mxu0 0
    %5725 = vmatprep.subr.bf16.mxu0 0
    %5726 = vmatpush1.bf16.xpose.msra.mxu0 0
    %5727 = vmatprep.subr.bf16.mxu0 0
    %5728 = vmatpush1.bf16.xpose.msra.mxu0 0
    %5729 = vmatprep.subr.bf16.mxu0 0
    %5730 = vmatpush1.bf16.xpose.msra.mxu0 0
    %5731 = vmatprep.subr.bf16.mxu0 0
    %5732 = vmatpush1.bf16.xpose.msra.mxu0 0
    %5733 = vmatprep.subr.bf16.mxu0 0
    %5734 = vmatpush1.bf16.xpose.msra.mxu0 0
    %5735 = vmatprep.subr.bf16.mxu0 0
    %5736 = vmatpush1.bf16.xpose.msra.mxu0 0
    %5737 = vmatprep.subr.bf16.mxu0 0
    %5738 = vmatpush1.bf16.xpose.msra.mxu0 0
    %5739 = vmatprep.subr.bf16.mxu0 0
    %5740 = vmatpush1.bf16.xpose.msra.mxu0 0
    %5741 = vmatprep.subr.bf16.mxu0 0
    %5742 = vmatpush1.bf16.xpose.msra.mxu0 0
    %5743 = vmatprep.subr.bf16.mxu0 0
    %5744 = vmatpush1.bf16.xpose.msra.mxu0 0
    %5745 = vmatprep.subr.bf16.mxu0 0
    %5746 = vmatpush1.bf16.xpose.msra.mxu0 0
    %5747 = vmatprep.mubr.bf16.mxu0 0
    %5748 = vmatmul.mubr.bf16.gmra.mrb[0].mxu0 %v5710
    %v5749 = vpop.f32.mrb[0].mxu0
    %v5750 = vadd.f32 0.0, %v5749
    %v5751 = vpop.f32.mrb[0].mxu0
    %v5752 = vpop.f32.mrb[0].mxu0
    %v5753 = vpop.f32.mrb[0].mxu0
    %5754 = vdwg.mxu0
    %5756 = vrot.lane.b32.xlu0 %v5443, 64
    %v5757 = vpop.permute.xlu0 %5756
    %5759 = vrot.lane.b32.xlu0 %v5453, 64
    %v5760 = vpop.permute.xlu0 %5759
    %v5762 = vsel %vm5468, %v5757, 0
    %v5765 = vsel %vm5468, %v5760, 0
    %5767 = vmatprep.subr.bf16.mxu0 0
    %5768 = vmatpush1.bf16.xpose.msra.mxu0 %v5765
    %5769 = vmatprep.subr.bf16.mxu0 0
    %5770 = vmatpush1.bf16.xpose.msra.mxu0 0
    %5771 = vmatprep.subr.bf16.mxu0 0
    %5772 = vmatpush1.bf16.xpose.msra.mxu0 0
    %5773 = vmatprep.subr.bf16.mxu0 0
    %5774 = vmatpush1.bf16.xpose.msra.mxu0 0
    %5775 = vmatprep.subr.bf16.mxu0 0
    %5776 = vmatpush1.bf16.xpose.msra.mxu0 0
    %5777 = vmatprep.subr.bf16.mxu0 0
    %5778 = vmatpush1.bf16.xpose.msra.mxu0 0
    %5779 = vmatprep.subr.bf16.mxu0 0
    %5780 = vmatpush1.bf16.xpose.msra.mxu0 0
    %5781 = vmatprep.subr.bf16.mxu0 0
    %5782 = vmatpush1.bf16.xpose.msra.mxu0 0
    %5783 = vmatprep.subr.bf16.mxu0 0
    %5784 = vmatpush1.bf16.xpose.msra.mxu0 0
    %5785 = vmatprep.subr.bf16.mxu0 0
    %5786 = vmatpush1.bf16.xpose.msra.mxu0 0
    %5787 = vmatprep.subr.bf16.mxu0 0
    %5788 = vmatpush1.bf16.xpose.msra.mxu0 0
    %5789 = vmatprep.subr.bf16.mxu0 0
    %5790 = vmatpush1.bf16.xpose.msra.mxu0 0
    %5791 = vmatprep.subr.bf16.mxu0 0
    %5792 = vmatpush1.bf16.xpose.msra.mxu0 0
    %5793 = vmatprep.subr.bf16.mxu0 0
    %5794 = vmatpush1.bf16.xpose.msra.mxu0 0
    %5795 = vmatprep.subr.bf16.mxu0 0
    %5796 = vmatpush1.bf16.xpose.msra.mxu0 0
    %5797 = vmatprep.subr.bf16.mxu0 0
    %5798 = vmatpush1.bf16.xpose.msra.mxu0 0
    %5799 = vmatprep.mubr.bf16.mxu0 0
    %5800 = vmatmul.mubr.bf16.gmra.mrb[0].mxu0 %v5762
    %v5801 = vpop.f32.mrb[0].mxu0
    %v5802 = vadd.f32 0.0, %v5801
    %v5803 = vpop.f32.mrb[0].mxu0
    %v5804 = vpop.f32.mrb[0].mxu0
    %v5805 = vpop.f32.mrb[0].mxu0
    %5806 = vdwg.mxu0
    %v5807 = vsel %vm5561, %v5750, -inf
    %5808 = vmax.xlane.f32.xlu0 %v5807
    %v5809 = vpop.xlane.xlu0 %5808
    %v5810 = vsel %vm5561, %v5802, -inf
    %5811 = vmax.xlane.f32.xlu0 %v5810
    %v5812 = vpop.xlane.xlu0 %5811
    %v5813 = vsub.f32 %v5750, %v5809
    %v5814 = vsub.f32 %v5802, %v5812
    %v5815 = vmul.f32 %v5813, 1.442695
    %v5816 = vpow.pop %v5815
    %v5817 = vmul.f32 %v5814, 1.442695
    %v5818 = vpow.pop %v5817
    %v5819 = vsel %vm5561, %v5816, 0.0
    %5820 = vadd.xlane.f32.xlu0 %v5819
    %v5821 = vpop.xlane.xlu0 %5820
    %v5822 = vsel %vm5561, %v5818, 0.0
    %5823 = vadd.xlane.f32.xlu0 %v5822
    %v5824 = vpop.xlane.xlu0 %5823
    %v5825 = vrcp.pop %v5821
    %v5826 = vrcp.pop %v5824
    %v5827 = vmul.f32 %v5816, %v5825
    %v5828 = vmul.f32 %v5818, %v5826
    %v5829 = vpack.c.bf16 %v5827, %v5827
    %v5830 = vpack.c.bf16 %v5828, %v5828
    %5832 = vrot.lane.b32.xlu0 %v5458, 64
    %v5833 = vpop.permute.xlu0 %5832
    %v5835 = vsel %vm5561, %v5829, 0
    %v5838 = vsel %vm1795, %v5833, 0
    %5840 = vmatprep.subr.bf16.mxu0 0
    %5841 = vmatpush1.bf16.msra.mxu0 %v5838
    %5842 = vmatprep.subr.bf16.mxu0 0
    %5843 = vmatpush1.bf16.msra.mxu0 0
    %5844 = vmatprep.subr.bf16.mxu0 0
    %5845 = vmatpush1.bf16.msra.mxu0 0
    %5846 = vmatprep.subr.bf16.mxu0 0
    %5847 = vmatpush1.bf16.msra.mxu0 0
    %5848 = vmatprep.subr.bf16.mxu0 0
    %5849 = vmatpush1.bf16.msra.mxu0 0
    %5850 = vmatprep.subr.bf16.mxu0 0
    %5851 = vmatpush1.bf16.msra.mxu0 0
    %5852 = vmatprep.subr.bf16.mxu0 0
    %5853 = vmatpush1.bf16.msra.mxu0 0
    %5854 = vmatprep.subr.bf16.mxu0 0
    %5855 = vmatpush1.bf16.msra.mxu0 0
    %5856 = vmatprep.subr.bf16.mxu0 0
    %5857 = vmatpush1.bf16.msra.mxu0 0
    %5858 = vmatprep.subr.bf16.mxu0 0
    %5859 = vmatpush1.bf16.msra.mxu0 0
    %5860 = vmatprep.subr.bf16.mxu0 0
    %5861 = vmatpush1.bf16.msra.mxu0 0
    %5862 = vmatprep.subr.bf16.mxu0 0
    %5863 = vmatpush1.bf16.msra.mxu0 0
    %5864 = vmatprep.subr.bf16.mxu0 0
    %5865 = vmatpush1.bf16.msra.mxu0 0
    %5866 = vmatprep.subr.bf16.mxu0 0
    %5867 = vmatpush1.bf16.msra.mxu0 0
    %5868 = vmatprep.subr.bf16.mxu0 0
    %5869 = vmatpush1.bf16.msra.mxu0 0
    %5870 = vmatprep.subr.bf16.mxu0 0
    %5871 = vmatpush1.bf16.msra.mxu0 0
    %5872 = vmatprep.mubr.bf16.mxu0 0
    %5873 = vmatmul.mubr.bf16.gmra.mrb[0].mxu0 %v5835
    %v5874 = vpop.f32.mrb[0].mxu0
    %v5875 = vadd.f32 0.0, %v5874
    %v5876 = vpop.f32.mrb[0].mxu0
    %v5877 = vpop.f32.mrb[0].mxu0
    %v5878 = vpop.f32.mrb[0].mxu0
    %5879 = vdwg.mxu0
    %5881 = vrot.lane.b32.xlu0 %v5463, 64
    %v5882 = vpop.permute.xlu0 %5881
    %v5884 = vsel %vm5561, %v5830, 0
    %v5887 = vsel %vm1795, %v5882, 0
    %5889 = vmatprep.subr.bf16.mxu0 0
    %5890 = vmatpush1.bf16.msra.mxu0 %v5887
    %5891 = vmatprep.subr.bf16.mxu0 0
    %5892 = vmatpush1.bf16.msra.mxu0 0
    %5893 = vmatprep.subr.bf16.mxu0 0
    %5894 = vmatpush1.bf16.msra.mxu0 0
    %5895 = vmatprep.subr.bf16.mxu0 0
    %5896 = vmatpush1.bf16.msra.mxu0 0
    %5897 = vmatprep.subr.bf16.mxu0 0
    %5898 = vmatpush1.bf16.msra.mxu0 0
    %5899 = vmatprep.subr.bf16.mxu0 0
    %5900 = vmatpush1.bf16.msra.mxu0 0
    %5901 = vmatprep.subr.bf16.mxu0 0
    %5902 = vmatpush1.bf16.msra.mxu0 0
    %5903 = vmatprep.subr.bf16.mxu0 0
    %5904 = vmatpush1.bf16.msra.mxu0 0
    %5905 = vmatprep.subr.bf16.mxu0 0
    %5906 = vmatpush1.bf16.msra.mxu0 0
    %5907 = vmatprep.subr.bf16.mxu0 0
    %5908 = vmatpush1.bf16.msra.mxu0 0
    %5909 = vmatprep.subr.bf16.mxu0 0
    %5910 = vmatpush1.bf16.msra.mxu0 0
    %5911 = vmatprep.subr.bf16.mxu0 0
    %5912 = vmatpush1.bf16.msra.mxu0 0
    %5913 = vmatprep.subr.bf16.mxu0 0
    %5914 = vmatpush1.bf16.msra.mxu0 0
    %5915 = vmatprep.subr.bf16.mxu0 0
    %5916 = vmatpush1.bf16.msra.mxu0 0
    %5917 = vmatprep.subr.bf16.mxu0 0
    %5918 = vmatpush1.bf16.msra.mxu0 0
    %5919 = vmatprep.subr.bf16.mxu0 0
    %5920 = vmatpush1.bf16.msra.mxu0 0
    %5921 = vmatprep.mubr.bf16.mxu0 0
    %5922 = vmatmul.mubr.bf16.gmra.mrb[0].mxu0 %v5884
    %v5923 = vpop.f32.mrb[0].mxu0
    %v5924 = vadd.f32 0.0, %v5923
    %v5925 = vpop.f32.mrb[0].mxu0
    %v5926 = vpop.f32.mrb[0].mxu0
    %v5927 = vpop.f32.mrb[0].mxu0
    %5928 = vdwg.mxu0
    %v5929 = vpack.c.bf16 %v5924, %v5875
    %s5930 = scalar_lea.vmem [#allocation7], 160
    %v5931 = vld [vmem:[%s5930] sm:$0xff]
    %v5932 = vld [vmem:[%s5930 + $0x8] sm:$0xff]
    %v5933 = vld [vmem:[%s5930 + $0x10] sm:$0xf]
    %v5934 = vld [vmem:[%s5930 + $0x14] sm:$0xff]
    %v5935 = vld [vmem:[%s5930 + $0x1c] sm:$0xff]
    %v5936 = vld [vmem:[%s5930 + $0x24] sm:$0xf]
    %v5937 = vld [vmem:[%s5930 + $0x28] sm:$0xff]
    %v5938 = vld [vmem:[%s5930 + $0x30] sm:$0xff]
    %v5939 = vld [vmem:[%s5930 + $0x38] sm:$0xf]
    %v5940 = vld [vmem:[%s5930 + $0x3c] sm:$0xff]
    %v5941 = vld [vmem:[%s5930 + $0x44] sm:$0xff]
    %v5942 = vld [vmem:[%s5930 + $0x4c] sm:$0xf]
    %v5943 = vld [vmem:[%s5930 + $0x50] sm:$0xff]
    %v5944 = vld [vmem:[%s5930 + $0x58] sm:$0xff]
    %v5945 = vld [vmem:[%s5930 + $0x60] sm:$0xf]
    %v5946 = vld [vmem:[%s5930 + $0x64] sm:$0xff]
    %v5947 = vld [vmem:[%s5930 + $0x6c] sm:$0xff]
    %v5948 = vld [vmem:[%s5930 + $0x74] sm:$0xf]
    %v5949 = vld [vmem:[%s5930 + $0x78] sm:$0xff]
    %v5950 = vld [vmem:[%s5930 + $0x80] sm:$0xff]
    %v5951 = vld [vmem:[%s5930 + $0x88] sm:$0xf]
    %v5952 = vld [vmem:[%s5930 + $0x8c] sm:$0xff]
    %v5953 = vld [vmem:[%s5930 + $0x94] sm:$0xff]
    %v5954 = vld [vmem:[%s5930 + $0x9c] sm:$0xf]
    %v5979 = vunpack.c.l.b16 %v5931
    %v5980 = vunpack.c.h.b16 %v5931
    %v5981 = vunpack.c.l.b16 %v5932
    %v5982 = vunpack.c.h.b16 %v5932
    %v5983 = vunpack.c.l.b16 %v5933
    %v5984 = vunpack.c.l.b16 %v5934
    %v5985 = vunpack.c.h.b16 %v5934
    %v5986 = vunpack.c.l.b16 %v5935
    %v5987 = vunpack.c.h.b16 %v5935
    %v5988 = vunpack.c.l.b16 %v5936
    %v5989 = vunpack.c.l.b16 %v5937
    %v5990 = vunpack.c.h.b16 %v5937
    %v5991 = vunpack.c.l.b16 %v5938
    %v5992 = vunpack.c.h.b16 %v5938
    %v5993 = vunpack.c.l.b16 %v5939
    %v5994 = vunpack.c.l.b16 %v5940
    %v5995 = vunpack.c.h.b16 %v5940
    %v5996 = vunpack.c.l.b16 %v5941
    %v5997 = vunpack.c.h.b16 %v5941
    %v5998 = vunpack.c.l.b16 %v5942
    %v5999 = vunpack.c.l.b16 %v5943
    %v6000 = vunpack.c.h.b16 %v5943
    %v6001 = vunpack.c.l.b16 %v5944
    %v6002 = vunpack.c.h.b16 %v5944
    %v6003 = vunpack.c.l.b16 %v5945
    %v6004 = vunpack.c.l.b16 %v5946
    %v6005 = vunpack.c.h.b16 %v5946
    %v6006 = vunpack.c.l.b16 %v5947
    %v6007 = vunpack.c.h.b16 %v5947
    %v6008 = vunpack.c.l.b16 %v5948
    %v6009 = vunpack.c.l.b16 %v5949
    %v6010 = vunpack.c.h.b16 %v5949
    %v6011 = vunpack.c.l.b16 %v5950
    %v6012 = vunpack.c.h.b16 %v5950
    %v6013 = vunpack.c.l.b16 %v5951
    %v6014 = vunpack.c.l.b16 %v5952
    %v6015 = vunpack.c.h.b16 %v5952
    %v6016 = vunpack.c.l.b16 %v5953
    %v6017 = vunpack.c.h.b16 %v5953
    %v6018 = vunpack.c.l.b16 %v5954
    %v6019 = vpack.c.b16 %v5984, %v5979
    %v6020 = vpack.c.b16 %v5985, %v5980
    %v6021 = vpack.c.b16 %v5986, %v5981
    %v6022 = vpack.c.b16 %v5987, %v5982
    %v6023 = vpack.c.b16 %v5988, %v5983
    %v6024 = vpack.c.b16 %v5994, %v5989
    %v6025 = vpack.c.b16 %v5995, %v5990
    %v6026 = vpack.c.b16 %v5996, %v5991
    %v6027 = vpack.c.b16 %v5997, %v5992
    %v6028 = vpack.c.b16 %v5998, %v5993
    %v6029 = vpack.c.b16 %v6004, %v5999
    %v6030 = vpack.c.b16 %v6005, %v6000
    %v6031 = vpack.c.b16 %v6006, %v6001
    %v6032 = vpack.c.b16 %v6007, %v6002
    %v6033 = vpack.c.b16 %v6008, %v6003
    %v6034 = vpack.c.b16 %v6014, %v6009
    %v6035 = vpack.c.b16 %v6015, %v6010
    %v6036 = vpack.c.b16 %v6016, %v6011
    %v6037 = vpack.c.b16 %v6017, %v6012
    %v6038 = vpack.c.b16 %v6018, %v6013
    %v6060 = vsel %vm5468, %v5929, 0
    %6062 = vmatprep.subr.bf16.mxu0 %v6020
    %6063 = vmatpush1.bf16.msra.mxu0 %v6019
    %6064 = vmatprep.subr.bf16.mxu0 %v6025
    %6065 = vmatpush1.bf16.msra.mxu0 %v6024
    %6066 = vmatprep.subr.bf16.mxu0 %v6030
    %6067 = vmatpush1.bf16.msra.mxu0 %v6029
    %6068 = vmatprep.subr.bf16.mxu0 %v6035
    %6069 = vmatpush1.bf16.msra.mxu0 %v6034
    %6070 = vmatprep.subr.bf16.mxu0 0
    %6071 = vmatpush1.bf16.msra.mxu0 0
    %6072 = vmatprep.subr.bf16.mxu0 0
    %6073 = vmatpush1.bf16.msra.mxu0 0
    %6074 = vmatprep.subr.bf16.mxu0 0
    %6075 = vmatpush1.bf16.msra.mxu0 0
    %6076 = vmatprep.subr.bf16.mxu0 0
    %6077 = vmatpush1.bf16.msra.mxu0 0
    %6078 = vmatprep.subr.bf16.mxu0 0
    %6079 = vmatpush1.bf16.msra.mxu0 0
    %6080 = vmatprep.subr.bf16.mxu0 0
    %6081 = vmatpush1.bf16.msra.mxu0 0
    %6082 = vmatprep.subr.bf16.mxu0 0
    %6083 = vmatpush1.bf16.msra.mxu0 0
    %6084 = vmatprep.subr.bf16.mxu0 0
    %6085 = vmatpush1.bf16.msra.mxu0 0
    %6086 = vmatprep.subr.bf16.mxu0 0
    %6087 = vmatpush1.bf16.msra.mxu0 0
    %6088 = vmatprep.subr.bf16.mxu0 0
    %6089 = vmatpush1.bf16.msra.mxu0 0
    %6090 = vmatprep.subr.bf16.mxu0 0
    %6091 = vmatpush1.bf16.msra.mxu0 0
    %6092 = vmatprep.subr.bf16.mxu0 0
    %6093 = vmatpush1.bf16.msra.mxu0 0
    %6094 = vmatprep.mubr.bf16.mxu0 0
    %6095 = vmatmul.mubr.bf16.gmra.mrb[0].mxu0 %v6060
    %v6096 = vpop.f32.mrb[0].mxu0
    %v6097 = vadd.f32 0.0, %v6096
    %v6098 = vpop.f32.mrb[0].mxu0
    %v6099 = vadd.f32 0.0, %v6098
    %v6100 = vpop.f32.mrb[0].mxu0
    %v6101 = vadd.f32 0.0, %v6100
    %v6102 = vpop.f32.mrb[0].mxu0
    %v6103 = vadd.f32 0.0, %v6102
    %6104 = vdwg.mxu0
    %6105 = vmatprep.subr.bf16.mxu0 %v6022
    %6106 = vmatpush1.bf16.msra.mxu0 %v6021
    %6107 = vmatprep.subr.bf16.mxu0 %v6027
    %6108 = vmatpush1.bf16.msra.mxu0 %v6026
    %6109 = vmatprep.subr.bf16.mxu0 %v6032
    %6110 = vmatpush1.bf16.msra.mxu0 %v6031
    %6111 = vmatprep.subr.bf16.mxu0 %v6037
    %6112 = vmatpush1.bf16.msra.mxu0 %v6036
    %6113 = vmatprep.subr.bf16.mxu0 0
    %6114 = vmatpush1.bf16.msra.mxu0 0
    %6115 = vmatprep.subr.bf16.mxu0 0
    %6116 = vmatpush1.bf16.msra.mxu0 0
    %6117 = vmatprep.subr.bf16.mxu0 0
    %6118 = vmatpush1.bf16.msra.mxu0 0
    %6119 = vmatprep.subr.bf16.mxu0 0
    %6120 = vmatpush1.bf16.msra.mxu0 0
    %6121 = vmatprep.subr.bf16.mxu0 0
    %6122 = vmatpush1.bf16.msra.mxu0 0
    %6123 = vmatprep.subr.bf16.mxu0 0
    %6124 = vmatpush1.bf16.msra.mxu0 0
    %6125 = vmatprep.subr.bf16.mxu0 0
    %6126 = vmatpush1.bf16.msra.mxu0 0
    %6127 = vmatprep.subr.bf16.mxu0 0
    %6128 = vmatpush1.bf16.msra.mxu0 0
    %6129 = vmatprep.subr.bf16.mxu0 0
    %6130 = vmatpush1.bf16.msra.mxu0 0
    %6131 = vmatprep.subr.bf16.mxu0 0
    %6132 = vmatpush1.bf16.msra.mxu0 0
    %6133 = vmatprep.subr.bf16.mxu0 0
    %6134 = vmatpush1.bf16.msra.mxu0 0
    %6135 = vmatprep.subr.bf16.mxu0 0
    %6136 = vmatpush1.bf16.msra.mxu0 0
    %6137 = vmatprep.mubr.bf16.mxu0 0
    %6138 = vmatmul.mubr.bf16.gmra.mrb[0].mxu0 %v6060
    %v6139 = vpop.f32.mrb[0].mxu0
    %v6140 = vadd.f32 0.0, %v6139
    %v6141 = vpop.f32.mrb[0].mxu0
    %v6142 = vadd.f32 0.0, %v6141
    %v6143 = vpop.f32.mrb[0].mxu0
    %v6144 = vadd.f32 0.0, %v6143
    %v6145 = vpop.f32.mrb[0].mxu0
    %v6146 = vadd.f32 0.0, %v6145
    %6147 = vdwg.mxu0
    %6148 = vmatprep.subr.bf16.mxu0 0
    %6149 = vmatpush1.bf16.msra.mxu0 %v6023
    %6150 = vmatprep.subr.bf16.mxu0 0
    %6151 = vmatpush1.bf16.msra.mxu0 %v6028
    %6152 = vmatprep.subr.bf16.mxu0 0
    %6153 = vmatpush1.bf16.msra.mxu0 %v6033
    %6154 = vmatprep.subr.bf16.mxu0 0
    %6155 = vmatpush1.bf16.msra.mxu0 %v6038
    %6156 = vmatprep.subr.bf16.mxu0 0
    %6157 = vmatpush1.bf16.msra.mxu0 0
    %6158 = vmatprep.subr.bf16.mxu0 0
    %6159 = vmatpush1.bf16.msra.mxu0 0
    %6160 = vmatprep.subr.bf16.mxu0 0
    %6161 = vmatpush1.bf16.msra.mxu0 0
    %6162 = vmatprep.subr.bf16.mxu0 0
    %6163 = vmatpush1.bf16.msra.mxu0 0
    %6164 = vmatprep.subr.bf16.mxu0 0
    %6165 = vmatpush1.bf16.msra.mxu0 0
    %6166 = vmatprep.subr.bf16.mxu0 0
    %6167 = vmatpush1.bf16.msra.mxu0 0
    %6168 = vmatprep.subr.bf16.mxu0 0
    %6169 = vmatpush1.bf16.msra.mxu0 0
    %6170 = vmatprep.subr.bf16.mxu0 0
    %6171 = vmatpush1.bf16.msra.mxu0 0
    %6172 = vmatprep.subr.bf16.mxu0 0
    %6173 = vmatpush1.bf16.msra.mxu0 0
    %6174 = vmatprep.subr.bf16.mxu0 0
    %6175 = vmatpush1.bf16.msra.mxu0 0
    %6176 = vmatprep.subr.bf16.mxu0 0
    %6177 = vmatpush1.bf16.msra.mxu0 0
    %6178 = vmatprep.subr.bf16.mxu0 0
    %6179 = vmatpush1.bf16.msra.mxu0 0
    %6180 = vmatprep.mubr.bf16.mxu0 0
    %6181 = vmatmul.mubr.bf16.gmra.mrb[0].mxu0 %v6060
    %v6182 = vpop.f32.mrb[0].mxu0
    %v6183 = vadd.f32 0.0, %v6182
    %v6184 = vpop.f32.mrb[0].mxu0
    %v6185 = vpop.f32.mrb[0].mxu0
    %v6186 = vadd.f32 0.0, %v6185
    %v6187 = vpop.f32.mrb[0].mxu0
    %6188 = vdwg.mxu0
    %v6213 = vunpack.c.l.b16 %v5679
    %v6214 = vunpack.c.h.b16 %v5679
    %v6215 = vunpack.c.l.b16 %v5680
    %v6216 = vunpack.c.h.b16 %v5680
    %v6217 = vunpack.c.l.b16 %v5681
    %v6218 = vunpack.c.l.b16 %v5682
    %v6219 = vunpack.c.h.b16 %v5682
    %v6220 = vunpack.c.l.b16 %v5683
    %v6221 = vunpack.c.h.b16 %v5683
    %v6222 = vunpack.c.l.b16 %v5684
    %v6223 = vunpack.c.l.b16 %v5685
    %v6224 = vunpack.c.h.b16 %v5685
    %v6225 = vunpack.c.l.b16 %v5686
    %v6226 = vunpack.c.h.b16 %v5686
    %v6227 = vunpack.c.l.b16 %v5687
    %v6228 = vunpack.c.l.b16 %v5688
    %v6229 = vunpack.c.h.b16 %v5688
    %v6230 = vunpack.c.l.b16 %v5689
    %v6231 = vunpack.c.h.b16 %v5689
    %v6232 = vunpack.c.l.b16 %v5690
    %v6233 = vunpack.c.l.b16 %v5691
    %v6234 = vunpack.c.h.b16 %v5691
    %v6235 = vunpack.c.l.b16 %v5692
    %v6236 = vunpack.c.h.b16 %v5692
    %v6237 = vunpack.c.l.b16 %v5693
    %v6238 = vunpack.c.l.b16 %v5694
    %v6239 = vunpack.c.h.b16 %v5694
    %v6240 = vunpack.c.l.b16 %v5695
    %v6241 = vunpack.c.h.b16 %v5695
    %v6242 = vunpack.c.l.b16 %v5696
    %v6243 = vunpack.c.l.b16 %v5697
    %v6244 = vunpack.c.h.b16 %v5697
    %v6245 = vunpack.c.l.b16 %v5698
    %v6246 = vunpack.c.h.b16 %v5698
    %v6247 = vunpack.c.l.b16 %v5699
    %v6248 = vunpack.c.l.b16 %v5700
    %v6249 = vunpack.c.h.b16 %v5700
    %v6250 = vunpack.c.l.b16 %v5701
    %v6251 = vunpack.c.h.b16 %v5701
    %v6252 = vunpack.c.l.b16 %v5702
    %v6253 = vpack.c.b16 %v6218, %v6213
    %v6254 = vpack.c.b16 %v6219, %v6214
    %v6255 = vpack.c.b16 %v6220, %v6215
    %v6256 = vpack.c.b16 %v6221, %v6216
    %v6257 = vpack.c.b16 %v6222, %v6217
    %v6258 = vpack.c.b16 %v6228, %v6223
    %v6259 = vpack.c.b16 %v6229, %v6224
    %v6260 = vpack.c.b16 %v6230, %v6225
    %v6261 = vpack.c.b16 %v6231, %v6226
    %v6262 = vpack.c.b16 %v6232, %v6227
    %v6263 = vpack.c.b16 %v6238, %v6233
    %v6264 = vpack.c.b16 %v6239, %v6234
    %v6265 = vpack.c.b16 %v6240, %v6235
    %v6266 = vpack.c.b16 %v6241, %v6236
    %v6267 = vpack.c.b16 %v6242, %v6237
    %v6268 = vpack.c.b16 %v6248, %v6243
    %v6269 = vpack.c.b16 %v6249, %v6244
    %v6270 = vpack.c.b16 %v6250, %v6245
    %v6271 = vpack.c.b16 %v6251, %v6246
    %v6272 = vpack.c.b16 %v6252, %v6247
    %v6294 = vsel %vm5468, %v5678, 0
    %6296 = vmatprep.subr.bf16.mxu0 %v6254
    %6297 = vmatpush1.bf16.msra.mxu0 %v6253
    %6298 = vmatprep.subr.bf16.mxu0 %v6259
    %6299 = vmatpush1.bf16.msra.mxu0 %v6258
    %6300 = vmatprep.subr.bf16.mxu0 %v6264
    %6301 = vmatpush1.bf16.msra.mxu0 %v6263
    %6302 = vmatprep.subr.bf16.mxu0 %v6269
    %6303 = vmatpush1.bf16.msra.mxu0 %v6268
    %6304 = vmatprep.subr.bf16.mxu0 0
    %6305 = vmatpush1.bf16.msra.mxu0 0
    %6306 = vmatprep.subr.bf16.mxu0 0
    %6307 = vmatpush1.bf16.msra.mxu0 0
    %6308 = vmatprep.subr.bf16.mxu0 0
    %6309 = vmatpush1.bf16.msra.mxu0 0
    %6310 = vmatprep.subr.bf16.mxu0 0
    %6311 = vmatpush1.bf16.msra.mxu0 0
    %6312 = vmatprep.subr.bf16.mxu0 0
    %6313 = vmatpush1.bf16.msra.mxu0 0
    %6314 = vmatprep.subr.bf16.mxu0 0
    %6315 = vmatpush1.bf16.msra.mxu0 0
    %6316 = vmatprep.subr.bf16.mxu0 0
    %6317 = vmatpush1.bf16.msra.mxu0 0
    %6318 = vmatprep.subr.bf16.mxu0 0
    %6319 = vmatpush1.bf16.msra.mxu0 0
    %6320 = vmatprep.subr.bf16.mxu0 0
    %6321 = vmatpush1.bf16.msra.mxu0 0
    %6322 = vmatprep.subr.bf16.mxu0 0
    %6323 = vmatpush1.bf16.msra.mxu0 0
    %6324 = vmatprep.subr.bf16.mxu0 0
    %6325 = vmatpush1.bf16.msra.mxu0 0
    %6326 = vmatprep.subr.bf16.mxu0 0
    %6327 = vmatpush1.bf16.msra.mxu0 0
    %6328 = vmatprep.mubr.bf16.mxu0 0
    %6329 = vmatmul.mubr.bf16.gmra.mrb[0].mxu0 %v6294
    %v6330 = vpop.f32.mrb[0].mxu0
    %v6331 = vadd.f32 %v6097, %v6330
    %v6332 = vpop.f32.mrb[0].mxu0
    %v6333 = vadd.f32 %v6099, %v6332
    %v6334 = vpop.f32.mrb[0].mxu0
    %v6335 = vadd.f32 %v6101, %v6334
    %v6336 = vpop.f32.mrb[0].mxu0
    %v6337 = vadd.f32 %v6103, %v6336
    %6338 = vdwg.mxu0
    %6339 = vmatprep.subr.bf16.mxu0 %v6256
    %6340 = vmatpush1.bf16.msra.mxu0 %v6255
    %6341 = vmatprep.subr.bf16.mxu0 %v6261
    %6342 = vmatpush1.bf16.msra.mxu0 %v6260
    %6343 = vmatprep.subr.bf16.mxu0 %v6266
    %6344 = vmatpush1.bf16.msra.mxu0 %v6265
    %6345 = vmatprep.subr.bf16.mxu0 %v6271
    %6346 = vmatpush1.bf16.msra.mxu0 %v6270
    %6347 = vmatprep.subr.bf16.mxu0 0
    %6348 = vmatpush1.bf16.msra.mxu0 0
    %6349 = vmatprep.subr.bf16.mxu0 0
    %6350 = vmatpush1.bf16.msra.mxu0 0
    %6351 = vmatprep.subr.bf16.mxu0 0
    %6352 = vmatpush1.bf16.msra.mxu0 0
    %6353 = vmatprep.subr.bf16.mxu0 0
    %6354 = vmatpush1.bf16.msra.mxu0 0
    %6355 = vmatprep.subr.bf16.mxu0 0
    %6356 = vmatpush1.bf16.msra.mxu0 0
    %6357 = vmatprep.subr.bf16.mxu0 0
    %6358 = vmatpush1.bf16.msra.mxu0 0
    %6359 = vmatprep.subr.bf16.mxu0 0
    %6360 = vmatpush1.bf16.msra.mxu0 0
    %6361 = vmatprep.subr.bf16.mxu0 0
    %6362 = vmatpush1.bf16.msra.mxu0 0
    %6363 = vmatprep.subr.bf16.mxu0 0
    %6364 = vmatpush1.bf16.msra.mxu0 0
    %6365 = vmatprep.subr.bf16.mxu0 0
    %6366 = vmatpush1.bf16.msra.mxu0 0
    %6367 = vmatprep.subr.bf16.mxu0 0
    %6368 = vmatpush1.bf16.msra.mxu0 0
    %6369 = vmatprep.subr.bf16.mxu0 0
    %6370 = vmatpush1.bf16.msra.mxu0 0
    %6371 = vmatprep.mubr.bf16.mxu0 0
    %6372 = vmatmul.mubr.bf16.gmra.mrb[0].mxu0 %v6294
    %v6373 = vpop.f32.mrb[0].mxu0
    %v6374 = vadd.f32 %v6140, %v6373
    %v6375 = vpop.f32.mrb[0].mxu0
    %v6376 = vadd.f32 %v6142, %v6375
    %v6377 = vpop.f32.mrb[0].mxu0
    %v6378 = vadd.f32 %v6144, %v6377
    %v6379 = vpop.f32.mrb[0].mxu0
    %v6380 = vadd.f32 %v6146, %v6379
    %6381 = vdwg.mxu0
    %6382 = vmatprep.subr.bf16.mxu0 0
    %6383 = vmatpush1.bf16.msra.mxu0 %v6257
    %6384 = vmatprep.subr.bf16.mxu0 0
    %6385 = vmatpush1.bf16.msra.mxu0 %v6262
    %6386 = vmatprep.subr.bf16.mxu0 0
    %6387 = vmatpush1.bf16.msra.mxu0 %v6267
    %6388 = vmatprep.subr.bf16.mxu0 0
    %6389 = vmatpush1.bf16.msra.mxu0 %v6272
    %6390 = vmatprep.subr.bf16.mxu0 0
    %6391 = vmatpush1.bf16.msra.mxu0 0
    %6392 = vmatprep.subr.bf16.mxu0 0
    %6393 = vmatpush1.bf16.msra.mxu0 0
    %6394 = vmatprep.subr.bf16.mxu0 0
    %6395 = vmatpush1.bf16.msra.mxu0 0
    %6396 = vmatprep.subr.bf16.mxu0 0
    %6397 = vmatpush1.bf16.msra.mxu0 0
    %6398 = vmatprep.subr.bf16.mxu0 0
    %6399 = vmatpush1.bf16.msra.mxu0 0
    %6400 = vmatprep.subr.bf16.mxu0 0
    %6401 = vmatpush1.bf16.msra.mxu0 0
    %6402 = vmatprep.subr.bf16.mxu0 0
    %6403 = vmatpush1.bf16.msra.mxu0 0
    %6404 = vmatprep.subr.bf16.mxu0 0
    %6405 = vmatpush1.bf16.msra.mxu0 0
    %6406 = vmatprep.subr.bf16.mxu0 0
    %6407 = vmatpush1.bf16.msra.mxu0 0
    %6408 = vmatprep.subr.bf16.mxu0 0
    %6409 = vmatpush1.bf16.msra.mxu0 0
    %6410 = vmatprep.subr.bf16.mxu0 0
    %6411 = vmatpush1.bf16.msra.mxu0 0
    %6412 = vmatprep.subr.bf16.mxu0 0
    %6413 = vmatpush1.bf16.msra.mxu0 0
    %6414 = vmatprep.mubr.bf16.mxu0 0
    %6415 = vmatmul.mubr.bf16.gmra.mrb[0].mxu0 %v6294
    %v6416 = vpop.f32.mrb[0].mxu0
    %v6417 = vadd.f32 %v6183, %v6416
    %v6418 = vpop.f32.mrb[0].mxu0
    %v6419 = vpop.f32.mrb[0].mxu0
    %v6420 = vadd.f32 %v6186, %v6419
    %v6421 = vpop.f32.mrb[0].mxu0
    %6422 = vdwg.mxu0
    %v6424 = vsel %vm5468, %v5439, 0
    %v6427 = vsel %vm5468, %v5449, 0
    %6429 = vmatprep.subr.bf16.mxu0 0
    %6430 = vmatpush1.bf16.xpose.msra.mxu0 %v6427
    %6431 = vmatprep.subr.bf16.mxu0 0
    %6432 = vmatpush1.bf16.xpose.msra.mxu0 0
    %6433 = vmatprep.subr.bf16.mxu0 0
    %6434 = vmatpush1.bf16.xpose.msra.mxu0 0
    %6435 = vmatprep.subr.bf16.mxu0 0
    %6436 = vmatpush1.bf16.xpose.msra.mxu0 0
    %6437 = vmatprep.subr.bf16.mxu0 0
    %6438 = vmatpush1.bf16.xpose.msra.mxu0 0
    %6439 = vmatprep.subr.bf16.mxu0 0
    %6440 = vmatpush1.bf16.xpose.msra.mxu0 0
    %6441 = vmatprep.subr.bf16.mxu0 0
    %6442 = vmatpush1.bf16.xpose.msra.mxu0 0
    %6443 = vmatprep.subr.bf16.mxu0 0
    %6444 = vmatpush1.bf16.xpose.msra.mxu0 0
    %6445 = vmatprep.subr.bf16.mxu0 0
    %6446 = vmatpush1.bf16.xpose.msra.mxu0 0
    %6447 = vmatprep.subr.bf16.mxu0 0
    %6448 = vmatpush1.bf16.xpose.msra.mxu0 0
    %6449 = vmatprep.subr.bf16.mxu0 0
    %6450 = vmatpush1.bf16.xpose.msra.mxu0 0
    %6451 = vmatprep.subr.bf16.mxu0 0
    %6452 = vmatpush1.bf16.xpose.msra.mxu0 0
    %6453 = vmatprep.subr.bf16.mxu0 0
    %6454 = vmatpush1.bf16.xpose.msra.mxu0 0
    %6455 = vmatprep.subr.bf16.mxu0 0
    %6456 = vmatpush1.bf16.xpose.msra.mxu0 0
    %6457 = vmatprep.subr.bf16.mxu0 0
    %6458 = vmatpush1.bf16.xpose.msra.mxu0 0
    %6459 = vmatprep.subr.bf16.mxu0 0
    %6460 = vmatpush1.bf16.xpose.msra.mxu0 0
    %6461 = vmatprep.mubr.bf16.mxu0 0
    %6462 = vmatmul.mubr.bf16.gmra.mrb[0].mxu0 %v6424
    %v6463 = vpop.f32.mrb[0].mxu0
    %v6464 = vadd.f32 0.0, %v6463
    %v6465 = vpop.f32.mrb[0].mxu0
    %v6466 = vpop.f32.mrb[0].mxu0
    %v6467 = vpop.f32.mrb[0].mxu0
    %6468 = vdwg.mxu0
    %v6470 = vsel %vm5468, %v5444, 0
    %v6473 = vsel %vm5468, %v5454, 0
    %6475 = vmatprep.subr.bf16.mxu0 0
    %6476 = vmatpush1.bf16.xpose.msra.mxu0 %v6473
    %6477 = vmatprep.subr.bf16.mxu0 0
    %6478 = vmatpush1.bf16.xpose.msra.mxu0 0
    %6479 = vmatprep.subr.bf16.mxu0 0
    %6480 = vmatpush1.bf16.xpose.msra.mxu0 0
    %6481 = vmatprep.subr.bf16.mxu0 0
    %6482 = vmatpush1.bf16.xpose.msra.mxu0 0
    %6483 = vmatprep.subr.bf16.mxu0 0
    %6484 = vmatpush1.bf16.xpose.msra.mxu0 0
    %6485 = vmatprep.subr.bf16.mxu0 0
    %6486 = vmatpush1.bf16.xpose.msra.mxu0 0
    %6487 = vmatprep.subr.bf16.mxu0 0
    %6488 = vmatpush1.bf16.xpose.msra.mxu0 0
    %6489 = vmatprep.subr.bf16.mxu0 0
    %6490 = vmatpush1.bf16.xpose.msra.mxu0 0
    %6491 = vmatprep.subr.bf16.mxu0 0
    %6492 = vmatpush1.bf16.xpose.msra.mxu0 0
    %6493 = vmatprep.subr.bf16.mxu0 0
    %6494 = vmatpush1.bf16.xpose.msra.mxu0 0
    %6495 = vmatprep.subr.bf16.mxu0 0
    %6496 = vmatpush1.bf16.xpose.msra.mxu0 0
    %6497 = vmatprep.subr.bf16.mxu0 0
    %6498 = vmatpush1.bf16.xpose.msra.mxu0 0
    %6499 = vmatprep.subr.bf16.mxu0 0
    %6500 = vmatpush1.bf16.xpose.msra.mxu0 0
    %6501 = vmatprep.subr.bf16.mxu0 0
    %6502 = vmatpush1.bf16.xpose.msra.mxu0 0
    %6503 = vmatprep.subr.bf16.mxu0 0
    %6504 = vmatpush1.bf16.xpose.msra.mxu0 0
    %6505 = vmatprep.subr.bf16.mxu0 0
    %6506 = vmatpush1.bf16.xpose.msra.mxu0 0
    %6507 = vmatprep.mubr.bf16.mxu0 0
    %6508 = vmatmul.mubr.bf16.gmra.mrb[0].mxu0 %v6470
    %v6509 = vpop.f32.mrb[0].mxu0
    %v6510 = vadd.f32 0.0, %v6509
    %v6511 = vpop.f32.mrb[0].mxu0
    %v6512 = vpop.f32.mrb[0].mxu0
    %v6513 = vpop.f32.mrb[0].mxu0
    %6514 = vdwg.mxu0
    %v6515 = vsel %vm5561, %v6464, -inf
    %6516 = vmax.xlane.f32.xlu0 %v6515
    %v6517 = vpop.xlane.xlu0 %6516
    %v6518 = vsel %vm5561, %v6510, -inf
    %6519 = vmax.xlane.f32.xlu0 %v6518
    %v6520 = vpop.xlane.xlu0 %6519
    %v6521 = vsub.f32 %v6464, %v6517
    %v6522 = vsub.f32 %v6510, %v6520
    %v6523 = vmul.f32 %v6521, 1.442695
    %v6524 = vpow.pop %v6523
    %v6525 = vmul.f32 %v6522, 1.442695
    %v6526 = vpow.pop %v6525
    %v6527 = vsel %vm5561, %v6524, 0.0
    %6528 = vadd.xlane.f32.xlu0 %v6527
    %v6529 = vpop.xlane.xlu0 %6528
    %v6530 = vsel %vm5561, %v6526, 0.0
    %6531 = vadd.xlane.f32.xlu0 %v6530
    %v6532 = vpop.xlane.xlu0 %6531
    %v6533 = vrcp.pop %v6529
    %v6534 = vrcp.pop %v6532
    %v6535 = vmul.f32 %v6524, %v6533
    %v6536 = vmul.f32 %v6526, %v6534
    %v6537 = vpack.c.bf16 %v6535, %v6535
    %v6538 = vpack.c.bf16 %v6536, %v6536
    %v6540 = vsel %vm5561, %v6537, 0
    %v6543 = vsel %vm1795, %v5459, 0
    %6545 = vmatprep.subr.bf16.mxu0 0
    %6546 = vmatpush1.bf16.msra.mxu0 %v6543
    %6547 = vmatprep.subr.bf16.mxu0 0
    %6548 = vmatpush1.bf16.msra.mxu0 0
    %6549 = vmatprep.subr.bf16.mxu0 0
    %6550 = vmatpush1.bf16.msra.mxu0 0
    %6551 = vmatprep.subr.bf16.mxu0 0
    %6552 = vmatpush1.bf16.msra.mxu0 0
    %6553 = vmatprep.subr.bf16.mxu0 0
    %6554 = vmatpush1.bf16.msra.mxu0 0
    %6555 = vmatprep.subr.bf16.mxu0 0
    %6556 = vmatpush1.bf16.msra.mxu0 0
    %6557 = vmatprep.subr.bf16.mxu0 0
    %6558 = vmatpush1.bf16.msra.mxu0 0
    %6559 = vmatprep.subr.bf16.mxu0 0
    %6560 = vmatpush1.bf16.msra.mxu0 0
    %6561 = vmatprep.subr.bf16.mxu0 0
    %6562 = vmatpush1.bf16.msra.mxu0 0
    %6563 = vmatprep.subr.bf16.mxu0 0
    %6564 = vmatpush1.bf16.msra.mxu0 0
    %6565 = vmatprep.subr.bf16.mxu0 0
    %6566 = vmatpush1.bf16.msra.mxu0 0
    %6567 = vmatprep.subr.bf16.mxu0 0
    %6568 = vmatpush1.bf16.msra.mxu0 0
    %6569 = vmatprep.subr.bf16.mxu0 0
    %6570 = vmatpush1.bf16.msra.mxu0 0
    %6571 = vmatprep.subr.bf16.mxu0 0
    %6572 = vmatpush1.bf16.msra.mxu0 0
    %6573 = vmatprep.subr.bf16.mxu0 0
    %6574 = vmatpush1.bf16.msra.mxu0 0
    %6575 = vmatprep.subr.bf16.mxu0 0
    %6576 = vmatpush1.bf16.msra.mxu0 0
    %6577 = vmatprep.mubr.bf16.mxu0 0
    %6578 = vmatmul.mubr.bf16.gmra.mrb[0].mxu0 %v6540
    %v6579 = vpop.f32.mrb[0].mxu0
    %v6580 = vadd.f32 0.0, %v6579
    %v6581 = vpop.f32.mrb[0].mxu0
    %v6582 = vpop.f32.mrb[0].mxu0
    %v6583 = vpop.f32.mrb[0].mxu0
    %6584 = vdwg.mxu0
    %v6586 = vsel %vm5561, %v6538, 0
    %v6589 = vsel %vm1795, %v5464, 0
    %6591 = vmatprep.subr.bf16.mxu0 0
    %6592 = vmatpush1.bf16.msra.mxu0 %v6589
    %6593 = vmatprep.subr.bf16.mxu0 0
    %6594 = vmatpush1.bf16.msra.mxu0 0
    %6595 = vmatprep.subr.bf16.mxu0 0
    %6596 = vmatpush1.bf16.msra.mxu0 0
    %6597 = vmatprep.subr.bf16.mxu0 0
    %6598 = vmatpush1.bf16.msra.mxu0 0
    %6599 = vmatprep.subr.bf16.mxu0 0
    %6600 = vmatpush1.bf16.msra.mxu0 0
    %6601 = vmatprep.subr.bf16.mxu0 0
    %6602 = vmatpush1.bf16.msra.mxu0 0
    %6603 = vmatprep.subr.bf16.mxu0 0
    %6604 = vmatpush1.bf16.msra.mxu0 0
    %6605 = vmatprep.subr.bf16.mxu0 0
    %6606 = vmatpush1.bf16.msra.mxu0 0
    %6607 = vmatprep.subr.bf16.mxu0 0
    %6608 = vmatpush1.bf16.msra.mxu0 0
    %6609 = vmatprep.subr.bf16.mxu0 0
    %6610 = vmatpush1.bf16.msra.mxu0 0
    %6611 = vmatprep.subr.bf16.mxu0 0
    %6612 = vmatpush1.bf16.msra.mxu0 0
    %6613 = vmatprep.subr.bf16.mxu0 0
    %6614 = vmatpush1.bf16.msra.mxu0 0
    %6615 = vmatprep.subr.bf16.mxu0 0
    %6616 = vmatpush1.bf16.msra.mxu0 0
    %6617 = vmatprep.subr.bf16.mxu0 0
    %6618 = vmatpush1.bf16.msra.mxu0 0
    %6619 = vmatprep.subr.bf16.mxu0 0
    %6620 = vmatpush1.bf16.msra.mxu0 0
    %6621 = vmatprep.subr.bf16.mxu0 0
    %6622 = vmatpush1.bf16.msra.mxu0 0
    %6623 = vmatprep.mubr.bf16.mxu0 0
    %6624 = vmatmul.mubr.bf16.gmra.mrb[0].mxu0 %v6586
    %v6625 = vpop.f32.mrb[0].mxu0
    %v6626 = vadd.f32 0.0, %v6625
    %v6627 = vpop.f32.mrb[0].mxu0
    %v6628 = vpop.f32.mrb[0].mxu0
    %v6629 = vpop.f32.mrb[0].mxu0
    %6630 = vdwg.mxu0
    %v6631 = vpack.c.bf16 %v6626, %v6580
    %s6632 = scalar_lea.vmem [#allocation7], 320
    %v6633 = vld [vmem:[%s6632] sm:$0xff]
    %v6634 = vld [vmem:[%s6632 + $0x8] sm:$0xff]
    %v6635 = vld [vmem:[%s6632 + $0x10] sm:$0xf]
    %v6636 = vld [vmem:[%s6632 + $0x14] sm:$0xff]
    %v6637 = vld [vmem:[%s6632 + $0x1c] sm:$0xff]
    %v6638 = vld [vmem:[%s6632 + $0x24] sm:$0xf]
    %v6639 = vld [vmem:[%s6632 + $0x28] sm:$0xff]
    %v6640 = vld [vmem:[%s6632 + $0x30] sm:$0xff]
    %v6641 = vld [vmem:[%s6632 + $0x38] sm:$0xf]
    %v6642 = vld [vmem:[%s6632 + $0x3c] sm:$0xff]
    %v6643 = vld [vmem:[%s6632 + $0x44] sm:$0xff]
    %v6644 = vld [vmem:[%s6632 + $0x4c] sm:$0xf]
    %v6645 = vld [vmem:[%s6632 + $0x50] sm:$0xff]
    %v6646 = vld [vmem:[%s6632 + $0x58] sm:$0xff]
    %v6647 = vld [vmem:[%s6632 + $0x60] sm:$0xf]
    %v6648 = vld [vmem:[%s6632 + $0x64] sm:$0xff]
    %v6649 = vld [vmem:[%s6632 + $0x6c] sm:$0xff]
    %v6650 = vld [vmem:[%s6632 + $0x74] sm:$0xf]
    %v6651 = vld [vmem:[%s6632 + $0x78] sm:$0xff]
    %v6652 = vld [vmem:[%s6632 + $0x80] sm:$0xff]
    %v6653 = vld [vmem:[%s6632 + $0x88] sm:$0xf]
    %v6654 = vld [vmem:[%s6632 + $0x8c] sm:$0xff]
    %v6655 = vld [vmem:[%s6632 + $0x94] sm:$0xff]
    %v6656 = vld [vmem:[%s6632 + $0x9c] sm:$0xf]
    %v6681 = vunpack.c.l.b16 %v6633
    %v6682 = vunpack.c.h.b16 %v6633
    %v6683 = vunpack.c.l.b16 %v6634
    %v6684 = vunpack.c.h.b16 %v6634
    %v6685 = vunpack.c.l.b16 %v6635
    %v6686 = vunpack.c.l.b16 %v6636
    %v6687 = vunpack.c.h.b16 %v6636
    %v6688 = vunpack.c.l.b16 %v6637
    %v6689 = vunpack.c.h.b16 %v6637
    %v6690 = vunpack.c.l.b16 %v6638
    %v6691 = vunpack.c.l.b16 %v6639
    %v6692 = vunpack.c.h.b16 %v6639
    %v6693 = vunpack.c.l.b16 %v6640
    %v6694 = vunpack.c.h.b16 %v6640
    %v6695 = vunpack.c.l.b16 %v6641
    %v6696 = vunpack.c.l.b16 %v6642
    %v6697 = vunpack.c.h.b16 %v6642
    %v6698 = vunpack.c.l.b16 %v6643
    %v6699 = vunpack.c.h.b16 %v6643
    %v6700 = vunpack.c.l.b16 %v6644
    %v6701 = vunpack.c.l.b16 %v6645
    %v6702 = vunpack.c.h.b16 %v6645
    %v6703 = vunpack.c.l.b16 %v6646
    %v6704 = vunpack.c.h.b16 %v6646
    %v6705 = vunpack.c.l.b16 %v6647
    %v6706 = vunpack.c.l.b16 %v6648
    %v6707 = vunpack.c.h.b16 %v6648
    %v6708 = vunpack.c.l.b16 %v6649
    %v6709 = vunpack.c.h.b16 %v6649
    %v6710 = vunpack.c.l.b16 %v6650
    %v6711 = vunpack.c.l.b16 %v6651
    %v6712 = vunpack.c.h.b16 %v6651
    %v6713 = vunpack.c.l.b16 %v6652
    %v6714 = vunpack.c.h.b16 %v6652
    %v6715 = vunpack.c.l.b16 %v6653
    %v6716 = vunpack.c.l.b16 %v6654
    %v6717 = vunpack.c.h.b16 %v6654
    %v6718 = vunpack.c.l.b16 %v6655
    %v6719 = vunpack.c.h.b16 %v6655
    %v6720 = vunpack.c.l.b16 %v6656
    %v6721 = vpack.c.b16 %v6686, %v6681
    %v6722 = vpack.c.b16 %v6687, %v6682
    %v6723 = vpack.c.b16 %v6688, %v6683
    %v6724 = vpack.c.b16 %v6689, %v6684
    %v6725 = vpack.c.b16 %v6690, %v6685
    %v6726 = vpack.c.b16 %v6696, %v6691
    %v6727 = vpack.c.b16 %v6697, %v6692
    %v6728 = vpack.c.b16 %v6698, %v6693
    %v6729 = vpack.c.b16 %v6699, %v6694
    %v6730 = vpack.c.b16 %v6700, %v6695
    %v6731 = vpack.c.b16 %v6706, %v6701
    %v6732 = vpack.c.b16 %v6707, %v6702
    %v6733 = vpack.c.b16 %v6708, %v6703
    %v6734 = vpack.c.b16 %v6709, %v6704
    %v6735 = vpack.c.b16 %v6710, %v6705
    %v6736 = vpack.c.b16 %v6716, %v6711
    %v6737 = vpack.c.b16 %v6717, %v6712
    %v6738 = vpack.c.b16 %v6718, %v6713
    %v6739 = vpack.c.b16 %v6719, %v6714
    %v6740 = vpack.c.b16 %v6720, %v6715
    %v6762 = vsel %vm5468, %v6631, 0
    %6764 = vmatprep.subr.bf16.mxu0 %v6722
    %6765 = vmatpush1.bf16.msra.mxu0 %v6721
    %6766 = vmatprep.subr.bf16.mxu0 %v6727
    %6767 = vmatpush1.bf16.msra.mxu0 %v6726
    %6768 = vmatprep.subr.bf16.mxu0 %v6732
    %6769 = vmatpush1.bf16.msra.mxu0 %v6731
    %6770 = vmatprep.subr.bf16.mxu0 %v6737
    %6771 = vmatpush1.bf16.msra.mxu0 %v6736
    %6772 = vmatprep.subr.bf16.mxu0 0
    %6773 = vmatpush1.bf16.msra.mxu0 0
    %6774 = vmatprep.subr.bf16.mxu0 0
    %6775 = vmatpush1.bf16.msra.mxu0 0
    %6776 = vmatprep.subr.bf16.mxu0 0
    %6777 = vmatpush1.bf16.msra.mxu0 0
    %6778 = vmatprep.subr.bf16.mxu0 0
    %6779 = vmatpush1.bf16.msra.mxu0 0
    %6780 = vmatprep.subr.bf16.mxu0 0
    %6781 = vmatpush1.bf16.msra.mxu0 0
    %6782 = vmatprep.subr.bf16.mxu0 0
    %6783 = vmatpush1.bf16.msra.mxu0 0
    %6784 = vmatprep.subr.bf16.mxu0 0
    %6785 = vmatpush1.bf16.msra.mxu0 0
    %6786 = vmatprep.subr.bf16.mxu0 0
    %6787 = vmatpush1.bf16.msra.mxu0 0
    %6788 = vmatprep.subr.bf16.mxu0 0
    %6789 = vmatpush1.bf16.msra.mxu0 0
    %6790 = vmatprep.subr.bf16.mxu0 0
    %6791 = vmatpush1.bf16.msra.mxu0 0
    %6792 = vmatprep.subr.bf16.mxu0 0
    %6793 = vmatpush1.bf16.msra.mxu0 0
    %6794 = vmatprep.subr.bf16.mxu0 0
    %6795 = vmatpush1.bf16.msra.mxu0 0
    %6796 = vmatprep.mubr.bf16.mxu0 0
    %6797 = vmatmul.mubr.bf16.gmra.mrb[0].mxu0 %v6762
    %v6798 = vpop.f32.mrb[0].mxu0
    %v6799 = vadd.f32 0.0, %v6798
    %v6800 = vpop.f32.mrb[0].mxu0
    %v6801 = vadd.f32 0.0, %v6800
    %v6802 = vpop.f32.mrb[0].mxu0
    %v6803 = vadd.f32 0.0, %v6802
    %v6804 = vpop.f32.mrb[0].mxu0
    %v6805 = vadd.f32 0.0, %v6804
    %6806 = vdwg.mxu0
    %6807 = vmatprep.subr.bf16.mxu0 %v6724
    %6808 = vmatpush1.bf16.msra.mxu0 %v6723
    %6809 = vmatprep.subr.bf16.mxu0 %v6729
    %6810 = vmatpush1.bf16.msra.mxu0 %v6728
    %6811 = vmatprep.subr.bf16.mxu0 %v6734
    %6812 = vmatpush1.bf16.msra.mxu0 %v6733
    %6813 = vmatprep.subr.bf16.mxu0 %v6739
    %6814 = vmatpush1.bf16.msra.mxu0 %v6738
    %6815 = vmatprep.subr.bf16.mxu0 0
    %6816 = vmatpush1.bf16.msra.mxu0 0
    %6817 = vmatprep.subr.bf16.mxu0 0
    %6818 = vmatpush1.bf16.msra.mxu0 0
    %6819 = vmatprep.subr.bf16.mxu0 0
    %6820 = vmatpush1.bf16.msra.mxu0 0
    %6821 = vmatprep.subr.bf16.mxu0 0
    %6822 = vmatpush1.bf16.msra.mxu0 0
    %6823 = vmatprep.subr.bf16.mxu0 0
    %6824 = vmatpush1.bf16.msra.mxu0 0
    %6825 = vmatprep.subr.bf16.mxu0 0
    %6826 = vmatpush1.bf16.msra.mxu0 0
    %6827 = vmatprep.subr.bf16.mxu0 0
    %6828 = vmatpush1.bf16.msra.mxu0 0
    %6829 = vmatprep.subr.bf16.mxu0 0
    %6830 = vmatpush1.bf16.msra.mxu0 0
    %6831 = vmatprep.subr.bf16.mxu0 0
    %6832 = vmatpush1.bf16.msra.mxu0 0
    %6833 = vmatprep.subr.bf16.mxu0 0
    %6834 = vmatpush1.bf16.msra.mxu0 0
    %6835 = vmatprep.subr.bf16.mxu0 0
    %6836 = vmatpush1.bf16.msra.mxu0 0
    %6837 = vmatprep.subr.bf16.mxu0 0
    %6838 = vmatpush1.bf16.msra.mxu0 0
    %6839 = vmatprep.mubr.bf16.mxu0 0
    %6840 = vmatmul.mubr.bf16.gmra.mrb[0].mxu0 %v6762
    %v6841 = vpop.f32.mrb[0].mxu0
    %v6842 = vadd.f32 0.0, %v6841
    %v6843 = vpop.f32.mrb[0].mxu0
    %v6844 = vadd.f32 0.0, %v6843
    %v6845 = vpop.f32.mrb[0].mxu0
    %v6846 = vadd.f32 0.0, %v6845
    %v6847 = vpop.f32.mrb[0].mxu0
    %v6848 = vadd.f32 0.0, %v6847
    %6849 = vdwg.mxu0
    %6850 = vmatprep.subr.bf16.mxu0 0
    %6851 = vmatpush1.bf16.msra.mxu0 %v6725
    %6852 = vmatprep.subr.bf16.mxu0 0
    %6853 = vmatpush1.bf16.msra.mxu0 %v6730
    %6854 = vmatprep.subr.bf16.mxu0 0
    %6855 = vmatpush1.bf16.msra.mxu0 %v6735
    %6856 = vmatprep.subr.bf16.mxu0 0
    %6857 = vmatpush1.bf16.msra.mxu0 %v6740
    %6858 = vmatprep.subr.bf16.mxu0 0
    %6859 = vmatpush1.bf16.msra.mxu0 0
    %6860 = vmatprep.subr.bf16.mxu0 0
    %6861 = vmatpush1.bf16.msra.mxu0 0
    %6862 = vmatprep.subr.bf16.mxu0 0
    %6863 = vmatpush1.bf16.msra.mxu0 0
    %6864 = vmatprep.subr.bf16.mxu0 0
    %6865 = vmatpush1.bf16.msra.mxu0 0
    %6866 = vmatprep.subr.bf16.mxu0 0
    %6867 = vmatpush1.bf16.msra.mxu0 0
    %6868 = vmatprep.subr.bf16.mxu0 0
    %6869 = vmatpush1.bf16.msra.mxu0 0
    %6870 = vmatprep.subr.bf16.mxu0 0
    %6871 = vmatpush1.bf16.msra.mxu0 0
    %6872 = vmatprep.subr.bf16.mxu0 0
    %6873 = vmatpush1.bf16.msra.mxu0 0
    %6874 = vmatprep.subr.bf16.mxu0 0
    %6875 = vmatpush1.bf16.msra.mxu0 0
    %6876 = vmatprep.subr.bf16.mxu0 0
    %6877 = vmatpush1.bf16.msra.mxu0 0
    %6878 = vmatprep.subr.bf16.mxu0 0
    %6879 = vmatpush1.bf16.msra.mxu0 0
    %6880 = vmatprep.subr.bf16.mxu0 0
    %6881 = vmatpush1.bf16.msra.mxu0 0
    %6882 = vmatprep.mubr.bf16.mxu0 0
    %6883 = vmatmul.mubr.bf16.gmra.mrb[0].mxu0 %v6762
    %v6884 = vpop.f32.mrb[0].mxu0
    %v6885 = vadd.f32 0.0, %v6884
    %v6886 = vpop.f32.mrb[0].mxu0
    %v6887 = vpop.f32.mrb[0].mxu0
    %v6888 = vadd.f32 0.0, %v6887
    %v6889 = vpop.f32.mrb[0].mxu0
    %6890 = vdwg.mxu0
    %v6891 = vadd.f32 %v6331, %v6799
    %v6892 = vadd.f32 %v6333, %v6801
    %v6893 = vadd.f32 %v6374, %v6842
    %v6894 = vadd.f32 %v6376, %v6844
    %v6895 = vadd.f32 %v6417, %v6885
    %v6896 = vadd.f32 %v6335, %v6803
    %v6897 = vadd.f32 %v6337, %v6805
    %v6898 = vadd.f32 %v6378, %v6846
    %v6899 = vadd.f32 %v6380, %v6848
    %v6900 = vadd.f32 %v6420, %v6888
    %6902 = vrot.lane.b32.xlu0 %v5439, 64
    %v6903 = vpop.permute.xlu0 %6902
    %6905 = vrot.lane.b32.xlu0 %v5449, 64
    %v6906 = vpop.permute.xlu0 %6905
    %v6908 = vsel %vm5468, %v6903, 0
    %v6911 = vsel %vm5468, %v6906, 0
    %6913 = vmatprep.subr.bf16.mxu0 0
    %6914 = vmatpush1.bf16.xpose.msra.mxu0 %v6911
    %6915 = vmatprep.subr.bf16.mxu0 0
    %6916 = vmatpush1.bf16.xpose.msra.mxu0 0
    %6917 = vmatprep.subr.bf16.mxu0 0
    %6918 = vmatpush1.bf16.xpose.msra.mxu0 0
    %6919 = vmatprep.subr.bf16.mxu0 0
    %6920 = vmatpush1.bf16.xpose.msra.mxu0 0
    %6921 = vmatprep.subr.bf16.mxu0 0
    %6922 = vmatpush1.bf16.xpose.msra.mxu0 0
    %6923 = vmatprep.subr.bf16.mxu0 0
    %6924 = vmatpush1.bf16.xpose.msra.mxu0 0
    %6925 = vmatprep.subr.bf16.mxu0 0
    %6926 = vmatpush1.bf16.xpose.msra.mxu0 0
    %6927 = vmatprep.subr.bf16.mxu0 0
    %6928 = vmatpush1.bf16.xpose.msra.mxu0 0
    %6929 = vmatprep.subr.bf16.mxu0 0
    %6930 = vmatpush1.bf16.xpose.msra.mxu0 0
    %6931 = vmatprep.subr.bf16.mxu0 0
    %6932 = vmatpush1.bf16.xpose.msra.mxu0 0
    %6933 = vmatprep.subr.bf16.mxu0 0
    %6934 = vmatpush1.bf16.xpose.msra.mxu0 0
    %6935 = vmatprep.subr.bf16.mxu0 0
    %6936 = vmatpush1.bf16.xpose.msra.mxu0 0
    %6937 = vmatprep.subr.bf16.mxu0 0
    %6938 = vmatpush1.bf16.xpose.msra.mxu0 0
    %6939 = vmatprep.subr.bf16.mxu0 0
    %6940 = vmatpush1.bf16.xpose.msra.mxu0 0
    %6941 = vmatprep.subr.bf16.mxu0 0
    %6942 = vmatpush1.bf16.xpose.msra.mxu0 0
    %6943 = vmatprep.subr.bf16.mxu0 0
    %6944 = vmatpush1.bf16.xpose.msra.mxu0 0
    %6945 = vmatprep.mubr.bf16.mxu0 0
    %6946 = vmatmul.mubr.bf16.gmra.mrb[0].mxu0 %v6908
    %v6947 = vpop.f32.mrb[0].mxu0
    %v6948 = vadd.f32 0.0, %v6947
    %v6949 = vpop.f32.mrb[0].mxu0
    %v6950 = vpop.f32.mrb[0].mxu0
    %v6951 = vpop.f32.mrb[0].mxu0
    %6952 = vdwg.mxu0
    %6954 = vrot.lane.b32.xlu0 %v5444, 64
    %v6955 = vpop.permute.xlu0 %6954
    %6957 = vrot.lane.b32.xlu0 %v5454, 64
    %v6958 = vpop.permute.xlu0 %6957
    %v6960 = vsel %vm5468, %v6955, 0
    %v6963 = vsel %vm5468, %v6958, 0
    %6965 = vmatprep.subr.bf16.mxu0 0
    %6966 = vmatpush1.bf16.xpose.msra.mxu0 %v6963
    %6967 = vmatprep.subr.bf16.mxu0 0
    %6968 = vmatpush1.bf16.xpose.msra.mxu0 0
    %6969 = vmatprep.subr.bf16.mxu0 0
    %6970 = vmatpush1.bf16.xpose.msra.mxu0 0
    %6971 = vmatprep.subr.bf16.mxu0 0
    %6972 = vmatpush1.bf16.xpose.msra.mxu0 0
    %6973 = vmatprep.subr.bf16.mxu0 0
    %6974 = vmatpush1.bf16.xpose.msra.mxu0 0
    %6975 = vmatprep.subr.bf16.mxu0 0
    %6976 = vmatpush1.bf16.xpose.msra.mxu0 0
    %6977 = vmatprep.subr.bf16.mxu0 0
    %6978 = vmatpush1.bf16.xpose.msra.mxu0 0
    %6979 = vmatprep.subr.bf16.mxu0 0
    %6980 = vmatpush1.bf16.xpose.msra.mxu0 0
    %6981 = vmatprep.subr.bf16.mxu0 0
    %6982 = vmatpush1.bf16.xpose.msra.mxu0 0
    %6983 = vmatprep.subr.bf16.mxu0 0
    %6984 = vmatpush1.bf16.xpose.msra.mxu0 0
    %6985 = vmatprep.subr.bf16.mxu0 0
    %6986 = vmatpush1.bf16.xpose.msra.mxu0 0
    %6987 = vmatprep.subr.bf16.mxu0 0
    %6988 = vmatpush1.bf16.xpose.msra.mxu0 0
    %6989 = vmatprep.subr.bf16.mxu0 0
    %6990 = vmatpush1.bf16.xpose.msra.mxu0 0
    %6991 = vmatprep.subr.bf16.mxu0 0
    %6992 = vmatpush1.bf16.xpose.msra.mxu0 0
    %6993 = vmatprep.subr.bf16.mxu0 0
    %6994 = vmatpush1.bf16.xpose.msra.mxu0 0
    %6995 = vmatprep.subr.bf16.mxu0 0
    %6996 = vmatpush1.bf16.xpose.msra.mxu0 0
    %6997 = vmatprep.mubr.bf16.mxu0 0
    %6998 = vmatmul.mubr.bf16.gmra.mrb[0].mxu0 %v6960
    %v6999 = vpop.f32.mrb[0].mxu0
    %v7000 = vadd.f32 0.0, %v6999
    %v7001 = vpop.f32.mrb[0].mxu0
    %v7002 = vpop.f32.mrb[0].mxu0
    %v7003 = vpop.f32.mrb[0].mxu0
    %7004 = vdwg.mxu0
    %v7005 = vsel %vm5561, %v6948, -inf
    %7006 = vmax.xlane.f32.xlu0 %v7005
    %v7007 = vpop.xlane.xlu0 %7006
    %v7008 = vsel %vm5561, %v7000, -inf
    %7009 = vmax.xlane.f32.xlu0 %v7008
    %v7010 = vpop.xlane.xlu0 %7009
    %v7011 = vsub.f32 %v6948, %v7007
    %v7012 = vsub.f32 %v7000, %v7010
    %v7013 = vmul.f32 %v7011, 1.442695
    %v7014 = vpow.pop %v7013
    %v7015 = vmul.f32 %v7012, 1.442695
    %v7016 = vpow.pop %v7015
    %v7017 = vsel %vm5561, %v7014, 0.0
    %7018 = vadd.xlane.f32.xlu0 %v7017
    %v7019 = vpop.xlane.xlu0 %7018
    %v7020 = vsel %vm5561, %v7016, 0.0
    %7021 = vadd.xlane.f32.xlu0 %v7020
    %v7022 = vpop.xlane.xlu0 %7021
    %v7023 = vrcp.pop %v7019
    %v7024 = vrcp.pop %v7022
    %v7025 = vmul.f32 %v7014, %v7023
    %v7026 = vmul.f32 %v7016, %v7024
    %v7027 = vpack.c.bf16 %v7025, %v7025
    %v7028 = vpack.c.bf16 %v7026, %v7026
    %7030 = vrot.lane.b32.xlu0 %v5459, 64
    %v7031 = vpop.permute.xlu0 %7030
    %v7033 = vsel %vm5561, %v7027, 0
    %v7036 = vsel %vm1795, %v7031, 0
    %7038 = vmatprep.subr.bf16.mxu0 0
    %7039 = vmatpush1.bf16.msra.mxu0 %v7036
    %7040 = vmatprep.subr.bf16.mxu0 0
    %7041 = vmatpush1.bf16.msra.mxu0 0
    %7042 = vmatprep.subr.bf16.mxu0 0
    %7043 = vmatpush1.bf16.msra.mxu0 0
    %7044 = vmatprep.subr.bf16.mxu0 0
    %7045 = vmatpush1.bf16.msra.mxu0 0
    %7046 = vmatprep.subr.bf16.mxu0 0
    %7047 = vmatpush1.bf16.msra.mxu0 0
    %7048 = vmatprep.subr.bf16.mxu0 0
    %7049 = vmatpush1.bf16.msra.mxu0 0
    %7050 = vmatprep.subr.bf16.mxu0 0
    %7051 = vmatpush1.bf16.msra.mxu0 0
    %7052 = vmatprep.subr.bf16.mxu0 0
    %7053 = vmatpush1.bf16.msra.mxu0 0
    %7054 = vmatprep.subr.bf16.mxu0 0
    %7055 = vmatpush1.bf16.msra.mxu0 0
    %7056 = vmatprep.subr.bf16.mxu0 0
    %7057 = vmatpush1.bf16.msra.mxu0 0
    %7058 = vmatprep.subr.bf16.mxu0 0
    %7059 = vmatpush1.bf16.msra.mxu0 0
    %7060 = vmatprep.subr.bf16.mxu0 0
    %7061 = vmatpush1.bf16.msra.mxu0 0
    %7062 = vmatprep.subr.bf16.mxu0 0
    %7063 = vmatpush1.bf16.msra.mxu0 0
    %7064 = vmatprep.subr.bf16.mxu0 0
    %7065 = vmatpush1.bf16.msra.mxu0 0
    %7066 = vmatprep.subr.bf16.mxu0 0
    %7067 = vmatpush1.bf16.msra.mxu0 0
    %7068 = vmatprep.subr.bf16.mxu0 0
    %7069 = vmatpush1.bf16.msra.mxu0 0
    %7070 = vmatprep.mubr.bf16.mxu0 0
    %7071 = vmatmul.mubr.bf16.gmra.mrb[0].mxu0 %v7033
    %v7072 = vpop.f32.mrb[0].mxu0
    %v7073 = vadd.f32 0.0, %v7072
    %v7074 = vpop.f32.mrb[0].mxu0
    %v7075 = vpop.f32.mrb[0].mxu0
    %v7076 = vpop.f32.mrb[0].mxu0
    %7077 = vdwg.mxu0
    %7079 = vrot.lane.b32.xlu0 %v5464, 64
    %v7080 = vpop.permute.xlu0 %7079
    %v7082 = vsel %vm5561, %v7028, 0
    %v7085 = vsel %vm1795, %v7080, 0
    %7087 = vmatprep.subr.bf16.mxu0 0
    %7088 = vmatpush1.bf16.msra.mxu0 %v7085
    %7089 = vmatprep.subr.bf16.mxu0 0
    %7090 = vmatpush1.bf16.msra.mxu0 0
    %7091 = vmatprep.subr.bf16.mxu0 0
    %7092 = vmatpush1.bf16.msra.mxu0 0
    %7093 = vmatprep.subr.bf16.mxu0 0
    %7094 = vmatpush1.bf16.msra.mxu0 0
    %7095 = vmatprep.subr.bf16.mxu0 0
    %7096 = vmatpush1.bf16.msra.mxu0 0
    %7097 = vmatprep.subr.bf16.mxu0 0
    %7098 = vmatpush1.bf16.msra.mxu0 0
    %7099 = vmatprep.subr.bf16.mxu0 0
    %7100 = vmatpush1.bf16.msra.mxu0 0
    %7101 = vmatprep.subr.bf16.mxu0 0
    %7102 = vmatpush1.bf16.msra.mxu0 0
    %7103 = vmatprep.subr.bf16.mxu0 0
    %7104 = vmatpush1.bf16.msra.mxu0 0
    %7105 = vmatprep.subr.bf16.mxu0 0
    %7106 = vmatpush1.bf16.msra.mxu0 0
    %7107 = vmatprep.subr.bf16.mxu0 0
    %7108 = vmatpush1.bf16.msra.mxu0 0
    %7109 = vmatprep.subr.bf16.mxu0 0
    %7110 = vmatpush1.bf16.msra.mxu0 0
    %7111 = vmatprep.subr.bf16.mxu0 0
    %7112 = vmatpush1.bf16.msra.mxu0 0
    %7113 = vmatprep.subr.bf16.mxu0 0
    %7114 = vmatpush1.bf16.msra.mxu0 0
    %7115 = vmatprep.subr.bf16.mxu0 0
    %7116 = vmatpush1.bf16.msra.mxu0 0
    %7117 = vmatprep.subr.bf16.mxu0 0
    %7118 = vmatpush1.bf16.msra.mxu0 0
    %7119 = vmatprep.mubr.bf16.mxu0 0
    %7120 = vmatmul.mubr.bf16.gmra.mrb[0].mxu0 %v7082
    %v7121 = vpop.f32.mrb[0].mxu0
    %v7122 = vadd.f32 0.0, %v7121
    %v7123 = vpop.f32.mrb[0].mxu0
    %v7124 = vpop.f32.mrb[0].mxu0
    %v7125 = vpop.f32.mrb[0].mxu0
    %7126 = vdwg.mxu0
    %v7127 = vpack.c.bf16 %v7122, %v7073
    %s7128 = scalar_lea.vmem [#allocation7], 480
    %v7129 = vld [vmem:[%s7128] sm:$0xff]
    %v7130 = vld [vmem:[%s7128 + $0x8] sm:$0xff]
    %v7131 = vld [vmem:[%s7128 + $0x10] sm:$0xf]
    %v7132 = vld [vmem:[%s7128 + $0x14] sm:$0xff]
    %v7133 = vld [vmem:[%s7128 + $0x1c] sm:$0xff]
    %v7134 = vld [vmem:[%s7128 + $0x24] sm:$0xf]
    %v7135 = vld [vmem:[%s7128 + $0x28] sm:$0xff]
    %v7136 = vld [vmem:[%s7128 + $0x30] sm:$0xff]
    %v7137 = vld [vmem:[%s7128 + $0x38] sm:$0xf]
    %v7138 = vld [vmem:[%s7128 + $0x3c] sm:$0xff]
    %v7139 = vld [vmem:[%s7128 + $0x44] sm:$0xff]
    %v7140 = vld [vmem:[%s7128 + $0x4c] sm:$0xf]
    %v7141 = vld [vmem:[%s7128 + $0x50] sm:$0xff]
    %v7142 = vld [vmem:[%s7128 + $0x58] sm:$0xff]
    %v7143 = vld [vmem:[%s7128 + $0x60] sm:$0xf]
    %v7144 = vld [vmem:[%s7128 + $0x64] sm:$0xff]
    %v7145 = vld [vmem:[%s7128 + $0x6c] sm:$0xff]
    %v7146 = vld [vmem:[%s7128 + $0x74] sm:$0xf]
    %v7147 = vld [vmem:[%s7128 + $0x78] sm:$0xff]
    %v7148 = vld [vmem:[%s7128 + $0x80] sm:$0xff]
    %v7149 = vld [vmem:[%s7128 + $0x88] sm:$0xf]
    %v7150 = vld [vmem:[%s7128 + $0x8c] sm:$0xff]
    %v7151 = vld [vmem:[%s7128 + $0x94] sm:$0xff]
    %v7152 = vld [vmem:[%s7128 + $0x9c] sm:$0xf]
    %v7177 = vunpack.c.l.b16 %v7129
    %v7178 = vunpack.c.h.b16 %v7129
    %v7179 = vunpack.c.l.b16 %v7130
    %v7180 = vunpack.c.h.b16 %v7130
    %v7181 = vunpack.c.l.b16 %v7131
    %v7182 = vunpack.c.l.b16 %v7132
    %v7183 = vunpack.c.h.b16 %v7132
    %v7184 = vunpack.c.l.b16 %v7133
    %v7185 = vunpack.c.h.b16 %v7133
    %v7186 = vunpack.c.l.b16 %v7134
    %v7187 = vunpack.c.l.b16 %v7135
    %v7188 = vunpack.c.h.b16 %v7135
    %v7189 = vunpack.c.l.b16 %v7136
    %v7190 = vunpack.c.h.b16 %v7136
    %v7191 = vunpack.c.l.b16 %v7137
    %v7192 = vunpack.c.l.b16 %v7138
    %v7193 = vunpack.c.h.b16 %v7138
    %v7194 = vunpack.c.l.b16 %v7139
    %v7195 = vunpack.c.h.b16 %v7139
    %v7196 = vunpack.c.l.b16 %v7140
    %v7197 = vunpack.c.l.b16 %v7141
    %v7198 = vunpack.c.h.b16 %v7141
    %v7199 = vunpack.c.l.b16 %v7142
    %v7200 = vunpack.c.h.b16 %v7142
    %v7201 = vunpack.c.l.b16 %v7143
    %v7202 = vunpack.c.l.b16 %v7144
    %v7203 = vunpack.c.h.b16 %v7144
    %v7204 = vunpack.c.l.b16 %v7145
    %v7205 = vunpack.c.h.b16 %v7145
    %v7206 = vunpack.c.l.b16 %v7146
    %v7207 = vunpack.c.l.b16 %v7147
    %v7208 = vunpack.c.h.b16 %v7147
    %v7209 = vunpack.c.l.b16 %v7148
    %v7210 = vunpack.c.h.b16 %v7148
    %v7211 = vunpack.c.l.b16 %v7149
    %v7212 = vunpack.c.l.b16 %v7150
    %v7213 = vunpack.c.h.b16 %v7150
    %v7214 = vunpack.c.l.b16 %v7151
    %v7215 = vunpack.c.h.b16 %v7151
    %v7216 = vunpack.c.l.b16 %v7152
    %v7217 = vpack.c.b16 %v7182, %v7177
    %v7218 = vpack.c.b16 %v7183, %v7178
    %v7219 = vpack.c.b16 %v7184, %v7179
    %v7220 = vpack.c.b16 %v7185, %v7180
    %v7221 = vpack.c.b16 %v7186, %v7181
    %v7222 = vpack.c.b16 %v7192, %v7187
    %v7223 = vpack.c.b16 %v7193, %v7188
    %v7224 = vpack.c.b16 %v7194, %v7189
    %v7225 = vpack.c.b16 %v7195, %v7190
    %v7226 = vpack.c.b16 %v7196, %v7191
    %v7227 = vpack.c.b16 %v7202, %v7197
    %v7228 = vpack.c.b16 %v7203, %v7198
    %v7229 = vpack.c.b16 %v7204, %v7199
    %v7230 = vpack.c.b16 %v7205, %v7200
    %v7231 = vpack.c.b16 %v7206, %v7201
    %v7232 = vpack.c.b16 %v7212, %v7207
    %v7233 = vpack.c.b16 %v7213, %v7208
    %v7234 = vpack.c.b16 %v7214, %v7209
    %v7235 = vpack.c.b16 %v7215, %v7210
    %v7236 = vpack.c.b16 %v7216, %v7211
    %v7258 = vsel %vm5468, %v7127, 0
    %7260 = vmatprep.subr.bf16.mxu0 %v7218
    %7261 = vmatpush1.bf16.msra.mxu0 %v7217
    %7262 = vmatprep.subr.bf16.mxu0 %v7223
    %7263 = vmatpush1.bf16.msra.mxu0 %v7222
    %7264 = vmatprep.subr.bf16.mxu0 %v7228
    %7265 = vmatpush1.bf16.msra.mxu0 %v7227
    %7266 = vmatprep.subr.bf16.mxu0 %v7233
    %7267 = vmatpush1.bf16.msra.mxu0 %v7232
    %7268 = vmatprep.subr.bf16.mxu0 0
    %7269 = vmatpush1.bf16.msra.mxu0 0
    %7270 = vmatprep.subr.bf16.mxu0 0
    %7271 = vmatpush1.bf16.msra.mxu0 0
    %7272 = vmatprep.subr.bf16.mxu0 0
    %7273 = vmatpush1.bf16.msra.mxu0 0
    %7274 = vmatprep.subr.bf16.mxu0 0
    %7275 = vmatpush1.bf16.msra.mxu0 0
    %7276 = vmatprep.subr.bf16.mxu0 0
    %7277 = vmatpush1.bf16.msra.mxu0 0
    %7278 = vmatprep.subr.bf16.mxu0 0
    %7279 = vmatpush1.bf16.msra.mxu0 0
    %7280 = vmatprep.subr.bf16.mxu0 0
    %7281 = vmatpush1.bf16.msra.mxu0 0
    %7282 = vmatprep.subr.bf16.mxu0 0
    %7283 = vmatpush1.bf16.msra.mxu0 0
    %7284 = vmatprep.subr.bf16.mxu0 0
    %7285 = vmatpush1.bf16.msra.mxu0 0
    %7286 = vmatprep.subr.bf16.mxu0 0
    %7287 = vmatpush1.bf16.msra.mxu0 0
    %7288 = vmatprep.subr.bf16.mxu0 0
    %7289 = vmatpush1.bf16.msra.mxu0 0
    %7290 = vmatprep.subr.bf16.mxu0 0
    %7291 = vmatpush1.bf16.msra.mxu0 0
    %7292 = vmatprep.mubr.bf16.mxu0 0
    %7293 = vmatmul.mubr.bf16.gmra.mrb[0].mxu0 %v7258
    %v7294 = vpop.f32.mrb[0].mxu0
    %v7295 = vadd.f32 0.0, %v7294
    %v7296 = vpop.f32.mrb[0].mxu0
    %v7297 = vadd.f32 0.0, %v7296
    %v7298 = vpop.f32.mrb[0].mxu0
    %v7299 = vadd.f32 0.0, %v7298
    %v7300 = vpop.f32.mrb[0].mxu0
    %v7301 = vadd.f32 0.0, %v7300
    %7302 = vdwg.mxu0
    %7303 = vmatprep.subr.bf16.mxu0 %v7220
    %7304 = vmatpush1.bf16.msra.mxu0 %v7219
    %7305 = vmatprep.subr.bf16.mxu0 %v7225
    %7306 = vmatpush1.bf16.msra.mxu0 %v7224
    %7307 = vmatprep.subr.bf16.mxu0 %v7230
    %7308 = vmatpush1.bf16.msra.mxu0 %v7229
    %7309 = vmatprep.subr.bf16.mxu0 %v7235
    %7310 = vmatpush1.bf16.msra.mxu0 %v7234
    %7311 = vmatprep.subr.bf16.mxu0 0
    %7312 = vmatpush1.bf16.msra.mxu0 0
    %7313 = vmatprep.subr.bf16.mxu0 0
    %7314 = vmatpush1.bf16.msra.mxu0 0
    %7315 = vmatprep.subr.bf16.mxu0 0
    %7316 = vmatpush1.bf16.msra.mxu0 0
    %7317 = vmatprep.subr.bf16.mxu0 0
    %7318 = vmatpush1.bf16.msra.mxu0 0
    %7319 = vmatprep.subr.bf16.mxu0 0
    %7320 = vmatpush1.bf16.msra.mxu0 0
    %7321 = vmatprep.subr.bf16.mxu0 0
    %7322 = vmatpush1.bf16.msra.mxu0 0
    %7323 = vmatprep.subr.bf16.mxu0 0
    %7324 = vmatpush1.bf16.msra.mxu0 0
    %7325 = vmatprep.subr.bf16.mxu0 0
    %7326 = vmatpush1.bf16.msra.mxu0 0
    %7327 = vmatprep.subr.bf16.mxu0 0
    %7328 = vmatpush1.bf16.msra.mxu0 0
    %7329 = vmatprep.subr.bf16.mxu0 0
    %7330 = vmatpush1.bf16.msra.mxu0 0
    %7331 = vmatprep.subr.bf16.mxu0 0
    %7332 = vmatpush1.bf16.msra.mxu0 0
    %7333 = vmatprep.subr.bf16.mxu0 0
    %7334 = vmatpush1.bf16.msra.mxu0 0
    %7335 = vmatprep.mubr.bf16.mxu0 0
    %7336 = vmatmul.mubr.bf16.gmra.mrb[0].mxu0 %v7258
    %v7337 = vpop.f32.mrb[0].mxu0
    %v7338 = vadd.f32 0.0, %v7337
    %v7339 = vpop.f32.mrb[0].mxu0
    %v7340 = vadd.f32 0.0, %v7339
    %v7341 = vpop.f32.mrb[0].mxu0
    %v7342 = vadd.f32 0.0, %v7341
    %v7343 = vpop.f32.mrb[0].mxu0
    %v7344 = vadd.f32 0.0, %v7343
    %7345 = vdwg.mxu0
    %7346 = vmatprep.subr.bf16.mxu0 0
    %7347 = vmatpush1.bf16.msra.mxu0 %v7221
    %7348 = vmatprep.subr.bf16.mxu0 0
    %7349 = vmatpush1.bf16.msra.mxu0 %v7226
    %7350 = vmatprep.subr.bf16.mxu0 0
    %7351 = vmatpush1.bf16.msra.mxu0 %v7231
    %7352 = vmatprep.subr.bf16.mxu0 0
    %7353 = vmatpush1.bf16.msra.mxu0 %v7236
    %7354 = vmatprep.subr.bf16.mxu0 0
    %7355 = vmatpush1.bf16.msra.mxu0 0
    %7356 = vmatprep.subr.bf16.mxu0 0
    %7357 = vmatpush1.bf16.msra.mxu0 0
    %7358 = vmatprep.subr.bf16.mxu0 0
    %7359 = vmatpush1.bf16.msra.mxu0 0
    %7360 = vmatprep.subr.bf16.mxu0 0
    %7361 = vmatpush1.bf16.msra.mxu0 0
    %7362 = vmatprep.subr.bf16.mxu0 0
    %7363 = vmatpush1.bf16.msra.mxu0 0
    %7364 = vmatprep.subr.bf16.mxu0 0
    %7365 = vmatpush1.bf16.msra.mxu0 0
    %7366 = vmatprep.subr.bf16.mxu0 0
    %7367 = vmatpush1.bf16.msra.mxu0 0
    %7368 = vmatprep.subr.bf16.mxu0 0
    %7369 = vmatpush1.bf16.msra.mxu0 0
    %7370 = vmatprep.subr.bf16.mxu0 0
    %7371 = vmatpush1.bf16.msra.mxu0 0
    %7372 = vmatprep.subr.bf16.mxu0 0
    %7373 = vmatpush1.bf16.msra.mxu0 0
    %7374 = vmatprep.subr.bf16.mxu0 0
    %7375 = vmatpush1.bf16.msra.mxu0 0
    %7376 = vmatprep.subr.bf16.mxu0 0
    %7377 = vmatpush1.bf16.msra.mxu0 0
    %7378 = vmatprep.mubr.bf16.mxu0 0
    %7379 = vmatmul.mubr.bf16.gmra.mrb[0].mxu0 %v7258
    %v7380 = vpop.f32.mrb[0].mxu0
    %v7381 = vadd.f32 0.0, %v7380
    %v7382 = vpop.f32.mrb[0].mxu0
    %v7383 = vpop.f32.mrb[0].mxu0
    %v7384 = vadd.f32 0.0, %v7383
    %v7385 = vpop.f32.mrb[0].mxu0
    %7386 = vdwg.mxu0
    %v7387 = vadd.f32 %v6891, %v7295
    %v7388 = vadd.f32 %v6892, %v7297
    %v7389 = vadd.f32 %v6893, %v7338
    %v7390 = vadd.f32 %v6894, %v7340
    %v7391 = vadd.f32 %v6895, %v7381
    %v7392 = vadd.f32 %v6896, %v7299
    %v7393 = vadd.f32 %v6897, %v7301
    %v7394 = vadd.f32 %v6898, %v7342
    %v7395 = vadd.f32 %v6899, %v7344
    %v7396 = vadd.f32 %v6900, %v7384
    %v7398 = vsel %vm5468, %v5440, 0
    %v7401 = vsel %vm5468, %v5450, 0
    %7403 = vmatprep.subr.bf16.mxu0 0
    %7404 = vmatpush1.bf16.xpose.msra.mxu0 %v7401
    %7405 = vmatprep.subr.bf16.mxu0 0
    %7406 = vmatpush1.bf16.xpose.msra.mxu0 0
    %7407 = vmatprep.subr.bf16.mxu0 0
    %7408 = vmatpush1.bf16.xpose.msra.mxu0 0
    %7409 = vmatprep.subr.bf16.mxu0 0
    %7410 = vmatpush1.bf16.xpose.msra.mxu0 0
    %7411 = vmatprep.subr.bf16.mxu0 0
    %7412 = vmatpush1.bf16.xpose.msra.mxu0 0
    %7413 = vmatprep.subr.bf16.mxu0 0
    %7414 = vmatpush1.bf16.xpose.msra.mxu0 0
    %7415 = vmatprep.subr.bf16.mxu0 0
    %7416 = vmatpush1.bf16.xpose.msra.mxu0 0
    %7417 = vmatprep.subr.bf16.mxu0 0
    %7418 = vmatpush1.bf16.xpose.msra.mxu0 0
    %7419 = vmatprep.subr.bf16.mxu0 0
    %7420 = vmatpush1.bf16.xpose.msra.mxu0 0
    %7421 = vmatprep.subr.bf16.mxu0 0
    %7422 = vmatpush1.bf16.xpose.msra.mxu0 0
    %7423 = vmatprep.subr.bf16.mxu0 0
    %7424 = vmatpush1.bf16.xpose.msra.mxu0 0
    %7425 = vmatprep.subr.bf16.mxu0 0
    %7426 = vmatpush1.bf16.xpose.msra.mxu0 0
    %7427 = vmatprep.subr.bf16.mxu0 0
    %7428 = vmatpush1.bf16.xpose.msra.mxu0 0
    %7429 = vmatprep.subr.bf16.mxu0 0
    %7430 = vmatpush1.bf16.xpose.msra.mxu0 0
    %7431 = vmatprep.subr.bf16.mxu0 0
    %7432 = vmatpush1.bf16.xpose.msra.mxu0 0
    %7433 = vmatprep.subr.bf16.mxu0 0
    %7434 = vmatpush1.bf16.xpose.msra.mxu0 0
    %7435 = vmatprep.mubr.bf16.mxu0 0
    %7436 = vmatmul.mubr.bf16.gmra.mrb[0].mxu0 %v7398
    %v7437 = vpop.f32.mrb[0].mxu0
    %v7438 = vadd.f32 0.0, %v7437
    %v7439 = vpop.f32.mrb[0].mxu0
    %v7440 = vpop.f32.mrb[0].mxu0
    %v7441 = vpop.f32.mrb[0].mxu0
    %7442 = vdwg.mxu0
    %v7444 = vsel %vm5468, %v5445, 0
    %v7447 = vsel %vm5468, %v5455, 0
    %7449 = vmatprep.subr.bf16.mxu0 0
    %7450 = vmatpush1.bf16.xpose.msra.mxu0 %v7447
    %7451 = vmatprep.subr.bf16.mxu0 0
    %7452 = vmatpush1.bf16.xpose.msra.mxu0 0
    %7453 = vmatprep.subr.bf16.mxu0 0
    %7454 = vmatpush1.bf16.xpose.msra.mxu0 0
    %7455 = vmatprep.subr.bf16.mxu0 0
    %7456 = vmatpush1.bf16.xpose.msra.mxu0 0
    %7457 = vmatprep.subr.bf16.mxu0 0
    %7458 = vmatpush1.bf16.xpose.msra.mxu0 0
    %7459 = vmatprep.subr.bf16.mxu0 0
    %7460 = vmatpush1.bf16.xpose.msra.mxu0 0
    %7461 = vmatprep.subr.bf16.mxu0 0
    %7462 = vmatpush1.bf16.xpose.msra.mxu0 0
    %7463 = vmatprep.subr.bf16.mxu0 0
    %7464 = vmatpush1.bf16.xpose.msra.mxu0 0
    %7465 = vmatprep.subr.bf16.mxu0 0
    %7466 = vmatpush1.bf16.xpose.msra.mxu0 0
    %7467 = vmatprep.subr.bf16.mxu0 0
    %7468 = vmatpush1.bf16.xpose.msra.mxu0 0
    %7469 = vmatprep.subr.bf16.mxu0 0
    %7470 = vmatpush1.bf16.xpose.msra.mxu0 0
    %7471 = vmatprep.subr.bf16.mxu0 0
    %7472 = vmatpush1.bf16.xpose.msra.mxu0 0
    %7473 = vmatprep.subr.bf16.mxu0 0
    %7474 = vmatpush1.bf16.xpose.msra.mxu0 0
    %7475 = vmatprep.subr.bf16.mxu0 0
    %7476 = vmatpush1.bf16.xpose.msra.mxu0 0
    %7477 = vmatprep.subr.bf16.mxu0 0
    %7478 = vmatpush1.bf16.xpose.msra.mxu0 0
    %7479 = vmatprep.subr.bf16.mxu0 0
    %7480 = vmatpush1.bf16.xpose.msra.mxu0 0
    %7481 = vmatprep.mubr.bf16.mxu0 0
    %7482 = vmatmul.mubr.bf16.gmra.mrb[0].mxu0 %v7444
    %v7483 = vpop.f32.mrb[0].mxu0
    %v7484 = vadd.f32 0.0, %v7483
    %v7485 = vpop.f32.mrb[0].mxu0
    %v7486 = vpop.f32.mrb[0].mxu0
    %v7487 = vpop.f32.mrb[0].mxu0
    %7488 = vdwg.mxu0
    %v7489 = vsel %vm5561, %v7438, -inf
    %7490 = vmax.xlane.f32.xlu0 %v7489
    %v7491 = vpop.xlane.xlu0 %7490
    %v7492 = vsel %vm5561, %v7484, -inf
    %7493 = vmax.xlane.f32.xlu0 %v7492
    %v7494 = vpop.xlane.xlu0 %7493
    %v7495 = vsub.f32 %v7438, %v7491
    %v7496 = vsub.f32 %v7484, %v7494
    %v7497 = vmul.f32 %v7495, 1.442695
    %v7498 = vpow.pop %v7497
    %v7499 = vmul.f32 %v7496, 1.442695
    %v7500 = vpow.pop %v7499
    %v7501 = vsel %vm5561, %v7498, 0.0
    %7502 = vadd.xlane.f32.xlu0 %v7501
    %v7503 = vpop.xlane.xlu0 %7502
    %v7504 = vsel %vm5561, %v7500, 0.0
    %7505 = vadd.xlane.f32.xlu0 %v7504
    %v7506 = vpop.xlane.xlu0 %7505
    %v7507 = vrcp.pop %v7503
    %v7508 = vrcp.pop %v7506
    %v7509 = vmul.f32 %v7498, %v7507
    %v7510 = vmul.f32 %v7500, %v7508
    %v7511 = vpack.c.bf16 %v7509, %v7509
    %v7512 = vpack.c.bf16 %v7510, %v7510
    %v7514 = vsel %vm5561, %v7511, 0
    %v7517 = vsel %vm1795, %v5460, 0
    %7519 = vmatprep.subr.bf16.mxu0 0
    %7520 = vmatpush1.bf16.msra.mxu0 %v7517
    %7521 = vmatprep.subr.bf16.mxu0 0
    %7522 = vmatpush1.bf16.msra.mxu0 0
    %7523 = vmatprep.subr.bf16.mxu0 0
    %7524 = vmatpush1.bf16.msra.mxu0 0
    %7525 = vmatprep.subr.bf16.mxu0 0
    %7526 = vmatpush1.bf16.msra.mxu0 0
    %7527 = vmatprep.subr.bf16.mxu0 0
    %7528 = vmatpush1.bf16.msra.mxu0 0
    %7529 = vmatprep.subr.bf16.mxu0 0
    %7530 = vmatpush1.bf16.msra.mxu0 0
    %7531 = vmatprep.subr.bf16.mxu0 0
    %7532 = vmatpush1.bf16.msra.mxu0 0
    %7533 = vmatprep.subr.bf16.mxu0 0
    %7534 = vmatpush1.bf16.msra.mxu0 0
    %7535 = vmatprep.subr.bf16.mxu0 0
    %7536 = vmatpush1.bf16.msra.mxu0 0
    %7537 = vmatprep.subr.bf16.mxu0 0
    %7538 = vmatpush1.bf16.msra.mxu0 0
    %7539 = vmatprep.subr.bf16.mxu0 0
    %7540 = vmatpush1.bf16.msra.mxu0 0
    %7541 = vmatprep.subr.bf16.mxu0 0
    %7542 = vmatpush1.bf16.msra.mxu0 0
    %7543 = vmatprep.subr.bf16.mxu0 0
    %7544 = vmatpush1.bf16.msra.mxu0 0
    %7545 = vmatprep.subr.bf16.mxu0 0
    %7546 = vmatpush1.bf16.msra.mxu0 0
    %7547 = vmatprep.subr.bf16.mxu0 0
    %7548 = vmatpush1.bf16.msra.mxu0 0
    %7549 = vmatprep.subr.bf16.mxu0 0
    %7550 = vmatpush1.bf16.msra.mxu0 0
    %7551 = vmatprep.mubr.bf16.mxu0 0
    %7552 = vmatmul.mubr.bf16.gmra.mrb[0].mxu0 %v7514
    %v7553 = vpop.f32.mrb[0].mxu0
    %v7554 = vadd.f32 0.0, %v7553
    %v7555 = vpop.f32.mrb[0].mxu0
    %v7556 = vpop.f32.mrb[0].mxu0
    %v7557 = vpop.f32.mrb[0].mxu0
    %7558 = vdwg.mxu0
    %v7560 = vsel %vm5561, %v7512, 0
    %v7563 = vsel %vm1795, %v5465, 0
    %7565 = vmatprep.subr.bf16.mxu0 0
    %7566 = vmatpush1.bf16.msra.mxu0 %v7563
    %7567 = vmatprep.subr.bf16.mxu0 0
    %7568 = vmatpush1.bf16.msra.mxu0 0
    %7569 = vmatprep.subr.bf16.mxu0 0
    %7570 = vmatpush1.bf16.msra.mxu0 0
    %7571 = vmatprep.subr.bf16.mxu0 0
    %7572 = vmatpush1.bf16.msra.mxu0 0
    %7573 = vmatprep.subr.bf16.mxu0 0
    %7574 = vmatpush1.bf16.msra.mxu0 0
    %7575 = vmatprep.subr.bf16.mxu0 0
    %7576 = vmatpush1.bf16.msra.mxu0 0
    %7577 = vmatprep.subr.bf16.mxu0 0
    %7578 = vmatpush1.bf16.msra.mxu0 0
    %7579 = vmatprep.subr.bf16.mxu0 0
    %7580 = vmatpush1.bf16.msra.mxu0 0
    %7581 = vmatprep.subr.bf16.mxu0 0
    %7582 = vmatpush1.bf16.msra.mxu0 0
    %7583 = vmatprep.subr.bf16.mxu0 0
    %7584 = vmatpush1.bf16.msra.mxu0 0
    %7585 = vmatprep.subr.bf16.mxu0 0
    %7586 = vmatpush1.bf16.msra.mxu0 0
    %7587 = vmatprep.subr.bf16.mxu0 0
    %7588 = vmatpush1.bf16.msra.mxu0 0
    %7589 = vmatprep.subr.bf16.mxu0 0
    %7590 = vmatpush1.bf16.msra.mxu0 0
    %7591 = vmatprep.subr.bf16.mxu0 0
    %7592 = vmatpush1.bf16.msra.mxu0 0
    %7593 = vmatprep.subr.bf16.mxu0 0
    %7594 = vmatpush1.bf16.msra.mxu0 0
    %7595 = vmatprep.subr.bf16.mxu0 0
    %7596 = vmatpush1.bf16.msra.mxu0 0
    %7597 = vmatprep.mubr.bf16.mxu0 0
    %7598 = vmatmul.mubr.bf16.gmra.mrb[0].mxu0 %v7560
    %v7599 = vpop.f32.mrb[0].mxu0
    %v7600 = vadd.f32 0.0, %v7599
    %v7601 = vpop.f32.mrb[0].mxu0
    %v7602 = vpop.f32.mrb[0].mxu0
    %v7603 = vpop.f32.mrb[0].mxu0
    %7604 = vdwg.mxu0
    %v7605 = vpack.c.bf16 %v7600, %v7554
    %s7606 = scalar_lea.vmem [#allocation7], 640
    %v7607 = vld [vmem:[%s7606] sm:$0xff]
    %v7608 = vld [vmem:[%s7606 + $0x8] sm:$0xff]
    %v7609 = vld [vmem:[%s7606 + $0x10] sm:$0xf]
    %v7610 = vld [vmem:[%s7606 + $0x14] sm:$0xff]
    %v7611 = vld [vmem:[%s7606 + $0x1c] sm:$0xff]
    %v7612 = vld [vmem:[%s7606 + $0x24] sm:$0xf]
    %v7613 = vld [vmem:[%s7606 + $0x28] sm:$0xff]
    %v7614 = vld [vmem:[%s7606 + $0x30] sm:$0xff]
    %v7615 = vld [vmem:[%s7606 + $0x38] sm:$0xf]
    %v7616 = vld [vmem:[%s7606 + $0x3c] sm:$0xff]
    %v7617 = vld [vmem:[%s7606 + $0x44] sm:$0xff]
    %v7618 = vld [vmem:[%s7606 + $0x4c] sm:$0xf]
    %v7619 = vld [vmem:[%s7606 + $0x50] sm:$0xff]
    %v7620 = vld [vmem:[%s7606 + $0x58] sm:$0xff]
    %v7621 = vld [vmem:[%s7606 + $0x60] sm:$0xf]
    %v7622 = vld [vmem:[%s7606 + $0x64] sm:$0xff]
    %v7623 = vld [vmem:[%s7606 + $0x6c] sm:$0xff]
    %v7624 = vld [vmem:[%s7606 + $0x74] sm:$0xf]
    %v7625 = vld [vmem:[%s7606 + $0x78] sm:$0xff]
    %v7626 = vld [vmem:[%s7606 + $0x80] sm:$0xff]
    %v7627 = vld [vmem:[%s7606 + $0x88] sm:$0xf]
    %v7628 = vld [vmem:[%s7606 + $0x8c] sm:$0xff]
    %v7629 = vld [vmem:[%s7606 + $0x94] sm:$0xff]
    %v7630 = vld [vmem:[%s7606 + $0x9c] sm:$0xf]
    %v7655 = vunpack.c.l.b16 %v7607
    %v7656 = vunpack.c.h.b16 %v7607
    %v7657 = vunpack.c.l.b16 %v7608
    %v7658 = vunpack.c.h.b16 %v7608
    %v7659 = vunpack.c.l.b16 %v7609
    %v7660 = vunpack.c.l.b16 %v7610
    %v7661 = vunpack.c.h.b16 %v7610
    %v7662 = vunpack.c.l.b16 %v7611
    %v7663 = vunpack.c.h.b16 %v7611
    %v7664 = vunpack.c.l.b16 %v7612
    %v7665 = vunpack.c.l.b16 %v7613
    %v7666 = vunpack.c.h.b16 %v7613
    %v7667 = vunpack.c.l.b16 %v7614
    %v7668 = vunpack.c.h.b16 %v7614
    %v7669 = vunpack.c.l.b16 %v7615
    %v7670 = vunpack.c.l.b16 %v7616
    %v7671 = vunpack.c.h.b16 %v7616
    %v7672 = vunpack.c.l.b16 %v7617
    %v7673 = vunpack.c.h.b16 %v7617
    %v7674 = vunpack.c.l.b16 %v7618
    %v7675 = vunpack.c.l.b16 %v7619
    %v7676 = vunpack.c.h.b16 %v7619
    %v7677 = vunpack.c.l.b16 %v7620
    %v7678 = vunpack.c.h.b16 %v7620
    %v7679 = vunpack.c.l.b16 %v7621
    %v7680 = vunpack.c.l.b16 %v7622
    %v7681 = vunpack.c.h.b16 %v7622
    %v7682 = vunpack.c.l.b16 %v7623
    %v7683 = vunpack.c.h.b16 %v7623
    %v7684 = vunpack.c.l.b16 %v7624
    %v7685 = vunpack.c.l.b16 %v7625
    %v7686 = vunpack.c.h.b16 %v7625
    %v7687 = vunpack.c.l.b16 %v7626
    %v7688 = vunpack.c.h.b16 %v7626
    %v7689 = vunpack.c.l.b16 %v7627
    %v7690 = vunpack.c.l.b16 %v7628
    %v7691 = vunpack.c.h.b16 %v7628
    %v7692 = vunpack.c.l.b16 %v7629
    %v7693 = vunpack.c.h.b16 %v7629
    %v7694 = vunpack.c.l.b16 %v7630
    %v7695 = vpack.c.b16 %v7660, %v7655
    %v7696 = vpack.c.b16 %v7661, %v7656
    %v7697 = vpack.c.b16 %v7662, %v7657
    %v7698 = vpack.c.b16 %v7663, %v7658
    %v7699 = vpack.c.b16 %v7664, %v7659
    %v7700 = vpack.c.b16 %v7670, %v7665
    %v7701 = vpack.c.b16 %v7671, %v7666
    %v7702 = vpack.c.b16 %v7672, %v7667
    %v7703 = vpack.c.b16 %v7673, %v7668
    %v7704 = vpack.c.b16 %v7674, %v7669
    %v7705 = vpack.c.b16 %v7680, %v7675
    %v7706 = vpack.c.b16 %v7681, %v7676
    %v7707 = vpack.c.b16 %v7682, %v7677
    %v7708 = vpack.c.b16 %v7683, %v7678
    %v7709 = vpack.c.b16 %v7684, %v7679
    %v7710 = vpack.c.b16 %v7690, %v7685
    %v7711 = vpack.c.b16 %v7691, %v7686
    %v7712 = vpack.c.b16 %v7692, %v7687
    %v7713 = vpack.c.b16 %v7693, %v7688
    %v7714 = vpack.c.b16 %v7694, %v7689
    %v7736 = vsel %vm5468, %v7605, 0
    %7738 = vmatprep.subr.bf16.mxu0 %v7696
    %7739 = vmatpush1.bf16.msra.mxu0 %v7695
    %7740 = vmatprep.subr.bf16.mxu0 %v7701
    %7741 = vmatpush1.bf16.msra.mxu0 %v7700
    %7742 = vmatprep.subr.bf16.mxu0 %v7706
    %7743 = vmatpush1.bf16.msra.mxu0 %v7705
    %7744 = vmatprep.subr.bf16.mxu0 %v7711
    %7745 = vmatpush1.bf16.msra.mxu0 %v7710
    %7746 = vmatprep.subr.bf16.mxu0 0
    %7747 = vmatpush1.bf16.msra.mxu0 0
    %7748 = vmatprep.subr.bf16.mxu0 0
    %7749 = vmatpush1.bf16.msra.mxu0 0
    %7750 = vmatprep.subr.bf16.mxu0 0
    %7751 = vmatpush1.bf16.msra.mxu0 0
    %7752 = vmatprep.subr.bf16.mxu0 0
    %7753 = vmatpush1.bf16.msra.mxu0 0
    %7754 = vmatprep.subr.bf16.mxu0 0
    %7755 = vmatpush1.bf16.msra.mxu0 0
    %7756 = vmatprep.subr.bf16.mxu0 0
    %7757 = vmatpush1.bf16.msra.mxu0 0
    %7758 = vmatprep.subr.bf16.mxu0 0
    %7759 = vmatpush1.bf16.msra.mxu0 0
    %7760 = vmatprep.subr.bf16.mxu0 0
    %7761 = vmatpush1.bf16.msra.mxu0 0
    %7762 = vmatprep.subr.bf16.mxu0 0
    %7763 = vmatpush1.bf16.msra.mxu0 0
    %7764 = vmatprep.subr.bf16.mxu0 0
    %7765 = vmatpush1.bf16.msra.mxu0 0
    %7766 = vmatprep.subr.bf16.mxu0 0
    %7767 = vmatpush1.bf16.msra.mxu0 0
    %7768 = vmatprep.subr.bf16.mxu0 0
    %7769 = vmatpush1.bf16.msra.mxu0 0
    %7770 = vmatprep.mubr.bf16.mxu0 0
    %7771 = vmatmul.mubr.bf16.gmra.mrb[0].mxu0 %v7736
    %v7772 = vpop.f32.mrb[0].mxu0
    %v7773 = vadd.f32 0.0, %v7772
    %v7774 = vpop.f32.mrb[0].mxu0
    %v7775 = vadd.f32 0.0, %v7774
    %v7776 = vpop.f32.mrb[0].mxu0
    %v7777 = vadd.f32 0.0, %v7776
    %v7778 = vpop.f32.mrb[0].mxu0
    %v7779 = vadd.f32 0.0, %v7778
    %7780 = vdwg.mxu0
    %7781 = vmatprep.subr.bf16.mxu0 %v7698
    %7782 = vmatpush1.bf16.msra.mxu0 %v7697
    %7783 = vmatprep.subr.bf16.mxu0 %v7703
    %7784 = vmatpush1.bf16.msra.mxu0 %v7702
    %7785 = vmatprep.subr.bf16.mxu0 %v7708
    %7786 = vmatpush1.bf16.msra.mxu0 %v7707
    %7787 = vmatprep.subr.bf16.mxu0 %v7713
    %7788 = vmatpush1.bf16.msra.mxu0 %v7712
    %7789 = vmatprep.subr.bf16.mxu0 0
    %7790 = vmatpush1.bf16.msra.mxu0 0
    %7791 = vmatprep.subr.bf16.mxu0 0
    %7792 = vmatpush1.bf16.msra.mxu0 0
    %7793 = vmatprep.subr.bf16.mxu0 0
    %7794 = vmatpush1.bf16.msra.mxu0 0
    %7795 = vmatprep.subr.bf16.mxu0 0
    %7796 = vmatpush1.bf16.msra.mxu0 0
    %7797 = vmatprep.subr.bf16.mxu0 0
    %7798 = vmatpush1.bf16.msra.mxu0 0
    %7799 = vmatprep.subr.bf16.mxu0 0
    %7800 = vmatpush1.bf16.msra.mxu0 0
    %7801 = vmatprep.subr.bf16.mxu0 0
    %7802 = vmatpush1.bf16.msra.mxu0 0
    %7803 = vmatprep.subr.bf16.mxu0 0
    %7804 = vmatpush1.bf16.msra.mxu0 0
    %7805 = vmatprep.subr.bf16.mxu0 0
    %7806 = vmatpush1.bf16.msra.mxu0 0
    %7807 = vmatprep.subr.bf16.mxu0 0
    %7808 = vmatpush1.bf16.msra.mxu0 0
    %7809 = vmatprep.subr.bf16.mxu0 0
    %7810 = vmatpush1.bf16.msra.mxu0 0
    %7811 = vmatprep.subr.bf16.mxu0 0
    %7812 = vmatpush1.bf16.msra.mxu0 0
    %7813 = vmatprep.mubr.bf16.mxu0 0
    %7814 = vmatmul.mubr.bf16.gmra.mrb[0].mxu0 %v7736
    %v7815 = vpop.f32.mrb[0].mxu0
    %v7816 = vadd.f32 0.0, %v7815
    %v7817 = vpop.f32.mrb[0].mxu0
    %v7818 = vadd.f32 0.0, %v7817
    %v7819 = vpop.f32.mrb[0].mxu0
    %v7820 = vadd.f32 0.0, %v7819
    %v7821 = vpop.f32.mrb[0].mxu0
    %v7822 = vadd.f32 0.0, %v7821
    %7823 = vdwg.mxu0
    %7824 = vmatprep.subr.bf16.mxu0 0
    %7825 = vmatpush1.bf16.msra.mxu0 %v7699
    %7826 = vmatprep.subr.bf16.mxu0 0
    %7827 = vmatpush1.bf16.msra.mxu0 %v7704
    %7828 = vmatprep.subr.bf16.mxu0 0
    %7829 = vmatpush1.bf16.msra.mxu0 %v7709
    %7830 = vmatprep.subr.bf16.mxu0 0
    %7831 = vmatpush1.bf16.msra.mxu0 %v7714
    %7832 = vmatprep.subr.bf16.mxu0 0
    %7833 = vmatpush1.bf16.msra.mxu0 0
    %7834 = vmatprep.subr.bf16.mxu0 0
    %7835 = vmatpush1.bf16.msra.mxu0 0
    %7836 = vmatprep.subr.bf16.mxu0 0
    %7837 = vmatpush1.bf16.msra.mxu0 0
    %7838 = vmatprep.subr.bf16.mxu0 0
    %7839 = vmatpush1.bf16.msra.mxu0 0
    %7840 = vmatprep.subr.bf16.mxu0 0
    %7841 = vmatpush1.bf16.msra.mxu0 0
    %7842 = vmatprep.subr.bf16.mxu0 0
    %7843 = vmatpush1.bf16.msra.mxu0 0
    %7844 = vmatprep.subr.bf16.mxu0 0
    %7845 = vmatpush1.bf16.msra.mxu0 0
    %7846 = vmatprep.subr.bf16.mxu0 0
    %7847 = vmatpush1.bf16.msra.mxu0 0
    %7848 = vmatprep.subr.bf16.mxu0 0
    %7849 = vmatpush1.bf16.msra.mxu0 0
    %7850 = vmatprep.subr.bf16.mxu0 0
    %7851 = vmatpush1.bf16.msra.mxu0 0
    %7852 = vmatprep.subr.bf16.mxu0 0
    %7853 = vmatpush1.bf16.msra.mxu0 0
    %7854 = vmatprep.subr.bf16.mxu0 0
    %7855 = vmatpush1.bf16.msra.mxu0 0
    %7856 = vmatprep.mubr.bf16.mxu0 0
    %7857 = vmatmul.mubr.bf16.gmra.mrb[0].mxu0 %v7736
    %v7858 = vpop.f32.mrb[0].mxu0
    %v7859 = vadd.f32 0.0, %v7858
    %v7860 = vpop.f32.mrb[0].mxu0
    %v7861 = vpop.f32.mrb[0].mxu0
    %v7862 = vadd.f32 0.0, %v7861
    %v7863 = vpop.f32.mrb[0].mxu0
    %7864 = vdwg.mxu0
    %v7865 = vadd.f32 %v7387, %v7773
    %v7866 = vadd.f32 %v7388, %v7775
    %v7867 = vadd.f32 %v7389, %v7816
    %v7868 = vadd.f32 %v7390, %v7818
    %v7869 = vadd.f32 %v7391, %v7859
    %v7870 = vadd.f32 %v7392, %v7777
    %v7871 = vadd.f32 %v7393, %v7779
    %v7872 = vadd.f32 %v7394, %v7820
    %v7873 = vadd.f32 %v7395, %v7822
    %v7874 = vadd.f32 %v7396, %v7862
    %7876 = vrot.lane.b32.xlu0 %v5440, 64
    %v7877 = vpop.permute.xlu0 %7876
    %7879 = vrot.lane.b32.xlu0 %v5450, 64
    %v7880 = vpop.permute.xlu0 %7879
    %v7882 = vsel %vm5468, %v7877, 0
    %v7885 = vsel %vm5468, %v7880, 0
    %7887 = vmatprep.subr.bf16.mxu0 0
    %7888 = vmatpush1.bf16.xpose.msra.mxu0 %v7885
    %7889 = vmatprep.subr.bf16.mxu0 0
    %7890 = vmatpush1.bf16.xpose.msra.mxu0 0
    %7891 = vmatprep.subr.bf16.mxu0 0
    %7892 = vmatpush1.bf16.xpose.msra.mxu0 0
    %7893 = vmatprep.subr.bf16.mxu0 0
    %7894 = vmatpush1.bf16.xpose.msra.mxu0 0
    %7895 = vmatprep.subr.bf16.mxu0 0
    %7896 = vmatpush1.bf16.xpose.msra.mxu0 0
    %7897 = vmatprep.subr.bf16.mxu0 0
    %7898 = vmatpush1.bf16.xpose.msra.mxu0 0
    %7899 = vmatprep.subr.bf16.mxu0 0
    %7900 = vmatpush1.bf16.xpose.msra.mxu0 0
    %7901 = vmatprep.subr.bf16.mxu0 0
    %7902 = vmatpush1.bf16.xpose.msra.mxu0 0
    %7903 = vmatprep.subr.bf16.mxu0 0
    %7904 = vmatpush1.bf16.xpose.msra.mxu0 0
    %7905 = vmatprep.subr.bf16.mxu0 0
    %7906 = vmatpush1.bf16.xpose.msra.mxu0 0
    %7907 = vmatprep.subr.bf16.mxu0 0
    %7908 = vmatpush1.bf16.xpose.msra.mxu0 0
    %7909 = vmatprep.subr.bf16.mxu0 0
    %7910 = vmatpush1.bf16.xpose.msra.mxu0 0
    %7911 = vmatprep.subr.bf16.mxu0 0
    %7912 = vmatpush1.bf16.xpose.msra.mxu0 0
    %7913 = vmatprep.subr.bf16.mxu0 0
    %7914 = vmatpush1.bf16.xpose.msra.mxu0 0
    %7915 = vmatprep.subr.bf16.mxu0 0
    %7916 = vmatpush1.bf16.xpose.msra.mxu0 0
    %7917 = vmatprep.subr.bf16.mxu0 0
    %7918 = vmatpush1.bf16.xpose.msra.mxu0 0
    %7919 = vmatprep.mubr.bf16.mxu0 0
    %7920 = vmatmul.mubr.bf16.gmra.mrb[0].mxu0 %v7882
    %v7921 = vpop.f32.mrb[0].mxu0
    %v7922 = vadd.f32 0.0, %v7921
    %v7923 = vpop.f32.mrb[0].mxu0
    %v7924 = vpop.f32.mrb[0].mxu0
    %v7925 = vpop.f32.mrb[0].mxu0
    %7926 = vdwg.mxu0
    %7928 = vrot.lane.b32.xlu0 %v5445, 64
    %v7929 = vpop.permute.xlu0 %7928
    %7931 = vrot.lane.b32.xlu0 %v5455, 64
    %v7932 = vpop.permute.xlu0 %7931
    %v7934 = vsel %vm5468, %v7929, 0
    %v7937 = vsel %vm5468, %v7932, 0
    %7939 = vmatprep.subr.bf16.mxu0 0
    %7940 = vmatpush1.bf16.xpose.msra.mxu0 %v7937
    %7941 = vmatprep.subr.bf16.mxu0 0
    %7942 = vmatpush1.bf16.xpose.msra.mxu0 0
    %7943 = vmatprep.subr.bf16.mxu0 0
    %7944 = vmatpush1.bf16.xpose.msra.mxu0 0
    %7945 = vmatprep.subr.bf16.mxu0 0
    %7946 = vmatpush1.bf16.xpose.msra.mxu0 0
    %7947 = vmatprep.subr.bf16.mxu0 0
    %7948 = vmatpush1.bf16.xpose.msra.mxu0 0
    %7949 = vmatprep.subr.bf16.mxu0 0
    %7950 = vmatpush1.bf16.xpose.msra.mxu0 0
    %7951 = vmatprep.subr.bf16.mxu0 0
    %7952 = vmatpush1.bf16.xpose.msra.mxu0 0
    %7953 = vmatprep.subr.bf16.mxu0 0
    %7954 = vmatpush1.bf16.xpose.msra.mxu0 0
    %7955 = vmatprep.subr.bf16.mxu0 0
    %7956 = vmatpush1.bf16.xpose.msra.mxu0 0
    %7957 = vmatprep.subr.bf16.mxu0 0
    %7958 = vmatpush1.bf16.xpose.msra.mxu0 0
    %7959 = vmatprep.subr.bf16.mxu0 0
    %7960 = vmatpush1.bf16.xpose.msra.mxu0 0
    %7961 = vmatprep.subr.bf16.mxu0 0
    %7962 = vmatpush1.bf16.xpose.msra.mxu0 0
    %7963 = vmatprep.subr.bf16.mxu0 0
    %7964 = vmatpush1.bf16.xpose.msra.mxu0 0
    %7965 = vmatprep.subr.bf16.mxu0 0
    %7966 = vmatpush1.bf16.xpose.msra.mxu0 0
    %7967 = vmatprep.subr.bf16.mxu0 0
    %7968 = vmatpush1.bf16.xpose.msra.mxu0 0
    %7969 = vmatprep.subr.bf16.mxu0 0
    %7970 = vmatpush1.bf16.xpose.msra.mxu0 0
    %7971 = vmatprep.mubr.bf16.mxu0 0
    %7972 = vmatmul.mubr.bf16.gmra.mrb[0].mxu0 %v7934
    %v7973 = vpop.f32.mrb[0].mxu0
    %v7974 = vadd.f32 0.0, %v7973
    %v7975 = vpop.f32.mrb[0].mxu0
    %v7976 = vpop.f32.mrb[0].mxu0
    %v7977 = vpop.f32.mrb[0].mxu0
    %7978 = vdwg.mxu0
    %v7979 = vsel %vm5561, %v7922, -inf
    %7980 = vmax.xlane.f32.xlu0 %v7979
    %v7981 = vpop.xlane.xlu0 %7980
    %v7982 = vsel %vm5561, %v7974, -inf
    %7983 = vmax.xlane.f32.xlu0 %v7982
    %v7984 = vpop.xlane.xlu0 %7983
    %v7985 = vsub.f32 %v7922, %v7981
    %v7986 = vsub.f32 %v7974, %v7984
    %v7987 = vmul.f32 %v7985, 1.442695
    %v7988 = vpow.pop %v7987
    %v7989 = vmul.f32 %v7986, 1.442695
    %v7990 = vpow.pop %v7989
    %v7991 = vsel %vm5561, %v7988, 0.0
    %7992 = vadd.xlane.f32.xlu0 %v7991
    %v7993 = vpop.xlane.xlu0 %7992
    %v7994 = vsel %vm5561, %v7990, 0.0
    %7995 = vadd.xlane.f32.xlu0 %v7994
    %v7996 = vpop.xlane.xlu0 %7995
    %v7997 = vrcp.pop %v7993
    %v7998 = vrcp.pop %v7996
    %v7999 = vmul.f32 %v7988, %v7997
    %v8000 = vmul.f32 %v7990, %v7998
    %v8001 = vpack.c.bf16 %v7999, %v7999
    %v8002 = vpack.c.bf16 %v8000, %v8000
    %8004 = vrot.lane.b32.xlu0 %v5460, 64
    %v8005 = vpop.permute.xlu0 %8004
    %v8007 = vsel %vm5561, %v8001, 0
    %v8010 = vsel %vm1795, %v8005, 0
    %8012 = vmatprep.subr.bf16.mxu0 0
    %8013 = vmatpush1.bf16.msra.mxu0 %v8010
    %8014 = vmatprep.subr.bf16.mxu0 0
    %8015 = vmatpush1.bf16.msra.mxu0 0
    %8016 = vmatprep.subr.bf16.mxu0 0
    %8017 = vmatpush1.bf16.msra.mxu0 0
    %8018 = vmatprep.subr.bf16.mxu0 0
    %8019 = vmatpush1.bf16.msra.mxu0 0
    %8020 = vmatprep.subr.bf16.mxu0 0
    %8021 = vmatpush1.bf16.msra.mxu0 0
    %8022 = vmatprep.subr.bf16.mxu0 0
    %8023 = vmatpush1.bf16.msra.mxu0 0
    %8024 = vmatprep.subr.bf16.mxu0 0
    %8025 = vmatpush1.bf16.msra.mxu0 0
    %8026 = vmatprep.subr.bf16.mxu0 0
    %8027 = vmatpush1.bf16.msra.mxu0 0
    %8028 = vmatprep.subr.bf16.mxu0 0
    %8029 = vmatpush1.bf16.msra.mxu0 0
    %8030 = vmatprep.subr.bf16.mxu0 0
    %8031 = vmatpush1.bf16.msra.mxu0 0
    %8032 = vmatprep.subr.bf16.mxu0 0
    %8033 = vmatpush1.bf16.msra.mxu0 0
    %8034 = vmatprep.subr.bf16.mxu0 0
    %8035 = vmatpush1.bf16.msra.mxu0 0
    %8036 = vmatprep.subr.bf16.mxu0 0
    %8037 = vmatpush1.bf16.msra.mxu0 0
    %8038 = vmatprep.subr.bf16.mxu0 0
    %8039 = vmatpush1.bf16.msra.mxu0 0
    %8040 = vmatprep.subr.bf16.mxu0 0
    %8041 = vmatpush1.bf16.msra.mxu0 0
    %8042 = vmatprep.subr.bf16.mxu0 0
    %8043 = vmatpush1.bf16.msra.mxu0 0
    %8044 = vmatprep.mubr.bf16.mxu0 0
    %8045 = vmatmul.mubr.bf16.gmra.mrb[0].mxu0 %v8007
    %v8046 = vpop.f32.mrb[0].mxu0
    %v8047 = vadd.f32 0.0, %v8046
    %v8048 = vpop.f32.mrb[0].mxu0
    %v8049 = vpop.f32.mrb[0].mxu0
    %v8050 = vpop.f32.mrb[0].mxu0
    %8051 = vdwg.mxu0
    %8053 = vrot.lane.b32.xlu0 %v5465, 64
    %v8054 = vpop.permute.xlu0 %8053
    %v8056 = vsel %vm5561, %v8002, 0
    %v8059 = vsel %vm1795, %v8054, 0
    %8061 = vmatprep.subr.bf16.mxu0 0
    %8062 = vmatpush1.bf16.msra.mxu0 %v8059
    %8063 = vmatprep.subr.bf16.mxu0 0
    %8064 = vmatpush1.bf16.msra.mxu0 0
    %8065 = vmatprep.subr.bf16.mxu0 0
    %8066 = vmatpush1.bf16.msra.mxu0 0
    %8067 = vmatprep.subr.bf16.mxu0 0
    %8068 = vmatpush1.bf16.msra.mxu0 0
    %8069 = vmatprep.subr.bf16.mxu0 0
    %8070 = vmatpush1.bf16.msra.mxu0 0
    %8071 = vmatprep.subr.bf16.mxu0 0
    %8072 = vmatpush1.bf16.msra.mxu0 0
    %8073 = vmatprep.subr.bf16.mxu0 0
    %8074 = vmatpush1.bf16.msra.mxu0 0
    %8075 = vmatprep.subr.bf16.mxu0 0
    %8076 = vmatpush1.bf16.msra.mxu0 0
    %8077 = vmatprep.subr.bf16.mxu0 0
    %8078 = vmatpush1.bf16.msra.mxu0 0
    %8079 = vmatprep.subr.bf16.mxu0 0
    %8080 = vmatpush1.bf16.msra.mxu0 0
    %8081 = vmatprep.subr.bf16.mxu0 0
    %8082 = vmatpush1.bf16.msra.mxu0 0
    %8083 = vmatprep.subr.bf16.mxu0 0
    %8084 = vmatpush1.bf16.msra.mxu0 0
    %8085 = vmatprep.subr.bf16.mxu0 0
    %8086 = vmatpush1.bf16.msra.mxu0 0
    %8087 = vmatprep.subr.bf16.mxu0 0
    %8088 = vmatpush1.bf16.msra.mxu0 0
    %8089 = vmatprep.subr.bf16.mxu0 0
    %8090 = vmatpush1.bf16.msra.mxu0 0
    %8091 = vmatprep.subr.bf16.mxu0 0
    %8092 = vmatpush1.bf16.msra.mxu0 0
    %8093 = vmatprep.mubr.bf16.mxu0 0
    %8094 = vmatmul.mubr.bf16.gmra.mrb[0].mxu0 %v8056
    %v8095 = vpop.f32.mrb[0].mxu0
    %v8096 = vadd.f32 0.0, %v8095
    %v8097 = vpop.f32.mrb[0].mxu0
    %v8098 = vpop.f32.mrb[0].mxu0
    %v8099 = vpop.f32.mrb[0].mxu0
    %8100 = vdwg.mxu0
    %v8101 = vpack.c.bf16 %v8096, %v8047
    %s8102 = scalar_lea.vmem [#allocation7], 800
    %v8103 = vld [vmem:[%s8102] sm:$0xff]
    %v8104 = vld [vmem:[%s8102 + $0x8] sm:$0xff]
    %v8105 = vld [vmem:[%s8102 + $0x10] sm:$0xf]
    %v8106 = vld [vmem:[%s8102 + $0x14] sm:$0xff]
    %v8107 = vld [vmem:[%s8102 + $0x1c] sm:$0xff]
    %v8108 = vld [vmem:[%s8102 + $0x24] sm:$0xf]
    %v8109 = vld [vmem:[%s8102 + $0x28] sm:$0xff]
    %v8110 = vld [vmem:[%s8102 + $0x30] sm:$0xff]
    %v8111 = vld [vmem:[%s8102 + $0x38] sm:$0xf]
    %v8112 = vld [vmem:[%s8102 + $0x3c] sm:$0xff]
    %v8113 = vld [vmem:[%s8102 + $0x44] sm:$0xff]
    %v8114 = vld [vmem:[%s8102 + $0x4c] sm:$0xf]
    %v8115 = vld [vmem:[%s8102 + $0x50] sm:$0xff]
    %v8116 = vld [vmem:[%s8102 + $0x58] sm:$0xff]
    %v8117 = vld [vmem:[%s8102 + $0x60] sm:$0xf]
    %v8118 = vld [vmem:[%s8102 + $0x64] sm:$0xff]
    %v8119 = vld [vmem:[%s8102 + $0x6c] sm:$0xff]
    %v8120 = vld [vmem:[%s8102 + $0x74] sm:$0xf]
    %v8121 = vld [vmem:[%s8102 + $0x78] sm:$0xff]
    %v8122 = vld [vmem:[%s8102 + $0x80] sm:$0xff]
    %v8123 = vld [vmem:[%s8102 + $0x88] sm:$0xf]
    %v8124 = vld [vmem:[%s8102 + $0x8c] sm:$0xff]
    %v8125 = vld [vmem:[%s8102 + $0x94] sm:$0xff]
    %v8126 = vld [vmem:[%s8102 + $0x9c] sm:$0xf]
    %v8151 = vunpack.c.l.b16 %v8103
    %v8152 = vunpack.c.h.b16 %v8103
    %v8153 = vunpack.c.l.b16 %v8104
    %v8154 = vunpack.c.h.b16 %v8104
    %v8155 = vunpack.c.l.b16 %v8105
    %v8156 = vunpack.c.l.b16 %v8106
    %v8157 = vunpack.c.h.b16 %v8106
    %v8158 = vunpack.c.l.b16 %v8107
    %v8159 = vunpack.c.h.b16 %v8107
    %v8160 = vunpack.c.l.b16 %v8108
    %v8161 = vunpack.c.l.b16 %v8109
    %v8162 = vunpack.c.h.b16 %v8109
    %v8163 = vunpack.c.l.b16 %v8110
    %v8164 = vunpack.c.h.b16 %v8110
    %v8165 = vunpack.c.l.b16 %v8111
    %v8166 = vunpack.c.l.b16 %v8112
    %v8167 = vunpack.c.h.b16 %v8112
    %v8168 = vunpack.c.l.b16 %v8113
    %v8169 = vunpack.c.h.b16 %v8113
    %v8170 = vunpack.c.l.b16 %v8114
    %v8171 = vunpack.c.l.b16 %v8115
    %v8172 = vunpack.c.h.b16 %v8115
    %v8173 = vunpack.c.l.b16 %v8116
    %v8174 = vunpack.c.h.b16 %v8116
    %v8175 = vunpack.c.l.b16 %v8117
    %v8176 = vunpack.c.l.b16 %v8118
    %v8177 = vunpack.c.h.b16 %v8118
    %v8178 = vunpack.c.l.b16 %v8119
    %v8179 = vunpack.c.h.b16 %v8119
    %v8180 = vunpack.c.l.b16 %v8120
    %v8181 = vunpack.c.l.b16 %v8121
    %v8182 = vunpack.c.h.b16 %v8121
    %v8183 = vunpack.c.l.b16 %v8122
    %v8184 = vunpack.c.h.b16 %v8122
    %v8185 = vunpack.c.l.b16 %v8123
    %v8186 = vunpack.c.l.b16 %v8124
    %v8187 = vunpack.c.h.b16 %v8124
    %v8188 = vunpack.c.l.b16 %v8125
    %v8189 = vunpack.c.h.b16 %v8125
    %v8190 = vunpack.c.l.b16 %v8126
    %v8191 = vpack.c.b16 %v8156, %v8151
    %v8192 = vpack.c.b16 %v8157, %v8152
    %v8193 = vpack.c.b16 %v8158, %v8153
    %v8194 = vpack.c.b16 %v8159, %v8154
    %v8195 = vpack.c.b16 %v8160, %v8155
    %v8196 = vpack.c.b16 %v8166, %v8161
    %v8197 = vpack.c.b16 %v8167, %v8162
    %v8198 = vpack.c.b16 %v8168, %v8163
    %v8199 = vpack.c.b16 %v8169, %v8164
    %v8200 = vpack.c.b16 %v8170, %v8165
    %v8201 = vpack.c.b16 %v8176, %v8171
    %v8202 = vpack.c.b16 %v8177, %v8172
    %v8203 = vpack.c.b16 %v8178, %v8173
    %v8204 = vpack.c.b16 %v8179, %v8174
    %v8205 = vpack.c.b16 %v8180, %v8175
    %v8206 = vpack.c.b16 %v8186, %v8181
    %v8207 = vpack.c.b16 %v8187, %v8182
    %v8208 = vpack.c.b16 %v8188, %v8183
    %v8209 = vpack.c.b16 %v8189, %v8184
    %v8210 = vpack.c.b16 %v8190, %v8185
    %v8232 = vsel %vm5468, %v8101, 0
    %8234 = vmatprep.subr.bf16.mxu0 %v8192
    %8235 = vmatpush1.bf16.msra.mxu0 %v8191
    %8236 = vmatprep.subr.bf16.mxu0 %v8197
    %8237 = vmatpush1.bf16.msra.mxu0 %v8196
    %8238 = vmatprep.subr.bf16.mxu0 %v8202
    %8239 = vmatpush1.bf16.msra.mxu0 %v8201
    %8240 = vmatprep.subr.bf16.mxu0 %v8207
    %8241 = vmatpush1.bf16.msra.mxu0 %v8206
    %8242 = vmatprep.subr.bf16.mxu0 0
    %8243 = vmatpush1.bf16.msra.mxu0 0
    %8244 = vmatprep.subr.bf16.mxu0 0
    %8245 = vmatpush1.bf16.msra.mxu0 0
    %8246 = vmatprep.subr.bf16.mxu0 0
    %8247 = vmatpush1.bf16.msra.mxu0 0
    %8248 = vmatprep.subr.bf16.mxu0 0
    %8249 = vmatpush1.bf16.msra.mxu0 0
    %8250 = vmatprep.subr.bf16.mxu0 0
    %8251 = vmatpush1.bf16.msra.mxu0 0
    %8252 = vmatprep.subr.bf16.mxu0 0
    %8253 = vmatpush1.bf16.msra.mxu0 0
    %8254 = vmatprep.subr.bf16.mxu0 0
    %8255 = vmatpush1.bf16.msra.mxu0 0
    %8256 = vmatprep.subr.bf16.mxu0 0
    %8257 = vmatpush1.bf16.msra.mxu0 0
    %8258 = vmatprep.subr.bf16.mxu0 0
    %8259 = vmatpush1.bf16.msra.mxu0 0
    %8260 = vmatprep.subr.bf16.mxu0 0
    %8261 = vmatpush1.bf16.msra.mxu0 0
    %8262 = vmatprep.subr.bf16.mxu0 0
    %8263 = vmatpush1.bf16.msra.mxu0 0
    %8264 = vmatprep.subr.bf16.mxu0 0
    %8265 = vmatpush1.bf16.msra.mxu0 0
    %8266 = vmatprep.mubr.bf16.mxu0 0
    %8267 = vmatmul.mubr.bf16.gmra.mrb[0].mxu0 %v8232
    %v8268 = vpop.f32.mrb[0].mxu0
    %v8269 = vadd.f32 0.0, %v8268
    %v8270 = vpop.f32.mrb[0].mxu0
    %v8271 = vadd.f32 0.0, %v8270
    %v8272 = vpop.f32.mrb[0].mxu0
    %v8273 = vadd.f32 0.0, %v8272
    %v8274 = vpop.f32.mrb[0].mxu0
    %v8275 = vadd.f32 0.0, %v8274
    %8276 = vdwg.mxu0
    %8277 = vmatprep.subr.bf16.mxu0 %v8194
    %8278 = vmatpush1.bf16.msra.mxu0 %v8193
    %8279 = vmatprep.subr.bf16.mxu0 %v8199
    %8280 = vmatpush1.bf16.msra.mxu0 %v8198
    %8281 = vmatprep.subr.bf16.mxu0 %v8204
    %8282 = vmatpush1.bf16.msra.mxu0 %v8203
    %8283 = vmatprep.subr.bf16.mxu0 %v8209
    %8284 = vmatpush1.bf16.msra.mxu0 %v8208
    %8285 = vmatprep.subr.bf16.mxu0 0
    %8286 = vmatpush1.bf16.msra.mxu0 0
    %8287 = vmatprep.subr.bf16.mxu0 0
    %8288 = vmatpush1.bf16.msra.mxu0 0
    %8289 = vmatprep.subr.bf16.mxu0 0
    %8290 = vmatpush1.bf16.msra.mxu0 0
    %8291 = vmatprep.subr.bf16.mxu0 0
    %8292 = vmatpush1.bf16.msra.mxu0 0
    %8293 = vmatprep.subr.bf16.mxu0 0
    %8294 = vmatpush1.bf16.msra.mxu0 0
    %8295 = vmatprep.subr.bf16.mxu0 0
    %8296 = vmatpush1.bf16.msra.mxu0 0
    %8297 = vmatprep.subr.bf16.mxu0 0
    %8298 = vmatpush1.bf16.msra.mxu0 0
    %8299 = vmatprep.subr.bf16.mxu0 0
    %8300 = vmatpush1.bf16.msra.mxu0 0
    %8301 = vmatprep.subr.bf16.mxu0 0
    %8302 = vmatpush1.bf16.msra.mxu0 0
    %8303 = vmatprep.subr.bf16.mxu0 0
    %8304 = vmatpush1.bf16.msra.mxu0 0
    %8305 = vmatprep.subr.bf16.mxu0 0
    %8306 = vmatpush1.bf16.msra.mxu0 0
    %8307 = vmatprep.subr.bf16.mxu0 0
    %8308 = vmatpush1.bf16.msra.mxu0 0
    %8309 = vmatprep.mubr.bf16.mxu0 0
    %8310 = vmatmul.mubr.bf16.gmra.mrb[0].mxu0 %v8232
    %v8311 = vpop.f32.mrb[0].mxu0
    %v8312 = vadd.f32 0.0, %v8311
    %v8313 = vpop.f32.mrb[0].mxu0
    %v8314 = vadd.f32 0.0, %v8313
    %v8315 = vpop.f32.mrb[0].mxu0
    %v8316 = vadd.f32 0.0, %v8315
    %v8317 = vpop.f32.mrb[0].mxu0
    %v8318 = vadd.f32 0.0, %v8317
    %8319 = vdwg.mxu0
    %8320 = vmatprep.subr.bf16.mxu0 0
    %8321 = vmatpush1.bf16.msra.mxu0 %v8195
    %8322 = vmatprep.subr.bf16.mxu0 0
    %8323 = vmatpush1.bf16.msra.mxu0 %v8200
    %8324 = vmatprep.subr.bf16.mxu0 0
    %8325 = vmatpush1.bf16.msra.mxu0 %v8205
    %8326 = vmatprep.subr.bf16.mxu0 0
    %8327 = vmatpush1.bf16.msra.mxu0 %v8210
    %8328 = vmatprep.subr.bf16.mxu0 0
    %8329 = vmatpush1.bf16.msra.mxu0 0
    %8330 = vmatprep.subr.bf16.mxu0 0
    %8331 = vmatpush1.bf16.msra.mxu0 0
    %8332 = vmatprep.subr.bf16.mxu0 0
    %8333 = vmatpush1.bf16.msra.mxu0 0
    %8334 = vmatprep.subr.bf16.mxu0 0
    %8335 = vmatpush1.bf16.msra.mxu0 0
    %8336 = vmatprep.subr.bf16.mxu0 0
    %8337 = vmatpush1.bf16.msra.mxu0 0
    %8338 = vmatprep.subr.bf16.mxu0 0
    %8339 = vmatpush1.bf16.msra.mxu0 0
    %8340 = vmatprep.subr.bf16.mxu0 0
    %8341 = vmatpush1.bf16.msra.mxu0 0
    %8342 = vmatprep.subr.bf16.mxu0 0
    %8343 = vmatpush1.bf16.msra.mxu0 0
    %8344 = vmatprep.subr.bf16.mxu0 0
    %8345 = vmatpush1.bf16.msra.mxu0 0
    %8346 = vmatprep.subr.bf16.mxu0 0
    %8347 = vmatpush1.bf16.msra.mxu0 0
    %8348 = vmatprep.subr.bf16.mxu0 0
    %8349 = vmatpush1.bf16.msra.mxu0 0
    %8350 = vmatprep.subr.bf16.mxu0 0
    %8351 = vmatpush1.bf16.msra.mxu0 0
    %8352 = vmatprep.mubr.bf16.mxu0 0
    %8353 = vmatmul.mubr.bf16.gmra.mrb[0].mxu0 %v8232
    %v8354 = vpop.f32.mrb[0].mxu0
    %v8355 = vadd.f32 0.0, %v8354
    %v8356 = vpop.f32.mrb[0].mxu0
    %v8357 = vpop.f32.mrb[0].mxu0
    %v8358 = vadd.f32 0.0, %v8357
    %v8359 = vpop.f32.mrb[0].mxu0
    %8360 = vdwg.mxu0
    %v8361 = vadd.f32 %v7865, %v8269
    %v8362 = vadd.f32 %v7866, %v8271
    %v8363 = vadd.f32 %v7867, %v8312
    %v8364 = vadd.f32 %v7868, %v8314
    %v8365 = vadd.f32 %v7869, %v8355
    %v8366 = vadd.f32 %v7870, %v8273
    %v8367 = vadd.f32 %v7871, %v8275
    %v8368 = vadd.f32 %v7872, %v8316
    %v8369 = vadd.f32 %v7873, %v8318
    %v8370 = vadd.f32 %v7874, %v8358
    %v8372 = vsel %vm5468, %v5441, 0
    %v8375 = vsel %vm5468, %v5451, 0
    %8377 = vmatprep.subr.bf16.mxu0 0
    %8378 = vmatpush1.bf16.xpose.msra.mxu0 %v8375
    %8379 = vmatprep.subr.bf16.mxu0 0
    %8380 = vmatpush1.bf16.xpose.msra.mxu0 0
    %8381 = vmatprep.subr.bf16.mxu0 0
    %8382 = vmatpush1.bf16.xpose.msra.mxu0 0
    %8383 = vmatprep.subr.bf16.mxu0 0
    %8384 = vmatpush1.bf16.xpose.msra.mxu0 0
    %8385 = vmatprep.subr.bf16.mxu0 0
    %8386 = vmatpush1.bf16.xpose.msra.mxu0 0
    %8387 = vmatprep.subr.bf16.mxu0 0
    %8388 = vmatpush1.bf16.xpose.msra.mxu0 0
    %8389 = vmatprep.subr.bf16.mxu0 0
    %8390 = vmatpush1.bf16.xpose.msra.mxu0 0
    %8391 = vmatprep.subr.bf16.mxu0 0
    %8392 = vmatpush1.bf16.xpose.msra.mxu0 0
    %8393 = vmatprep.subr.bf16.mxu0 0
    %8394 = vmatpush1.bf16.xpose.msra.mxu0 0
    %8395 = vmatprep.subr.bf16.mxu0 0
    %8396 = vmatpush1.bf16.xpose.msra.mxu0 0
    %8397 = vmatprep.subr.bf16.mxu0 0
    %8398 = vmatpush1.bf16.xpose.msra.mxu0 0
    %8399 = vmatprep.subr.bf16.mxu0 0
    %8400 = vmatpush1.bf16.xpose.msra.mxu0 0
    %8401 = vmatprep.subr.bf16.mxu0 0
    %8402 = vmatpush1.bf16.xpose.msra.mxu0 0
    %8403 = vmatprep.subr.bf16.mxu0 0
    %8404 = vmatpush1.bf16.xpose.msra.mxu0 0
    %8405 = vmatprep.subr.bf16.mxu0 0
    %8406 = vmatpush1.bf16.xpose.msra.mxu0 0
    %8407 = vmatprep.subr.bf16.mxu0 0
    %8408 = vmatpush1.bf16.xpose.msra.mxu0 0
    %8409 = vmatprep.mubr.bf16.mxu0 0
    %8410 = vmatmul.mubr.bf16.gmra.mrb[0].mxu0 %v8372
    %v8411 = vpop.f32.mrb[0].mxu0
    %v8412 = vadd.f32 0.0, %v8411
    %v8413 = vpop.f32.mrb[0].mxu0
    %v8414 = vpop.f32.mrb[0].mxu0
    %v8415 = vpop.f32.mrb[0].mxu0
    %8416 = vdwg.mxu0
    %v8418 = vsel %vm5468, %v5446, 0
    %v8421 = vsel %vm5468, %v5456, 0
    %8423 = vmatprep.subr.bf16.mxu0 0
    %8424 = vmatpush1.bf16.xpose.msra.mxu0 %v8421
    %8425 = vmatprep.subr.bf16.mxu0 0
    %8426 = vmatpush1.bf16.xpose.msra.mxu0 0
    %8427 = vmatprep.subr.bf16.mxu0 0
    %8428 = vmatpush1.bf16.xpose.msra.mxu0 0
    %8429 = vmatprep.subr.bf16.mxu0 0
    %8430 = vmatpush1.bf16.xpose.msra.mxu0 0
    %8431 = vmatprep.subr.bf16.mxu0 0
    %8432 = vmatpush1.bf16.xpose.msra.mxu0 0
    %8433 = vmatprep.subr.bf16.mxu0 0
    %8434 = vmatpush1.bf16.xpose.msra.mxu0 0
    %8435 = vmatprep.subr.bf16.mxu0 0
    %8436 = vmatpush1.bf16.xpose.msra.mxu0 0
    %8437 = vmatprep.subr.bf16.mxu0 0
    %8438 = vmatpush1.bf16.xpose.msra.mxu0 0
    %8439 = vmatprep.subr.bf16.mxu0 0
    %8440 = vmatpush1.bf16.xpose.msra.mxu0 0
    %8441 = vmatprep.subr.bf16.mxu0 0
    %8442 = vmatpush1.bf16.xpose.msra.mxu0 0
    %8443 = vmatprep.subr.bf16.mxu0 0
    %8444 = vmatpush1.bf16.xpose.msra.mxu0 0
    %8445 = vmatprep.subr.bf16.mxu0 0
    %8446 = vmatpush1.bf16.xpose.msra.mxu0 0
    %8447 = vmatprep.subr.bf16.mxu0 0
    %8448 = vmatpush1.bf16.xpose.msra.mxu0 0
    %8449 = vmatprep.subr.bf16.mxu0 0
    %8450 = vmatpush1.bf16.xpose.msra.mxu0 0
    %8451 = vmatprep.subr.bf16.mxu0 0
    %8452 = vmatpush1.bf16.xpose.msra.mxu0 0
    %8453 = vmatprep.subr.bf16.mxu0 0
    %8454 = vmatpush1.bf16.xpose.msra.mxu0 0
    %8455 = vmatprep.mubr.bf16.mxu0 0
    %8456 = vmatmul.mubr.bf16.gmra.mrb[0].mxu0 %v8418
    %v8457 = vpop.f32.mrb[0].mxu0
    %v8458 = vadd.f32 0.0, %v8457
    %v8459 = vpop.f32.mrb[0].mxu0
    %v8460 = vpop.f32.mrb[0].mxu0
    %v8461 = vpop.f32.mrb[0].mxu0
    %8462 = vdwg.mxu0
    %v8463 = vsel %vm5561, %v8412, -inf
    %8464 = vmax.xlane.f32.xlu0 %v8463
    %v8465 = vpop.xlane.xlu0 %8464
    %v8466 = vsel %vm5561, %v8458, -inf
    %8467 = vmax.xlane.f32.xlu0 %v8466
    %v8468 = vpop.xlane.xlu0 %8467
    %v8469 = vsub.f32 %v8412, %v8465
    %v8470 = vsub.f32 %v8458, %v8468
    %v8471 = vmul.f32 %v8469, 1.442695
    %v8472 = vpow.pop %v8471
    %v8473 = vmul.f32 %v8470, 1.442695
    %v8474 = vpow.pop %v8473
    %v8475 = vsel %vm5561, %v8472, 0.0
    %8476 = vadd.xlane.f32.xlu0 %v8475
    %v8477 = vpop.xlane.xlu0 %8476
    %v8478 = vsel %vm5561, %v8474, 0.0
    %8479 = vadd.xlane.f32.xlu0 %v8478
    %v8480 = vpop.xlane.xlu0 %8479
    %v8481 = vrcp.pop %v8477
    %v8482 = vrcp.pop %v8480
    %v8483 = vmul.f32 %v8472, %v8481
    %v8484 = vmul.f32 %v8474, %v8482
    %v8485 = vpack.c.bf16 %v8483, %v8483
    %v8486 = vpack.c.bf16 %v8484, %v8484
    %v8488 = vsel %vm5561, %v8485, 0
    %v8491 = vsel %vm1795, %v5461, 0
    %8493 = vmatprep.subr.bf16.mxu0 0
    %8494 = vmatpush1.bf16.msra.mxu0 %v8491
    %8495 = vmatprep.subr.bf16.mxu0 0
    %8496 = vmatpush1.bf16.msra.mxu0 0
    %8497 = vmatprep.subr.bf16.mxu0 0
    %8498 = vmatpush1.bf16.msra.mxu0 0
    %8499 = vmatprep.subr.bf16.mxu0 0
    %8500 = vmatpush1.bf16.msra.mxu0 0
    %8501 = vmatprep.subr.bf16.mxu0 0
    %8502 = vmatpush1.bf16.msra.mxu0 0
    %8503 = vmatprep.subr.bf16.mxu0 0
    %8504 = vmatpush1.bf16.msra.mxu0 0
    %8505 = vmatprep.subr.bf16.mxu0 0
    %8506 = vmatpush1.bf16.msra.mxu0 0
    %8507 = vmatprep.subr.bf16.mxu0 0
    %8508 = vmatpush1.bf16.msra.mxu0 0
    %8509 = vmatprep.subr.bf16.mxu0 0
    %8510 = vmatpush1.bf16.msra.mxu0 0
    %8511 = vmatprep.subr.bf16.mxu0 0
    %8512 = vmatpush1.bf16.msra.mxu0 0
    %8513 = vmatprep.subr.bf16.mxu0 0
    %8514 = vmatpush1.bf16.msra.mxu0 0
    %8515 = vmatprep.subr.bf16.mxu0 0
    %8516 = vmatpush1.bf16.msra.mxu0 0
    %8517 = vmatprep.subr.bf16.mxu0 0
    %8518 = vmatpush1.bf16.msra.mxu0 0
    %8519 = vmatprep.subr.bf16.mxu0 0
    %8520 = vmatpush1.bf16.msra.mxu0 0
    %8521 = vmatprep.subr.bf16.mxu0 0
    %8522 = vmatpush1.bf16.msra.mxu0 0
    %8523 = vmatprep.subr.bf16.mxu0 0
    %8524 = vmatpush1.bf16.msra.mxu0 0
    %8525 = vmatprep.mubr.bf16.mxu0 0
    %8526 = vmatmul.mubr.bf16.gmra.mrb[0].mxu0 %v8488
    %v8527 = vpop.f32.mrb[0].mxu0
    %v8528 = vadd.f32 0.0, %v8527
    %v8529 = vpop.f32.mrb[0].mxu0
    %v8530 = vpop.f32.mrb[0].mxu0
    %v8531 = vpop.f32.mrb[0].mxu0
    %8532 = vdwg.mxu0
    %v8534 = vsel %vm5561, %v8486, 0
    %v8537 = vsel %vm1795, %v5466, 0
    %8539 = vmatprep.subr.bf16.mxu0 0
    %8540 = vmatpush1.bf16.msra.mxu0 %v8537
    %8541 = vmatprep.subr.bf16.mxu0 0
    %8542 = vmatpush1.bf16.msra.mxu0 0
    %8543 = vmatprep.subr.bf16.mxu0 0
    %8544 = vmatpush1.bf16.msra.mxu0 0
    %8545 = vmatprep.subr.bf16.mxu0 0
    %8546 = vmatpush1.bf16.msra.mxu0 0
    %8547 = vmatprep.subr.bf16.mxu0 0
    %8548 = vmatpush1.bf16.msra.mxu0 0
    %8549 = vmatprep.subr.bf16.mxu0 0
    %8550 = vmatpush1.bf16.msra.mxu0 0
    %8551 = vmatprep.subr.bf16.mxu0 0
    %8552 = vmatpush1.bf16.msra.mxu0 0
    %8553 = vmatprep.subr.bf16.mxu0 0
    %8554 = vmatpush1.bf16.msra.mxu0 0
    %8555 = vmatprep.subr.bf16.mxu0 0
    %8556 = vmatpush1.bf16.msra.mxu0 0
    %8557 = vmatprep.subr.bf16.mxu0 0
    %8558 = vmatpush1.bf16.msra.mxu0 0
    %8559 = vmatprep.subr.bf16.mxu0 0
    %8560 = vmatpush1.bf16.msra.mxu0 0
    %8561 = vmatprep.subr.bf16.mxu0 0
    %8562 = vmatpush1.bf16.msra.mxu0 0
    %8563 = vmatprep.subr.bf16.mxu0 0
    %8564 = vmatpush1.bf16.msra.mxu0 0
    %8565 = vmatprep.subr.bf16.mxu0 0
    %8566 = vmatpush1.bf16.msra.mxu0 0
    %8567 = vmatprep.subr.bf16.mxu0 0
    %8568 = vmatpush1.bf16.msra.mxu0 0
    %8569 = vmatprep.subr.bf16.mxu0 0
    %8570 = vmatpush1.bf16.msra.mxu0 0
    %8571 = vmatprep.mubr.bf16.mxu0 0
    %8572 = vmatmul.mubr.bf16.gmra.mrb[0].mxu0 %v8534
    %v8573 = vpop.f32.mrb[0].mxu0
    %v8574 = vadd.f32 0.0, %v8573
    %v8575 = vpop.f32.mrb[0].mxu0
    %v8576 = vpop.f32.mrb[0].mxu0
    %v8577 = vpop.f32.mrb[0].mxu0
    %8578 = vdwg.mxu0
    %v8579 = vpack.c.bf16 %v8574, %v8528
    %s8580 = scalar_lea.vmem [#allocation7], 960
    %v8581 = vld [vmem:[%s8580] sm:$0xff]
    %v8582 = vld [vmem:[%s8580 + $0x8] sm:$0xff]
    %v8583 = vld [vmem:[%s8580 + $0x10] sm:$0xf]
    %v8584 = vld [vmem:[%s8580 + $0x14] sm:$0xff]
    %v8585 = vld [vmem:[%s8580 + $0x1c] sm:$0xff]
    %v8586 = vld [vmem:[%s8580 + $0x24] sm:$0xf]
    %v8587 = vld [vmem:[%s8580 + $0x28] sm:$0xff]
    %v8588 = vld [vmem:[%s8580 + $0x30] sm:$0xff]
    %v8589 = vld [vmem:[%s8580 + $0x38] sm:$0xf]
    %v8590 = vld [vmem:[%s8580 + $0x3c] sm:$0xff]
    %v8591 = vld [vmem:[%s8580 + $0x44] sm:$0xff]
    %v8592 = vld [vmem:[%s8580 + $0x4c] sm:$0xf]
    %v8593 = vld [vmem:[%s8580 + $0x50] sm:$0xff]
    %v8594 = vld [vmem:[%s8580 + $0x58] sm:$0xff]
    %v8595 = vld [vmem:[%s8580 + $0x60] sm:$0xf]
    %v8596 = vld [vmem:[%s8580 + $0x64] sm:$0xff]
    %v8597 = vld [vmem:[%s8580 + $0x6c] sm:$0xff]
    %v8598 = vld [vmem:[%s8580 + $0x74] sm:$0xf]
    %v8599 = vld [vmem:[%s8580 + $0x78] sm:$0xff]
    %v8600 = vld [vmem:[%s8580 + $0x80] sm:$0xff]
    %v8601 = vld [vmem:[%s8580 + $0x88] sm:$0xf]
    %v8602 = vld [vmem:[%s8580 + $0x8c] sm:$0xff]
    %v8603 = vld [vmem:[%s8580 + $0x94] sm:$0xff]
    %v8604 = vld [vmem:[%s8580 + $0x9c] sm:$0xf]
    %v8629 = vunpack.c.l.b16 %v8581
    %v8630 = vunpack.c.h.b16 %v8581
    %v8631 = vunpack.c.l.b16 %v8582
    %v8632 = vunpack.c.h.b16 %v8582
    %v8633 = vunpack.c.l.b16 %v8583
    %v8634 = vunpack.c.l.b16 %v8584
    %v8635 = vunpack.c.h.b16 %v8584
    %v8636 = vunpack.c.l.b16 %v8585
    %v8637 = vunpack.c.h.b16 %v8585
    %v8638 = vunpack.c.l.b16 %v8586
    %v8639 = vunpack.c.l.b16 %v8587
    %v8640 = vunpack.c.h.b16 %v8587
    %v8641 = vunpack.c.l.b16 %v8588
    %v8642 = vunpack.c.h.b16 %v8588
    %v8643 = vunpack.c.l.b16 %v8589
    %v8644 = vunpack.c.l.b16 %v8590
    %v8645 = vunpack.c.h.b16 %v8590
    %v8646 = vunpack.c.l.b16 %v8591
    %v8647 = vunpack.c.h.b16 %v8591
    %v8648 = vunpack.c.l.b16 %v8592
    %v8649 = vunpack.c.l.b16 %v8593
    %v8650 = vunpack.c.h.b16 %v8593
    %v8651 = vunpack.c.l.b16 %v8594
    %v8652 = vunpack.c.h.b16 %v8594
    %v8653 = vunpack.c.l.b16 %v8595
    %v8654 = vunpack.c.l.b16 %v8596
    %v8655 = vunpack.c.h.b16 %v8596
    %v8656 = vunpack.c.l.b16 %v8597
    %v8657 = vunpack.c.h.b16 %v8597
    %v8658 = vunpack.c.l.b16 %v8598
    %v8659 = vunpack.c.l.b16 %v8599
    %v8660 = vunpack.c.h.b16 %v8599
    %v8661 = vunpack.c.l.b16 %v8600
    %v8662 = vunpack.c.h.b16 %v8600
    %v8663 = vunpack.c.l.b16 %v8601
    %v8664 = vunpack.c.l.b16 %v8602
    %v8665 = vunpack.c.h.b16 %v8602
    %v8666 = vunpack.c.l.b16 %v8603
    %v8667 = vunpack.c.h.b16 %v8603
    %v8668 = vunpack.c.l.b16 %v8604
    %v8669 = vpack.c.b16 %v8634, %v8629
    %v8670 = vpack.c.b16 %v8635, %v8630
    %v8671 = vpack.c.b16 %v8636, %v8631
    %v8672 = vpack.c.b16 %v8637, %v8632
    %v8673 = vpack.c.b16 %v8638, %v8633
    %v8674 = vpack.c.b16 %v8644, %v8639
    %v8675 = vpack.c.b16 %v8645, %v8640
    %v8676 = vpack.c.b16 %v8646, %v8641
    %v8677 = vpack.c.b16 %v8647, %v8642
    %v8678 = vpack.c.b16 %v8648, %v8643
    %v8679 = vpack.c.b16 %v8654, %v8649
    %v8680 = vpack.c.b16 %v8655, %v8650
    %v8681 = vpack.c.b16 %v8656, %v8651
    %v8682 = vpack.c.b16 %v8657, %v8652
    %v8683 = vpack.c.b16 %v8658, %v8653
    %v8684 = vpack.c.b16 %v8664, %v8659
    %v8685 = vpack.c.b16 %v8665, %v8660
    %v8686 = vpack.c.b16 %v8666, %v8661
    %v8687 = vpack.c.b16 %v8667, %v8662
    %v8688 = vpack.c.b16 %v8668, %v8663
    %v8710 = vsel %vm5468, %v8579, 0
    %8712 = vmatprep.subr.bf16.mxu0 %v8670
    %8713 = vmatpush1.bf16.msra.mxu0 %v8669
    %8714 = vmatprep.subr.bf16.mxu0 %v8675
    %8715 = vmatpush1.bf16.msra.mxu0 %v8674
    %8716 = vmatprep.subr.bf16.mxu0 %v8680
    %8717 = vmatpush1.bf16.msra.mxu0 %v8679
    %8718 = vmatprep.subr.bf16.mxu0 %v8685
    %8719 = vmatpush1.bf16.msra.mxu0 %v8684
    %8720 = vmatprep.subr.bf16.mxu0 0
    %8721 = vmatpush1.bf16.msra.mxu0 0
    %8722 = vmatprep.subr.bf16.mxu0 0
    %8723 = vmatpush1.bf16.msra.mxu0 0
    %8724 = vmatprep.subr.bf16.mxu0 0
    %8725 = vmatpush1.bf16.msra.mxu0 0
    %8726 = vmatprep.subr.bf16.mxu0 0
    %8727 = vmatpush1.bf16.msra.mxu0 0
    %8728 = vmatprep.subr.bf16.mxu0 0
    %8729 = vmatpush1.bf16.msra.mxu0 0
    %8730 = vmatprep.subr.bf16.mxu0 0
    %8731 = vmatpush1.bf16.msra.mxu0 0
    %8732 = vmatprep.subr.bf16.mxu0 0
    %8733 = vmatpush1.bf16.msra.mxu0 0
    %8734 = vmatprep.subr.bf16.mxu0 0
    %8735 = vmatpush1.bf16.msra.mxu0 0
    %8736 = vmatprep.subr.bf16.mxu0 0
    %8737 = vmatpush1.bf16.msra.mxu0 0
    %8738 = vmatprep.subr.bf16.mxu0 0
    %8739 = vmatpush1.bf16.msra.mxu0 0
    %8740 = vmatprep.subr.bf16.mxu0 0
    %8741 = vmatpush1.bf16.msra.mxu0 0
    %8742 = vmatprep.subr.bf16.mxu0 0
    %8743 = vmatpush1.bf16.msra.mxu0 0
    %8744 = vmatprep.mubr.bf16.mxu0 0
    %8745 = vmatmul.mubr.bf16.gmra.mrb[0].mxu0 %v8710
    %v8746 = vpop.f32.mrb[0].mxu0
    %v8747 = vadd.f32 0.0, %v8746
    %v8748 = vpop.f32.mrb[0].mxu0
    %v8749 = vadd.f32 0.0, %v8748
    %v8750 = vpop.f32.mrb[0].mxu0
    %v8751 = vadd.f32 0.0, %v8750
    %v8752 = vpop.f32.mrb[0].mxu0
    %v8753 = vadd.f32 0.0, %v8752
    %8754 = vdwg.mxu0
    %8755 = vmatprep.subr.bf16.mxu0 %v8672
    %8756 = vmatpush1.bf16.msra.mxu0 %v8671
    %8757 = vmatprep.subr.bf16.mxu0 %v8677
    %8758 = vmatpush1.bf16.msra.mxu0 %v8676
    %8759 = vmatprep.subr.bf16.mxu0 %v8682
    %8760 = vmatpush1.bf16.msra.mxu0 %v8681
    %8761 = vmatprep.subr.bf16.mxu0 %v8687
    %8762 = vmatpush1.bf16.msra.mxu0 %v8686
    %8763 = vmatprep.subr.bf16.mxu0 0
    %8764 = vmatpush1.bf16.msra.mxu0 0
    %8765 = vmatprep.subr.bf16.mxu0 0
    %8766 = vmatpush1.bf16.msra.mxu0 0
    %8767 = vmatprep.subr.bf16.mxu0 0
    %8768 = vmatpush1.bf16.msra.mxu0 0
    %8769 = vmatprep.subr.bf16.mxu0 0
    %8770 = vmatpush1.bf16.msra.mxu0 0
    %8771 = vmatprep.subr.bf16.mxu0 0
    %8772 = vmatpush1.bf16.msra.mxu0 0
    %8773 = vmatprep.subr.bf16.mxu0 0
    %8774 = vmatpush1.bf16.msra.mxu0 0
    %8775 = vmatprep.subr.bf16.mxu0 0
    %8776 = vmatpush1.bf16.msra.mxu0 0
    %8777 = vmatprep.subr.bf16.mxu0 0
    %8778 = vmatpush1.bf16.msra.mxu0 0
    %8779 = vmatprep.subr.bf16.mxu0 0
    %8780 = vmatpush1.bf16.msra.mxu0 0
    %8781 = vmatprep.subr.bf16.mxu0 0
    %8782 = vmatpush1.bf16.msra.mxu0 0
    %8783 = vmatprep.subr.bf16.mxu0 0
    %8784 = vmatpush1.bf16.msra.mxu0 0
    %8785 = vmatprep.subr.bf16.mxu0 0
    %8786 = vmatpush1.bf16.msra.mxu0 0
    %8787 = vmatprep.mubr.bf16.mxu0 0
    %8788 = vmatmul.mubr.bf16.gmra.mrb[0].mxu0 %v8710
    %v8789 = vpop.f32.mrb[0].mxu0
    %v8790 = vadd.f32 0.0, %v8789
    %v8791 = vpop.f32.mrb[0].mxu0
    %v8792 = vadd.f32 0.0, %v8791
    %v8793 = vpop.f32.mrb[0].mxu0
    %v8794 = vadd.f32 0.0, %v8793
    %v8795 = vpop.f32.mrb[0].mxu0
    %v8796 = vadd.f32 0.0, %v8795
    %8797 = vdwg.mxu0
    %8798 = vmatprep.subr.bf16.mxu0 0
    %8799 = vmatpush1.bf16.msra.mxu0 %v8673
    %8800 = vmatprep.subr.bf16.mxu0 0
    %8801 = vmatpush1.bf16.msra.mxu0 %v8678
    %8802 = vmatprep.subr.bf16.mxu0 0
    %8803 = vmatpush1.bf16.msra.mxu0 %v8683
    %8804 = vmatprep.subr.bf16.mxu0 0
    %8805 = vmatpush1.bf16.msra.mxu0 %v8688
    %8806 = vmatprep.subr.bf16.mxu0 0
    %8807 = vmatpush1.bf16.msra.mxu0 0
    %8808 = vmatprep.subr.bf16.mxu0 0
    %8809 = vmatpush1.bf16.msra.mxu0 0
    %8810 = vmatprep.subr.bf16.mxu0 0
    %8811 = vmatpush1.bf16.msra.mxu0 0
    %8812 = vmatprep.subr.bf16.mxu0 0
    %8813 = vmatpush1.bf16.msra.mxu0 0
    %8814 = vmatprep.subr.bf16.mxu0 0
    %8815 = vmatpush1.bf16.msra.mxu0 0
    %8816 = vmatprep.subr.bf16.mxu0 0
    %8817 = vmatpush1.bf16.msra.mxu0 0
    %8818 = vmatprep.subr.bf16.mxu0 0
    %8819 = vmatpush1.bf16.msra.mxu0 0
    %8820 = vmatprep.subr.bf16.mxu0 0
    %8821 = vmatpush1.bf16.msra.mxu0 0
    %8822 = vmatprep.subr.bf16.mxu0 0
    %8823 = vmatpush1.bf16.msra.mxu0 0
    %8824 = vmatprep.subr.bf16.mxu0 0
    %8825 = vmatpush1.bf16.msra.mxu0 0
    %8826 = vmatprep.subr.bf16.mxu0 0
    %8827 = vmatpush1.bf16.msra.mxu0 0
    %8828 = vmatprep.subr.bf16.mxu0 0
    %8829 = vmatpush1.bf16.msra.mxu0 0
    %8830 = vmatprep.mubr.bf16.mxu0 0
    %8831 = vmatmul.mubr.bf16.gmra.mrb[0].mxu0 %v8710
    %v8832 = vpop.f32.mrb[0].mxu0
    %v8833 = vadd.f32 0.0, %v8832
    %v8834 = vpop.f32.mrb[0].mxu0
    %v8835 = vpop.f32.mrb[0].mxu0
    %v8836 = vadd.f32 0.0, %v8835
    %v8837 = vpop.f32.mrb[0].mxu0
    %8838 = vdwg.mxu0
    %v8839 = vadd.f32 %v8361, %v8747
    %v8840 = vadd.f32 %v8362, %v8749
    %v8841 = vadd.f32 %v8363, %v8790
    %v8842 = vadd.f32 %v8364, %v8792
    %v8843 = vadd.f32 %v8365, %v8833
    %v8844 = vadd.f32 %v8366, %v8751
    %v8845 = vadd.f32 %v8367, %v8753
    %v8846 = vadd.f32 %v8368, %v8794
    %v8847 = vadd.f32 %v8369, %v8796
    %v8848 = vadd.f32 %v8370, %v8836
    %8850 = vrot.lane.b32.xlu0 %v5441, 64
    %v8851 = vpop.permute.xlu0 %8850
    %8853 = vrot.lane.b32.xlu0 %v5451, 64
    %v8854 = vpop.permute.xlu0 %8853
    %v8856 = vsel %vm5468, %v8851, 0
    %v8859 = vsel %vm5468, %v8854, 0
    %8861 = vmatprep.subr.bf16.mxu0 0
    %8862 = vmatpush1.bf16.xpose.msra.mxu0 %v8859
    %8863 = vmatprep.subr.bf16.mxu0 0
    %8864 = vmatpush1.bf16.xpose.msra.mxu0 0
    %8865 = vmatprep.subr.bf16.mxu0 0
    %8866 = vmatpush1.bf16.xpose.msra.mxu0 0
    %8867 = vmatprep.subr.bf16.mxu0 0
    %8868 = vmatpush1.bf16.xpose.msra.mxu0 0
    %8869 = vmatprep.subr.bf16.mxu0 0
    %8870 = vmatpush1.bf16.xpose.msra.mxu0 0
    %8871 = vmatprep.subr.bf16.mxu0 0
    %8872 = vmatpush1.bf16.xpose.msra.mxu0 0
    %8873 = vmatprep.subr.bf16.mxu0 0
    %8874 = vmatpush1.bf16.xpose.msra.mxu0 0
    %8875 = vmatprep.subr.bf16.mxu0 0
    %8876 = vmatpush1.bf16.xpose.msra.mxu0 0
    %8877 = vmatprep.subr.bf16.mxu0 0
    %8878 = vmatpush1.bf16.xpose.msra.mxu0 0
    %8879 = vmatprep.subr.bf16.mxu0 0
    %8880 = vmatpush1.bf16.xpose.msra.mxu0 0
    %8881 = vmatprep.subr.bf16.mxu0 0
    %8882 = vmatpush1.bf16.xpose.msra.mxu0 0
    %8883 = vmatprep.subr.bf16.mxu0 0
    %8884 = vmatpush1.bf16.xpose.msra.mxu0 0
    %8885 = vmatprep.subr.bf16.mxu0 0
    %8886 = vmatpush1.bf16.xpose.msra.mxu0 0
    %8887 = vmatprep.subr.bf16.mxu0 0
    %8888 = vmatpush1.bf16.xpose.msra.mxu0 0
    %8889 = vmatprep.subr.bf16.mxu0 0
    %8890 = vmatpush1.bf16.xpose.msra.mxu0 0
    %8891 = vmatprep.subr.bf16.mxu0 0
    %8892 = vmatpush1.bf16.xpose.msra.mxu0 0
    %8893 = vmatprep.mubr.bf16.mxu0 0
    %8894 = vmatmul.mubr.bf16.gmra.mrb[0].mxu0 %v8856
    %v8895 = vpop.f32.mrb[0].mxu0
    %v8896 = vadd.f32 0.0, %v8895
    %v8897 = vpop.f32.mrb[0].mxu0
    %v8898 = vpop.f32.mrb[0].mxu0
    %v8899 = vpop.f32.mrb[0].mxu0
    %8900 = vdwg.mxu0
    %8902 = vrot.lane.b32.xlu0 %v5446, 64
    %v8903 = vpop.permute.xlu0 %8902
    %8905 = vrot.lane.b32.xlu0 %v5456, 64
    %v8906 = vpop.permute.xlu0 %8905
    %v8908 = vsel %vm5468, %v8903, 0
    %v8911 = vsel %vm5468, %v8906, 0
    %8913 = vmatprep.subr.bf16.mxu0 0
    %8914 = vmatpush1.bf16.xpose.msra.mxu0 %v8911
    %8915 = vmatprep.subr.bf16.mxu0 0
    %8916 = vmatpush1.bf16.xpose.msra.mxu0 0
    %8917 = vmatprep.subr.bf16.mxu0 0
    %8918 = vmatpush1.bf16.xpose.msra.mxu0 0
    %8919 = vmatprep.subr.bf16.mxu0 0
    %8920 = vmatpush1.bf16.xpose.msra.mxu0 0
    %8921 = vmatprep.subr.bf16.mxu0 0
    %8922 = vmatpush1.bf16.xpose.msra.mxu0 0
    %8923 = vmatprep.subr.bf16.mxu0 0
    %8924 = vmatpush1.bf16.xpose.msra.mxu0 0
    %8925 = vmatprep.subr.bf16.mxu0 0
    %8926 = vmatpush1.bf16.xpose.msra.mxu0 0
    %8927 = vmatprep.subr.bf16.mxu0 0
    %8928 = vmatpush1.bf16.xpose.msra.mxu0 0
    %8929 = vmatprep.subr.bf16.mxu0 0
    %8930 = vmatpush1.bf16.xpose.msra.mxu0 0
    %8931 = vmatprep.subr.bf16.mxu0 0
    %8932 = vmatpush1.bf16.xpose.msra.mxu0 0
    %8933 = vmatprep.subr.bf16.mxu0 0
    %8934 = vmatpush1.bf16.xpose.msra.mxu0 0
    %8935 = vmatprep.subr.bf16.mxu0 0
    %8936 = vmatpush1.bf16.xpose.msra.mxu0 0
    %8937 = vmatprep.subr.bf16.mxu0 0
    %8938 = vmatpush1.bf16.xpose.msra.mxu0 0
    %8939 = vmatprep.subr.bf16.mxu0 0
    %8940 = vmatpush1.bf16.xpose.msra.mxu0 0
    %8941 = vmatprep.subr.bf16.mxu0 0
    %8942 = vmatpush1.bf16.xpose.msra.mxu0 0
    %8943 = vmatprep.subr.bf16.mxu0 0
    %8944 = vmatpush1.bf16.xpose.msra.mxu0 0
    %8945 = vmatprep.mubr.bf16.mxu0 0
    %8946 = vmatmul.mubr.bf16.gmra.mrb[0].mxu0 %v8908
    %v8947 = vpop.f32.mrb[0].mxu0
    %v8948 = vadd.f32 0.0, %v8947
    %v8949 = vpop.f32.mrb[0].mxu0
    %v8950 = vpop.f32.mrb[0].mxu0
    %v8951 = vpop.f32.mrb[0].mxu0
    %8952 = vdwg.mxu0
    %v8953 = vsel %vm5561, %v8896, -inf
    %8954 = vmax.xlane.f32.xlu0 %v8953
    %v8955 = vpop.xlane.xlu0 %8954
    %v8956 = vsel %vm5561, %v8948, -inf
    %8957 = vmax.xlane.f32.xlu0 %v8956
    %v8958 = vpop.xlane.xlu0 %8957
    %v8959 = vsub.f32 %v8896, %v8955
    %v8960 = vsub.f32 %v8948, %v8958
    %v8961 = vmul.f32 %v8959, 1.442695
    %v8962 = vpow.pop %v8961
    %v8963 = vmul.f32 %v8960, 1.442695
    %v8964 = vpow.pop %v8963
    %v8965 = vsel %vm5561, %v8962, 0.0
    %8966 = vadd.xlane.f32.xlu0 %v8965
    %v8967 = vpop.xlane.xlu0 %8966
    %v8968 = vsel %vm5561, %v8964, 0.0
    %8969 = vadd.xlane.f32.xlu0 %v8968
    %v8970 = vpop.xlane.xlu0 %8969
    %v8971 = vrcp.pop %v8967
    %v8972 = vrcp.pop %v8970
    %v8973 = vmul.f32 %v8962, %v8971
    %v8974 = vmul.f32 %v8964, %v8972
    %v8975 = vpack.c.bf16 %v8973, %v8973
    %v8976 = vpack.c.bf16 %v8974, %v8974
    %8978 = vrot.lane.b32.xlu0 %v5461, 64
    %v8979 = vpop.permute.xlu0 %8978
    %v8981 = vsel %vm5561, %v8975, 0
    %v8984 = vsel %vm1795, %v8979, 0
    %8986 = vmatprep.subr.bf16.mxu0 0
    %8987 = vmatpush1.bf16.msra.mxu0 %v8984
    %8988 = vmatprep.subr.bf16.mxu0 0
    %8989 = vmatpush1.bf16.msra.mxu0 0
    %8990 = vmatprep.subr.bf16.mxu0 0
    %8991 = vmatpush1.bf16.msra.mxu0 0
    %8992 = vmatprep.subr.bf16.mxu0 0
    %8993 = vmatpush1.bf16.msra.mxu0 0
    %8994 = vmatprep.subr.bf16.mxu0 0
    %8995 = vmatpush1.bf16.msra.mxu0 0
    %8996 = vmatprep.subr.bf16.mxu0 0
    %8997 = vmatpush1.bf16.msra.mxu0 0
    %8998 = vmatprep.subr.bf16.mxu0 0
    %8999 = vmatpush1.bf16.msra.mxu0 0
    %9000 = vmatprep.subr.bf16.mxu0 0
    %9001 = vmatpush1.bf16.msra.mxu0 0
    %9002 = vmatprep.subr.bf16.mxu0 0
    %9003 = vmatpush1.bf16.msra.mxu0 0
    %9004 = vmatprep.subr.bf16.mxu0 0
    %9005 = vmatpush1.bf16.msra.mxu0 0
    %9006 = vmatprep.subr.bf16.mxu0 0
    %9007 = vmatpush1.bf16.msra.mxu0 0
    %9008 = vmatprep.subr.bf16.mxu0 0
    %9009 = vmatpush1.bf16.msra.mxu0 0
    %9010 = vmatprep.subr.bf16.mxu0 0
    %9011 = vmatpush1.bf16.msra.mxu0 0
    %9012 = vmatprep.subr.bf16.mxu0 0
    %9013 = vmatpush1.bf16.msra.mxu0 0
    %9014 = vmatprep.subr.bf16.mxu0 0
    %9015 = vmatpush1.bf16.msra.mxu0 0
    %9016 = vmatprep.subr.bf16.mxu0 0
    %9017 = vmatpush1.bf16.msra.mxu0 0
    %9018 = vmatprep.mubr.bf16.mxu0 0
    %9019 = vmatmul.mubr.bf16.gmra.mrb[0].mxu0 %v8981
    %v9020 = vpop.f32.mrb[0].mxu0
    %v9021 = vadd.f32 0.0, %v9020
    %v9022 = vpop.f32.mrb[0].mxu0
    %v9023 = vpop.f32.mrb[0].mxu0
    %v9024 = vpop.f32.mrb[0].mxu0
    %9025 = vdwg.mxu0
    %9027 = vrot.lane.b32.xlu0 %v5466, 64
    %v9028 = vpop.permute.xlu0 %9027
    %v9030 = vsel %vm5561, %v8976, 0
    %v9033 = vsel %vm1795, %v9028, 0
    %9035 = vmatprep.subr.bf16.mxu0 0
    %9036 = vmatpush1.bf16.msra.mxu0 %v9033
    %9037 = vmatprep.subr.bf16.mxu0 0
    %9038 = vmatpush1.bf16.msra.mxu0 0
    %9039 = vmatprep.subr.bf16.mxu0 0
    %9040 = vmatpush1.bf16.msra.mxu0 0
    %9041 = vmatprep.subr.bf16.mxu0 0
    %9042 = vmatpush1.bf16.msra.mxu0 0
    %9043 = vmatprep.subr.bf16.mxu0 0
    %9044 = vmatpush1.bf16.msra.mxu0 0
    %9045 = vmatprep.subr.bf16.mxu0 0
    %9046 = vmatpush1.bf16.msra.mxu0 0
    %9047 = vmatprep.subr.bf16.mxu0 0
    %9048 = vmatpush1.bf16.msra.mxu0 0
    %9049 = vmatprep.subr.bf16.mxu0 0
    %9050 = vmatpush1.bf16.msra.mxu0 0
    %9051 = vmatprep.subr.bf16.mxu0 0
    %9052 = vmatpush1.bf16.msra.mxu0 0
    %9053 = vmatprep.subr.bf16.mxu0 0
    %9054 = vmatpush1.bf16.msra.mxu0 0
    %9055 = vmatprep.subr.bf16.mxu0 0
    %9056 = vmatpush1.bf16.msra.mxu0 0
    %9057 = vmatprep.subr.bf16.mxu0 0
    %9058 = vmatpush1.bf16.msra.mxu0 0
    %9059 = vmatprep.subr.bf16.mxu0 0
    %9060 = vmatpush1.bf16.msra.mxu0 0
    %9061 = vmatprep.subr.bf16.mxu0 0
    %9062 = vmatpush1.bf16.msra.mxu0 0
    %9063 = vmatprep.subr.bf16.mxu0 0
    %9064 = vmatpush1.bf16.msra.mxu0 0
    %9065 = vmatprep.subr.bf16.mxu0 0
    %9066 = vmatpush1.bf16.msra.mxu0 0
    %9067 = vmatprep.mubr.bf16.mxu0 0
    %9068 = vmatmul.mubr.bf16.gmra.mrb[0].mxu0 %v9030
    %v9069 = vpop.f32.mrb[0].mxu0
    %v9070 = vadd.f32 0.0, %v9069
    %v9071 = vpop.f32.mrb[0].mxu0
    %v9072 = vpop.f32.mrb[0].mxu0
    %v9073 = vpop.f32.mrb[0].mxu0
    %9074 = vdwg.mxu0
    %v9075 = vpack.c.bf16 %v9070, %v9021
    %s9076 = scalar_lea.vmem [#allocation7], 1120
    %v9077 = vld [vmem:[%s9076] sm:$0xff]
    %v9078 = vld [vmem:[%s9076 + $0x8] sm:$0xff]
    %v9079 = vld [vmem:[%s9076 + $0x10] sm:$0xf]
    %v9080 = vld [vmem:[%s9076 + $0x14] sm:$0xff]
    %v9081 = vld [vmem:[%s9076 + $0x1c] sm:$0xff]
    %v9082 = vld [vmem:[%s9076 + $0x24] sm:$0xf]
    %v9083 = vld [vmem:[%s9076 + $0x28] sm:$0xff]
    %v9084 = vld [vmem:[%s9076 + $0x30] sm:$0xff]
    %v9085 = vld [vmem:[%s9076 + $0x38] sm:$0xf]
    %v9086 = vld [vmem:[%s9076 + $0x3c] sm:$0xff]
    %v9087 = vld [vmem:[%s9076 + $0x44] sm:$0xff]
    %v9088 = vld [vmem:[%s9076 + $0x4c] sm:$0xf]
    %v9089 = vld [vmem:[%s9076 + $0x50] sm:$0xff]
    %v9090 = vld [vmem:[%s9076 + $0x58] sm:$0xff]
    %v9091 = vld [vmem:[%s9076 + $0x60] sm:$0xf]
    %v9092 = vld [vmem:[%s9076 + $0x64] sm:$0xff]
    %v9093 = vld [vmem:[%s9076 + $0x6c] sm:$0xff]
    %v9094 = vld [vmem:[%s9076 + $0x74] sm:$0xf]
    %v9095 = vld [vmem:[%s9076 + $0x78] sm:$0xff]
    %v9096 = vld [vmem:[%s9076 + $0x80] sm:$0xff]
    %v9097 = vld [vmem:[%s9076 + $0x88] sm:$0xf]
    %v9098 = vld [vmem:[%s9076 + $0x8c] sm:$0xff]
    %v9099 = vld [vmem:[%s9076 + $0x94] sm:$0xff]
    %v9100 = vld [vmem:[%s9076 + $0x9c] sm:$0xf]
    %v9125 = vunpack.c.l.b16 %v9077
    %v9126 = vunpack.c.h.b16 %v9077
    %v9127 = vunpack.c.l.b16 %v9078
    %v9128 = vunpack.c.h.b16 %v9078
    %v9129 = vunpack.c.l.b16 %v9079
    %v9130 = vunpack.c.l.b16 %v9080
    %v9131 = vunpack.c.h.b16 %v9080
    %v9132 = vunpack.c.l.b16 %v9081
    %v9133 = vunpack.c.h.b16 %v9081
    %v9134 = vunpack.c.l.b16 %v9082
    %v9135 = vunpack.c.l.b16 %v9083
    %v9136 = vunpack.c.h.b16 %v9083
    %v9137 = vunpack.c.l.b16 %v9084
    %v9138 = vunpack.c.h.b16 %v9084
    %v9139 = vunpack.c.l.b16 %v9085
    %v9140 = vunpack.c.l.b16 %v9086
    %v9141 = vunpack.c.h.b16 %v9086
    %v9142 = vunpack.c.l.b16 %v9087
    %v9143 = vunpack.c.h.b16 %v9087
    %v9144 = vunpack.c.l.b16 %v9088
    %v9145 = vunpack.c.l.b16 %v9089
    %v9146 = vunpack.c.h.b16 %v9089
    %v9147 = vunpack.c.l.b16 %v9090
    %v9148 = vunpack.c.h.b16 %v9090
    %v9149 = vunpack.c.l.b16 %v9091
    %v9150 = vunpack.c.l.b16 %v9092
    %v9151 = vunpack.c.h.b16 %v9092
    %v9152 = vunpack.c.l.b16 %v9093
    %v9153 = vunpack.c.h.b16 %v9093
    %v9154 = vunpack.c.l.b16 %v9094
    %v9155 = vunpack.c.l.b16 %v9095
    %v9156 = vunpack.c.h.b16 %v9095
    %v9157 = vunpack.c.l.b16 %v9096
    %v9158 = vunpack.c.h.b16 %v9096
    %v9159 = vunpack.c.l.b16 %v9097
    %v9160 = vunpack.c.l.b16 %v9098
    %v9161 = vunpack.c.h.b16 %v9098
    %v9162 = vunpack.c.l.b16 %v9099
    %v9163 = vunpack.c.h.b16 %v9099
    %v9164 = vunpack.c.l.b16 %v9100
    %v9165 = vpack.c.b16 %v9130, %v9125
    %v9166 = vpack.c.b16 %v9131, %v9126
    %v9167 = vpack.c.b16 %v9132, %v9127
    %v9168 = vpack.c.b16 %v9133, %v9128
    %v9169 = vpack.c.b16 %v9134, %v9129
    %v9170 = vpack.c.b16 %v9140, %v9135
    %v9171 = vpack.c.b16 %v9141, %v9136
    %v9172 = vpack.c.b16 %v9142, %v9137
    %v9173 = vpack.c.b16 %v9143, %v9138
    %v9174 = vpack.c.b16 %v9144, %v9139
    %v9175 = vpack.c.b16 %v9150, %v9145
    %v9176 = vpack.c.b16 %v9151, %v9146
    %v9177 = vpack.c.b16 %v9152, %v9147
    %v9178 = vpack.c.b16 %v9153, %v9148
    %v9179 = vpack.c.b16 %v9154, %v9149
    %v9180 = vpack.c.b16 %v9160, %v9155
    %v9181 = vpack.c.b16 %v9161, %v9156
    %v9182 = vpack.c.b16 %v9162, %v9157
    %v9183 = vpack.c.b16 %v9163, %v9158
    %v9184 = vpack.c.b16 %v9164, %v9159
    %v9206 = vsel %vm5468, %v9075, 0
    %9208 = vmatprep.subr.bf16.mxu0 %v9166
    %9209 = vmatpush1.bf16.msra.mxu0 %v9165
    %9210 = vmatprep.subr.bf16.mxu0 %v9171
    %9211 = vmatpush1.bf16.msra.mxu0 %v9170
    %9212 = vmatprep.subr.bf16.mxu0 %v9176
    %9213 = vmatpush1.bf16.msra.mxu0 %v9175
    %9214 = vmatprep.subr.bf16.mxu0 %v9181
    %9215 = vmatpush1.bf16.msra.mxu0 %v9180
    %9216 = vmatprep.subr.bf16.mxu0 0
    %9217 = vmatpush1.bf16.msra.mxu0 0
    %9218 = vmatprep.subr.bf16.mxu0 0
    %9219 = vmatpush1.bf16.msra.mxu0 0
    %9220 = vmatprep.subr.bf16.mxu0 0
    %9221 = vmatpush1.bf16.msra.mxu0 0
    %9222 = vmatprep.subr.bf16.mxu0 0
    %9223 = vmatpush1.bf16.msra.mxu0 0
    %9224 = vmatprep.subr.bf16.mxu0 0
    %9225 = vmatpush1.bf16.msra.mxu0 0
    %9226 = vmatprep.subr.bf16.mxu0 0
    %9227 = vmatpush1.bf16.msra.mxu0 0
    %9228 = vmatprep.subr.bf16.mxu0 0
    %9229 = vmatpush1.bf16.msra.mxu0 0
    %9230 = vmatprep.subr.bf16.mxu0 0
    %9231 = vmatpush1.bf16.msra.mxu0 0
    %9232 = vmatprep.subr.bf16.mxu0 0
    %9233 = vmatpush1.bf16.msra.mxu0 0
    %9234 = vmatprep.subr.bf16.mxu0 0
    %9235 = vmatpush1.bf16.msra.mxu0 0
    %9236 = vmatprep.subr.bf16.mxu0 0
    %9237 = vmatpush1.bf16.msra.mxu0 0
    %9238 = vmatprep.subr.bf16.mxu0 0
    %9239 = vmatpush1.bf16.msra.mxu0 0
    %9240 = vmatprep.mubr.bf16.mxu0 0
    %9241 = vmatmul.mubr.bf16.gmra.mrb[0].mxu0 %v9206
    %v9242 = vpop.f32.mrb[0].mxu0
    %v9243 = vadd.f32 0.0, %v9242
    %v9244 = vpop.f32.mrb[0].mxu0
    %v9245 = vadd.f32 0.0, %v9244
    %v9246 = vpop.f32.mrb[0].mxu0
    %v9247 = vadd.f32 0.0, %v9246
    %v9248 = vpop.f32.mrb[0].mxu0
    %v9249 = vadd.f32 0.0, %v9248
    %9250 = vdwg.mxu0
    %9251 = vmatprep.subr.bf16.mxu0 %v9168
    %9252 = vmatpush1.bf16.msra.mxu0 %v9167
    %9253 = vmatprep.subr.bf16.mxu0 %v9173
    %9254 = vmatpush1.bf16.msra.mxu0 %v9172
    %9255 = vmatprep.subr.bf16.mxu0 %v9178
    %9256 = vmatpush1.bf16.msra.mxu0 %v9177
    %9257 = vmatprep.subr.bf16.mxu0 %v9183
    %9258 = vmatpush1.bf16.msra.mxu0 %v9182
    %9259 = vmatprep.subr.bf16.mxu0 0
    %9260 = vmatpush1.bf16.msra.mxu0 0
    %9261 = vmatprep.subr.bf16.mxu0 0
    %9262 = vmatpush1.bf16.msra.mxu0 0
    %9263 = vmatprep.subr.bf16.mxu0 0
    %9264 = vmatpush1.bf16.msra.mxu0 0
    %9265 = vmatprep.subr.bf16.mxu0 0
    %9266 = vmatpush1.bf16.msra.mxu0 0
    %9267 = vmatprep.subr.bf16.mxu0 0
    %9268 = vmatpush1.bf16.msra.mxu0 0
    %9269 = vmatprep.subr.bf16.mxu0 0
    %9270 = vmatpush1.bf16.msra.mxu0 0
    %9271 = vmatprep.subr.bf16.mxu0 0
    %9272 = vmatpush1.bf16.msra.mxu0 0
    %9273 = vmatprep.subr.bf16.mxu0 0
    %9274 = vmatpush1.bf16.msra.mxu0 0
    %9275 = vmatprep.subr.bf16.mxu0 0
    %9276 = vmatpush1.bf16.msra.mxu0 0
    %9277 = vmatprep.subr.bf16.mxu0 0
    %9278 = vmatpush1.bf16.msra.mxu0 0
    %9279 = vmatprep.subr.bf16.mxu0 0
    %9280 = vmatpush1.bf16.msra.mxu0 0
    %9281 = vmatprep.subr.bf16.mxu0 0
    %9282 = vmatpush1.bf16.msra.mxu0 0
    %9283 = vmatprep.mubr.bf16.mxu0 0
    %9284 = vmatmul.mubr.bf16.gmra.mrb[0].mxu0 %v9206
    %v9285 = vpop.f32.mrb[0].mxu0
    %v9286 = vadd.f32 0.0, %v9285
    %v9287 = vpop.f32.mrb[0].mxu0
    %v9288 = vadd.f32 0.0, %v9287
    %v9289 = vpop.f32.mrb[0].mxu0
    %v9290 = vadd.f32 0.0, %v9289
    %v9291 = vpop.f32.mrb[0].mxu0
    %v9292 = vadd.f32 0.0, %v9291
    %9293 = vdwg.mxu0
    %9294 = vmatprep.subr.bf16.mxu0 0
    %9295 = vmatpush1.bf16.msra.mxu0 %v9169
    %9296 = vmatprep.subr.bf16.mxu0 0
    %9297 = vmatpush1.bf16.msra.mxu0 %v9174
    %9298 = vmatprep.subr.bf16.mxu0 0
    %9299 = vmatpush1.bf16.msra.mxu0 %v9179
    %9300 = vmatprep.subr.bf16.mxu0 0
    %9301 = vmatpush1.bf16.msra.mxu0 %v9184
    %9302 = vmatprep.subr.bf16.mxu0 0
    %9303 = vmatpush1.bf16.msra.mxu0 0
    %9304 = vmatprep.subr.bf16.mxu0 0
    %9305 = vmatpush1.bf16.msra.mxu0 0
    %9306 = vmatprep.subr.bf16.mxu0 0
    %9307 = vmatpush1.bf16.msra.mxu0 0
    %9308 = vmatprep.subr.bf16.mxu0 0
    %9309 = vmatpush1.bf16.msra.mxu0 0
    %9310 = vmatprep.subr.bf16.mxu0 0
    %9311 = vmatpush1.bf16.msra.mxu0 0
    %9312 = vmatprep.subr.bf16.mxu0 0
    %9313 = vmatpush1.bf16.msra.mxu0 0
    %9314 = vmatprep.subr.bf16.mxu0 0
    %9315 = vmatpush1.bf16.msra.mxu0 0
    %9316 = vmatprep.subr.bf16.mxu0 0
    %9317 = vmatpush1.bf16.msra.mxu0 0
    %9318 = vmatprep.subr.bf16.mxu0 0
    %9319 = vmatpush1.bf16.msra.mxu0 0
    %9320 = vmatprep.subr.bf16.mxu0 0
    %9321 = vmatpush1.bf16.msra.mxu0 0
    %9322 = vmatprep.subr.bf16.mxu0 0
    %9323 = vmatpush1.bf16.msra.mxu0 0
    %9324 = vmatprep.subr.bf16.mxu0 0
    %9325 = vmatpush1.bf16.msra.mxu0 0
    %9326 = vmatprep.mubr.bf16.mxu0 0
    %9327 = vmatmul.mubr.bf16.gmra.mrb[0].mxu0 %v9206
    %v9328 = vpop.f32.mrb[0].mxu0
    %v9329 = vadd.f32 0.0, %v9328
    %v9330 = vpop.f32.mrb[0].mxu0
    %v9331 = vpop.f32.mrb[0].mxu0
    %v9332 = vadd.f32 0.0, %v9331
    %v9333 = vpop.f32.mrb[0].mxu0
    %9334 = vdwg.mxu0
    %v9335 = vadd.f32 %v8839, %v9243
    %v9336 = vadd.f32 %v8840, %v9245
    %v9337 = vadd.f32 %v8841, %v9286
    %v9338 = vadd.f32 %v8842, %v9288
    %v9339 = vadd.f32 %v8843, %v9329
    %v9340 = vadd.f32 %v8844, %v9247
    %v9341 = vadd.f32 %v8845, %v9249
    %v9342 = vadd.f32 %v8846, %v9290
    %v9343 = vadd.f32 %v8847, %v9292
    %v9344 = vadd.f32 %v8848, %v9332
    %v9346 = vsel %vm5468, %v5442, 0
    %v9349 = vsel %vm5468, %v5452, 0
    %9351 = vmatprep.subr.bf16.mxu0 0
    %9352 = vmatpush1.bf16.xpose.msra.mxu0 %v9349
    %9353 = vmatprep.subr.bf16.mxu0 0
    %9354 = vmatpush1.bf16.xpose.msra.mxu0 0
    %9355 = vmatprep.subr.bf16.mxu0 0
    %9356 = vmatpush1.bf16.xpose.msra.mxu0 0
    %9357 = vmatprep.subr.bf16.mxu0 0
    %9358 = vmatpush1.bf16.xpose.msra.mxu0 0
    %9359 = vmatprep.subr.bf16.mxu0 0
    %9360 = vmatpush1.bf16.xpose.msra.mxu0 0
    %9361 = vmatprep.subr.bf16.mxu0 0
    %9362 = vmatpush1.bf16.xpose.msra.mxu0 0
    %9363 = vmatprep.subr.bf16.mxu0 0
    %9364 = vmatpush1.bf16.xpose.msra.mxu0 0
    %9365 = vmatprep.subr.bf16.mxu0 0
    %9366 = vmatpush1.bf16.xpose.msra.mxu0 0
    %9367 = vmatprep.subr.bf16.mxu0 0
    %9368 = vmatpush1.bf16.xpose.msra.mxu0 0
    %9369 = vmatprep.subr.bf16.mxu0 0
    %9370 = vmatpush1.bf16.xpose.msra.mxu0 0
    %9371 = vmatprep.subr.bf16.mxu0 0
    %9372 = vmatpush1.bf16.xpose.msra.mxu0 0
    %9373 = vmatprep.subr.bf16.mxu0 0
    %9374 = vmatpush1.bf16.xpose.msra.mxu0 0
    %9375 = vmatprep.subr.bf16.mxu0 0
    %9376 = vmatpush1.bf16.xpose.msra.mxu0 0
    %9377 = vmatprep.subr.bf16.mxu0 0
    %9378 = vmatpush1.bf16.xpose.msra.mxu0 0
    %9379 = vmatprep.subr.bf16.mxu0 0
    %9380 = vmatpush1.bf16.xpose.msra.mxu0 0
    %9381 = vmatprep.subr.bf16.mxu0 0
    %9382 = vmatpush1.bf16.xpose.msra.mxu0 0
    %9383 = vmatprep.mubr.bf16.mxu0 0
    %9384 = vmatmul.mubr.bf16.gmra.mrb[0].mxu0 %v9346
    %v9385 = vpop.f32.mrb[0].mxu0
    %v9386 = vadd.f32 0.0, %v9385
    %v9387 = vpop.f32.mrb[0].mxu0
    %v9388 = vpop.f32.mrb[0].mxu0
    %v9389 = vpop.f32.mrb[0].mxu0
    %9390 = vdwg.mxu0
    %v9392 = vsel %vm5468, %v5447, 0
    %v9395 = vsel %vm5468, %v5457, 0
    %9397 = vmatprep.subr.bf16.mxu0 0
    %9398 = vmatpush1.bf16.xpose.msra.mxu0 %v9395
    %9399 = vmatprep.subr.bf16.mxu0 0
    %9400 = vmatpush1.bf16.xpose.msra.mxu0 0
    %9401 = vmatprep.subr.bf16.mxu0 0
    %9402 = vmatpush1.bf16.xpose.msra.mxu0 0
    %9403 = vmatprep.subr.bf16.mxu0 0
    %9404 = vmatpush1.bf16.xpose.msra.mxu0 0
    %9405 = vmatprep.subr.bf16.mxu0 0
    %9406 = vmatpush1.bf16.xpose.msra.mxu0 0
    %9407 = vmatprep.subr.bf16.mxu0 0
    %9408 = vmatpush1.bf16.xpose.msra.mxu0 0
    %9409 = vmatprep.subr.bf16.mxu0 0
    %9410 = vmatpush1.bf16.xpose.msra.mxu0 0
    %9411 = vmatprep.subr.bf16.mxu0 0
    %9412 = vmatpush1.bf16.xpose.msra.mxu0 0
    %9413 = vmatprep.subr.bf16.mxu0 0
    %9414 = vmatpush1.bf16.xpose.msra.mxu0 0
    %9415 = vmatprep.subr.bf16.mxu0 0
    %9416 = vmatpush1.bf16.xpose.msra.mxu0 0
    %9417 = vmatprep.subr.bf16.mxu0 0
    %9418 = vmatpush1.bf16.xpose.msra.mxu0 0
    %9419 = vmatprep.subr.bf16.mxu0 0
    %9420 = vmatpush1.bf16.xpose.msra.mxu0 0
    %9421 = vmatprep.subr.bf16.mxu0 0
    %9422 = vmatpush1.bf16.xpose.msra.mxu0 0
    %9423 = vmatprep.subr.bf16.mxu0 0
    %9424 = vmatpush1.bf16.xpose.msra.mxu0 0
    %9425 = vmatprep.subr.bf16.mxu0 0
    %9426 = vmatpush1.bf16.xpose.msra.mxu0 0
    %9427 = vmatprep.subr.bf16.mxu0 0
    %9428 = vmatpush1.bf16.xpose.msra.mxu0 0
    %9429 = vmatprep.mubr.bf16.mxu0 0
    %9430 = vmatmul.mubr.bf16.gmra.mrb[0].mxu0 %v9392
    %v9431 = vpop.f32.mrb[0].mxu0
    %v9432 = vadd.f32 0.0, %v9431
    %v9433 = vpop.f32.mrb[0].mxu0
    %v9434 = vpop.f32.mrb[0].mxu0
    %v9435 = vpop.f32.mrb[0].mxu0
    %9436 = vdwg.mxu0
    %v9437 = vsel %vm5561, %v9386, -inf
    %9438 = vmax.xlane.f32.xlu0 %v9437
    %v9439 = vpop.xlane.xlu0 %9438
    %v9440 = vsel %vm5561, %v9432, -inf
    %9441 = vmax.xlane.f32.xlu0 %v9440
    %v9442 = vpop.xlane.xlu0 %9441
    %v9443 = vsub.f32 %v9386, %v9439
    %v9444 = vsub.f32 %v9432, %v9442
    %v9445 = vmul.f32 %v9443, 1.442695
    %v9446 = vpow.pop %v9445
    %v9447 = vmul.f32 %v9444, 1.442695
    %v9448 = vpow.pop %v9447
    %v9449 = vsel %vm5561, %v9446, 0.0
    %9450 = vadd.xlane.f32.xlu0 %v9449
    %v9451 = vpop.xlane.xlu0 %9450
    %v9452 = vsel %vm5561, %v9448, 0.0
    %9453 = vadd.xlane.f32.xlu0 %v9452
    %v9454 = vpop.xlane.xlu0 %9453
    %v9455 = vrcp.pop %v9451
    %v9456 = vrcp.pop %v9454
    %v9457 = vmul.f32 %v9446, %v9455
    %v9458 = vmul.f32 %v9448, %v9456
    %v9459 = vpack.c.bf16 %v9457, %v9457
    %v9460 = vpack.c.bf16 %v9458, %v9458
    %v9462 = vsel %vm5561, %v9459, 0
    %v9465 = vsel %vm1795, %v5462, 0
    %9467 = vmatprep.subr.bf16.mxu0 0
    %9468 = vmatpush1.bf16.msra.mxu0 %v9465
    %9469 = vmatprep.subr.bf16.mxu0 0
    %9470 = vmatpush1.bf16.msra.mxu0 0
    %9471 = vmatprep.subr.bf16.mxu0 0
    %9472 = vmatpush1.bf16.msra.mxu0 0
    %9473 = vmatprep.subr.bf16.mxu0 0
    %9474 = vmatpush1.bf16.msra.mxu0 0
    %9475 = vmatprep.subr.bf16.mxu0 0
    %9476 = vmatpush1.bf16.msra.mxu0 0
    %9477 = vmatprep.subr.bf16.mxu0 0
    %9478 = vmatpush1.bf16.msra.mxu0 0
    %9479 = vmatprep.subr.bf16.mxu0 0
    %9480 = vmatpush1.bf16.msra.mxu0 0
    %9481 = vmatprep.subr.bf16.mxu0 0
    %9482 = vmatpush1.bf16.msra.mxu0 0
    %9483 = vmatprep.subr.bf16.mxu0 0
    %9484 = vmatpush1.bf16.msra.mxu0 0
    %9485 = vmatprep.subr.bf16.mxu0 0
    %9486 = vmatpush1.bf16.msra.mxu0 0
    %9487 = vmatprep.subr.bf16.mxu0 0
    %9488 = vmatpush1.bf16.msra.mxu0 0
    %9489 = vmatprep.subr.bf16.mxu0 0
    %9490 = vmatpush1.bf16.msra.mxu0 0
    %9491 = vmatprep.subr.bf16.mxu0 0
    %9492 = vmatpush1.bf16.msra.mxu0 0
    %9493 = vmatprep.subr.bf16.mxu0 0
    %9494 = vmatpush1.bf16.msra.mxu0 0
    %9495 = vmatprep.subr.bf16.mxu0 0
    %9496 = vmatpush1.bf16.msra.mxu0 0
    %9497 = vmatprep.subr.bf16.mxu0 0
    %9498 = vmatpush1.bf16.msra.mxu0 0
    %9499 = vmatprep.mubr.bf16.mxu0 0
    %9500 = vmatmul.mubr.bf16.gmra.mrb[0].mxu0 %v9462
    %v9501 = vpop.f32.mrb[0].mxu0
    %v9502 = vadd.f32 0.0, %v9501
    %v9503 = vpop.f32.mrb[0].mxu0
    %v9504 = vpop.f32.mrb[0].mxu0
    %v9505 = vpop.f32.mrb[0].mxu0
    %9506 = vdwg.mxu0
    %v9508 = vsel %vm5561, %v9460, 0
    %v9511 = vsel %vm1795, %v5467, 0
    %9513 = vmatprep.subr.bf16.mxu0 0
    %9514 = vmatpush1.bf16.msra.mxu0 %v9511
    %9515 = vmatprep.subr.bf16.mxu0 0
    %9516 = vmatpush1.bf16.msra.mxu0 0
    %9517 = vmatprep.subr.bf16.mxu0 0
    %9518 = vmatpush1.bf16.msra.mxu0 0
    %9519 = vmatprep.subr.bf16.mxu0 0
    %9520 = vmatpush1.bf16.msra.mxu0 0
    %9521 = vmatprep.subr.bf16.mxu0 0
    %9522 = vmatpush1.bf16.msra.mxu0 0
    %9523 = vmatprep.subr.bf16.mxu0 0
    %9524 = vmatpush1.bf16.msra.mxu0 0
    %9525 = vmatprep.subr.bf16.mxu0 0
    %9526 = vmatpush1.bf16.msra.mxu0 0
    %9527 = vmatprep.subr.bf16.mxu0 0
    %9528 = vmatpush1.bf16.msra.mxu0 0
    %9529 = vmatprep.subr.bf16.mxu0 0
    %9530 = vmatpush1.bf16.msra.mxu0 0
    %9531 = vmatprep.subr.bf16.mxu0 0
    %9532 = vmatpush1.bf16.msra.mxu0 0
    %9533 = vmatprep.subr.bf16.mxu0 0
    %9534 = vmatpush1.bf16.msra.mxu0 0
    %9535 = vmatprep.subr.bf16.mxu0 0
    %9536 = vmatpush1.bf16.msra.mxu0 0
    %9537 = vmatprep.subr.bf16.mxu0 0
    %9538 = vmatpush1.bf16.msra.mxu0 0
    %9539 = vmatprep.subr.bf16.mxu0 0
    %9540 = vmatpush1.bf16.msra.mxu0 0
    %9541 = vmatprep.subr.bf16.mxu0 0
    %9542 = vmatpush1.bf16.msra.mxu0 0
    %9543 = vmatprep.subr.bf16.mxu0 0
    %9544 = vmatpush1.bf16.msra.mxu0 0
    %9545 = vmatprep.mubr.bf16.mxu0 0
    %9546 = vmatmul.mubr.bf16.gmra.mrb[0].mxu0 %v9508
    %v9547 = vpop.f32.mrb[0].mxu0
    %v9548 = vadd.f32 0.0, %v9547
    %v9549 = vpop.f32.mrb[0].mxu0
    %v9550 = vpop.f32.mrb[0].mxu0
    %v9551 = vpop.f32.mrb[0].mxu0
    %9552 = vdwg.mxu0
    %v9553 = vpack.c.bf16 %v9548, %v9502
    %s9554 = scalar_lea.vmem [#allocation7], 1280
    %v9555 = vld [vmem:[%s9554] sm:$0xff]
    %v9556 = vld [vmem:[%s9554 + $0x8] sm:$0xff]
    %v9557 = vld [vmem:[%s9554 + $0x10] sm:$0xf]
    %v9558 = vld [vmem:[%s9554 + $0x14] sm:$0xff]
    %v9559 = vld [vmem:[%s9554 + $0x1c] sm:$0xff]
    %v9560 = vld [vmem:[%s9554 + $0x24] sm:$0xf]
    %v9561 = vld [vmem:[%s9554 + $0x28] sm:$0xff]
    %v9562 = vld [vmem:[%s9554 + $0x30] sm:$0xff]
    %v9563 = vld [vmem:[%s9554 + $0x38] sm:$0xf]
    %v9564 = vld [vmem:[%s9554 + $0x3c] sm:$0xff]
    %v9565 = vld [vmem:[%s9554 + $0x44] sm:$0xff]
    %v9566 = vld [vmem:[%s9554 + $0x4c] sm:$0xf]
    %v9567 = vld [vmem:[%s9554 + $0x50] sm:$0xff]
    %v9568 = vld [vmem:[%s9554 + $0x58] sm:$0xff]
    %v9569 = vld [vmem:[%s9554 + $0x60] sm:$0xf]
    %v9570 = vld [vmem:[%s9554 + $0x64] sm:$0xff]
    %v9571 = vld [vmem:[%s9554 + $0x6c] sm:$0xff]
    %v9572 = vld [vmem:[%s9554 + $0x74] sm:$0xf]
    %v9573 = vld [vmem:[%s9554 + $0x78] sm:$0xff]
    %v9574 = vld [vmem:[%s9554 + $0x80] sm:$0xff]
    %v9575 = vld [vmem:[%s9554 + $0x88] sm:$0xf]
    %v9576 = vld [vmem:[%s9554 + $0x8c] sm:$0xff]
    %v9577 = vld [vmem:[%s9554 + $0x94] sm:$0xff]
    %v9578 = vld [vmem:[%s9554 + $0x9c] sm:$0xf]
    %v9603 = vunpack.c.l.b16 %v9555
    %v9604 = vunpack.c.h.b16 %v9555
    %v9605 = vunpack.c.l.b16 %v9556
    %v9606 = vunpack.c.h.b16 %v9556
    %v9607 = vunpack.c.l.b16 %v9557
    %v9608 = vunpack.c.l.b16 %v9558
    %v9609 = vunpack.c.h.b16 %v9558
    %v9610 = vunpack.c.l.b16 %v9559
    %v9611 = vunpack.c.h.b16 %v9559
    %v9612 = vunpack.c.l.b16 %v9560
    %v9613 = vunpack.c.l.b16 %v9561
    %v9614 = vunpack.c.h.b16 %v9561
    %v9615 = vunpack.c.l.b16 %v9562
    %v9616 = vunpack.c.h.b16 %v9562
    %v9617 = vunpack.c.l.b16 %v9563
    %v9618 = vunpack.c.l.b16 %v9564
    %v9619 = vunpack.c.h.b16 %v9564
    %v9620 = vunpack.c.l.b16 %v9565
    %v9621 = vunpack.c.h.b16 %v9565
    %v9622 = vunpack.c.l.b16 %v9566
    %v9623 = vunpack.c.l.b16 %v9567
    %v9624 = vunpack.c.h.b16 %v9567
    %v9625 = vunpack.c.l.b16 %v9568
    %v9626 = vunpack.c.h.b16 %v9568
    %v9627 = vunpack.c.l.b16 %v9569
    %v9628 = vunpack.c.l.b16 %v9570
    %v9629 = vunpack.c.h.b16 %v9570
    %v9630 = vunpack.c.l.b16 %v9571
    %v9631 = vunpack.c.h.b16 %v9571
    %v9632 = vunpack.c.l.b16 %v9572
    %v9633 = vunpack.c.l.b16 %v9573
    %v9634 = vunpack.c.h.b16 %v9573
    %v9635 = vunpack.c.l.b16 %v9574
    %v9636 = vunpack.c.h.b16 %v9574
    %v9637 = vunpack.c.l.b16 %v9575
    %v9638 = vunpack.c.l.b16 %v9576
    %v9639 = vunpack.c.h.b16 %v9576
    %v9640 = vunpack.c.l.b16 %v9577
    %v9641 = vunpack.c.h.b16 %v9577
    %v9642 = vunpack.c.l.b16 %v9578
    %v9643 = vpack.c.b16 %v9608, %v9603
    %v9644 = vpack.c.b16 %v9609, %v9604
    %v9645 = vpack.c.b16 %v9610, %v9605
    %v9646 = vpack.c.b16 %v9611, %v9606
    %v9647 = vpack.c.b16 %v9612, %v9607
    %v9648 = vpack.c.b16 %v9618, %v9613
    %v9649 = vpack.c.b16 %v9619, %v9614
    %v9650 = vpack.c.b16 %v9620, %v9615
    %v9651 = vpack.c.b16 %v9621, %v9616
    %v9652 = vpack.c.b16 %v9622, %v9617
    %v9653 = vpack.c.b16 %v9628, %v9623
    %v9654 = vpack.c.b16 %v9629, %v9624
    %v9655 = vpack.c.b16 %v9630, %v9625
    %v9656 = vpack.c.b16 %v9631, %v9626
    %v9657 = vpack.c.b16 %v9632, %v9627
    %v9658 = vpack.c.b16 %v9638, %v9633
    %v9659 = vpack.c.b16 %v9639, %v9634
    %v9660 = vpack.c.b16 %v9640, %v9635
    %v9661 = vpack.c.b16 %v9641, %v9636
    %v9662 = vpack.c.b16 %v9642, %v9637
    %v9684 = vsel %vm5468, %v9553, 0
    %9686 = vmatprep.subr.bf16.mxu0 %v9644
    %9687 = vmatpush1.bf16.msra.mxu0 %v9643
    %9688 = vmatprep.subr.bf16.mxu0 %v9649
    %9689 = vmatpush1.bf16.msra.mxu0 %v9648
    %9690 = vmatprep.subr.bf16.mxu0 %v9654
    %9691 = vmatpush1.bf16.msra.mxu0 %v9653
    %9692 = vmatprep.subr.bf16.mxu0 %v9659
    %9693 = vmatpush1.bf16.msra.mxu0 %v9658
    %9694 = vmatprep.subr.bf16.mxu0 0
    %9695 = vmatpush1.bf16.msra.mxu0 0
    %9696 = vmatprep.subr.bf16.mxu0 0
    %9697 = vmatpush1.bf16.msra.mxu0 0
    %9698 = vmatprep.subr.bf16.mxu0 0
    %9699 = vmatpush1.bf16.msra.mxu0 0
    %9700 = vmatprep.subr.bf16.mxu0 0
    %9701 = vmatpush1.bf16.msra.mxu0 0
    %9702 = vmatprep.subr.bf16.mxu0 0
    %9703 = vmatpush1.bf16.msra.mxu0 0
    %9704 = vmatprep.subr.bf16.mxu0 0
    %9705 = vmatpush1.bf16.msra.mxu0 0
    %9706 = vmatprep.subr.bf16.mxu0 0
    %9707 = vmatpush1.bf16.msra.mxu0 0
    %9708 = vmatprep.subr.bf16.mxu0 0
    %9709 = vmatpush1.bf16.msra.mxu0 0
    %9710 = vmatprep.subr.bf16.mxu0 0
    %9711 = vmatpush1.bf16.msra.mxu0 0
    %9712 = vmatprep.subr.bf16.mxu0 0
    %9713 = vmatpush1.bf16.msra.mxu0 0
    %9714 = vmatprep.subr.bf16.mxu0 0
    %9715 = vmatpush1.bf16.msra.mxu0 0
    %9716 = vmatprep.subr.bf16.mxu0 0
    %9717 = vmatpush1.bf16.msra.mxu0 0
    %9718 = vmatprep.mubr.bf16.mxu0 0
    %9719 = vmatmul.mubr.bf16.gmra.mrb[0].mxu0 %v9684
    %v9720 = vpop.f32.mrb[0].mxu0
    %v9721 = vadd.f32 0.0, %v9720
    %v9722 = vpop.f32.mrb[0].mxu0
    %v9723 = vadd.f32 0.0, %v9722
    %v9724 = vpop.f32.mrb[0].mxu0
    %v9725 = vadd.f32 0.0, %v9724
    %v9726 = vpop.f32.mrb[0].mxu0
    %v9727 = vadd.f32 0.0, %v9726
    %9728 = vdwg.mxu0
    %9729 = vmatprep.subr.bf16.mxu0 %v9646
    %9730 = vmatpush1.bf16.msra.mxu0 %v9645
    %9731 = vmatprep.subr.bf16.mxu0 %v9651
    %9732 = vmatpush1.bf16.msra.mxu0 %v9650
    %9733 = vmatprep.subr.bf16.mxu0 %v9656
    %9734 = vmatpush1.bf16.msra.mxu0 %v9655
    %9735 = vmatprep.subr.bf16.mxu0 %v9661
    %9736 = vmatpush1.bf16.msra.mxu0 %v9660
    %9737 = vmatprep.subr.bf16.mxu0 0
    %9738 = vmatpush1.bf16.msra.mxu0 0
    %9739 = vmatprep.subr.bf16.mxu0 0
    %9740 = vmatpush1.bf16.msra.mxu0 0
    %9741 = vmatprep.subr.bf16.mxu0 0
    %9742 = vmatpush1.bf16.msra.mxu0 0
    %9743 = vmatprep.subr.bf16.mxu0 0
    %9744 = vmatpush1.bf16.msra.mxu0 0
    %9745 = vmatprep.subr.bf16.mxu0 0
    %9746 = vmatpush1.bf16.msra.mxu0 0
    %9747 = vmatprep.subr.bf16.mxu0 0
    %9748 = vmatpush1.bf16.msra.mxu0 0
    %9749 = vmatprep.subr.bf16.mxu0 0
    %9750 = vmatpush1.bf16.msra.mxu0 0
    %9751 = vmatprep.subr.bf16.mxu0 0
    %9752 = vmatpush1.bf16.msra.mxu0 0
    %9753 = vmatprep.subr.bf16.mxu0 0
    %9754 = vmatpush1.bf16.msra.mxu0 0
    %9755 = vmatprep.subr.bf16.mxu0 0
    %9756 = vmatpush1.bf16.msra.mxu0 0
    %9757 = vmatprep.subr.bf16.mxu0 0
    %9758 = vmatpush1.bf16.msra.mxu0 0
    %9759 = vmatprep.subr.bf16.mxu0 0
    %9760 = vmatpush1.bf16.msra.mxu0 0
    %9761 = vmatprep.mubr.bf16.mxu0 0
    %9762 = vmatmul.mubr.bf16.gmra.mrb[0].mxu0 %v9684
    %v9763 = vpop.f32.mrb[0].mxu0
    %v9764 = vadd.f32 0.0, %v9763
    %v9765 = vpop.f32.mrb[0].mxu0
    %v9766 = vadd.f32 0.0, %v9765
    %v9767 = vpop.f32.mrb[0].mxu0
    %v9768 = vadd.f32 0.0, %v9767
    %v9769 = vpop.f32.mrb[0].mxu0
    %v9770 = vadd.f32 0.0, %v9769
    %9771 = vdwg.mxu0
    %9772 = vmatprep.subr.bf16.mxu0 0
    %9773 = vmatpush1.bf16.msra.mxu0 %v9647
    %9774 = vmatprep.subr.bf16.mxu0 0
    %9775 = vmatpush1.bf16.msra.mxu0 %v9652
    %9776 = vmatprep.subr.bf16.mxu0 0
    %9777 = vmatpush1.bf16.msra.mxu0 %v9657
    %9778 = vmatprep.subr.bf16.mxu0 0
    %9779 = vmatpush1.bf16.msra.mxu0 %v9662
    %9780 = vmatprep.subr.bf16.mxu0 0
    %9781 = vmatpush1.bf16.msra.mxu0 0
    %9782 = vmatprep.subr.bf16.mxu0 0
    %9783 = vmatpush1.bf16.msra.mxu0 0
    %9784 = vmatprep.subr.bf16.mxu0 0
    %9785 = vmatpush1.bf16.msra.mxu0 0
    %9786 = vmatprep.subr.bf16.mxu0 0
    %9787 = vmatpush1.bf16.msra.mxu0 0
    %9788 = vmatprep.subr.bf16.mxu0 0
    %9789 = vmatpush1.bf16.msra.mxu0 0
    %9790 = vmatprep.subr.bf16.mxu0 0
    %9791 = vmatpush1.bf16.msra.mxu0 0
    %9792 = vmatprep.subr.bf16.mxu0 0
    %9793 = vmatpush1.bf16.msra.mxu0 0
    %9794 = vmatprep.subr.bf16.mxu0 0
    %9795 = vmatpush1.bf16.msra.mxu0 0
    %9796 = vmatprep.subr.bf16.mxu0 0
    %9797 = vmatpush1.bf16.msra.mxu0 0
    %9798 = vmatprep.subr.bf16.mxu0 0
    %9799 = vmatpush1.bf16.msra.mxu0 0
    %9800 = vmatprep.subr.bf16.mxu0 0
    %9801 = vmatpush1.bf16.msra.mxu0 0
    %9802 = vmatprep.subr.bf16.mxu0 0
    %9803 = vmatpush1.bf16.msra.mxu0 0
    %9804 = vmatprep.mubr.bf16.mxu0 0
    %9805 = vmatmul.mubr.bf16.gmra.mrb[0].mxu0 %v9684
    %v9806 = vpop.f32.mrb[0].mxu0
    %v9807 = vadd.f32 0.0, %v9806
    %v9808 = vpop.f32.mrb[0].mxu0
    %v9809 = vpop.f32.mrb[0].mxu0
    %v9810 = vadd.f32 0.0, %v9809
    %v9811 = vpop.f32.mrb[0].mxu0
    %9812 = vdwg.mxu0
    %v9813 = vadd.f32 %v9335, %v9721
    %v9814 = vadd.f32 %v9336, %v9723
    %v9815 = vadd.f32 %v9337, %v9764
    %v9816 = vadd.f32 %v9338, %v9766
    %v9817 = vadd.f32 %v9339, %v9807
    %v9818 = vadd.f32 %v9340, %v9725
    %v9819 = vadd.f32 %v9341, %v9727
    %v9820 = vadd.f32 %v9342, %v9768
    %v9821 = vadd.f32 %v9343, %v9770
    %v9822 = vadd.f32 %v9344, %v9810
    %9824 = vrot.lane.b32.xlu0 %v5442, 64
    %v9825 = vpop.permute.xlu0 %9824
    %9827 = vrot.lane.b32.xlu0 %v5452, 64
    %v9828 = vpop.permute.xlu0 %9827
    %v9830 = vsel %vm5468, %v9825, 0
    %v9833 = vsel %vm5468, %v9828, 0
    %9835 = vmatprep.subr.bf16.mxu0 0
    %9836 = vmatpush1.bf16.xpose.msra.mxu0 %v9833
    %9837 = vmatprep.subr.bf16.mxu0 0
    %9838 = vmatpush1.bf16.xpose.msra.mxu0 0
    %9839 = vmatprep.subr.bf16.mxu0 0
    %9840 = vmatpush1.bf16.xpose.msra.mxu0 0
    %9841 = vmatprep.subr.bf16.mxu0 0
    %9842 = vmatpush1.bf16.xpose.msra.mxu0 0
    %9843 = vmatprep.subr.bf16.mxu0 0
    %9844 = vmatpush1.bf16.xpose.msra.mxu0 0
    %9845 = vmatprep.subr.bf16.mxu0 0
    %9846 = vmatpush1.bf16.xpose.msra.mxu0 0
    %9847 = vmatprep.subr.bf16.mxu0 0
    %9848 = vmatpush1.bf16.xpose.msra.mxu0 0
    %9849 = vmatprep.subr.bf16.mxu0 0
    %9850 = vmatpush1.bf16.xpose.msra.mxu0 0
    %9851 = vmatprep.subr.bf16.mxu0 0
    %9852 = vmatpush1.bf16.xpose.msra.mxu0 0
    %9853 = vmatprep.subr.bf16.mxu0 0
    %9854 = vmatpush1.bf16.xpose.msra.mxu0 0
    %9855 = vmatprep.subr.bf16.mxu0 0
    %9856 = vmatpush1.bf16.xpose.msra.mxu0 0
    %9857 = vmatprep.subr.bf16.mxu0 0
    %9858 = vmatpush1.bf16.xpose.msra.mxu0 0
    %9859 = vmatprep.subr.bf16.mxu0 0
    %9860 = vmatpush1.bf16.xpose.msra.mxu0 0
    %9861 = vmatprep.subr.bf16.mxu0 0
    %9862 = vmatpush1.bf16.xpose.msra.mxu0 0
    %9863 = vmatprep.subr.bf16.mxu0 0
    %9864 = vmatpush1.bf16.xpose.msra.mxu0 0
    %9865 = vmatprep.subr.bf16.mxu0 0
    %9866 = vmatpush1.bf16.xpose.msra.mxu0 0
    %9867 = vmatprep.mubr.bf16.mxu0 0
    %9868 = vmatmul.mubr.bf16.gmra.mrb[0].mxu0 %v9830
    %v9869 = vpop.f32.mrb[0].mxu0
    %v9870 = vadd.f32 0.0, %v9869
    %v9871 = vpop.f32.mrb[0].mxu0
    %v9872 = vpop.f32.mrb[0].mxu0
    %v9873 = vpop.f32.mrb[0].mxu0
    %9874 = vdwg.mxu0
    %9876 = vrot.lane.b32.xlu0 %v5447, 64
    %v9877 = vpop.permute.xlu0 %9876
    %9879 = vrot.lane.b32.xlu0 %v5457, 64
    %v9880 = vpop.permute.xlu0 %9879
    %v9882 = vsel %vm5468, %v9877, 0
    %v9885 = vsel %vm5468, %v9880, 0
    %9887 = vmatprep.subr.bf16.mxu0 0
    %9888 = vmatpush1.bf16.xpose.msra.mxu0 %v9885
    %9889 = vmatprep.subr.bf16.mxu0 0
    %9890 = vmatpush1.bf16.xpose.msra.mxu0 0
    %9891 = vmatprep.subr.bf16.mxu0 0
    %9892 = vmatpush1.bf16.xpose.msra.mxu0 0
    %9893 = vmatprep.subr.bf16.mxu0 0
    %9894 = vmatpush1.bf16.xpose.msra.mxu0 0
    %9895 = vmatprep.subr.bf16.mxu0 0
    %9896 = vmatpush1.bf16.xpose.msra.mxu0 0
    %9897 = vmatprep.subr.bf16.mxu0 0
    %9898 = vmatpush1.bf16.xpose.msra.mxu0 0
    %9899 = vmatprep.subr.bf16.mxu0 0
    %9900 = vmatpush1.bf16.xpose.msra.mxu0 0
    %9901 = vmatprep.subr.bf16.mxu0 0
    %9902 = vmatpush1.bf16.xpose.msra.mxu0 0
    %9903 = vmatprep.subr.bf16.mxu0 0
    %9904 = vmatpush1.bf16.xpose.msra.mxu0 0
    %9905 = vmatprep.subr.bf16.mxu0 0
    %9906 = vmatpush1.bf16.xpose.msra.mxu0 0
    %9907 = vmatprep.subr.bf16.mxu0 0
    %9908 = vmatpush1.bf16.xpose.msra.mxu0 0
    %9909 = vmatprep.subr.bf16.mxu0 0
    %9910 = vmatpush1.bf16.xpose.msra.mxu0 0
    %9911 = vmatprep.subr.bf16.mxu0 0
    %9912 = vmatpush1.bf16.xpose.msra.mxu0 0
    %9913 = vmatprep.subr.bf16.mxu0 0
    %9914 = vmatpush1.bf16.xpose.msra.mxu0 0
    %9915 = vmatprep.subr.bf16.mxu0 0
    %9916 = vmatpush1.bf16.xpose.msra.mxu0 0
    %9917 = vmatprep.subr.bf16.mxu0 0
    %9918 = vmatpush1.bf16.xpose.msra.mxu0 0
    %9919 = vmatprep.mubr.bf16.mxu0 0
    %9920 = vmatmul.mubr.bf16.gmra.mrb[0].mxu0 %v9882
    %v9921 = vpop.f32.mrb[0].mxu0
    %v9922 = vadd.f32 0.0, %v9921
    %v9923 = vpop.f32.mrb[0].mxu0
    %v9924 = vpop.f32.mrb[0].mxu0
    %v9925 = vpop.f32.mrb[0].mxu0
    %9926 = vdwg.mxu0
    %v9927 = vsel %vm5561, %v9870, -inf
    %9928 = vmax.xlane.f32.xlu0 %v9927
    %v9929 = vpop.xlane.xlu0 %9928
    %v9930 = vsel %vm5561, %v9922, -inf
    %9931 = vmax.xlane.f32.xlu0 %v9930
    %v9932 = vpop.xlane.xlu0 %9931
    %v9933 = vsub.f32 %v9870, %v9929
    %v9934 = vsub.f32 %v9922, %v9932
    %v9935 = vmul.f32 %v9933, 1.442695
    %v9936 = vpow.pop %v9935
    %v9937 = vmul.f32 %v9934, 1.442695
    %v9938 = vpow.pop %v9937
    %v9939 = vsel %vm5561, %v9936, 0.0
    %9940 = vadd.xlane.f32.xlu0 %v9939
    %v9941 = vpop.xlane.xlu0 %9940
    %v9942 = vsel %vm5561, %v9938, 0.0
    %9943 = vadd.xlane.f32.xlu0 %v9942
    %v9944 = vpop.xlane.xlu0 %9943
    %v9945 = vrcp.pop %v9941
    %v9946 = vrcp.pop %v9944
    %v9947 = vmul.f32 %v9936, %v9945
    %v9948 = vmul.f32 %v9938, %v9946
    %v9949 = vpack.c.bf16 %v9947, %v9947
    %v9950 = vpack.c.bf16 %v9948, %v9948
    %9952 = vrot.lane.b32.xlu0 %v5462, 64
    %v9953 = vpop.permute.xlu0 %9952
    %v9955 = vsel %vm5561, %v9949, 0
    %v9958 = vsel %vm1795, %v9953, 0
    %9960 = vmatprep.subr.bf16.mxu0 0
    %9961 = vmatpush1.bf16.msra.mxu0 %v9958
    %9962 = vmatprep.subr.bf16.mxu0 0
    %9963 = vmatpush1.bf16.msra.mxu0 0
    %9964 = vmatprep.subr.bf16.mxu0 0
    %9965 = vmatpush1.bf16.msra.mxu0 0
    %9966 = vmatprep.subr.bf16.mxu0 0
    %9967 = vmatpush1.bf16.msra.mxu0 0
    %9968 = vmatprep.subr.bf16.mxu0 0
    %9969 = vmatpush1.bf16.msra.mxu0 0
    %9970 = vmatprep.subr.bf16.mxu0 0
    %9971 = vmatpush1.bf16.msra.mxu0 0
    %9972 = vmatprep.subr.bf16.mxu0 0
    %9973 = vmatpush1.bf16.msra.mxu0 0
    %9974 = vmatprep.subr.bf16.mxu0 0
    %9975 = vmatpush1.bf16.msra.mxu0 0
    %9976 = vmatprep.subr.bf16.mxu0 0
    %9977 = vmatpush1.bf16.msra.mxu0 0
    %9978 = vmatprep.subr.bf16.mxu0 0
    %9979 = vmatpush1.bf16.msra.mxu0 0
    %9980 = vmatprep.subr.bf16.mxu0 0
    %9981 = vmatpush1.bf16.msra.mxu0 0
    %9982 = vmatprep.subr.bf16.mxu0 0
    %9983 = vmatpush1.bf16.msra.mxu0 0
    %9984 = vmatprep.subr.bf16.mxu0 0
    %9985 = vmatpush1.bf16.msra.mxu0 0
    %9986 = vmatprep.subr.bf16.mxu0 0
    %9987 = vmatpush1.bf16.msra.mxu0 0
    %9988 = vmatprep.subr.bf16.mxu0 0
    %9989 = vmatpush1.bf16.msra.mxu0 0
    %9990 = vmatprep.subr.bf16.mxu0 0
    %9991 = vmatpush1.bf16.msra.mxu0 0
    %9992 = vmatprep.mubr.bf16.mxu0 0
    %9993 = vmatmul.mubr.bf16.gmra.mrb[0].mxu0 %v9955
    %v9994 = vpop.f32.mrb[0].mxu0
    %v9995 = vadd.f32 0.0, %v9994
    %v9996 = vpop.f32.mrb[0].mxu0
    %v9997 = vpop.f32.mrb[0].mxu0
    %v9998 = vpop.f32.mrb[0].mxu0
    %9999 = vdwg.mxu0
    %10001 = vrot.lane.b32.xlu0 %v5467, 64
    %v10002 = vpop.permute.xlu0 %10001
    %v10004 = vsel %vm5561, %v9950, 0
    %v10007 = vsel %vm1795, %v10002, 0
    %10009 = vmatprep.subr.bf16.mxu0 0
    %10010 = vmatpush1.bf16.msra.mxu0 %v10007
    %10011 = vmatprep.subr.bf16.mxu0 0
    %10012 = vmatpush1.bf16.msra.mxu0 0
    %10013 = vmatprep.subr.bf16.mxu0 0
    %10014 = vmatpush1.bf16.msra.mxu0 0
    %10015 = vmatprep.subr.bf16.mxu0 0
    %10016 = vmatpush1.bf16.msra.mxu0 0
    %10017 = vmatprep.subr.bf16.mxu0 0
    %10018 = vmatpush1.bf16.msra.mxu0 0
    %10019 = vmatprep.subr.bf16.mxu0 0
    %10020 = vmatpush1.bf16.msra.mxu0 0
    %10021 = vmatprep.subr.bf16.mxu0 0
    %10022 = vmatpush1.bf16.msra.mxu0 0
    %10023 = vmatprep.subr.bf16.mxu0 0
    %10024 = vmatpush1.bf16.msra.mxu0 0
    %10025 = vmatprep.subr.bf16.mxu0 0
    %10026 = vmatpush1.bf16.msra.mxu0 0
    %10027 = vmatprep.subr.bf16.mxu0 0
    %10028 = vmatpush1.bf16.msra.mxu0 0
    %10029 = vmatprep.subr.bf16.mxu0 0
    %10030 = vmatpush1.bf16.msra.mxu0 0
    %10031 = vmatprep.subr.bf16.mxu0 0
    %10032 = vmatpush1.bf16.msra.mxu0 0
    %10033 = vmatprep.subr.bf16.mxu0 0
    %10034 = vmatpush1.bf16.msra.mxu0 0
    %10035 = vmatprep.subr.bf16.mxu0 0
    %10036 = vmatpush1.bf16.msra.mxu0 0
    %10037 = vmatprep.subr.bf16.mxu0 0
    %10038 = vmatpush1.bf16.msra.mxu0 0
    %10039 = vmatprep.subr.bf16.mxu0 0
    %10040 = vmatpush1.bf16.msra.mxu0 0
    %10041 = vmatprep.mubr.bf16.mxu0 0
    %10042 = vmatmul.mubr.bf16.gmra.mrb[0].mxu0 %v10004
    %v10043 = vpop.f32.mrb[0].mxu0
    %v10044 = vadd.f32 0.0, %v10043
    %v10045 = vpop.f32.mrb[0].mxu0
    %v10046 = vpop.f32.mrb[0].mxu0
    %v10047 = vpop.f32.mrb[0].mxu0
    %10048 = vdwg.mxu0
    %v10049 = vpack.c.bf16 %v10044, %v9995
    %s10050 = scalar_lea.vmem [#allocation7], 1440
    %v10051 = vld [vmem:[%s10050] sm:$0xff]
    %v10052 = vld [vmem:[%s10050 + $0x8] sm:$0xff]
    %v10053 = vld [vmem:[%s10050 + $0x10] sm:$0xf]
    %v10054 = vld [vmem:[%s10050 + $0x14] sm:$0xff]
    %v10055 = vld [vmem:[%s10050 + $0x1c] sm:$0xff]
    %v10056 = vld [vmem:[%s10050 + $0x24] sm:$0xf]
    %v10057 = vld [vmem:[%s10050 + $0x28] sm:$0xff]
    %v10058 = vld [vmem:[%s10050 + $0x30] sm:$0xff]
    %v10059 = vld [vmem:[%s10050 + $0x38] sm:$0xf]
    %v10060 = vld [vmem:[%s10050 + $0x3c] sm:$0xff]
    %v10061 = vld [vmem:[%s10050 + $0x44] sm:$0xff]
    %v10062 = vld [vmem:[%s10050 + $0x4c] sm:$0xf]
    %v10063 = vld [vmem:[%s10050 + $0x50] sm:$0xff]
    %v10064 = vld [vmem:[%s10050 + $0x58] sm:$0xff]
    %v10065 = vld [vmem:[%s10050 + $0x60] sm:$0xf]
    %v10066 = vld [vmem:[%s10050 + $0x64] sm:$0xff]
    %v10067 = vld [vmem:[%s10050 + $0x6c] sm:$0xff]
    %v10068 = vld [vmem:[%s10050 + $0x74] sm:$0xf]
    %v10069 = vld [vmem:[%s10050 + $0x78] sm:$0xff]
    %v10070 = vld [vmem:[%s10050 + $0x80] sm:$0xff]
    %v10071 = vld [vmem:[%s10050 + $0x88] sm:$0xf]
    %v10072 = vld [vmem:[%s10050 + $0x8c] sm:$0xff]
    %v10073 = vld [vmem:[%s10050 + $0x94] sm:$0xff]
    %v10074 = vld [vmem:[%s10050 + $0x9c] sm:$0xf]
    %v10099 = vunpack.c.l.b16 %v10051
    %v10100 = vunpack.c.h.b16 %v10051
    %v10101 = vunpack.c.l.b16 %v10052
    %v10102 = vunpack.c.h.b16 %v10052
    %v10103 = vunpack.c.l.b16 %v10053
    %v10104 = vunpack.c.l.b16 %v10054
    %v10105 = vunpack.c.h.b16 %v10054
    %v10106 = vunpack.c.l.b16 %v10055
    %v10107 = vunpack.c.h.b16 %v10055
    %v10108 = vunpack.c.l.b16 %v10056
    %v10109 = vunpack.c.l.b16 %v10057
    %v10110 = vunpack.c.h.b16 %v10057
    %v10111 = vunpack.c.l.b16 %v10058
    %v10112 = vunpack.c.h.b16 %v10058
    %v10113 = vunpack.c.l.b16 %v10059
    %v10114 = vunpack.c.l.b16 %v10060
    %v10115 = vunpack.c.h.b16 %v10060
    %v10116 = vunpack.c.l.b16 %v10061
    %v10117 = vunpack.c.h.b16 %v10061
    %v10118 = vunpack.c.l.b16 %v10062
    %v10119 = vunpack.c.l.b16 %v10063
    %v10120 = vunpack.c.h.b16 %v10063
    %v10121 = vunpack.c.l.b16 %v10064
    %v10122 = vunpack.c.h.b16 %v10064
    %v10123 = vunpack.c.l.b16 %v10065
    %v10124 = vunpack.c.l.b16 %v10066
    %v10125 = vunpack.c.h.b16 %v10066
    %v10126 = vunpack.c.l.b16 %v10067
    %v10127 = vunpack.c.h.b16 %v10067
    %v10128 = vunpack.c.l.b16 %v10068
    %v10129 = vunpack.c.l.b16 %v10069
    %v10130 = vunpack.c.h.b16 %v10069
    %v10131 = vunpack.c.l.b16 %v10070
    %v10132 = vunpack.c.h.b16 %v10070
    %v10133 = vunpack.c.l.b16 %v10071
    %v10134 = vunpack.c.l.b16 %v10072
    %v10135 = vunpack.c.h.b16 %v10072
    %v10136 = vunpack.c.l.b16 %v10073
    %v10137 = vunpack.c.h.b16 %v10073
    %v10138 = vunpack.c.l.b16 %v10074
    %v10139 = vpack.c.b16 %v10104, %v10099
    %v10140 = vpack.c.b16 %v10105, %v10100
    %v10141 = vpack.c.b16 %v10106, %v10101
    %v10142 = vpack.c.b16 %v10107, %v10102
    %v10143 = vpack.c.b16 %v10108, %v10103
    %v10144 = vpack.c.b16 %v10114, %v10109
    %v10145 = vpack.c.b16 %v10115, %v10110
    %v10146 = vpack.c.b16 %v10116, %v10111
    %v10147 = vpack.c.b16 %v10117, %v10112
    %v10148 = vpack.c.b16 %v10118, %v10113
    %v10149 = vpack.c.b16 %v10124, %v10119
    %v10150 = vpack.c.b16 %v10125, %v10120
    %v10151 = vpack.c.b16 %v10126, %v10121
    %v10152 = vpack.c.b16 %v10127, %v10122
    %v10153 = vpack.c.b16 %v10128, %v10123
    %v10154 = vpack.c.b16 %v10134, %v10129
    %v10155 = vpack.c.b16 %v10135, %v10130
    %v10156 = vpack.c.b16 %v10136, %v10131
    %v10157 = vpack.c.b16 %v10137, %v10132
    %v10158 = vpack.c.b16 %v10138, %v10133
    %v10180 = vsel %vm5468, %v10049, 0
    %10182 = vmatprep.subr.bf16.mxu0 %v10140
    %10183 = vmatpush1.bf16.msra.mxu0 %v10139
    %10184 = vmatprep.subr.bf16.mxu0 %v10145
    %10185 = vmatpush1.bf16.msra.mxu0 %v10144
    %10186 = vmatprep.subr.bf16.mxu0 %v10150
    %10187 = vmatpush1.bf16.msra.mxu0 %v10149
    %10188 = vmatprep.subr.bf16.mxu0 %v10155
    %10189 = vmatpush1.bf16.msra.mxu0 %v10154
    %10190 = vmatprep.subr.bf16.mxu0 0
    %10191 = vmatpush1.bf16.msra.mxu0 0
    %10192 = vmatprep.subr.bf16.mxu0 0
    %10193 = vmatpush1.bf16.msra.mxu0 0
    %10194 = vmatprep.subr.bf16.mxu0 0
    %10195 = vmatpush1.bf16.msra.mxu0 0
    %10196 = vmatprep.subr.bf16.mxu0 0
    %10197 = vmatpush1.bf16.msra.mxu0 0
    %10198 = vmatprep.subr.bf16.mxu0 0
    %10199 = vmatpush1.bf16.msra.mxu0 0
    %10200 = vmatprep.subr.bf16.mxu0 0
    %10201 = vmatpush1.bf16.msra.mxu0 0
    %10202 = vmatprep.subr.bf16.mxu0 0
    %10203 = vmatpush1.bf16.msra.mxu0 0
    %10204 = vmatprep.subr.bf16.mxu0 0
    %10205 = vmatpush1.bf16.msra.mxu0 0
    %10206 = vmatprep.subr.bf16.mxu0 0
    %10207 = vmatpush1.bf16.msra.mxu0 0
    %10208 = vmatprep.subr.bf16.mxu0 0
    %10209 = vmatpush1.bf16.msra.mxu0 0
    %10210 = vmatprep.subr.bf16.mxu0 0
    %10211 = vmatpush1.bf16.msra.mxu0 0
    %10212 = vmatprep.subr.bf16.mxu0 0
    %10213 = vmatpush1.bf16.msra.mxu0 0
    %10214 = vmatprep.mubr.bf16.mxu0 0
    %10215 = vmatmul.mubr.bf16.gmra.mrb[0].mxu0 %v10180
    %v10216 = vpop.f32.mrb[0].mxu0
    %v10217 = vadd.f32 0.0, %v10216
    %v10218 = vpop.f32.mrb[0].mxu0
    %v10219 = vadd.f32 0.0, %v10218
    %v10220 = vpop.f32.mrb[0].mxu0
    %v10221 = vadd.f32 0.0, %v10220
    %v10222 = vpop.f32.mrb[0].mxu0
    %v10223 = vadd.f32 0.0, %v10222
    %10224 = vdwg.mxu0
    %10225 = vmatprep.subr.bf16.mxu0 %v10142
    %10226 = vmatpush1.bf16.msra.mxu0 %v10141
    %10227 = vmatprep.subr.bf16.mxu0 %v10147
    %10228 = vmatpush1.bf16.msra.mxu0 %v10146
    %10229 = vmatprep.subr.bf16.mxu0 %v10152
    %10230 = vmatpush1.bf16.msra.mxu0 %v10151
    %10231 = vmatprep.subr.bf16.mxu0 %v10157
    %10232 = vmatpush1.bf16.msra.mxu0 %v10156
    %10233 = vmatprep.subr.bf16.mxu0 0
    %10234 = vmatpush1.bf16.msra.mxu0 0
    %10235 = vmatprep.subr.bf16.mxu0 0
    %10236 = vmatpush1.bf16.msra.mxu0 0
    %10237 = vmatprep.subr.bf16.mxu0 0
    %10238 = vmatpush1.bf16.msra.mxu0 0
    %10239 = vmatprep.subr.bf16.mxu0 0
    %10240 = vmatpush1.bf16.msra.mxu0 0
    %10241 = vmatprep.subr.bf16.mxu0 0
    %10242 = vmatpush1.bf16.msra.mxu0 0
    %10243 = vmatprep.subr.bf16.mxu0 0
    %10244 = vmatpush1.bf16.msra.mxu0 0
    %10245 = vmatprep.subr.bf16.mxu0 0
    %10246 = vmatpush1.bf16.msra.mxu0 0
    %10247 = vmatprep.subr.bf16.mxu0 0
    %10248 = vmatpush1.bf16.msra.mxu0 0
    %10249 = vmatprep.subr.bf16.mxu0 0
    %10250 = vmatpush1.bf16.msra.mxu0 0
    %10251 = vmatprep.subr.bf16.mxu0 0
    %10252 = vmatpush1.bf16.msra.mxu0 0
    %10253 = vmatprep.subr.bf16.mxu0 0
    %10254 = vmatpush1.bf16.msra.mxu0 0
    %10255 = vmatprep.subr.bf16.mxu0 0
    %10256 = vmatpush1.bf16.msra.mxu0 0
    %10257 = vmatprep.mubr.bf16.mxu0 0
    %10258 = vmatmul.mubr.bf16.gmra.mrb[0].mxu0 %v10180
    %v10259 = vpop.f32.mrb[0].mxu0
    %v10260 = vadd.f32 0.0, %v10259
    %v10261 = vpop.f32.mrb[0].mxu0
    %v10262 = vadd.f32 0.0, %v10261
    %v10263 = vpop.f32.mrb[0].mxu0
    %v10264 = vadd.f32 0.0, %v10263
    %v10265 = vpop.f32.mrb[0].mxu0
    %v10266 = vadd.f32 0.0, %v10265
    %10267 = vdwg.mxu0
    %10268 = vmatprep.subr.bf16.mxu0 0
    %10269 = vmatpush1.bf16.msra.mxu0 %v10143
    %10270 = vmatprep.subr.bf16.mxu0 0
    %10271 = vmatpush1.bf16.msra.mxu0 %v10148
    %10272 = vmatprep.subr.bf16.mxu0 0
    %10273 = vmatpush1.bf16.msra.mxu0 %v10153
    %10274 = vmatprep.subr.bf16.mxu0 0
    %10275 = vmatpush1.bf16.msra.mxu0 %v10158
    %10276 = vmatprep.subr.bf16.mxu0 0
    %10277 = vmatpush1.bf16.msra.mxu0 0
    %10278 = vmatprep.subr.bf16.mxu0 0
    %10279 = vmatpush1.bf16.msra.mxu0 0
    %10280 = vmatprep.subr.bf16.mxu0 0
    %10281 = vmatpush1.bf16.msra.mxu0 0
    %10282 = vmatprep.subr.bf16.mxu0 0
    %10283 = vmatpush1.bf16.msra.mxu0 0
    %10284 = vmatprep.subr.bf16.mxu0 0
    %10285 = vmatpush1.bf16.msra.mxu0 0
    %10286 = vmatprep.subr.bf16.mxu0 0
    %10287 = vmatpush1.bf16.msra.mxu0 0
    %10288 = vmatprep.subr.bf16.mxu0 0
    %10289 = vmatpush1.bf16.msra.mxu0 0
    %10290 = vmatprep.subr.bf16.mxu0 0
    %10291 = vmatpush1.bf16.msra.mxu0 0
    %10292 = vmatprep.subr.bf16.mxu0 0
    %10293 = vmatpush1.bf16.msra.mxu0 0
    %10294 = vmatprep.subr.bf16.mxu0 0
    %10295 = vmatpush1.bf16.msra.mxu0 0
    %10296 = vmatprep.subr.bf16.mxu0 0
    %10297 = vmatpush1.bf16.msra.mxu0 0
    %10298 = vmatprep.subr.bf16.mxu0 0
    %10299 = vmatpush1.bf16.msra.mxu0 0
    %10300 = vmatprep.mubr.bf16.mxu0 0
    %10301 = vmatmul.mubr.bf16.gmra.mrb[0].mxu0 %v10180
    %v10302 = vpop.f32.mrb[0].mxu0
    %v10303 = vadd.f32 0.0, %v10302
    %v10304 = vpop.f32.mrb[0].mxu0
    %v10305 = vpop.f32.mrb[0].mxu0
    %v10306 = vadd.f32 0.0, %v10305
    %v10307 = vpop.f32.mrb[0].mxu0
    %10308 = vdwg.mxu0
    %v10309 = vadd.f32 %v9813, %v10217
    %v10310 = vadd.f32 %v9814, %v10219
    %v10311 = vadd.f32 %v9815, %v10260
    %v10312 = vadd.f32 %v9816, %v10262
    %v10313 = vadd.f32 %v9817, %v10303
    %v10314 = vadd.f32 %v9818, %v10221
    %v10315 = vadd.f32 %v9819, %v10223
    %v10316 = vadd.f32 %v9820, %v10264
    %v10317 = vadd.f32 %v9821, %v10266
    %v10318 = vadd.f32 %v9822, %v10306
    %v10319 = vld [vmem:[%s8] sm:$0x1f]
    %v10321 = vlaneseq
    %v10322 = vshrl.u32 %v10321, 7
    %v10323 = vsub.s32 0, %v10322
    %v10324 = vrot.slane %v10319, %v10323
    %v10325 = vlaneseq
    %v10326 = vshrl.u32 %v10325, 7
    %v10327 = vsub.s32 1, %v10326
    %v10328 = vrot.slane %v10319, %v10327
    %v10329 = vlaneseq
    %v10330 = vshrl.u32 %v10329, 7
    %v10331 = vsub.s32 2, %v10330
    %v10332 = vrot.slane %v10319, %v10331
    %v10333 = vlaneseq
    %v10334 = vshrl.u32 %v10333, 7
    %v10335 = vsub.s32 3, %v10334
    %v10336 = vrot.slane %v10319, %v10335
    %v10337 = vlaneseq
    %v10338 = vshrl.u32 %v10337, 7
    %v10339 = vsub.s32 4, %v10338
    %v10340 = vrot.slane %v10319, %v10339
    %v10346 = vadd.f32 %v10309, %v10324
    %v10347 = vadd.f32 %v10310, %v10328
    %v10348 = vadd.f32 %v10311, %v10332
    %v10349 = vadd.f32 %v10312, %v10336
    %v10350 = vadd.f32 %v10313, %v10340
    %v10351 = vadd.f32 %v10314, %v10324
    %v10352 = vadd.f32 %v10315, %v10328
    %v10353 = vadd.f32 %v10316, %v10332
    %v10354 = vadd.f32 %v10317, %v10336
    %v10355 = vadd.f32 %v10318, %v10340
    %10356 = vxpose.xlu0.b32.start [1/16] %v10346, 128
    %10357 = vxpose.xlu0.b32.cont [2/16] 0.0, 128
    %10358 = vxpose.xlu0.b32.cont [3/16] 0.0, 128
    %10359 = vxpose.xlu0.b32.cont [4/16] 0.0, 128
    %10360 = vxpose.xlu0.b32.cont [5/16] 0.0, 128
    %10361 = vxpose.xlu0.b32.cont [6/16] 0.0, 128
    %10362 = vxpose.xlu0.b32.cont [7/16] 0.0, 128
    %10363 = vxpose.xlu0.b32.cont [8/16] 0.0, 128
    %10364 = vxpose.xlu0.b32.cont [9/16] 0.0, 128
    %10365 = vxpose.xlu0.b32.cont [10/16] 0.0, 128
    %10366 = vxpose.xlu0.b32.cont [11/16] 0.0, 128
    %10367 = vxpose.xlu0.b32.cont [12/16] 0.0, 128
    %10368 = vxpose.xlu0.b32.cont [13/16] 0.0, 128
    %10369 = vxpose.xlu0.b32.cont [14/16] 0.0, 128
    %10370 = vxpose.xlu0.b32.cont [15/16] 0.0, 128
    %10371 = vxpose.xlu0.b32.end [16/16] 0.0, 128
    %v10372 = vpop.trf.xlu0
    %v10373 = vpop.trf.xlu0
    %v10374 = vpop.trf.xlu0
    %v10375 = vpop.trf.xlu0
    %v10376 = vpop.trf.xlu0
    %v10377 = vpop.trf.xlu0
    %v10378 = vpop.trf.xlu0
    %v10379 = vpop.trf.xlu0
    %v10380 = vpop.trf.xlu0
    %v10381 = vpop.trf.xlu0
    %v10382 = vpop.trf.xlu0
    %v10383 = vpop.trf.xlu0
    %v10384 = vpop.trf.xlu0
    %v10385 = vpop.trf.xlu0
    %v10386 = vpop.trf.xlu0
    %v10387 = vpop.trf.xlu0
    %10388 = vxpose.xlu0.b32.start [1/16] %v10347, 128
    %10389 = vxpose.xlu0.b32.cont [2/16] 0.0, 128
    %10390 = vxpose.xlu0.b32.cont [3/16] 0.0, 128
    %10391 = vxpose.xlu0.b32.cont [4/16] 0.0, 128
    %10392 = vxpose.xlu0.b32.cont [5/16] 0.0, 128
    %10393 = vxpose.xlu0.b32.cont [6/16] 0.0, 128
    %10394 = vxpose.xlu0.b32.cont [7/16] 0.0, 128
    %10395 = vxpose.xlu0.b32.cont [8/16] 0.0, 128
    %10396 = vxpose.xlu0.b32.cont [9/16] 0.0, 128
    %10397 = vxpose.xlu0.b32.cont [10/16] 0.0, 128
    %10398 = vxpose.xlu0.b32.cont [11/16] 0.0, 128
    %10399 = vxpose.xlu0.b32.cont [12/16] 0.0, 128
    %10400 = vxpose.xlu0.b32.cont [13/16] 0.0, 128
    %10401 = vxpose.xlu0.b32.cont [14/16] 0.0, 128
    %10402 = vxpose.xlu0.b32.cont [15/16] 0.0, 128
    %10403 = vxpose.xlu0.b32.end [16/16] 0.0, 128
    %v10404 = vpop.trf.xlu0
    %v10405 = vpop.trf.xlu0
    %v10406 = vpop.trf.xlu0
    %v10407 = vpop.trf.xlu0
    %v10408 = vpop.trf.xlu0
    %v10409 = vpop.trf.xlu0
    %v10410 = vpop.trf.xlu0
    %v10411 = vpop.trf.xlu0
    %v10412 = vpop.trf.xlu0
    %v10413 = vpop.trf.xlu0
    %v10414 = vpop.trf.xlu0
    %v10415 = vpop.trf.xlu0
    %v10416 = vpop.trf.xlu0
    %v10417 = vpop.trf.xlu0
    %v10418 = vpop.trf.xlu0
    %v10419 = vpop.trf.xlu0
    %10420 = vxpose.xlu0.b32.start [1/16] %v10348, 128
    %10421 = vxpose.xlu0.b32.cont [2/16] 0.0, 128
    %10422 = vxpose.xlu0.b32.cont [3/16] 0.0, 128
    %10423 = vxpose.xlu0.b32.cont [4/16] 0.0, 128
    %10424 = vxpose.xlu0.b32.cont [5/16] 0.0, 128
    %10425 = vxpose.xlu0.b32.cont [6/16] 0.0, 128
    %10426 = vxpose.xlu0.b32.cont [7/16] 0.0, 128
    %10427 = vxpose.xlu0.b32.cont [8/16] 0.0, 128
    %10428 = vxpose.xlu0.b32.cont [9/16] 0.0, 128
    %10429 = vxpose.xlu0.b32.cont [10/16] 0.0, 128
    %10430 = vxpose.xlu0.b32.cont [11/16] 0.0, 128
    %10431 = vxpose.xlu0.b32.cont [12/16] 0.0, 128
    %10432 = vxpose.xlu0.b32.cont [13/16] 0.0, 128
    %10433 = vxpose.xlu0.b32.cont [14/16] 0.0, 128
    %10434 = vxpose.xlu0.b32.cont [15/16] 0.0, 128
    %10435 = vxpose.xlu0.b32.end [16/16] 0.0, 128
    %v10436 = vpop.trf.xlu0
    %v10437 = vpop.trf.xlu0
    %v10438 = vpop.trf.xlu0
    %v10439 = vpop.trf.xlu0
    %v10440 = vpop.trf.xlu0
    %v10441 = vpop.trf.xlu0
    %v10442 = vpop.trf.xlu0
    %v10443 = vpop.trf.xlu0
    %v10444 = vpop.trf.xlu0
    %v10445 = vpop.trf.xlu0
    %v10446 = vpop.trf.xlu0
    %v10447 = vpop.trf.xlu0
    %v10448 = vpop.trf.xlu0
    %v10449 = vpop.trf.xlu0
    %v10450 = vpop.trf.xlu0
    %v10451 = vpop.trf.xlu0
    %10452 = vxpose.xlu0.b32.start [1/16] %v10349, 128
    %10453 = vxpose.xlu0.b32.cont [2/16] 0.0, 128
    %10454 = vxpose.xlu0.b32.cont [3/16] 0.0, 128
    %10455 = vxpose.xlu0.b32.cont [4/16] 0.0, 128
    %10456 = vxpose.xlu0.b32.cont [5/16] 0.0, 128
    %10457 = vxpose.xlu0.b32.cont [6/16] 0.0, 128
    %10458 = vxpose.xlu0.b32.cont [7/16] 0.0, 128
    %10459 = vxpose.xlu0.b32.cont [8/16] 0.0, 128
    %10460 = vxpose.xlu0.b32.cont [9/16] 0.0, 128
    %10461 = vxpose.xlu0.b32.cont [10/16] 0.0, 128
    %10462 = vxpose.xlu0.b32.cont [11/16] 0.0, 128
    %10463 = vxpose.xlu0.b32.cont [12/16] 0.0, 128
    %10464 = vxpose.xlu0.b32.cont [13/16] 0.0, 128
    %10465 = vxpose.xlu0.b32.cont [14/16] 0.0, 128
    %10466 = vxpose.xlu0.b32.cont [15/16] 0.0, 128
    %10467 = vxpose.xlu0.b32.end [16/16] 0.0, 128
    %v10468 = vpop.trf.xlu0
    %v10469 = vpop.trf.xlu0
    %v10470 = vpop.trf.xlu0
    %v10471 = vpop.trf.xlu0
    %v10472 = vpop.trf.xlu0
    %v10473 = vpop.trf.xlu0
    %v10474 = vpop.trf.xlu0
    %v10475 = vpop.trf.xlu0
    %v10476 = vpop.trf.xlu0
    %v10477 = vpop.trf.xlu0
    %v10478 = vpop.trf.xlu0
    %v10479 = vpop.trf.xlu0
    %v10480 = vpop.trf.xlu0
    %v10481 = vpop.trf.xlu0
    %v10482 = vpop.trf.xlu0
    %v10483 = vpop.trf.xlu0
    %10484 = vxpose.xlu0.b32.start [1/16] %v10350, 128
    %10485 = vxpose.xlu0.b32.cont [2/16] 0.0, 128
    %10486 = vxpose.xlu0.b32.cont [3/16] 0.0, 128
    %10487 = vxpose.xlu0.b32.cont [4/16] 0.0, 128
    %10488 = vxpose.xlu0.b32.cont [5/16] 0.0, 128
    %10489 = vxpose.xlu0.b32.cont [6/16] 0.0, 128
    %10490 = vxpose.xlu0.b32.cont [7/16] 0.0, 128
    %10491 = vxpose.xlu0.b32.cont [8/16] 0.0, 128
    %10492 = vxpose.xlu0.b32.cont [9/16] 0.0, 128
    %10493 = vxpose.xlu0.b32.cont [10/16] 0.0, 128
    %10494 = vxpose.xlu0.b32.cont [11/16] 0.0, 128
    %10495 = vxpose.xlu0.b32.cont [12/16] 0.0, 128
    %10496 = vxpose.xlu0.b32.cont [13/16] 0.0, 128
    %10497 = vxpose.xlu0.b32.cont [14/16] 0.0, 128
    %10498 = vxpose.xlu0.b32.cont [15/16] 0.0, 128
    %10499 = vxpose.xlu0.b32.end [16/16] 0.0, 128
    %v10500 = vpop.trf.xlu0
    %v10501 = vpop.trf.xlu0
    %v10502 = vpop.trf.xlu0
    %v10503 = vpop.trf.xlu0
    %v10504 = vpop.trf.xlu0
    %v10505 = vpop.trf.xlu0
    %v10506 = vpop.trf.xlu0
    %v10507 = vpop.trf.xlu0
    %v10508 = vpop.trf.xlu0
    %v10509 = vpop.trf.xlu0
    %v10510 = vpop.trf.xlu0
    %v10511 = vpop.trf.xlu0
    %v10512 = vpop.trf.xlu0
    %v10513 = vpop.trf.xlu0
    %v10514 = vpop.trf.xlu0
    %v10515 = vpop.trf.xlu0
    %10516 = vst.msk [vmem:[%s9] sm:$0xff] %vm5561, %v10372
    %10517 = vst.msk [vmem:[%s9 + $0x8] sm:$0xff] %vm5561, %v10373
    %10518 = vst.msk [vmem:[%s9 + $0x10] sm:$0xff] %vm5561, %v10374
    %10519 = vst.msk [vmem:[%s9 + $0x18] sm:$0xff] %vm5561, %v10375
    %10520 = vst.msk [vmem:[%s9 + $0x20] sm:$0xff] %vm5561, %v10376
    %10521 = vst.msk [vmem:[%s9 + $0x28] sm:$0xff] %vm5561, %v10377
    %10522 = vst.msk [vmem:[%s9 + $0x30] sm:$0xff] %vm5561, %v10378
    %10523 = vst.msk [vmem:[%s9 + $0x38] sm:$0xff] %vm5561, %v10379
    %10524 = vst.msk [vmem:[%s9 + $0x40] sm:$0xff] %vm5561, %v10380
    %10525 = vst.msk [vmem:[%s9 + $0x48] sm:$0xff] %vm5561, %v10381
    %10526 = vst.msk [vmem:[%s9 + $0x50] sm:$0xff] %vm5561, %v10382
    %10527 = vst.msk [vmem:[%s9 + $0x58] sm:$0xff] %vm5561, %v10383
    %10528 = vst.msk [vmem:[%s9 + $0x60] sm:$0xff] %vm5561, %v10384
    %10529 = vst.msk [vmem:[%s9 + $0x68] sm:$0xff] %vm5561, %v10385
    %10530 = vst.msk [vmem:[%s9 + $0x70] sm:$0xff] %vm5561, %v10386
    %10531 = vst.msk [vmem:[%s9 + $0x78] sm:$0xff] %vm5561, %v10387
    %10532 = vst.msk [vmem:[%s9 + $0x80] sm:$0xff] %vm5561, %v10404
    %10533 = vst.msk [vmem:[%s9 + $0x88] sm:$0xff] %vm5561, %v10405
    %10534 = vst.msk [vmem:[%s9 + $0x90] sm:$0xff] %vm5561, %v10406
    %10535 = vst.msk [vmem:[%s9 + $0x98] sm:$0xff] %vm5561, %v10407
    %10536 = vst.msk [vmem:[%s9 + $0xa0] sm:$0xff] %vm5561, %v10408
    %10537 = vst.msk [vmem:[%s9 + $0xa8] sm:$0xff] %vm5561, %v10409
    %10538 = vst.msk [vmem:[%s9 + $0xb0] sm:$0xff] %vm5561, %v10410
    %10539 = vst.msk [vmem:[%s9 + $0xb8] sm:$0xff] %vm5561, %v10411
    %10540 = vst.msk [vmem:[%s9 + $0xc0] sm:$0xff] %vm5561, %v10412
    %10541 = vst.msk [vmem:[%s9 + $0xc8] sm:$0xff] %vm5561, %v10413
    %10542 = vst.msk [vmem:[%s9 + $0xd0] sm:$0xff] %vm5561, %v10414
    %10543 = vst.msk [vmem:[%s9 + $0xd8] sm:$0xff] %vm5561, %v10415
    %10544 = vst.msk [vmem:[%s9 + $0xe0] sm:$0xff] %vm5561, %v10416
    %10545 = vst.msk [vmem:[%s9 + $0xe8] sm:$0xff] %vm5561, %v10417
    %10546 = vst.msk [vmem:[%s9 + $0xf0] sm:$0xff] %vm5561, %v10418
    %10547 = vst.msk [vmem:[%s9 + $0xf8] sm:$0xff] %vm5561, %v10419
    %10548 = vst.msk [vmem:[%s9 + $0x100] sm:$0xff] %vm5561, %v10436
    %10549 = vst.msk [vmem:[%s9 + $0x108] sm:$0xff] %vm5561, %v10437
    %10550 = vst.msk [vmem:[%s9 + $0x110] sm:$0xff] %vm5561, %v10438
    %10551 = vst.msk [vmem:[%s9 + $0x118] sm:$0xff] %vm5561, %v10439
    %10552 = vst.msk [vmem:[%s9 + $0x120] sm:$0xff] %vm5561, %v10440
    %10553 = vst.msk [vmem:[%s9 + $0x128] sm:$0xff] %vm5561, %v10441
    %10554 = vst.msk [vmem:[%s9 + $0x130] sm:$0xff] %vm5561, %v10442
    %10555 = vst.msk [vmem:[%s9 + $0x138] sm:$0xff] %vm5561, %v10443
    %10556 = vst.msk [vmem:[%s9 + $0x140] sm:$0xff] %vm5561, %v10444
    %10557 = vst.msk [vmem:[%s9 + $0x148] sm:$0xff] %vm5561, %v10445
    %10558 = vst.msk [vmem:[%s9 + $0x150] sm:$0xff] %vm5561, %v10446
    %10559 = vst.msk [vmem:[%s9 + $0x158] sm:$0xff] %vm5561, %v10447
    %10560 = vst.msk [vmem:[%s9 + $0x160] sm:$0xff] %vm5561, %v10448
    %10561 = vst.msk [vmem:[%s9 + $0x168] sm:$0xff] %vm5561, %v10449
    %10562 = vst.msk [vmem:[%s9 + $0x170] sm:$0xff] %vm5561, %v10450
    %10563 = vst.msk [vmem:[%s9 + $0x178] sm:$0xff] %vm5561, %v10451
    %10564 = vst.msk [vmem:[%s9 + $0x180] sm:$0xff] %vm5561, %v10468
    %10565 = vst.msk [vmem:[%s9 + $0x188] sm:$0xff] %vm5561, %v10469
    %10566 = vst.msk [vmem:[%s9 + $0x190] sm:$0xff] %vm5561, %v10470
    %10567 = vst.msk [vmem:[%s9 + $0x198] sm:$0xff] %vm5561, %v10471
    %10568 = vst.msk [vmem:[%s9 + $0x1a0] sm:$0xff] %vm5561, %v10472
    %10569 = vst.msk [vmem:[%s9 + $0x1a8] sm:$0xff] %vm5561, %v10473
    %10570 = vst.msk [vmem:[%s9 + $0x1b0] sm:$0xff] %vm5561, %v10474
    %10571 = vst.msk [vmem:[%s9 + $0x1b8] sm:$0xff] %vm5561, %v10475
    %10572 = vst.msk [vmem:[%s9 + $0x1c0] sm:$0xff] %vm5561, %v10476
    %10573 = vst.msk [vmem:[%s9 + $0x1c8] sm:$0xff] %vm5561, %v10477
    %10574 = vst.msk [vmem:[%s9 + $0x1d0] sm:$0xff] %vm5561, %v10478
    %10575 = vst.msk [vmem:[%s9 + $0x1d8] sm:$0xff] %vm5561, %v10479
    %10576 = vst.msk [vmem:[%s9 + $0x1e0] sm:$0xff] %vm5561, %v10480
    %10577 = vst.msk [vmem:[%s9 + $0x1e8] sm:$0xff] %vm5561, %v10481
    %10578 = vst.msk [vmem:[%s9 + $0x1f0] sm:$0xff] %vm5561, %v10482
    %10579 = vst.msk [vmem:[%s9 + $0x1f8] sm:$0xff] %vm5561, %v10483
    %10580 = vst.msk [vmem:[%s9 + $0x200] sm:$0xff] %vm5561, %v10500
    %10581 = vst.msk [vmem:[%s9 + $0x208] sm:$0xff] %vm5561, %v10501
    %10582 = vst.msk [vmem:[%s9 + $0x210] sm:$0xff] %vm5561, %v10502
    %10583 = vst.msk [vmem:[%s9 + $0x218] sm:$0xff] %vm5561, %v10503
    %10584 = vst.msk [vmem:[%s9 + $0x220] sm:$0xff] %vm5561, %v10504
    %10585 = vst.msk [vmem:[%s9 + $0x228] sm:$0xff] %vm5561, %v10505
    %10586 = vst.msk [vmem:[%s9 + $0x230] sm:$0xff] %vm5561, %v10506
    %10587 = vst.msk [vmem:[%s9 + $0x238] sm:$0xff] %vm5561, %v10507
    %10588 = vst.msk [vmem:[%s9 + $0x240] sm:$0xff] %vm5561, %v10508
    %10589 = vst.msk [vmem:[%s9 + $0x248] sm:$0xff] %vm5561, %v10509
    %10590 = vst.msk [vmem:[%s9 + $0x250] sm:$0xff] %vm5561, %v10510
    %10591 = vxpose.xlu0.b32.start [1/16] %v10351, 128
    %10592 = vxpose.xlu0.b32.cont [2/16] 0.0, 128
    %10593 = vxpose.xlu0.b32.cont [3/16] 0.0, 128
    %10594 = vxpose.xlu0.b32.cont [4/16] 0.0, 128
    %10595 = vxpose.xlu0.b32.cont [5/16] 0.0, 128
    %10596 = vxpose.xlu0.b32.cont [6/16] 0.0, 128
    %10597 = vxpose.xlu0.b32.cont [7/16] 0.0, 128
    %10598 = vxpose.xlu0.b32.cont [8/16] 0.0, 128
    %10599 = vxpose.xlu0.b32.cont [9/16] 0.0, 128
    %10600 = vxpose.xlu0.b32.cont [10/16] 0.0, 128
    %10601 = vxpose.xlu0.b32.cont [11/16] 0.0, 128
    %10602 = vxpose.xlu0.b32.cont [12/16] 0.0, 128
    %10603 = vxpose.xlu0.b32.cont [13/16] 0.0, 128
    %10604 = vxpose.xlu0.b32.cont [14/16] 0.0, 128
    %10605 = vxpose.xlu0.b32.cont [15/16] 0.0, 128
    %10606 = vxpose.xlu0.b32.end [16/16] 0.0, 128
    %v10607 = vpop.trf.xlu0
    %v10608 = vpop.trf.xlu0
    %v10609 = vpop.trf.xlu0
    %v10610 = vpop.trf.xlu0
    %v10611 = vpop.trf.xlu0
    %v10612 = vpop.trf.xlu0
    %v10613 = vpop.trf.xlu0
    %v10614 = vpop.trf.xlu0
    %v10615 = vpop.trf.xlu0
    %v10616 = vpop.trf.xlu0
    %v10617 = vpop.trf.xlu0
    %v10618 = vpop.trf.xlu0
    %v10619 = vpop.trf.xlu0
    %v10620 = vpop.trf.xlu0
    %v10621 = vpop.trf.xlu0
    %v10622 = vpop.trf.xlu0
    %10623 = vxpose.xlu0.b32.start [1/16] %v10352, 128
    %10624 = vxpose.xlu0.b32.cont [2/16] 0.0, 128
    %10625 = vxpose.xlu0.b32.cont [3/16] 0.0, 128
    %10626 = vxpose.xlu0.b32.cont [4/16] 0.0, 128
    %10627 = vxpose.xlu0.b32.cont [5/16] 0.0, 128
    %10628 = vxpose.xlu0.b32.cont [6/16] 0.0, 128
    %10629 = vxpose.xlu0.b32.cont [7/16] 0.0, 128
    %10630 = vxpose.xlu0.b32.cont [8/16] 0.0, 128
    %10631 = vxpose.xlu0.b32.cont [9/16] 0.0, 128
    %10632 = vxpose.xlu0.b32.cont [10/16] 0.0, 128
    %10633 = vxpose.xlu0.b32.cont [11/16] 0.0, 128
    %10634 = vxpose.xlu0.b32.cont [12/16] 0.0, 128
    %10635 = vxpose.xlu0.b32.cont [13/16] 0.0, 128
    %10636 = vxpose.xlu0.b32.cont [14/16] 0.0, 128
    %10637 = vxpose.xlu0.b32.cont [15/16] 0.0, 128
    %10638 = vxpose.xlu0.b32.end [16/16] 0.0, 128
    %v10639 = vpop.trf.xlu0
    %v10640 = vpop.trf.xlu0
    %v10641 = vpop.trf.xlu0
    %v10642 = vpop.trf.xlu0
    %v10643 = vpop.trf.xlu0
    %v10644 = vpop.trf.xlu0
    %v10645 = vpop.trf.xlu0
    %v10646 = vpop.trf.xlu0
    %v10647 = vpop.trf.xlu0
    %v10648 = vpop.trf.xlu0
    %v10649 = vpop.trf.xlu0
    %v10650 = vpop.trf.xlu0
    %v10651 = vpop.trf.xlu0
    %v10652 = vpop.trf.xlu0
    %v10653 = vpop.trf.xlu0
    %v10654 = vpop.trf.xlu0
    %10655 = vxpose.xlu0.b32.start [1/16] %v10353, 128
    %10656 = vxpose.xlu0.b32.cont [2/16] 0.0, 128
    %10657 = vxpose.xlu0.b32.cont [3/16] 0.0, 128
    %10658 = vxpose.xlu0.b32.cont [4/16] 0.0, 128
    %10659 = vxpose.xlu0.b32.cont [5/16] 0.0, 128
    %10660 = vxpose.xlu0.b32.cont [6/16] 0.0, 128
    %10661 = vxpose.xlu0.b32.cont [7/16] 0.0, 128
    %10662 = vxpose.xlu0.b32.cont [8/16] 0.0, 128
    %10663 = vxpose.xlu0.b32.cont [9/16] 0.0, 128
    %10664 = vxpose.xlu0.b32.cont [10/16] 0.0, 128
    %10665 = vxpose.xlu0.b32.cont [11/16] 0.0, 128
    %10666 = vxpose.xlu0.b32.cont [12/16] 0.0, 128
    %10667 = vxpose.xlu0.b32.cont [13/16] 0.0, 128
    %10668 = vxpose.xlu0.b32.cont [14/16] 0.0, 128
    %10669 = vxpose.xlu0.b32.cont [15/16] 0.0, 128
    %10670 = vxpose.xlu0.b32.end [16/16] 0.0, 128
    %v10671 = vpop.trf.xlu0
    %v10672 = vpop.trf.xlu0
    %v10673 = vpop.trf.xlu0
    %v10674 = vpop.trf.xlu0
    %v10675 = vpop.trf.xlu0
    %v10676 = vpop.trf.xlu0
    %v10677 = vpop.trf.xlu0
    %v10678 = vpop.trf.xlu0
    %v10679 = vpop.trf.xlu0
    %v10680 = vpop.trf.xlu0
    %v10681 = vpop.trf.xlu0
    %v10682 = vpop.trf.xlu0
    %v10683 = vpop.trf.xlu0
    %v10684 = vpop.trf.xlu0
    %v10685 = vpop.trf.xlu0
    %v10686 = vpop.trf.xlu0
    %10687 = vxpose.xlu0.b32.start [1/16] %v10354, 128
    %10688 = vxpose.xlu0.b32.cont [2/16] 0.0, 128
    %10689 = vxpose.xlu0.b32.cont [3/16] 0.0, 128
    %10690 = vxpose.xlu0.b32.cont [4/16] 0.0, 128
    %10691 = vxpose.xlu0.b32.cont [5/16] 0.0, 128
    %10692 = vxpose.xlu0.b32.cont [6/16] 0.0, 128
    %10693 = vxpose.xlu0.b32.cont [7/16] 0.0, 128
    %10694 = vxpose.xlu0.b32.cont [8/16] 0.0, 128
    %10695 = vxpose.xlu0.b32.cont [9/16] 0.0, 128
    %10696 = vxpose.xlu0.b32.cont [10/16] 0.0, 128
    %10697 = vxpose.xlu0.b32.cont [11/16] 0.0, 128
    %10698 = vxpose.xlu0.b32.cont [12/16] 0.0, 128
    %10699 = vxpose.xlu0.b32.cont [13/16] 0.0, 128
    %10700 = vxpose.xlu0.b32.cont [14/16] 0.0, 128
    %10701 = vxpose.xlu0.b32.cont [15/16] 0.0, 128
    %10702 = vxpose.xlu0.b32.end [16/16] 0.0, 128
    %v10703 = vpop.trf.xlu0
    %v10704 = vpop.trf.xlu0
    %v10705 = vpop.trf.xlu0
    %v10706 = vpop.trf.xlu0
    %v10707 = vpop.trf.xlu0
    %v10708 = vpop.trf.xlu0
    %v10709 = vpop.trf.xlu0
    %v10710 = vpop.trf.xlu0
    %v10711 = vpop.trf.xlu0
    %v10712 = vpop.trf.xlu0
    %v10713 = vpop.trf.xlu0
    %v10714 = vpop.trf.xlu0
    %v10715 = vpop.trf.xlu0
    %v10716 = vpop.trf.xlu0
    %v10717 = vpop.trf.xlu0
    %v10718 = vpop.trf.xlu0
    %10719 = vxpose.xlu0.b32.start [1/16] %v10355, 128
    %10720 = vxpose.xlu0.b32.cont [2/16] 0.0, 128
    %10721 = vxpose.xlu0.b32.cont [3/16] 0.0, 128
    %10722 = vxpose.xlu0.b32.cont [4/16] 0.0, 128
    %10723 = vxpose.xlu0.b32.cont [5/16] 0.0, 128
    %10724 = vxpose.xlu0.b32.cont [6/16] 0.0, 128
    %10725 = vxpose.xlu0.b32.cont [7/16] 0.0, 128
    %10726 = vxpose.xlu0.b32.cont [8/16] 0.0, 128
    %10727 = vxpose.xlu0.b32.cont [9/16] 0.0, 128
    %10728 = vxpose.xlu0.b32.cont [10/16] 0.0, 128
    %10729 = vxpose.xlu0.b32.cont [11/16] 0.0, 128
    %10730 = vxpose.xlu0.b32.cont [12/16] 0.0, 128
    %10731 = vxpose.xlu0.b32.cont [13/16] 0.0, 128
    %10732 = vxpose.xlu0.b32.cont [14/16] 0.0, 128
    %10733 = vxpose.xlu0.b32.cont [15/16] 0.0, 128
    %10734 = vxpose.xlu0.b32.end [16/16] 0.0, 128
    %v10735 = vpop.trf.xlu0
    %v10736 = vpop.trf.xlu0
    %v10737 = vpop.trf.xlu0
    %v10738 = vpop.trf.xlu0
    %v10739 = vpop.trf.xlu0
    %v10740 = vpop.trf.xlu0
    %v10741 = vpop.trf.xlu0
    %v10742 = vpop.trf.xlu0
    %v10743 = vpop.trf.xlu0
    %v10744 = vpop.trf.xlu0
    %v10745 = vpop.trf.xlu0
    %v10746 = vpop.trf.xlu0
    %v10747 = vpop.trf.xlu0
    %v10748 = vpop.trf.xlu0
    %v10749 = vpop.trf.xlu0
    %v10750 = vpop.trf.xlu0
    %s10751 = scalar_lea.vmem %s9, 600
    %10752 = vst.msk [vmem:[%s10751] sm:$0xff] %vm5561, %v10607
    %10753 = vst.msk [vmem:[%s10751 + $0x8] sm:$0xff] %vm5561, %v10608
    %10754 = vst.msk [vmem:[%s10751 + $0x10] sm:$0xff] %vm5561, %v10609
    %10755 = vst.msk [vmem:[%s10751 + $0x18] sm:$0xff] %vm5561, %v10610
    %10756 = vst.msk [vmem:[%s10751 + $0x20] sm:$0xff] %vm5561, %v10611
    %10757 = vst.msk [vmem:[%s10751 + $0x28] sm:$0xff] %vm5561, %v10612
    %10758 = vst.msk [vmem:[%s10751 + $0x30] sm:$0xff] %vm5561, %v10613
    %10759 = vst.msk [vmem:[%s10751 + $0x38] sm:$0xff] %vm5561, %v10614
    %10760 = vst.msk [vmem:[%s10751 + $0x40] sm:$0xff] %vm5561, %v10615
    %10761 = vst.msk [vmem:[%s10751 + $0x48] sm:$0xff] %vm5561, %v10616
    %10762 = vst.msk [vmem:[%s10751 + $0x50] sm:$0xff] %vm5561, %v10617
    %10763 = vst.msk [vmem:[%s10751 + $0x58] sm:$0xff] %vm5561, %v10618
    %10764 = vst.msk [vmem:[%s10751 + $0x60] sm:$0xff] %vm5561, %v10619
    %10765 = vst.msk [vmem:[%s10751 + $0x68] sm:$0xff] %vm5561, %v10620
    %10766 = vst.msk [vmem:[%s10751 + $0x70] sm:$0xff] %vm5561, %v10621
    %10767 = vst.msk [vmem:[%s10751 + $0x78] sm:$0xff] %vm5561, %v10622
    %10768 = vst.msk [vmem:[%s10751 + $0x80] sm:$0xff] %vm5561, %v10639
    %10769 = vst.msk [vmem:[%s10751 + $0x88] sm:$0xff] %vm5561, %v10640
    %10770 = vst.msk [vmem:[%s10751 + $0x90] sm:$0xff] %vm5561, %v10641
    %10771 = vst.msk [vmem:[%s10751 + $0x98] sm:$0xff] %vm5561, %v10642
    %10772 = vst.msk [vmem:[%s10751 + $0xa0] sm:$0xff] %vm5561, %v10643
    %10773 = vst.msk [vmem:[%s10751 + $0xa8] sm:$0xff] %vm5561, %v10644
    %10774 = vst.msk [vmem:[%s10751 + $0xb0] sm:$0xff] %vm5561, %v10645
    %10775 = vst.msk [vmem:[%s10751 + $0xb8] sm:$0xff] %vm5561, %v10646
    %10776 = vst.msk [vmem:[%s10751 + $0xc0] sm:$0xff] %vm5561, %v10647
    %10777 = vst.msk [vmem:[%s10751 + $0xc8] sm:$0xff] %vm5561, %v10648
    %10778 = vst.msk [vmem:[%s10751 + $0xd0] sm:$0xff] %vm5561, %v10649
    %10779 = vst.msk [vmem:[%s10751 + $0xd8] sm:$0xff] %vm5561, %v10650
    %10780 = vst.msk [vmem:[%s10751 + $0xe0] sm:$0xff] %vm5561, %v10651
    %10781 = vst.msk [vmem:[%s10751 + $0xe8] sm:$0xff] %vm5561, %v10652
    %10782 = vst.msk [vmem:[%s10751 + $0xf0] sm:$0xff] %vm5561, %v10653
    %10783 = vst.msk [vmem:[%s10751 + $0xf8] sm:$0xff] %vm5561, %v10654
    %10784 = vst.msk [vmem:[%s10751 + $0x100] sm:$0xff] %vm5561, %v10671
    %10785 = vst.msk [vmem:[%s10751 + $0x108] sm:$0xff] %vm5561, %v10672
    %10786 = vst.msk [vmem:[%s10751 + $0x110] sm:$0xff] %vm5561, %v10673
    %10787 = vst.msk [vmem:[%s10751 + $0x118] sm:$0xff] %vm5561, %v10674
    %10788 = vst.msk [vmem:[%s10751 + $0x120] sm:$0xff] %vm5561, %v10675
    %10789 = vst.msk [vmem:[%s10751 + $0x128] sm:$0xff] %vm5561, %v10676
    %10790 = vst.msk [vmem:[%s10751 + $0x130] sm:$0xff] %vm5561, %v10677
    %10791 = vst.msk [vmem:[%s10751 + $0x138] sm:$0xff] %vm5561, %v10678
    %10792 = vst.msk [vmem:[%s10751 + $0x140] sm:$0xff] %vm5561, %v10679
    %10793 = vst.msk [vmem:[%s10751 + $0x148] sm:$0xff] %vm5561, %v10680
    %10794 = vst.msk [vmem:[%s10751 + $0x150] sm:$0xff] %vm5561, %v10681
    %10795 = vst.msk [vmem:[%s10751 + $0x158] sm:$0xff] %vm5561, %v10682
    %10796 = vst.msk [vmem:[%s10751 + $0x160] sm:$0xff] %vm5561, %v10683
    %10797 = vst.msk [vmem:[%s10751 + $0x168] sm:$0xff] %vm5561, %v10684
    %10798 = vst.msk [vmem:[%s10751 + $0x170] sm:$0xff] %vm5561, %v10685
    %10799 = vst.msk [vmem:[%s10751 + $0x178] sm:$0xff] %vm5561, %v10686
    %10800 = vst.msk [vmem:[%s10751 + $0x180] sm:$0xff] %vm5561, %v10703
    %10801 = vst.msk [vmem:[%s10751 + $0x188] sm:$0xff] %vm5561, %v10704
    %10802 = vst.msk [vmem:[%s10751 + $0x190] sm:$0xff] %vm5561, %v10705
    %10803 = vst.msk [vmem:[%s10751 + $0x198] sm:$0xff] %vm5561, %v10706
    %10804 = vst.msk [vmem:[%s10751 + $0x1a0] sm:$0xff] %vm5561, %v10707
    %10805 = vst.msk [vmem:[%s10751 + $0x1a8] sm:$0xff] %vm5561, %v10708
    %10806 = vst.msk [vmem:[%s10751 + $0x1b0] sm:$0xff] %vm5561, %v10709
    %10807 = vst.msk [vmem:[%s10751 + $0x1b8] sm:$0xff] %vm5561, %v10710
    %10808 = vst.msk [vmem:[%s10751 + $0x1c0] sm:$0xff] %vm5561, %v10711
    %10809 = vst.msk [vmem:[%s10751 + $0x1c8] sm:$0xff] %vm5561, %v10712
    %10810 = vst.msk [vmem:[%s10751 + $0x1d0] sm:$0xff] %vm5561, %v10713
    %10811 = vst.msk [vmem:[%s10751 + $0x1d8] sm:$0xff] %vm5561, %v10714
    %10812 = vst.msk [vmem:[%s10751 + $0x1e0] sm:$0xff] %vm5561, %v10715
    %10813 = vst.msk [vmem:[%s10751 + $0x1e8] sm:$0xff] %vm5561, %v10716
    %10814 = vst.msk [vmem:[%s10751 + $0x1f0] sm:$0xff] %vm5561, %v10717
    %10815 = vst.msk [vmem:[%s10751 + $0x1f8] sm:$0xff] %vm5561, %v10718
    %10816 = vst.msk [vmem:[%s10751 + $0x200] sm:$0xff] %vm5561, %v10735
    %10817 = vst.msk [vmem:[%s10751 + $0x208] sm:$0xff] %vm5561, %v10736
    %10818 = vst.msk [vmem:[%s10751 + $0x210] sm:$0xff] %vm5561, %v10737
    %10819 = vst.msk [vmem:[%s10751 + $0x218] sm:$0xff] %vm5561, %v10738
    %10820 = vst.msk [vmem:[%s10751 + $0x220] sm:$0xff] %vm5561, %v10739
    %10821 = vst.msk [vmem:[%s10751 + $0x228] sm:$0xff] %vm5561, %v10740
    %10822 = vst.msk [vmem:[%s10751 + $0x230] sm:$0xff] %vm5561, %v10741
    %10823 = vst.msk [vmem:[%s10751 + $0x238] sm:$0xff] %vm5561, %v10742
    %10824 = vst.msk [vmem:[%s10751 + $0x240] sm:$0xff] %vm5561, %v10743
    %10825 = vst.msk [vmem:[%s10751 + $0x248] sm:$0xff] %vm5561, %v10744
    %10826 = vst.msk [vmem:[%s10751 + $0x250] sm:$0xff] %vm5561, %v10745
    // Predicated region
    $region54: #{mha_forward.1} parent=1 // pred_check
      _
    $region55: #{mha_forward.1} parent=1 // pred_check_branch
      %10828 = sbr.rel (0) target = $region57
    $region56: #{mha_forward.1} parent=1 // pred_region
      _
    $region57: #{mha_forward.1} parent=1 // pred_fallthru
      _
    // Predicated region
    $region58: #{mha_forward.1} parent=1 // pred_check
      _
    $region59: #{mha_forward.1} parent=1 // pred_check_branch
      %10830 = sbr.rel (0) target = $region61
    $region60: #{mha_forward.1} parent=1 // pred_region
      _
    $region61: #{mha_forward.1} parent=1 // pred_fallthru
      _
    %10831 = vsyncpa [#allocation3], 1
    %10832 = vsyncpa [#allocation5], 1
    %10833 = vsyncpa [#allocation8], 1

</llo_original>
